<compile_context>
chip_gen: v6e
topology: v6e:2x2x1
jax: 0.10.0
libtpu: 0.0.40
codegen_flags: <defaults>
</compile_context>

<pallas_src>
import math
import functools

import numpy as np
import jax
import jax.numpy as jnp
from jax.experimental import pallas as pl
from jax.experimental.pallas import tpu as pltpu

BN_EPS = 1e-5
WIDTH_MULT = 0.25
NUM_CLASSES = 2
INPUT_SIZE = 32          # must be divisible by 32 (five stride-2 stages)
BATCH = 2


def make_divisible(x, divisible_by=8):
    return int(math.ceil(x * 1.0 / divisible_by) * divisible_by)


def _md(v):
    return make_divisible(v * WIDTH_MULT)


C32, C64, C128, C256, C512, C1024 = (_md(32), _md(64), _md(128),
                                     _md(256), _md(512), _md(1024))

# (inplanes, planes, stride) for bb_1 .. bb_13  -- static Python config.
BLOCK_CHANNELS = [
    (C32, C64, 1), (C64, C128, 2), (C128, C128, 1),
    (C128, C256, 2), (C256, C256, 1), (C256, C512, 2),
    (C512, C512, 1), (C512, C512, 1), (C512, C512, 1),
    (C512, C512, 1), (C512, C512, 1), (C512, C1024, 2),
    (C1024, C1024, 1),
]

# tap order matches weight row index t = (dh+1)*3 + (dw+1)
TAP_OFFSETS = [(dh, dw) for dh in (-1, 0, 1) for dw in (-1, 0, 1)]


def _build_static_cfg(input_size):
    assert input_size % 32 == 0
    hw = input_size // 2                      # spatial size after stem (s=2)
    dw_sizes = []
    for (_, _, s) in BLOCK_CHANNELS:
        dw_sizes.append(hw)
        if s == 2:
            hw //= 2
    mask_sizes = sorted(set(dw_sizes), reverse=True)
    mask_of = {s: i for i, s in enumerate(mask_sizes)}
    blocks, sel_sizes = [], []
    for i, ((cin, cout, s), size) in enumerate(zip(BLOCK_CHANNELS, dw_sizes)):
        sel = None
        if s == 2:
            sel = len(sel_sizes)
            sel_sizes.append(size)
        blocks.append(dict(i=i, cin=cin, cout=cout, stride=s, hw=size,
                           mask=mask_of[size], sel=sel))
    return dict(blocks=blocks, mask_sizes=mask_sizes, sel_sizes=sel_sizes,
                stem_hw=input_size // 2, final_hw=hw)


STATIC_CFG = _build_static_cfg(INPUT_SIZE)


# ----------------------------------------------------------------------------
# Host-built constant helpers (masks / stride-2 selection, per single sample)
# ----------------------------------------------------------------------------
def _dw_masks(hw):
    """(hw*hw, 9) validity mask for 3x3 depthwise conv, pad=1, one image."""
    m = np.zeros((hw * hw, 9), np.float32)
    for r in range(hw * hw):
        h, w = r // hw, r % hw
        for t, (dh, dw) in enumerate(TAP_OFFSETS):
            if 0 <= h + dh < hw and 0 <= w + dw < hw:
                m[r, t] = 1.0
    return m


def _stride2_select(hw):
    """(ho*wo, hw*hw) 0/1 row-selection matrix implementing out = x[::2, ::2]."""
    ho = hw // 2
    s = np.zeros((ho * ho, hw * hw), np.float32)
    for ro in range(ho * ho):
        oh, ow = ro // ho, ro % ho
        s[ro, (2 * oh) * hw + 2 * ow] = 1.0
    return s


# ----------------------------------------------------------------------------
# Parameters (mirrors the PyTorch init scheme; BN scale folded into weights)
# ----------------------------------------------------------------------------
def init_params(key):
    bn_scale = 1.0 / math.sqrt(1.0 + BN_EPS)   # fresh BN inference stats

    def normal(k, shape, std):
        return std * jax.random.normal(k, shape, jnp.float32)

    keys = jax.random.split(key, 2 + 2 * len(BLOCK_CHANNELS) + 2)
    ki = iter(keys)

    params = {}
    # stem: 3x3 conv, 3 -> C32, stride 2;  torch init std = sqrt(2 / (9*cout))
    stem = normal(next(ki), (3, 3, 3, C32), math.sqrt(2.0 / (9 * C32)))
    params["stem_w"] = (stem * bn_scale).reshape(9 * 3, C32)

    dw_ws, pw_ws = [], []
    for (cin, cout, _) in BLOCK_CHANNELS:
        dw = normal(next(ki), (9, cin), math.sqrt(2.0 / (9 * cin)))
        pw = normal(next(ki), (cin, cout), math.sqrt(2.0 / (1 * cout)))
        dw_ws.append(dw * bn_scale)
        pw_ws.append(pw * bn_scale)
    params["dw_w"] = dw_ws
    params["pw_w"] = pw_ws

    bound = 1.0 / math.sqrt(C1024)
    params["fc_w"] = jax.random.uniform(next(ki), (C1024, NUM_CLASSES),
                                        jnp.float32, -bound, bound)
    params["fc_b"] = jax.random.uniform(next(ki), (1, NUM_CLASSES),
                                        jnp.float32, -bound, bound)

    # constant tensors derived from static shapes
    params["masks"] = [jnp.asarray(_dw_masks(s)) for s in STATIC_CFG["mask_sizes"]]
    params["sels"] = [jnp.asarray(_stride2_select(s)) for s in STATIC_CFG["sel_sizes"]]
    return params


# ----------------------------------------------------------------------------
# Fused Pallas kernel (one grid step == one sample)
# ----------------------------------------------------------------------------
def _shift_rows(a, k):
    """y[r] = a[r + k] (static k), zero-filled where r + k is out of range."""
    rows, cols = a.shape
    if k == 0:
        return a
    if abs(k) >= rows:
        return jnp.zeros_like(a)
    if k > 0:
        pad = jnp.zeros((k, cols), a.dtype)
        return jnp.concatenate([a[k:, :], pad], axis=0)
    m = -k
    pad = jnp.zeros((m, cols), a.dtype)
    return jnp.concatenate([pad, a[:rows - m, :]], axis=0)


def _make_fused_kernel(cfg):
    n_blk = len(cfg["blocks"])
    n_mask = len(cfg["mask_sizes"])
    n_sel = len(cfg["sel_sizes"])

    def kernel(*refs):
        idx = 0
        patches_ref = refs[idx]; idx += 1
        stem_w_ref = refs[idx]; idx += 1
        dw_refs = refs[idx: idx + n_blk]; idx += n_blk
        pw_refs = refs[idx: idx + n_blk]; idx += n_blk
        mask_refs = refs[idx: idx + n_mask]; idx += n_mask
        sel_refs = refs[idx: idx + n_sel]; idx += n_sel
        fc_w_ref = refs[idx]; idx += 1
        fc_b_ref = refs[idx]; idx += 1
        out_ref = refs[idx]

        # stem 3x3/s2 conv (+ folded BN): one matmul over the im2col patches
        act = jnp.dot(patches_ref[...], stem_w_ref[...],
                      preferred_element_type=jnp.float32)     # (hw*hw, C32)

        for blk in cfg["blocks"]:
            hw = blk["hw"]
            dw_w = dw_refs[blk["i"]][...]                      # (9, Cin)
            mask = mask_refs[blk["mask"]][...]                 # (hw*hw, 9)

            # depthwise 3x3, pad=1 (stride-1 taps; zero padding via masks)
            acc = jnp.zeros_like(act)
            for t, (dh, dwo) in enumerate(TAP_OFFSETS):
                shifted = _shift_rows(act, dh * hw + dwo)
                acc = acc + (shifted * mask[:, t:t + 1]) * dw_w[t:t + 1, :]

            # stride-2: select the even spatial positions with a 0/1 matmul
            if blk["stride"] == 2:
                acc = jnp.dot(sel_refs[blk["sel"]][...], acc,
                              preferred_element_type=jnp.float32)

            # pointwise 1x1 conv (+ folded BN)
            act = jnp.dot(acc, pw_refs[blk["i"]][...],
                          preferred_element_type=jnp.float32)

        # AvgPool2d(input_size / 32) over the full map == global spatial mean
        feat = jnp.mean(act, axis=0, keepdims=True)            # (1, C1024)
        logits = jnp.dot(feat, fc_w_ref[...],
                         preferred_element_type=jnp.float32) + fc_b_ref[...]
        out_ref[0] = logits

    return kernel


# ----------------------------------------------------------------------------
# Forward pass
# ----------------------------------------------------------------------------
def tinyml_mobilenetv1_forward(params, x_nchw, temp=1.0, is_hard=False):
    # TODO(synk): temp / is_hard only drive the NAS gumbel path; unused here.
    w_complexity = jnp.float32(0.0)

    n = x_nchw.shape[0]
    hs = INPUT_SIZE // 2
    x = jnp.transpose(x_nchw, (0, 2, 3, 1))                    # NHWC

    # host-side im2col for the stem (tiny, one time):  (N*hs*hs, 27)
    xpad = jnp.pad(x, ((0, 0), (1, 1), (1, 1), (0, 0)))
    cols = [xpad[:, di:di + 2 * hs:2, dj:dj + 2 * hs:2, :]
            for di in range(3) for dj in range(3)]
    patches = jnp.concatenate(cols, axis=-1).reshape(n * hs * hs, 9 * 3)

    inputs = [patches, params["stem_w"], *params["dw_w"], *params["pw_w"],
              *params["masks"], *params["sels"], params["fc_w"], params["fc_b"]]

    def full_spec(a):
        nd = a.ndim
        return pl.BlockSpec(a.shape, lambda i, _nd=nd: (0,) * _nd)

    in_specs = [pl.BlockSpec((hs * hs, 9 * 3), lambda i: (i, 0))]
    in_specs += [full_spec(a) for a in inputs[1:]]

    out_shape = jax.ShapeDtypeStruct((n, 1, NUM_CLASSES), jnp.float32)
    out_spec = pl.BlockSpec((1, 1, NUM_CLASSES), lambda i: (i, 0, 0))

    logits = pl.pallas_call(
        _make_fused_kernel(STATIC_CFG),
        grid=(n,),
        in_specs=in_specs,
        out_specs=out_spec,
        out_shape=out_shape,
        compiler_params=pltpu.CompilerParams(
            dimension_semantics=("parallel",)),   # 2x on v7x (2 TCs)
    )(*inputs)

    return logits.reshape(n, NUM_CLASSES), w_complexity


run = jax.jit(tinyml_mobilenetv1_forward)


# ----------------------------------------------------------------------------
# Pure-XLA reference (same folded weights) for a correctness sanity check
# ----------------------------------------------------------------------------
def reference_forward(params, x_nchw):
    dn = ("NHWC", "HWIO", "NHWC")
    hi = jax.lax.Precision.HIGHEST
    x = jnp.transpose(x_nchw, (0, 2, 3, 1))
    w = params["stem_w"].reshape(3, 3, 3, C32)
    out = jax.lax.conv_general_dilated(x, w, (2, 2), ((1, 1), (1, 1)),
                                       dimension_numbers=dn, precision=hi)
    for i, (cin, cout, stride) in enumerate(BLOCK_CHANNELS):
        dw_k = params["dw_w"][i].reshape(3, 3, 1, cin)
        out = jax.lax.conv_general_dilated(out, dw_k, (stride, stride),
                                           ((1, 1), (1, 1)),
                                           dimension_numbers=dn,
                                           feature_group_count=cin,
                                           precision=hi)
        pw_k = params["pw_w"][i].reshape(1, 1, cin, cout)
        out = jax.lax.conv_general_dilated(out, pw_k, (1, 1), ((0, 0), (0, 0)),
                                           dimension_numbers=dn, precision=hi)
    feat = jnp.mean(out, axis=(1, 2))
    return feat @ params["fc_w"] + params["fc_b"]


if __name__ == "__main__":
    key = jax.random.PRNGKey(0)
    kp, kx = jax.random.split(key)

    params = init_params(kp)
    x = jax.random.normal(kx, (BATCH, 3, INPUT_SIZE, INPUT_SIZE), jnp.float32)

    logits, w_comp = run(params, x)
    logits = jax.block_until_ready(logits)

    assert logits.shape == (BATCH, NUM_CLASSES), logits.shape
    assert bool(jnp.all(jnp.isfinite(logits)))

    ref = reference_forward(params, x)
    max_diff = float(jnp.max(jnp.abs(logits - ref)))
    assert max_diff < 5e-2, f"mismatch vs XLA reference: {max_diff}"

    print("KERNEL_OK")
</pallas_src>

<mosaic_0001>
module attributes {stable_mosaic.version = 11 : i64} {
  func.func @kernel(%arg0: i32, %arg1: memref<256x27xf32, #tpu.memory_space<vmem>>, %arg2: memref<27x8xf32, #tpu.memory_space<vmem>>, %arg3: memref<9x8xf32, #tpu.memory_space<vmem>>, %arg4: memref<9x16xf32, #tpu.memory_space<vmem>>, %arg5: memref<9x32xf32, #tpu.memory_space<vmem>>, %arg6: memref<9x32xf32, #tpu.memory_space<vmem>>, %arg7: memref<9x64xf32, #tpu.memory_space<vmem>>, %arg8: memref<9x64xf32, #tpu.memory_space<vmem>>, %arg9: memref<9x128xf32, #tpu.memory_space<vmem>>, %arg10: memref<9x128xf32, #tpu.memory_space<vmem>>, %arg11: memref<9x128xf32, #tpu.memory_space<vmem>>, %arg12: memref<9x128xf32, #tpu.memory_space<vmem>>, %arg13: memref<9x128xf32, #tpu.memory_space<vmem>>, %arg14: memref<9x128xf32, #tpu.memory_space<vmem>>, %arg15: memref<9x256xf32, #tpu.memory_space<vmem>>, %arg16: memref<8x16xf32, #tpu.memory_space<vmem>>, %arg17: memref<16x32xf32, #tpu.memory_space<vmem>>, %arg18: memref<32x32xf32, #tpu.memory_space<vmem>>, %arg19: memref<32x64xf32, #tpu.memory_space<vmem>>, %arg20: memref<64x64xf32, #tpu.memory_space<vmem>>, %arg21: memref<64x128xf32, #tpu.memory_space<vmem>>, %arg22: memref<128x128xf32, #tpu.memory_space<vmem>>, %arg23: memref<128x128xf32, #tpu.memory_space<vmem>>, %arg24: memref<128x128xf32, #tpu.memory_space<vmem>>, %arg25: memref<128x128xf32, #tpu.memory_space<vmem>>, %arg26: memref<128x128xf32, #tpu.memory_space<vmem>>, %arg27: memref<128x256xf32, #tpu.memory_space<vmem>>, %arg28: memref<256x256xf32, #tpu.memory_space<vmem>>, %arg29: memref<256x9xf32, #tpu.memory_space<vmem>>, %arg30: memref<64x9xf32, #tpu.memory_space<vmem>>, %arg31: memref<16x9xf32, #tpu.memory_space<vmem>>, %arg32: memref<4x9xf32, #tpu.memory_space<vmem>>, %arg33: memref<1x9xf32, #tpu.memory_space<vmem>>, %arg34: memref<64x256xf32, #tpu.memory_space<vmem>>, %arg35: memref<16x64xf32, #tpu.memory_space<vmem>>, %arg36: memref<4x16xf32, #tpu.memory_space<vmem>>, %arg37: memref<1x4xf32, #tpu.memory_space<vmem>>, %arg38: memref<256x2xf32, #tpu.memory_space<vmem>>, %arg39: memref<1x2xf32, #tpu.memory_space<vmem>>, %arg40: memref<1x1x2xf32, #tpu.memory_space<vmem>>) attributes {dimension_semantics = [#tpu.dimension_semantics<parallel>], iteration_bounds = array<i64: 2>, scalar_prefetch = 0 : i64, scratch_operands = 0 : i64, tpu.core_type = #tpu.core_type<tc>, window_params = [{transform_indices = @transform_0, window_bounds = array<i64: 256, 27>}, {pipeline_mode = #tpu.pipeline_mode<synchronous>, transform_indices = @transform_1, window_bounds = array<i64: 27, 8>}, {pipeline_mode = #tpu.pipeline_mode<synchronous>, transform_indices = @transform_2, window_bounds = array<i64: 9, 8>}, {pipeline_mode = #tpu.pipeline_mode<synchronous>, transform_indices = @transform_3, window_bounds = array<i64: 9, 16>}, {pipeline_mode = #tpu.pipeline_mode<synchronous>, transform_indices = @transform_4, window_bounds = array<i64: 9, 32>}, {pipeline_mode = #tpu.pipeline_mode<synchronous>, transform_indices = @transform_5, window_bounds = array<i64: 9, 32>}, {pipeline_mode = #tpu.pipeline_mode<synchronous>, transform_indices = @transform_6, window_bounds = array<i64: 9, 64>}, {pipeline_mode = #tpu.pipeline_mode<synchronous>, transform_indices = @transform_7, window_bounds = array<i64: 9, 64>}, {pipeline_mode = #tpu.pipeline_mode<synchronous>, transform_indices = @transform_8, window_bounds = array<i64: 9, 128>}, {pipeline_mode = #tpu.pipeline_mode<synchronous>, transform_indices = @transform_9, window_bounds = array<i64: 9, 128>}, {pipeline_mode = #tpu.pipeline_mode<synchronous>, transform_indices = @transform_10, window_bounds = array<i64: 9, 128>}, {pipeline_mode = #tpu.pipeline_mode<synchronous>, transform_indices = @transform_11, window_bounds = array<i64: 9, 128>}, {pipeline_mode = #tpu.pipeline_mode<synchronous>, transform_indices = @transform_12, window_bounds = array<i64: 9, 128>}, {pipeline_mode = #tpu.pipeline_mode<synchronous>, transform_indices = @transform_13, window_bounds = array<i64: 9, 128>}, {pipeline_mode = #tpu.pipeline_mode<synchronous>, transform_indices = @transform_14, window_bounds = array<i64: 9, 256>}, {pipeline_mode = #tpu.pipeline_mode<synchronous>, transform_indices = @transform_15, window_bounds = array<i64: 8, 16>}, {pipeline_mode = #tpu.pipeline_mode<synchronous>, transform_indices = @transform_16, window_bounds = array<i64: 16, 32>}, {pipeline_mode = #tpu.pipeline_mode<synchronous>, transform_indices = @transform_17, window_bounds = array<i64: 32, 32>}, {pipeline_mode = #tpu.pipeline_mode<synchronous>, transform_indices = @transform_18, window_bounds = array<i64: 32, 64>}, {pipeline_mode = #tpu.pipeline_mode<synchronous>, transform_indices = @transform_19, window_bounds = array<i64: 64, 64>}, {pipeline_mode = #tpu.pipeline_mode<synchronous>, transform_indices = @transform_20, window_bounds = array<i64: 64, 128>}, {pipeline_mode = #tpu.pipeline_mode<synchronous>, transform_indices = @transform_21, window_bounds = array<i64: 128, 128>}, {pipeline_mode = #tpu.pipeline_mode<synchronous>, transform_indices = @transform_22, window_bounds = array<i64: 128, 128>}, {pipeline_mode = #tpu.pipeline_mode<synchronous>, transform_indices = @transform_23, window_bounds = array<i64: 128, 128>}, {pipeline_mode = #tpu.pipeline_mode<synchronous>, transform_indices = @transform_24, window_bounds = array<i64: 128, 128>}, {pipeline_mode = #tpu.pipeline_mode<synchronous>, transform_indices = @transform_25, window_bounds = array<i64: 128, 128>}, {pipeline_mode = #tpu.pipeline_mode<synchronous>, transform_indices = @transform_26, window_bounds = array<i64: 128, 256>}, {pipeline_mode = #tpu.pipeline_mode<synchronous>, transform_indices = @transform_27, window_bounds = array<i64: 256, 256>}, {pipeline_mode = #tpu.pipeline_mode<synchronous>, transform_indices = @transform_28, window_bounds = array<i64: 256, 9>}, {pipeline_mode = #tpu.pipeline_mode<synchronous>, transform_indices = @transform_29, window_bounds = array<i64: 64, 9>}, {pipeline_mode = #tpu.pipeline_mode<synchronous>, transform_indices = @transform_30, window_bounds = array<i64: 16, 9>}, {pipeline_mode = #tpu.pipeline_mode<synchronous>, transform_indices = @transform_31, window_bounds = array<i64: 4, 9>}, {pipeline_mode = #tpu.pipeline_mode<synchronous>, transform_indices = @transform_32, window_bounds = array<i64: 1, 9>}, {pipeline_mode = #tpu.pipeline_mode<synchronous>, transform_indices = @transform_33, window_bounds = array<i64: 64, 256>}, {pipeline_mode = #tpu.pipeline_mode<synchronous>, transform_indices = @transform_34, window_bounds = array<i64: 16, 64>}, {pipeline_mode = #tpu.pipeline_mode<synchronous>, transform_indices = @transform_35, window_bounds = array<i64: 4, 16>}, {pipeline_mode = #tpu.pipeline_mode<synchronous>, transform_indices = @transform_36, window_bounds = array<i64: 1, 4>}, {pipeline_mode = #tpu.pipeline_mode<synchronous>, transform_indices = @transform_37, window_bounds = array<i64: 256, 2>}, {pipeline_mode = #tpu.pipeline_mode<synchronous>, transform_indices = @transform_38, window_bounds = array<i64: 1, 2>}, {transform_indices = @transform_39, window_bounds = array<i64: 1, 1, 2>}]} {
    %c0 = arith.constant 0 : index
    %c0_0 = arith.constant 0 : index
    %0 = vector.load %arg1[%c0, %c0_0] : memref<256x27xf32, #tpu.memory_space<vmem>>, vector<256x27xf32>
    %c0_1 = arith.constant 0 : index
    %c0_2 = arith.constant 0 : index
    %1 = vector.load %arg2[%c0_1, %c0_2] : memref<27x8xf32, #tpu.memory_space<vmem>>, vector<27x8xf32>
    %cst = arith.constant dense<0.000000e+00> : vector<256x8xf32>
    %2 = tpu.matmul %0, %1, %cst {dimension_numbers = #tpu.dot_dimension_numbers<[1], [0], [0], [1], [0, 0, 1, 1], [], []>} : vector<256x27xf32>, vector<27x8xf32>, vector<256x8xf32> -> vector<256x8xf32>
    %c0_3 = arith.constant 0 : index
    %c0_4 = arith.constant 0 : index
    %3 = vector.load %arg3[%c0_3, %c0_4] : memref<9x8xf32, #tpu.memory_space<vmem>>, vector<9x8xf32>
    %c0_5 = arith.constant 0 : index
    %c0_6 = arith.constant 0 : index
    %4 = vector.load %arg29[%c0_5, %c0_6] : memref<256x9xf32, #tpu.memory_space<vmem>>, vector<256x9xf32>
    %cst_7 = arith.constant 0.000000e+00 : f32
    %5 = vector.broadcast %cst_7 : f32 to vector<256x8xf32>
    %cst_8 = arith.constant 0.000000e+00 : f32
    %6 = vector.broadcast %cst_8 : f32 to vector<17x8xf32>
    %7 = vector.extract_strided_slice %2 {offsets = [0, 0], sizes = [239, 8], strides = [1, 1]} : vector<256x8xf32> to vector<239x8xf32>
    %8 = tpu.concatenate %6, %7 in 0 : vector<17x8xf32>, vector<239x8xf32> -> vector<256x8xf32>
    %9 = vector.extract_strided_slice %4 {offsets = [0, 0], sizes = [256, 1], strides = [1, 1]} : vector<256x9xf32> to vector<256x1xf32>
    %10 = vector.broadcast %9 : vector<256x1xf32> to vector<256x8xf32>
    %11 = arith.mulf %8, %10 : vector<256x8xf32>
    %12 = vector.extract_strided_slice %3 {offsets = [0, 0], sizes = [1, 8], strides = [1, 1]} : vector<9x8xf32> to vector<1x8xf32>
    %13 = vector.broadcast %12 : vector<1x8xf32> to vector<256x8xf32>
    %14 = arith.mulf %11, %13 : vector<256x8xf32>
    %15 = arith.addf %5, %14 : vector<256x8xf32>
    %cst_9 = arith.constant 0.000000e+00 : f32
    %16 = vector.broadcast %cst_9 : f32 to vector<16x8xf32>
    %17 = vector.extract_strided_slice %2 {offsets = [0, 0], sizes = [240, 8], strides = [1, 1]} : vector<256x8xf32> to vector<240x8xf32>
    %18 = tpu.concatenate %16, %17 in 0 : vector<16x8xf32>, vector<240x8xf32> -> vector<256x8xf32>
    %19 = vector.extract_strided_slice %4 {offsets = [0, 1], sizes = [256, 1], strides = [1, 1]} : vector<256x9xf32> to vector<256x1xf32>
    %20 = vector.broadcast %19 : vector<256x1xf32> to vector<256x8xf32>
    %21 = arith.mulf %18, %20 : vector<256x8xf32>
    %22 = vector.extract_strided_slice %3 {offsets = [1, 0], sizes = [1, 8], strides = [1, 1]} : vector<9x8xf32> to vector<1x8xf32>
    %23 = vector.broadcast %22 : vector<1x8xf32> to vector<256x8xf32>
    %24 = arith.mulf %21, %23 : vector<256x8xf32>
    %25 = arith.addf %15, %24 : vector<256x8xf32>
    %cst_10 = arith.constant 0.000000e+00 : f32
    %26 = vector.broadcast %cst_10 : f32 to vector<15x8xf32>
    %27 = vector.extract_strided_slice %2 {offsets = [0, 0], sizes = [241, 8], strides = [1, 1]} : vector<256x8xf32> to vector<241x8xf32>
    %28 = tpu.concatenate %26, %27 in 0 : vector<15x8xf32>, vector<241x8xf32> -> vector<256x8xf32>
    %29 = vector.extract_strided_slice %4 {offsets = [0, 2], sizes = [256, 1], strides = [1, 1]} : vector<256x9xf32> to vector<256x1xf32>
    %30 = vector.broadcast %29 : vector<256x1xf32> to vector<256x8xf32>
    %31 = arith.mulf %28, %30 : vector<256x8xf32>
    %32 = vector.extract_strided_slice %3 {offsets = [2, 0], sizes = [1, 8], strides = [1, 1]} : vector<9x8xf32> to vector<1x8xf32>
    %33 = vector.broadcast %32 : vector<1x8xf32> to vector<256x8xf32>
    %34 = arith.mulf %31, %33 : vector<256x8xf32>
    %35 = arith.addf %25, %34 : vector<256x8xf32>
    %cst_11 = arith.constant 0.000000e+00 : f32
    %36 = vector.broadcast %cst_11 : f32 to vector<1x8xf32>
    %37 = vector.extract_strided_slice %2 {offsets = [0, 0], sizes = [255, 8], strides = [1, 1]} : vector<256x8xf32> to vector<255x8xf32>
    %38 = tpu.concatenate %36, %37 in 0 : vector<1x8xf32>, vector<255x8xf32> -> vector<256x8xf32>
    %39 = vector.extract_strided_slice %4 {offsets = [0, 3], sizes = [256, 1], strides = [1, 1]} : vector<256x9xf32> to vector<256x1xf32>
    %40 = vector.broadcast %39 : vector<256x1xf32> to vector<256x8xf32>
    %41 = arith.mulf %38, %40 : vector<256x8xf32>
    %42 = vector.extract_strided_slice %3 {offsets = [3, 0], sizes = [1, 8], strides = [1, 1]} : vector<9x8xf32> to vector<1x8xf32>
    %43 = vector.broadcast %42 : vector<1x8xf32> to vector<256x8xf32>
    %44 = arith.mulf %41, %43 : vector<256x8xf32>
    %45 = arith.addf %35, %44 : vector<256x8xf32>
    %46 = vector.extract_strided_slice %4 {offsets = [0, 4], sizes = [256, 1], strides = [1, 1]} : vector<256x9xf32> to vector<256x1xf32>
    %47 = vector.broadcast %46 : vector<256x1xf32> to vector<256x8xf32>
    %48 = arith.mulf %2, %47 : vector<256x8xf32>
    %49 = vector.extract_strided_slice %3 {offsets = [4, 0], sizes = [1, 8], strides = [1, 1]} : vector<9x8xf32> to vector<1x8xf32>
    %50 = vector.broadcast %49 : vector<1x8xf32> to vector<256x8xf32>
    %51 = arith.mulf %48, %50 : vector<256x8xf32>
    %52 = arith.addf %45, %51 : vector<256x8xf32>
    %cst_12 = arith.constant 0.000000e+00 : f32
    %53 = vector.broadcast %cst_12 : f32 to vector<1x8xf32>
    %54 = vector.extract_strided_slice %2 {offsets = [1, 0], sizes = [255, 8], strides = [1, 1]} : vector<256x8xf32> to vector<255x8xf32>
    %55 = tpu.concatenate %54, %53 in 0 : vector<255x8xf32>, vector<1x8xf32> -> vector<256x8xf32>
    %56 = vector.extract_strided_slice %4 {offsets = [0, 5], sizes = [256, 1], strides = [1, 1]} : vector<256x9xf32> to vector<256x1xf32>
    %57 = vector.broadcast %56 : vector<256x1xf32> to vector<256x8xf32>
    %58 = arith.mulf %55, %57 : vector<256x8xf32>
    %59 = vector.extract_strided_slice %3 {offsets = [5, 0], sizes = [1, 8], strides = [1, 1]} : vector<9x8xf32> to vector<1x8xf32>
    %60 = vector.broadcast %59 : vector<1x8xf32> to vector<256x8xf32>
    %61 = arith.mulf %58, %60 : vector<256x8xf32>
    %62 = arith.addf %52, %61 : vector<256x8xf32>
    %cst_13 = arith.constant 0.000000e+00 : f32
    %63 = vector.broadcast %cst_13 : f32 to vector<15x8xf32>
    %64 = vector.extract_strided_slice %2 {offsets = [15, 0], sizes = [241, 8], strides = [1, 1]} : vector<256x8xf32> to vector<241x8xf32>
    %65 = tpu.concatenate %64, %63 in 0 : vector<241x8xf32>, vector<15x8xf32> -> vector<256x8xf32>
    %66 = vector.extract_strided_slice %4 {offsets = [0, 6], sizes = [256, 1], strides = [1, 1]} : vector<256x9xf32> to vector<256x1xf32>
    %67 = vector.broadcast %66 : vector<256x1xf32> to vector<256x8xf32>
    %68 = arith.mulf %65, %67 : vector<256x8xf32>
    %69 = vector.extract_strided_slice %3 {offsets = [6, 0], sizes = [1, 8], strides = [1, 1]} : vector<9x8xf32> to vector<1x8xf32>
    %70 = vector.broadcast %69 : vector<1x8xf32> to vector<256x8xf32>
    %71 = arith.mulf %68, %70 : vector<256x8xf32>
    %72 = arith.addf %62, %71 : vector<256x8xf32>
    %cst_14 = arith.constant 0.000000e+00 : f32
    %73 = vector.broadcast %cst_14 : f32 to vector<16x8xf32>
    %74 = vector.extract_strided_slice %2 {offsets = [16, 0], sizes = [240, 8], strides = [1, 1]} : vector<256x8xf32> to vector<240x8xf32>
    %75 = tpu.concatenate %74, %73 in 0 : vector<240x8xf32>, vector<16x8xf32> -> vector<256x8xf32>
    %76 = vector.extract_strided_slice %4 {offsets = [0, 7], sizes = [256, 1], strides = [1, 1]} : vector<256x9xf32> to vector<256x1xf32>
    %77 = vector.broadcast %76 : vector<256x1xf32> to vector<256x8xf32>
    %78 = arith.mulf %75, %77 : vector<256x8xf32>
    %79 = vector.extract_strided_slice %3 {offsets = [7, 0], sizes = [1, 8], strides = [1, 1]} : vector<9x8xf32> to vector<1x8xf32>
    %80 = vector.broadcast %79 : vector<1x8xf32> to vector<256x8xf32>
    %81 = arith.mulf %78, %80 : vector<256x8xf32>
    %82 = arith.addf %72, %81 : vector<256x8xf32>
    %cst_15 = arith.constant 0.000000e+00 : f32
    %83 = vector.broadcast %cst_15 : f32 to vector<17x8xf32>
    %84 = vector.extract_strided_slice %2 {offsets = [17, 0], sizes = [239, 8], strides = [1, 1]} : vector<256x8xf32> to vector<239x8xf32>
    %85 = tpu.concatenate %84, %83 in 0 : vector<239x8xf32>, vector<17x8xf32> -> vector<256x8xf32>
    %86 = vector.extract_strided_slice %4 {offsets = [0, 8], sizes = [256, 1], strides = [1, 1]} : vector<256x9xf32> to vector<256x1xf32>
    %87 = vector.broadcast %86 : vector<256x1xf32> to vector<256x8xf32>
    %88 = arith.mulf %85, %87 : vector<256x8xf32>
    %89 = vector.extract_strided_slice %3 {offsets = [8, 0], sizes = [1, 8], strides = [1, 1]} : vector<9x8xf32> to vector<1x8xf32>
    %90 = vector.broadcast %89 : vector<1x8xf32> to vector<256x8xf32>
    %91 = arith.mulf %88, %90 : vector<256x8xf32>
    %92 = arith.addf %82, %91 : vector<256x8xf32>
    %c0_16 = arith.constant 0 : index
    %c0_17 = arith.constant 0 : index
    %93 = vector.load %arg16[%c0_16, %c0_17] : memref<8x16xf32, #tpu.memory_space<vmem>>, vector<8x16xf32>
    %cst_18 = arith.constant dense<0.000000e+00> : vector<256x16xf32>
    %94 = tpu.matmul %92, %93, %cst_18 {dimension_numbers = #tpu.dot_dimension_numbers<[1], [0], [0], [1], [0, 0, 1, 1], [], []>} : vector<256x8xf32>, vector<8x16xf32>, vector<256x16xf32> -> vector<256x16xf32>
    %c0_19 = arith.constant 0 : index
    %c0_20 = arith.constant 0 : index
    %95 = vector.load %arg4[%c0_19, %c0_20] : memref<9x16xf32, #tpu.memory_space<vmem>>, vector<9x16xf32>
    %c0_21 = arith.constant 0 : index
    %c0_22 = arith.constant 0 : index
    %96 = vector.load %arg29[%c0_21, %c0_22] : memref<256x9xf32, #tpu.memory_space<vmem>>, vector<256x9xf32>
    %cst_23 = arith.constant 0.000000e+00 : f32
    %97 = vector.broadcast %cst_23 : f32 to vector<256x16xf32>
    %cst_24 = arith.constant 0.000000e+00 : f32
    %98 = vector.broadcast %cst_24 : f32 to vector<17x16xf32>
    %99 = vector.extract_strided_slice %94 {offsets = [0, 0], sizes = [239, 16], strides = [1, 1]} : vector<256x16xf32> to vector<239x16xf32>
    %100 = tpu.concatenate %98, %99 in 0 : vector<17x16xf32>, vector<239x16xf32> -> vector<256x16xf32>
    %101 = vector.extract_strided_slice %96 {offsets = [0, 0], sizes = [256, 1], strides = [1, 1]} : vector<256x9xf32> to vector<256x1xf32>
    %102 = vector.broadcast %101 : vector<256x1xf32> to vector<256x16xf32>
    %103 = arith.mulf %100, %102 : vector<256x16xf32>
    %104 = vector.extract_strided_slice %95 {offsets = [0, 0], sizes = [1, 16], strides = [1, 1]} : vector<9x16xf32> to vector<1x16xf32>
    %105 = vector.broadcast %104 : vector<1x16xf32> to vector<256x16xf32>
    %106 = arith.mulf %103, %105 : vector<256x16xf32>
    %107 = arith.addf %97, %106 : vector<256x16xf32>
    %cst_25 = arith.constant 0.000000e+00 : f32
    %108 = vector.broadcast %cst_25 : f32 to vector<16x16xf32>
    %109 = vector.extract_strided_slice %94 {offsets = [0, 0], sizes = [240, 16], strides = [1, 1]} : vector<256x16xf32> to vector<240x16xf32>
    %110 = tpu.concatenate %108, %109 in 0 : vector<16x16xf32>, vector<240x16xf32> -> vector<256x16xf32>
    %111 = vector.extract_strided_slice %96 {offsets = [0, 1], sizes = [256, 1], strides = [1, 1]} : vector<256x9xf32> to vector<256x1xf32>
    %112 = vector.broadcast %111 : vector<256x1xf32> to vector<256x16xf32>
    %113 = arith.mulf %110, %112 : vector<256x16xf32>
    %114 = vector.extract_strided_slice %95 {offsets = [1, 0], sizes = [1, 16], strides = [1, 1]} : vector<9x16xf32> to vector<1x16xf32>
    %115 = vector.broadcast %114 : vector<1x16xf32> to vector<256x16xf32>
    %116 = arith.mulf %113, %115 : vector<256x16xf32>
    %117 = arith.addf %107, %116 : vector<256x16xf32>
    %cst_26 = arith.constant 0.000000e+00 : f32
    %118 = vector.broadcast %cst_26 : f32 to vector<15x16xf32>
    %119 = vector.extract_strided_slice %94 {offsets = [0, 0], sizes = [241, 16], strides = [1, 1]} : vector<256x16xf32> to vector<241x16xf32>
    %120 = tpu.concatenate %118, %119 in 0 : vector<15x16xf32>, vector<241x16xf32> -> vector<256x16xf32>
    %121 = vector.extract_strided_slice %96 {offsets = [0, 2], sizes = [256, 1], strides = [1, 1]} : vector<256x9xf32> to vector<256x1xf32>
    %122 = vector.broadcast %121 : vector<256x1xf32> to vector<256x16xf32>
    %123 = arith.mulf %120, %122 : vector<256x16xf32>
    %124 = vector.extract_strided_slice %95 {offsets = [2, 0], sizes = [1, 16], strides = [1, 1]} : vector<9x16xf32> to vector<1x16xf32>
    %125 = vector.broadcast %124 : vector<1x16xf32> to vector<256x16xf32>
    %126 = arith.mulf %123, %125 : vector<256x16xf32>
    %127 = arith.addf %117, %126 : vector<256x16xf32>
    %cst_27 = arith.constant 0.000000e+00 : f32
    %128 = vector.broadcast %cst_27 : f32 to vector<1x16xf32>
    %129 = vector.extract_strided_slice %94 {offsets = [0, 0], sizes = [255, 16], strides = [1, 1]} : vector<256x16xf32> to vector<255x16xf32>
    %130 = tpu.concatenate %128, %129 in 0 : vector<1x16xf32>, vector<255x16xf32> -> vector<256x16xf32>
    %131 = vector.extract_strided_slice %96 {offsets = [0, 3], sizes = [256, 1], strides = [1, 1]} : vector<256x9xf32> to vector<256x1xf32>
    %132 = vector.broadcast %131 : vector<256x1xf32> to vector<256x16xf32>
    %133 = arith.mulf %130, %132 : vector<256x16xf32>
    %134 = vector.extract_strided_slice %95 {offsets = [3, 0], sizes = [1, 16], strides = [1, 1]} : vector<9x16xf32> to vector<1x16xf32>
    %135 = vector.broadcast %134 : vector<1x16xf32> to vector<256x16xf32>
    %136 = arith.mulf %133, %135 : vector<256x16xf32>
    %137 = arith.addf %127, %136 : vector<256x16xf32>
    %138 = vector.extract_strided_slice %96 {offsets = [0, 4], sizes = [256, 1], strides = [1, 1]} : vector<256x9xf32> to vector<256x1xf32>
    %139 = vector.broadcast %138 : vector<256x1xf32> to vector<256x16xf32>
    %140 = arith.mulf %94, %139 : vector<256x16xf32>
    %141 = vector.extract_strided_slice %95 {offsets = [4, 0], sizes = [1, 16], strides = [1, 1]} : vector<9x16xf32> to vector<1x16xf32>
    %142 = vector.broadcast %141 : vector<1x16xf32> to vector<256x16xf32>
    %143 = arith.mulf %140, %142 : vector<256x16xf32>
    %144 = arith.addf %137, %143 : vector<256x16xf32>
    %cst_28 = arith.constant 0.000000e+00 : f32
    %145 = vector.broadcast %cst_28 : f32 to vector<1x16xf32>
    %146 = vector.extract_strided_slice %94 {offsets = [1, 0], sizes = [255, 16], strides = [1, 1]} : vector<256x16xf32> to vector<255x16xf32>
    %147 = tpu.concatenate %146, %145 in 0 : vector<255x16xf32>, vector<1x16xf32> -> vector<256x16xf32>
    %148 = vector.extract_strided_slice %96 {offsets = [0, 5], sizes = [256, 1], strides = [1, 1]} : vector<256x9xf32> to vector<256x1xf32>
    %149 = vector.broadcast %148 : vector<256x1xf32> to vector<256x16xf32>
    %150 = arith.mulf %147, %149 : vector<256x16xf32>
    %151 = vector.extract_strided_slice %95 {offsets = [5, 0], sizes = [1, 16], strides = [1, 1]} : vector<9x16xf32> to vector<1x16xf32>
    %152 = vector.broadcast %151 : vector<1x16xf32> to vector<256x16xf32>
    %153 = arith.mulf %150, %152 : vector<256x16xf32>
    %154 = arith.addf %144, %153 : vector<256x16xf32>
    %cst_29 = arith.constant 0.000000e+00 : f32
    %155 = vector.broadcast %cst_29 : f32 to vector<15x16xf32>
    %156 = vector.extract_strided_slice %94 {offsets = [15, 0], sizes = [241, 16], strides = [1, 1]} : vector<256x16xf32> to vector<241x16xf32>
    %157 = tpu.concatenate %156, %155 in 0 : vector<241x16xf32>, vector<15x16xf32> -> vector<256x16xf32>
    %158 = vector.extract_strided_slice %96 {offsets = [0, 6], sizes = [256, 1], strides = [1, 1]} : vector<256x9xf32> to vector<256x1xf32>
    %159 = vector.broadcast %158 : vector<256x1xf32> to vector<256x16xf32>
    %160 = arith.mulf %157, %159 : vector<256x16xf32>
    %161 = vector.extract_strided_slice %95 {offsets = [6, 0], sizes = [1, 16], strides = [1, 1]} : vector<9x16xf32> to vector<1x16xf32>
    %162 = vector.broadcast %161 : vector<1x16xf32> to vector<256x16xf32>
    %163 = arith.mulf %160, %162 : vector<256x16xf32>
    %164 = arith.addf %154, %163 : vector<256x16xf32>
    %cst_30 = arith.constant 0.000000e+00 : f32
    %165 = vector.broadcast %cst_30 : f32 to vector<16x16xf32>
    %166 = vector.extract_strided_slice %94 {offsets = [16, 0], sizes = [240, 16], strides = [1, 1]} : vector<256x16xf32> to vector<240x16xf32>
    %167 = tpu.concatenate %166, %165 in 0 : vector<240x16xf32>, vector<16x16xf32> -> vector<256x16xf32>
    %168 = vector.extract_strided_slice %96 {offsets = [0, 7], sizes = [256, 1], strides = [1, 1]} : vector<256x9xf32> to vector<256x1xf32>
    %169 = vector.broadcast %168 : vector<256x1xf32> to vector<256x16xf32>
    %170 = arith.mulf %167, %169 : vector<256x16xf32>
    %171 = vector.extract_strided_slice %95 {offsets = [7, 0], sizes = [1, 16], strides = [1, 1]} : vector<9x16xf32> to vector<1x16xf32>
    %172 = vector.broadcast %171 : vector<1x16xf32> to vector<256x16xf32>
    %173 = arith.mulf %170, %172 : vector<256x16xf32>
    %174 = arith.addf %164, %173 : vector<256x16xf32>
    %cst_31 = arith.constant 0.000000e+00 : f32
    %175 = vector.broadcast %cst_31 : f32 to vector<17x16xf32>
    %176 = vector.extract_strided_slice %94 {offsets = [17, 0], sizes = [239, 16], strides = [1, 1]} : vector<256x16xf32> to vector<239x16xf32>
    %177 = tpu.concatenate %176, %175 in 0 : vector<239x16xf32>, vector<17x16xf32> -> vector<256x16xf32>
    %178 = vector.extract_strided_slice %96 {offsets = [0, 8], sizes = [256, 1], strides = [1, 1]} : vector<256x9xf32> to vector<256x1xf32>
    %179 = vector.broadcast %178 : vector<256x1xf32> to vector<256x16xf32>
    %180 = arith.mulf %177, %179 : vector<256x16xf32>
    %181 = vector.extract_strided_slice %95 {offsets = [8, 0], sizes = [1, 16], strides = [1, 1]} : vector<9x16xf32> to vector<1x16xf32>
    %182 = vector.broadcast %181 : vector<1x16xf32> to vector<256x16xf32>
    %183 = arith.mulf %180, %182 : vector<256x16xf32>
    %184 = arith.addf %174, %183 : vector<256x16xf32>
    %c0_32 = arith.constant 0 : index
    %c0_33 = arith.constant 0 : index
    %185 = vector.load %arg34[%c0_32, %c0_33] : memref<64x256xf32, #tpu.memory_space<vmem>>, vector<64x256xf32>
    %cst_34 = arith.constant dense<0.000000e+00> : vector<64x16xf32>
    %186 = tpu.matmul %185, %184, %cst_34 {dimension_numbers = #tpu.dot_dimension_numbers<[1], [0], [0], [1], [0, 0, 1, 1], [], []>} : vector<64x256xf32>, vector<256x16xf32>, vector<64x16xf32> -> vector<64x16xf32>
    %c0_35 = arith.constant 0 : index
    %c0_36 = arith.constant 0 : index
    %187 = vector.load %arg17[%c0_35, %c0_36] : memref<16x32xf32, #tpu.memory_space<vmem>>, vector<16x32xf32>
    %cst_37 = arith.constant dense<0.000000e+00> : vector<64x32xf32>
    %188 = tpu.matmul %186, %187, %cst_37 {dimension_numbers = #tpu.dot_dimension_numbers<[1], [0], [0], [1], [0, 0, 1, 1], [], []>} : vector<64x16xf32>, vector<16x32xf32>, vector<64x32xf32> -> vector<64x32xf32>
    %c0_38 = arith.constant 0 : index
    %c0_39 = arith.constant 0 : index
    %189 = vector.load %arg5[%c0_38, %c0_39] : memref<9x32xf32, #tpu.memory_space<vmem>>, vector<9x32xf32>
    %c0_40 = arith.constant 0 : index
    %c0_41 = arith.constant 0 : index
    %190 = vector.load %arg30[%c0_40, %c0_41] : memref<64x9xf32, #tpu.memory_space<vmem>>, vector<64x9xf32>
    %cst_42 = arith.constant 0.000000e+00 : f32
    %191 = vector.broadcast %cst_42 : f32 to vector<64x32xf32>
    %cst_43 = arith.constant 0.000000e+00 : f32
    %192 = vector.broadcast %cst_43 : f32 to vector<9x32xf32>
    %193 = vector.extract_strided_slice %188 {offsets = [0, 0], sizes = [55, 32], strides = [1, 1]} : vector<64x32xf32> to vector<55x32xf32>
    %194 = tpu.concatenate %192, %193 in 0 : vector<9x32xf32>, vector<55x32xf32> -> vector<64x32xf32>
    %195 = vector.extract_strided_slice %190 {offsets = [0, 0], sizes = [64, 1], strides = [1, 1]} : vector<64x9xf32> to vector<64x1xf32>
    %196 = vector.broadcast %195 : vector<64x1xf32> to vector<64x32xf32>
    %197 = arith.mulf %194, %196 : vector<64x32xf32>
    %198 = vector.extract_strided_slice %189 {offsets = [0, 0], sizes = [1, 32], strides = [1, 1]} : vector<9x32xf32> to vector<1x32xf32>
    %199 = vector.broadcast %198 : vector<1x32xf32> to vector<64x32xf32>
    %200 = arith.mulf %197, %199 : vector<64x32xf32>
    %201 = arith.addf %191, %200 : vector<64x32xf32>
    %cst_44 = arith.constant 0.000000e+00 : f32
    %202 = vector.broadcast %cst_44 : f32 to vector<8x32xf32>
    %203 = vector.extract_strided_slice %188 {offsets = [0, 0], sizes = [56, 32], strides = [1, 1]} : vector<64x32xf32> to vector<56x32xf32>
    %204 = tpu.concatenate %202, %203 in 0 : vector<8x32xf32>, vector<56x32xf32> -> vector<64x32xf32>
    %205 = vector.extract_strided_slice %190 {offsets = [0, 1], sizes = [64, 1], strides = [1, 1]} : vector<64x9xf32> to vector<64x1xf32>
    %206 = vector.broadcast %205 : vector<64x1xf32> to vector<64x32xf32>
    %207 = arith.mulf %204, %206 : vector<64x32xf32>
    %208 = vector.extract_strided_slice %189 {offsets = [1, 0], sizes = [1, 32], strides = [1, 1]} : vector<9x32xf32> to vector<1x32xf32>
    %209 = vector.broadcast %208 : vector<1x32xf32> to vector<64x32xf32>
    %210 = arith.mulf %207, %209 : vector<64x32xf32>
    %211 = arith.addf %201, %210 : vector<64x32xf32>
    %cst_45 = arith.constant 0.000000e+00 : f32
    %212 = vector.broadcast %cst_45 : f32 to vector<7x32xf32>
    %213 = vector.extract_strided_slice %188 {offsets = [0, 0], sizes = [57, 32], strides = [1, 1]} : vector<64x32xf32> to vector<57x32xf32>
    %214 = tpu.concatenate %212, %213 in 0 : vector<7x32xf32>, vector<57x32xf32> -> vector<64x32xf32>
    %215 = vector.extract_strided_slice %190 {offsets = [0, 2], sizes = [64, 1], strides = [1, 1]} : vector<64x9xf32> to vector<64x1xf32>
    %216 = vector.broadcast %215 : vector<64x1xf32> to vector<64x32xf32>
    %217 = arith.mulf %214, %216 : vector<64x32xf32>
    %218 = vector.extract_strided_slice %189 {offsets = [2, 0], sizes = [1, 32], strides = [1, 1]} : vector<9x32xf32> to vector<1x32xf32>
    %219 = vector.broadcast %218 : vector<1x32xf32> to vector<64x32xf32>
    %220 = arith.mulf %217, %219 : vector<64x32xf32>
    %221 = arith.addf %211, %220 : vector<64x32xf32>
    %cst_46 = arith.constant 0.000000e+00 : f32
    %222 = vector.broadcast %cst_46 : f32 to vector<1x32xf32>
    %223 = vector.extract_strided_slice %188 {offsets = [0, 0], sizes = [63, 32], strides = [1, 1]} : vector<64x32xf32> to vector<63x32xf32>
    %224 = tpu.concatenate %222, %223 in 0 : vector<1x32xf32>, vector<63x32xf32> -> vector<64x32xf32>
    %225 = vector.extract_strided_slice %190 {offsets = [0, 3], sizes = [64, 1], strides = [1, 1]} : vector<64x9xf32> to vector<64x1xf32>
    %226 = vector.broadcast %225 : vector<64x1xf32> to vector<64x32xf32>
    %227 = arith.mulf %224, %226 : vector<64x32xf32>
    %228 = vector.extract_strided_slice %189 {offsets = [3, 0], sizes = [1, 32], strides = [1, 1]} : vector<9x32xf32> to vector<1x32xf32>
    %229 = vector.broadcast %228 : vector<1x32xf32> to vector<64x32xf32>
    %230 = arith.mulf %227, %229 : vector<64x32xf32>
    %231 = arith.addf %221, %230 : vector<64x32xf32>
    %232 = vector.extract_strided_slice %190 {offsets = [0, 4], sizes = [64, 1], strides = [1, 1]} : vector<64x9xf32> to vector<64x1xf32>
    %233 = vector.broadcast %232 : vector<64x1xf32> to vector<64x32xf32>
    %234 = arith.mulf %188, %233 : vector<64x32xf32>
    %235 = vector.extract_strided_slice %189 {offsets = [4, 0], sizes = [1, 32], strides = [1, 1]} : vector<9x32xf32> to vector<1x32xf32>
    %236 = vector.broadcast %235 : vector<1x32xf32> to vector<64x32xf32>
    %237 = arith.mulf %234, %236 : vector<64x32xf32>
    %238 = arith.addf %231, %237 : vector<64x32xf32>
    %cst_47 = arith.constant 0.000000e+00 : f32
    %239 = vector.broadcast %cst_47 : f32 to vector<1x32xf32>
    %240 = vector.extract_strided_slice %188 {offsets = [1, 0], sizes = [63, 32], strides = [1, 1]} : vector<64x32xf32> to vector<63x32xf32>
    %241 = tpu.concatenate %240, %239 in 0 : vector<63x32xf32>, vector<1x32xf32> -> vector<64x32xf32>
    %242 = vector.extract_strided_slice %190 {offsets = [0, 5], sizes = [64, 1], strides = [1, 1]} : vector<64x9xf32> to vector<64x1xf32>
    %243 = vector.broadcast %242 : vector<64x1xf32> to vector<64x32xf32>
    %244 = arith.mulf %241, %243 : vector<64x32xf32>
    %245 = vector.extract_strided_slice %189 {offsets = [5, 0], sizes = [1, 32], strides = [1, 1]} : vector<9x32xf32> to vector<1x32xf32>
    %246 = vector.broadcast %245 : vector<1x32xf32> to vector<64x32xf32>
    %247 = arith.mulf %244, %246 : vector<64x32xf32>
    %248 = arith.addf %238, %247 : vector<64x32xf32>
    %cst_48 = arith.constant 0.000000e+00 : f32
    %249 = vector.broadcast %cst_48 : f32 to vector<7x32xf32>
    %250 = vector.extract_strided_slice %188 {offsets = [7, 0], sizes = [57, 32], strides = [1, 1]} : vector<64x32xf32> to vector<57x32xf32>
    %251 = tpu.concatenate %250, %249 in 0 : vector<57x32xf32>, vector<7x32xf32> -> vector<64x32xf32>
    %252 = vector.extract_strided_slice %190 {offsets = [0, 6], sizes = [64, 1], strides = [1, 1]} : vector<64x9xf32> to vector<64x1xf32>
    %253 = vector.broadcast %252 : vector<64x1xf32> to vector<64x32xf32>
    %254 = arith.mulf %251, %253 : vector<64x32xf32>
    %255 = vector.extract_strided_slice %189 {offsets = [6, 0], sizes = [1, 32], strides = [1, 1]} : vector<9x32xf32> to vector<1x32xf32>
    %256 = vector.broadcast %255 : vector<1x32xf32> to vector<64x32xf32>
    %257 = arith.mulf %254, %256 : vector<64x32xf32>
    %258 = arith.addf %248, %257 : vector<64x32xf32>
    %cst_49 = arith.constant 0.000000e+00 : f32
    %259 = vector.broadcast %cst_49 : f32 to vector<8x32xf32>
    %260 = vector.extract_strided_slice %188 {offsets = [8, 0], sizes = [56, 32], strides = [1, 1]} : vector<64x32xf32> to vector<56x32xf32>
    %261 = tpu.concatenate %260, %259 in 0 : vector<56x32xf32>, vector<8x32xf32> -> vector<64x32xf32>
    %262 = vector.extract_strided_slice %190 {offsets = [0, 7], sizes = [64, 1], strides = [1, 1]} : vector<64x9xf32> to vector<64x1xf32>
    %263 = vector.broadcast %262 : vector<64x1xf32> to vector<64x32xf32>
    %264 = arith.mulf %261, %263 : vector<64x32xf32>
    %265 = vector.extract_strided_slice %189 {offsets = [7, 0], sizes = [1, 32], strides = [1, 1]} : vector<9x32xf32> to vector<1x32xf32>
    %266 = vector.broadcast %265 : vector<1x32xf32> to vector<64x32xf32>
    %267 = arith.mulf %264, %266 : vector<64x32xf32>
    %268 = arith.addf %258, %267 : vector<64x32xf32>
    %cst_50 = arith.constant 0.000000e+00 : f32
    %269 = vector.broadcast %cst_50 : f32 to vector<9x32xf32>
    %270 = vector.extract_strided_slice %188 {offsets = [9, 0], sizes = [55, 32], strides = [1, 1]} : vector<64x32xf32> to vector<55x32xf32>
    %271 = tpu.concatenate %270, %269 in 0 : vector<55x32xf32>, vector<9x32xf32> -> vector<64x32xf32>
    %272 = vector.extract_strided_slice %190 {offsets = [0, 8], sizes = [64, 1], strides = [1, 1]} : vector<64x9xf32> to vector<64x1xf32>
    %273 = vector.broadcast %272 : vector<64x1xf32> to vector<64x32xf32>
    %274 = arith.mulf %271, %273 : vector<64x32xf32>
    %275 = vector.extract_strided_slice %189 {offsets = [8, 0], sizes = [1, 32], strides = [1, 1]} : vector<9x32xf32> to vector<1x32xf32>
    %276 = vector.broadcast %275 : vector<1x32xf32> to vector<64x32xf32>
    %277 = arith.mulf %274, %276 : vector<64x32xf32>
    %278 = arith.addf %268, %277 : vector<64x32xf32>
    %c0_51 = arith.constant 0 : index
    %c0_52 = arith.constant 0 : index
    %279 = vector.load %arg18[%c0_51, %c0_52] : memref<32x32xf32, #tpu.memory_space<vmem>>, vector<32x32xf32>
    %cst_53 = arith.constant dense<0.000000e+00> : vector<64x32xf32>
    %280 = tpu.matmul %278, %279, %cst_53 {dimension_numbers = #tpu.dot_dimension_numbers<[1], [0], [0], [1], [0, 0, 1, 1], [], []>} : vector<64x32xf32>, vector<32x32xf32>, vector<64x32xf32> -> vector<64x32xf32>
    %c0_54 = arith.constant 0 : index
    %c0_55 = arith.constant 0 : index
    %281 = vector.load %arg6[%c0_54, %c0_55] : memref<9x32xf32, #tpu.memory_space<vmem>>, vector<9x32xf32>
    %c0_56 = arith.constant 0 : index
    %c0_57 = arith.constant 0 : index
    %282 = vector.load %arg30[%c0_56, %c0_57] : memref<64x9xf32, #tpu.memory_space<vmem>>, vector<64x9xf32>
    %cst_58 = arith.constant 0.000000e+00 : f32
    %283 = vector.broadcast %cst_58 : f32 to vector<64x32xf32>
    %cst_59 = arith.constant 0.000000e+00 : f32
    %284 = vector.broadcast %cst_59 : f32 to vector<9x32xf32>
    %285 = vector.extract_strided_slice %280 {offsets = [0, 0], sizes = [55, 32], strides = [1, 1]} : vector<64x32xf32> to vector<55x32xf32>
    %286 = tpu.concatenate %284, %285 in 0 : vector<9x32xf32>, vector<55x32xf32> -> vector<64x32xf32>
    %287 = vector.extract_strided_slice %282 {offsets = [0, 0], sizes = [64, 1], strides = [1, 1]} : vector<64x9xf32> to vector<64x1xf32>
    %288 = vector.broadcast %287 : vector<64x1xf32> to vector<64x32xf32>
    %289 = arith.mulf %286, %288 : vector<64x32xf32>
    %290 = vector.extract_strided_slice %281 {offsets = [0, 0], sizes = [1, 32], strides = [1, 1]} : vector<9x32xf32> to vector<1x32xf32>
    %291 = vector.broadcast %290 : vector<1x32xf32> to vector<64x32xf32>
    %292 = arith.mulf %289, %291 : vector<64x32xf32>
    %293 = arith.addf %283, %292 : vector<64x32xf32>
    %cst_60 = arith.constant 0.000000e+00 : f32
    %294 = vector.broadcast %cst_60 : f32 to vector<8x32xf32>
    %295 = vector.extract_strided_slice %280 {offsets = [0, 0], sizes = [56, 32], strides = [1, 1]} : vector<64x32xf32> to vector<56x32xf32>
    %296 = tpu.concatenate %294, %295 in 0 : vector<8x32xf32>, vector<56x32xf32> -> vector<64x32xf32>
    %297 = vector.extract_strided_slice %282 {offsets = [0, 1], sizes = [64, 1], strides = [1, 1]} : vector<64x9xf32> to vector<64x1xf32>
    %298 = vector.broadcast %297 : vector<64x1xf32> to vector<64x32xf32>
    %299 = arith.mulf %296, %298 : vector<64x32xf32>
    %300 = vector.extract_strided_slice %281 {offsets = [1, 0], sizes = [1, 32], strides = [1, 1]} : vector<9x32xf32> to vector<1x32xf32>
    %301 = vector.broadcast %300 : vector<1x32xf32> to vector<64x32xf32>
    %302 = arith.mulf %299, %301 : vector<64x32xf32>
    %303 = arith.addf %293, %302 : vector<64x32xf32>
    %cst_61 = arith.constant 0.000000e+00 : f32
    %304 = vector.broadcast %cst_61 : f32 to vector<7x32xf32>
    %305 = vector.extract_strided_slice %280 {offsets = [0, 0], sizes = [57, 32], strides = [1, 1]} : vector<64x32xf32> to vector<57x32xf32>
    %306 = tpu.concatenate %304, %305 in 0 : vector<7x32xf32>, vector<57x32xf32> -> vector<64x32xf32>
    %307 = vector.extract_strided_slice %282 {offsets = [0, 2], sizes = [64, 1], strides = [1, 1]} : vector<64x9xf32> to vector<64x1xf32>
    %308 = vector.broadcast %307 : vector<64x1xf32> to vector<64x32xf32>
    %309 = arith.mulf %306, %308 : vector<64x32xf32>
    %310 = vector.extract_strided_slice %281 {offsets = [2, 0], sizes = [1, 32], strides = [1, 1]} : vector<9x32xf32> to vector<1x32xf32>
    %311 = vector.broadcast %310 : vector<1x32xf32> to vector<64x32xf32>
    %312 = arith.mulf %309, %311 : vector<64x32xf32>
    %313 = arith.addf %303, %312 : vector<64x32xf32>
    %cst_62 = arith.constant 0.000000e+00 : f32
    %314 = vector.broadcast %cst_62 : f32 to vector<1x32xf32>
    %315 = vector.extract_strided_slice %280 {offsets = [0, 0], sizes = [63, 32], strides = [1, 1]} : vector<64x32xf32> to vector<63x32xf32>
    %316 = tpu.concatenate %314, %315 in 0 : vector<1x32xf32>, vector<63x32xf32> -> vector<64x32xf32>
    %317 = vector.extract_strided_slice %282 {offsets = [0, 3], sizes = [64, 1], strides = [1, 1]} : vector<64x9xf32> to vector<64x1xf32>
    %318 = vector.broadcast %317 : vector<64x1xf32> to vector<64x32xf32>
    %319 = arith.mulf %316, %318 : vector<64x32xf32>
    %320 = vector.extract_strided_slice %281 {offsets = [3, 0], sizes = [1, 32], strides = [1, 1]} : vector<9x32xf32> to vector<1x32xf32>
    %321 = vector.broadcast %320 : vector<1x32xf32> to vector<64x32xf32>
    %322 = arith.mulf %319, %321 : vector<64x32xf32>
    %323 = arith.addf %313, %322 : vector<64x32xf32>
    %324 = vector.extract_strided_slice %282 {offsets = [0, 4], sizes = [64, 1], strides = [1, 1]} : vector<64x9xf32> to vector<64x1xf32>
    %325 = vector.broadcast %324 : vector<64x1xf32> to vector<64x32xf32>
    %326 = arith.mulf %280, %325 : vector<64x32xf32>
    %327 = vector.extract_strided_slice %281 {offsets = [4, 0], sizes = [1, 32], strides = [1, 1]} : vector<9x32xf32> to vector<1x32xf32>
    %328 = vector.broadcast %327 : vector<1x32xf32> to vector<64x32xf32>
    %329 = arith.mulf %326, %328 : vector<64x32xf32>
    %330 = arith.addf %323, %329 : vector<64x32xf32>
    %cst_63 = arith.constant 0.000000e+00 : f32
    %331 = vector.broadcast %cst_63 : f32 to vector<1x32xf32>
    %332 = vector.extract_strided_slice %280 {offsets = [1, 0], sizes = [63, 32], strides = [1, 1]} : vector<64x32xf32> to vector<63x32xf32>
    %333 = tpu.concatenate %332, %331 in 0 : vector<63x32xf32>, vector<1x32xf32> -> vector<64x32xf32>
    %334 = vector.extract_strided_slice %282 {offsets = [0, 5], sizes = [64, 1], strides = [1, 1]} : vector<64x9xf32> to vector<64x1xf32>
    %335 = vector.broadcast %334 : vector<64x1xf32> to vector<64x32xf32>
    %336 = arith.mulf %333, %335 : vector<64x32xf32>
    %337 = vector.extract_strided_slice %281 {offsets = [5, 0], sizes = [1, 32], strides = [1, 1]} : vector<9x32xf32> to vector<1x32xf32>
    %338 = vector.broadcast %337 : vector<1x32xf32> to vector<64x32xf32>
    %339 = arith.mulf %336, %338 : vector<64x32xf32>
    %340 = arith.addf %330, %339 : vector<64x32xf32>
    %cst_64 = arith.constant 0.000000e+00 : f32
    %341 = vector.broadcast %cst_64 : f32 to vector<7x32xf32>
    %342 = vector.extract_strided_slice %280 {offsets = [7, 0], sizes = [57, 32], strides = [1, 1]} : vector<64x32xf32> to vector<57x32xf32>
    %343 = tpu.concatenate %342, %341 in 0 : vector<57x32xf32>, vector<7x32xf32> -> vector<64x32xf32>
    %344 = vector.extract_strided_slice %282 {offsets = [0, 6], sizes = [64, 1], strides = [1, 1]} : vector<64x9xf32> to vector<64x1xf32>
    %345 = vector.broadcast %344 : vector<64x1xf32> to vector<64x32xf32>
    %346 = arith.mulf %343, %345 : vector<64x32xf32>
    %347 = vector.extract_strided_slice %281 {offsets = [6, 0], sizes = [1, 32], strides = [1, 1]} : vector<9x32xf32> to vector<1x32xf32>
    %348 = vector.broadcast %347 : vector<1x32xf32> to vector<64x32xf32>
    %349 = arith.mulf %346, %348 : vector<64x32xf32>
    %350 = arith.addf %340, %349 : vector<64x32xf32>
    %cst_65 = arith.constant 0.000000e+00 : f32
    %351 = vector.broadcast %cst_65 : f32 to vector<8x32xf32>
    %352 = vector.extract_strided_slice %280 {offsets = [8, 0], sizes = [56, 32], strides = [1, 1]} : vector<64x32xf32> to vector<56x32xf32>
    %353 = tpu.concatenate %352, %351 in 0 : vector<56x32xf32>, vector<8x32xf32> -> vector<64x32xf32>
    %354 = vector.extract_strided_slice %282 {offsets = [0, 7], sizes = [64, 1], strides = [1, 1]} : vector<64x9xf32> to vector<64x1xf32>
    %355 = vector.broadcast %354 : vector<64x1xf32> to vector<64x32xf32>
    %356 = arith.mulf %353, %355 : vector<64x32xf32>
    %357 = vector.extract_strided_slice %281 {offsets = [7, 0], sizes = [1, 32], strides = [1, 1]} : vector<9x32xf32> to vector<1x32xf32>
    %358 = vector.broadcast %357 : vector<1x32xf32> to vector<64x32xf32>
    %359 = arith.mulf %356, %358 : vector<64x32xf32>
    %360 = arith.addf %350, %359 : vector<64x32xf32>
    %cst_66 = arith.constant 0.000000e+00 : f32
    %361 = vector.broadcast %cst_66 : f32 to vector<9x32xf32>
    %362 = vector.extract_strided_slice %280 {offsets = [9, 0], sizes = [55, 32], strides = [1, 1]} : vector<64x32xf32> to vector<55x32xf32>
    %363 = tpu.concatenate %362, %361 in 0 : vector<55x32xf32>, vector<9x32xf32> -> vector<64x32xf32>
    %364 = vector.extract_strided_slice %282 {offsets = [0, 8], sizes = [64, 1], strides = [1, 1]} : vector<64x9xf32> to vector<64x1xf32>
    %365 = vector.broadcast %364 : vector<64x1xf32> to vector<64x32xf32>
    %366 = arith.mulf %363, %365 : vector<64x32xf32>
    %367 = vector.extract_strided_slice %281 {offsets = [8, 0], sizes = [1, 32], strides = [1, 1]} : vector<9x32xf32> to vector<1x32xf32>
    %368 = vector.broadcast %367 : vector<1x32xf32> to vector<64x32xf32>
    %369 = arith.mulf %366, %368 : vector<64x32xf32>
    %370 = arith.addf %360, %369 : vector<64x32xf32>
    %c0_67 = arith.constant 0 : index
    %c0_68 = arith.constant 0 : index
    %371 = vector.load %arg35[%c0_67, %c0_68] : memref<16x64xf32, #tpu.memory_space<vmem>>, vector<16x64xf32>
    %cst_69 = arith.constant dense<0.000000e+00> : vector<16x32xf32>
    %372 = tpu.matmul %371, %370, %cst_69 {dimension_numbers = #tpu.dot_dimension_numbers<[1], [0], [0], [1], [0, 0, 1, 1], [], []>} : vector<16x64xf32>, vector<64x32xf32>, vector<16x32xf32> -> vector<16x32xf32>
    %c0_70 = arith.constant 0 : index
    %c0_71 = arith.constant 0 : index
    %373 = vector.load %arg19[%c0_70, %c0_71] : memref<32x64xf32, #tpu.memory_space<vmem>>, vector<32x64xf32>
    %cst_72 = arith.constant dense<0.000000e+00> : vector<16x64xf32>
    %374 = tpu.matmul %372, %373, %cst_72 {dimension_numbers = #tpu.dot_dimension_numbers<[1], [0], [0], [1], [0, 0, 1, 1], [], []>} : vector<16x32xf32>, vector<32x64xf32>, vector<16x64xf32> -> vector<16x64xf32>
    %c0_73 = arith.constant 0 : index
    %c0_74 = arith.constant 0 : index
    %375 = vector.load %arg7[%c0_73, %c0_74] : memref<9x64xf32, #tpu.memory_space<vmem>>, vector<9x64xf32>
    %c0_75 = arith.constant 0 : index
    %c0_76 = arith.constant 0 : index
    %376 = vector.load %arg31[%c0_75, %c0_76] : memref<16x9xf32, #tpu.memory_space<vmem>>, vector<16x9xf32>
    %cst_77 = arith.constant 0.000000e+00 : f32
    %377 = vector.broadcast %cst_77 : f32 to vector<16x64xf32>
    %cst_78 = arith.constant 0.000000e+00 : f32
    %378 = vector.broadcast %cst_78 : f32 to vector<5x64xf32>
    %379 = vector.extract_strided_slice %374 {offsets = [0, 0], sizes = [11, 64], strides = [1, 1]} : vector<16x64xf32> to vector<11x64xf32>
    %380 = tpu.concatenate %378, %379 in 0 : vector<5x64xf32>, vector<11x64xf32> -> vector<16x64xf32>
    %381 = vector.extract_strided_slice %376 {offsets = [0, 0], sizes = [16, 1], strides = [1, 1]} : vector<16x9xf32> to vector<16x1xf32>
    %382 = vector.broadcast %381 : vector<16x1xf32> to vector<16x64xf32>
    %383 = arith.mulf %380, %382 : vector<16x64xf32>
    %384 = vector.extract_strided_slice %375 {offsets = [0, 0], sizes = [1, 64], strides = [1, 1]} : vector<9x64xf32> to vector<1x64xf32>
    %385 = vector.broadcast %384 : vector<1x64xf32> to vector<16x64xf32>
    %386 = arith.mulf %383, %385 : vector<16x64xf32>
    %387 = arith.addf %377, %386 : vector<16x64xf32>
    %cst_79 = arith.constant 0.000000e+00 : f32
    %388 = vector.broadcast %cst_79 : f32 to vector<4x64xf32>
    %389 = vector.extract_strided_slice %374 {offsets = [0, 0], sizes = [12, 64], strides = [1, 1]} : vector<16x64xf32> to vector<12x64xf32>
    %390 = tpu.concatenate %388, %389 in 0 : vector<4x64xf32>, vector<12x64xf32> -> vector<16x64xf32>
    %391 = vector.extract_strided_slice %376 {offsets = [0, 1], sizes = [16, 1], strides = [1, 1]} : vector<16x9xf32> to vector<16x1xf32>
    %392 = vector.broadcast %391 : vector<16x1xf32> to vector<16x64xf32>
    %393 = arith.mulf %390, %392 : vector<16x64xf32>
    %394 = vector.extract_strided_slice %375 {offsets = [1, 0], sizes = [1, 64], strides = [1, 1]} : vector<9x64xf32> to vector<1x64xf32>
    %395 = vector.broadcast %394 : vector<1x64xf32> to vector<16x64xf32>
    %396 = arith.mulf %393, %395 : vector<16x64xf32>
    %397 = arith.addf %387, %396 : vector<16x64xf32>
    %cst_80 = arith.constant 0.000000e+00 : f32
    %398 = vector.broadcast %cst_80 : f32 to vector<3x64xf32>
    %399 = vector.extract_strided_slice %374 {offsets = [0, 0], sizes = [13, 64], strides = [1, 1]} : vector<16x64xf32> to vector<13x64xf32>
    %400 = tpu.concatenate %398, %399 in 0 : vector<3x64xf32>, vector<13x64xf32> -> vector<16x64xf32>
    %401 = vector.extract_strided_slice %376 {offsets = [0, 2], sizes = [16, 1], strides = [1, 1]} : vector<16x9xf32> to vector<16x1xf32>
    %402 = vector.broadcast %401 : vector<16x1xf32> to vector<16x64xf32>
    %403 = arith.mulf %400, %402 : vector<16x64xf32>
    %404 = vector.extract_strided_slice %375 {offsets = [2, 0], sizes = [1, 64], strides = [1, 1]} : vector<9x64xf32> to vector<1x64xf32>
    %405 = vector.broadcast %404 : vector<1x64xf32> to vector<16x64xf32>
    %406 = arith.mulf %403, %405 : vector<16x64xf32>
    %407 = arith.addf %397, %406 : vector<16x64xf32>
    %cst_81 = arith.constant 0.000000e+00 : f32
    %408 = vector.broadcast %cst_81 : f32 to vector<1x64xf32>
    %409 = vector.extract_strided_slice %374 {offsets = [0, 0], sizes = [15, 64], strides = [1, 1]} : vector<16x64xf32> to vector<15x64xf32>
    %410 = tpu.concatenate %408, %409 in 0 : vector<1x64xf32>, vector<15x64xf32> -> vector<16x64xf32>
    %411 = vector.extract_strided_slice %376 {offsets = [0, 3], sizes = [16, 1], strides = [1, 1]} : vector<16x9xf32> to vector<16x1xf32>
    %412 = vector.broadcast %411 : vector<16x1xf32> to vector<16x64xf32>
    %413 = arith.mulf %410, %412 : vector<16x64xf32>
    %414 = vector.extract_strided_slice %375 {offsets = [3, 0], sizes = [1, 64], strides = [1, 1]} : vector<9x64xf32> to vector<1x64xf32>
    %415 = vector.broadcast %414 : vector<1x64xf32> to vector<16x64xf32>
    %416 = arith.mulf %413, %415 : vector<16x64xf32>
    %417 = arith.addf %407, %416 : vector<16x64xf32>
    %418 = vector.extract_strided_slice %376 {offsets = [0, 4], sizes = [16, 1], strides = [1, 1]} : vector<16x9xf32> to vector<16x1xf32>
    %419 = vector.broadcast %418 : vector<16x1xf32> to vector<16x64xf32>
    %420 = arith.mulf %374, %419 : vector<16x64xf32>
    %421 = vector.extract_strided_slice %375 {offsets = [4, 0], sizes = [1, 64], strides = [1, 1]} : vector<9x64xf32> to vector<1x64xf32>
    %422 = vector.broadcast %421 : vector<1x64xf32> to vector<16x64xf32>
    %423 = arith.mulf %420, %422 : vector<16x64xf32>
    %424 = arith.addf %417, %423 : vector<16x64xf32>
    %cst_82 = arith.constant 0.000000e+00 : f32
    %425 = vector.broadcast %cst_82 : f32 to vector<1x64xf32>
    %426 = vector.extract_strided_slice %374 {offsets = [1, 0], sizes = [15, 64], strides = [1, 1]} : vector<16x64xf32> to vector<15x64xf32>
    %427 = tpu.concatenate %426, %425 in 0 : vector<15x64xf32>, vector<1x64xf32> -> vector<16x64xf32>
    %428 = vector.extract_strided_slice %376 {offsets = [0, 5], sizes = [16, 1], strides = [1, 1]} : vector<16x9xf32> to vector<16x1xf32>
    %429 = vector.broadcast %428 : vector<16x1xf32> to vector<16x64xf32>
    %430 = arith.mulf %427, %429 : vector<16x64xf32>
    %431 = vector.extract_strided_slice %375 {offsets = [5, 0], sizes = [1, 64], strides = [1, 1]} : vector<9x64xf32> to vector<1x64xf32>
    %432 = vector.broadcast %431 : vector<1x64xf32> to vector<16x64xf32>
    %433 = arith.mulf %430, %432 : vector<16x64xf32>
    %434 = arith.addf %424, %433 : vector<16x64xf32>
    %cst_83 = arith.constant 0.000000e+00 : f32
    %435 = vector.broadcast %cst_83 : f32 to vector<3x64xf32>
    %436 = vector.extract_strided_slice %374 {offsets = [3, 0], sizes = [13, 64], strides = [1, 1]} : vector<16x64xf32> to vector<13x64xf32>
    %437 = tpu.concatenate %436, %435 in 0 : vector<13x64xf32>, vector<3x64xf32> -> vector<16x64xf32>
    %438 = vector.extract_strided_slice %376 {offsets = [0, 6], sizes = [16, 1], strides = [1, 1]} : vector<16x9xf32> to vector<16x1xf32>
    %439 = vector.broadcast %438 : vector<16x1xf32> to vector<16x64xf32>
    %440 = arith.mulf %437, %439 : vector<16x64xf32>
    %441 = vector.extract_strided_slice %375 {offsets = [6, 0], sizes = [1, 64], strides = [1, 1]} : vector<9x64xf32> to vector<1x64xf32>
    %442 = vector.broadcast %441 : vector<1x64xf32> to vector<16x64xf32>
    %443 = arith.mulf %440, %442 : vector<16x64xf32>
    %444 = arith.addf %434, %443 : vector<16x64xf32>
    %cst_84 = arith.constant 0.000000e+00 : f32
    %445 = vector.broadcast %cst_84 : f32 to vector<4x64xf32>
    %446 = vector.extract_strided_slice %374 {offsets = [4, 0], sizes = [12, 64], strides = [1, 1]} : vector<16x64xf32> to vector<12x64xf32>
    %447 = tpu.concatenate %446, %445 in 0 : vector<12x64xf32>, vector<4x64xf32> -> vector<16x64xf32>
    %448 = vector.extract_strided_slice %376 {offsets = [0, 7], sizes = [16, 1], strides = [1, 1]} : vector<16x9xf32> to vector<16x1xf32>
    %449 = vector.broadcast %448 : vector<16x1xf32> to vector<16x64xf32>
    %450 = arith.mulf %447, %449 : vector<16x64xf32>
    %451 = vector.extract_strided_slice %375 {offsets = [7, 0], sizes = [1, 64], strides = [1, 1]} : vector<9x64xf32> to vector<1x64xf32>
    %452 = vector.broadcast %451 : vector<1x64xf32> to vector<16x64xf32>
    %453 = arith.mulf %450, %452 : vector<16x64xf32>
    %454 = arith.addf %444, %453 : vector<16x64xf32>
    %cst_85 = arith.constant 0.000000e+00 : f32
    %455 = vector.broadcast %cst_85 : f32 to vector<5x64xf32>
    %456 = vector.extract_strided_slice %374 {offsets = [5, 0], sizes = [11, 64], strides = [1, 1]} : vector<16x64xf32> to vector<11x64xf32>
    %457 = tpu.concatenate %456, %455 in 0 : vector<11x64xf32>, vector<5x64xf32> -> vector<16x64xf32>
    %458 = vector.extract_strided_slice %376 {offsets = [0, 8], sizes = [16, 1], strides = [1, 1]} : vector<16x9xf32> to vector<16x1xf32>
    %459 = vector.broadcast %458 : vector<16x1xf32> to vector<16x64xf32>
    %460 = arith.mulf %457, %459 : vector<16x64xf32>
    %461 = vector.extract_strided_slice %375 {offsets = [8, 0], sizes = [1, 64], strides = [1, 1]} : vector<9x64xf32> to vector<1x64xf32>
    %462 = vector.broadcast %461 : vector<1x64xf32> to vector<16x64xf32>
    %463 = arith.mulf %460, %462 : vector<16x64xf32>
    %464 = arith.addf %454, %463 : vector<16x64xf32>
    %c0_86 = arith.constant 0 : index
    %c0_87 = arith.constant 0 : index
    %465 = vector.load %arg20[%c0_86, %c0_87] : memref<64x64xf32, #tpu.memory_space<vmem>>, vector<64x64xf32>
    %cst_88 = arith.constant dense<0.000000e+00> : vector<16x64xf32>
    %466 = tpu.matmul %464, %465, %cst_88 {dimension_numbers = #tpu.dot_dimension_numbers<[1], [0], [0], [1], [0, 0, 1, 1], [], []>} : vector<16x64xf32>, vector<64x64xf32>, vector<16x64xf32> -> vector<16x64xf32>
    %c0_89 = arith.constant 0 : index
    %c0_90 = arith.constant 0 : index
    %467 = vector.load %arg8[%c0_89, %c0_90] : memref<9x64xf32, #tpu.memory_space<vmem>>, vector<9x64xf32>
    %c0_91 = arith.constant 0 : index
    %c0_92 = arith.constant 0 : index
    %468 = vector.load %arg31[%c0_91, %c0_92] : memref<16x9xf32, #tpu.memory_space<vmem>>, vector<16x9xf32>
    %cst_93 = arith.constant 0.000000e+00 : f32
    %469 = vector.broadcast %cst_93 : f32 to vector<16x64xf32>
    %cst_94 = arith.constant 0.000000e+00 : f32
    %470 = vector.broadcast %cst_94 : f32 to vector<5x64xf32>
    %471 = vector.extract_strided_slice %466 {offsets = [0, 0], sizes = [11, 64], strides = [1, 1]} : vector<16x64xf32> to vector<11x64xf32>
    %472 = tpu.concatenate %470, %471 in 0 : vector<5x64xf32>, vector<11x64xf32> -> vector<16x64xf32>
    %473 = vector.extract_strided_slice %468 {offsets = [0, 0], sizes = [16, 1], strides = [1, 1]} : vector<16x9xf32> to vector<16x1xf32>
    %474 = vector.broadcast %473 : vector<16x1xf32> to vector<16x64xf32>
    %475 = arith.mulf %472, %474 : vector<16x64xf32>
    %476 = vector.extract_strided_slice %467 {offsets = [0, 0], sizes = [1, 64], strides = [1, 1]} : vector<9x64xf32> to vector<1x64xf32>
    %477 = vector.broadcast %476 : vector<1x64xf32> to vector<16x64xf32>
    %478 = arith.mulf %475, %477 : vector<16x64xf32>
    %479 = arith.addf %469, %478 : vector<16x64xf32>
    %cst_95 = arith.constant 0.000000e+00 : f32
    %480 = vector.broadcast %cst_95 : f32 to vector<4x64xf32>
    %481 = vector.extract_strided_slice %466 {offsets = [0, 0], sizes = [12, 64], strides = [1, 1]} : vector<16x64xf32> to vector<12x64xf32>
    %482 = tpu.concatenate %480, %481 in 0 : vector<4x64xf32>, vector<12x64xf32> -> vector<16x64xf32>
    %483 = vector.extract_strided_slice %468 {offsets = [0, 1], sizes = [16, 1], strides = [1, 1]} : vector<16x9xf32> to vector<16x1xf32>
    %484 = vector.broadcast %483 : vector<16x1xf32> to vector<16x64xf32>
    %485 = arith.mulf %482, %484 : vector<16x64xf32>
    %486 = vector.extract_strided_slice %467 {offsets = [1, 0], sizes = [1, 64], strides = [1, 1]} : vector<9x64xf32> to vector<1x64xf32>
    %487 = vector.broadcast %486 : vector<1x64xf32> to vector<16x64xf32>
    %488 = arith.mulf %485, %487 : vector<16x64xf32>
    %489 = arith.addf %479, %488 : vector<16x64xf32>
    %cst_96 = arith.constant 0.000000e+00 : f32
    %490 = vector.broadcast %cst_96 : f32 to vector<3x64xf32>
    %491 = vector.extract_strided_slice %466 {offsets = [0, 0], sizes = [13, 64], strides = [1, 1]} : vector<16x64xf32> to vector<13x64xf32>
    %492 = tpu.concatenate %490, %491 in 0 : vector<3x64xf32>, vector<13x64xf32> -> vector<16x64xf32>
    %493 = vector.extract_strided_slice %468 {offsets = [0, 2], sizes = [16, 1], strides = [1, 1]} : vector<16x9xf32> to vector<16x1xf32>
    %494 = vector.broadcast %493 : vector<16x1xf32> to vector<16x64xf32>
    %495 = arith.mulf %492, %494 : vector<16x64xf32>
    %496 = vector.extract_strided_slice %467 {offsets = [2, 0], sizes = [1, 64], strides = [1, 1]} : vector<9x64xf32> to vector<1x64xf32>
    %497 = vector.broadcast %496 : vector<1x64xf32> to vector<16x64xf32>
    %498 = arith.mulf %495, %497 : vector<16x64xf32>
    %499 = arith.addf %489, %498 : vector<16x64xf32>
    %cst_97 = arith.constant 0.000000e+00 : f32
    %500 = vector.broadcast %cst_97 : f32 to vector<1x64xf32>
    %501 = vector.extract_strided_slice %466 {offsets = [0, 0], sizes = [15, 64], strides = [1, 1]} : vector<16x64xf32> to vector<15x64xf32>
    %502 = tpu.concatenate %500, %501 in 0 : vector<1x64xf32>, vector<15x64xf32> -> vector<16x64xf32>
    %503 = vector.extract_strided_slice %468 {offsets = [0, 3], sizes = [16, 1], strides = [1, 1]} : vector<16x9xf32> to vector<16x1xf32>
    %504 = vector.broadcast %503 : vector<16x1xf32> to vector<16x64xf32>
    %505 = arith.mulf %502, %504 : vector<16x64xf32>
    %506 = vector.extract_strided_slice %467 {offsets = [3, 0], sizes = [1, 64], strides = [1, 1]} : vector<9x64xf32> to vector<1x64xf32>
    %507 = vector.broadcast %506 : vector<1x64xf32> to vector<16x64xf32>
    %508 = arith.mulf %505, %507 : vector<16x64xf32>
    %509 = arith.addf %499, %508 : vector<16x64xf32>
    %510 = vector.extract_strided_slice %468 {offsets = [0, 4], sizes = [16, 1], strides = [1, 1]} : vector<16x9xf32> to vector<16x1xf32>
    %511 = vector.broadcast %510 : vector<16x1xf32> to vector<16x64xf32>
    %512 = arith.mulf %466, %511 : vector<16x64xf32>
    %513 = vector.extract_strided_slice %467 {offsets = [4, 0], sizes = [1, 64], strides = [1, 1]} : vector<9x64xf32> to vector<1x64xf32>
    %514 = vector.broadcast %513 : vector<1x64xf32> to vector<16x64xf32>
    %515 = arith.mulf %512, %514 : vector<16x64xf32>
    %516 = arith.addf %509, %515 : vector<16x64xf32>
    %cst_98 = arith.constant 0.000000e+00 : f32
    %517 = vector.broadcast %cst_98 : f32 to vector<1x64xf32>
    %518 = vector.extract_strided_slice %466 {offsets = [1, 0], sizes = [15, 64], strides = [1, 1]} : vector<16x64xf32> to vector<15x64xf32>
    %519 = tpu.concatenate %518, %517 in 0 : vector<15x64xf32>, vector<1x64xf32> -> vector<16x64xf32>
    %520 = vector.extract_strided_slice %468 {offsets = [0, 5], sizes = [16, 1], strides = [1, 1]} : vector<16x9xf32> to vector<16x1xf32>
    %521 = vector.broadcast %520 : vector<16x1xf32> to vector<16x64xf32>
    %522 = arith.mulf %519, %521 : vector<16x64xf32>
    %523 = vector.extract_strided_slice %467 {offsets = [5, 0], sizes = [1, 64], strides = [1, 1]} : vector<9x64xf32> to vector<1x64xf32>
    %524 = vector.broadcast %523 : vector<1x64xf32> to vector<16x64xf32>
    %525 = arith.mulf %522, %524 : vector<16x64xf32>
    %526 = arith.addf %516, %525 : vector<16x64xf32>
    %cst_99 = arith.constant 0.000000e+00 : f32
    %527 = vector.broadcast %cst_99 : f32 to vector<3x64xf32>
    %528 = vector.extract_strided_slice %466 {offsets = [3, 0], sizes = [13, 64], strides = [1, 1]} : vector<16x64xf32> to vector<13x64xf32>
    %529 = tpu.concatenate %528, %527 in 0 : vector<13x64xf32>, vector<3x64xf32> -> vector<16x64xf32>
    %530 = vector.extract_strided_slice %468 {offsets = [0, 6], sizes = [16, 1], strides = [1, 1]} : vector<16x9xf32> to vector<16x1xf32>
    %531 = vector.broadcast %530 : vector<16x1xf32> to vector<16x64xf32>
    %532 = arith.mulf %529, %531 : vector<16x64xf32>
    %533 = vector.extract_strided_slice %467 {offsets = [6, 0], sizes = [1, 64], strides = [1, 1]} : vector<9x64xf32> to vector<1x64xf32>
    %534 = vector.broadcast %533 : vector<1x64xf32> to vector<16x64xf32>
    %535 = arith.mulf %532, %534 : vector<16x64xf32>
    %536 = arith.addf %526, %535 : vector<16x64xf32>
    %cst_100 = arith.constant 0.000000e+00 : f32
    %537 = vector.broadcast %cst_100 : f32 to vector<4x64xf32>
    %538 = vector.extract_strided_slice %466 {offsets = [4, 0], sizes = [12, 64], strides = [1, 1]} : vector<16x64xf32> to vector<12x64xf32>
    %539 = tpu.concatenate %538, %537 in 0 : vector<12x64xf32>, vector<4x64xf32> -> vector<16x64xf32>
    %540 = vector.extract_strided_slice %468 {offsets = [0, 7], sizes = [16, 1], strides = [1, 1]} : vector<16x9xf32> to vector<16x1xf32>
    %541 = vector.broadcast %540 : vector<16x1xf32> to vector<16x64xf32>
    %542 = arith.mulf %539, %541 : vector<16x64xf32>
    %543 = vector.extract_strided_slice %467 {offsets = [7, 0], sizes = [1, 64], strides = [1, 1]} : vector<9x64xf32> to vector<1x64xf32>
    %544 = vector.broadcast %543 : vector<1x64xf32> to vector<16x64xf32>
    %545 = arith.mulf %542, %544 : vector<16x64xf32>
    %546 = arith.addf %536, %545 : vector<16x64xf32>
    %cst_101 = arith.constant 0.000000e+00 : f32
    %547 = vector.broadcast %cst_101 : f32 to vector<5x64xf32>
    %548 = vector.extract_strided_slice %466 {offsets = [5, 0], sizes = [11, 64], strides = [1, 1]} : vector<16x64xf32> to vector<11x64xf32>
    %549 = tpu.concatenate %548, %547 in 0 : vector<11x64xf32>, vector<5x64xf32> -> vector<16x64xf32>
    %550 = vector.extract_strided_slice %468 {offsets = [0, 8], sizes = [16, 1], strides = [1, 1]} : vector<16x9xf32> to vector<16x1xf32>
    %551 = vector.broadcast %550 : vector<16x1xf32> to vector<16x64xf32>
    %552 = arith.mulf %549, %551 : vector<16x64xf32>
    %553 = vector.extract_strided_slice %467 {offsets = [8, 0], sizes = [1, 64], strides = [1, 1]} : vector<9x64xf32> to vector<1x64xf32>
    %554 = vector.broadcast %553 : vector<1x64xf32> to vector<16x64xf32>
    %555 = arith.mulf %552, %554 : vector<16x64xf32>
    %556 = arith.addf %546, %555 : vector<16x64xf32>
    %c0_102 = arith.constant 0 : index
    %c0_103 = arith.constant 0 : index
    %557 = vector.load %arg36[%c0_102, %c0_103] : memref<4x16xf32, #tpu.memory_space<vmem>>, vector<4x16xf32>
    %cst_104 = arith.constant dense<0.000000e+00> : vector<4x64xf32>
    %558 = tpu.matmul %557, %556, %cst_104 {dimension_numbers = #tpu.dot_dimension_numbers<[1], [0], [0], [1], [0, 0, 1, 1], [], []>} : vector<4x16xf32>, vector<16x64xf32>, vector<4x64xf32> -> vector<4x64xf32>
    %c0_105 = arith.constant 0 : index
    %c0_106 = arith.constant 0 : index
    %559 = vector.load %arg21[%c0_105, %c0_106] : memref<64x128xf32, #tpu.memory_space<vmem>>, vector<64x128xf32>
    %cst_107 = arith.constant dense<0.000000e+00> : vector<4x128xf32>
    %560 = tpu.matmul %558, %559, %cst_107 {dimension_numbers = #tpu.dot_dimension_numbers<[1], [0], [0], [1], [0, 0, 1, 1], [], []>} : vector<4x64xf32>, vector<64x128xf32>, vector<4x128xf32> -> vector<4x128xf32>
    %c0_108 = arith.constant 0 : index
    %c0_109 = arith.constant 0 : index
    %561 = vector.load %arg9[%c0_108, %c0_109] : memref<9x128xf32, #tpu.memory_space<vmem>>, vector<9x128xf32>
    %c0_110 = arith.constant 0 : index
    %c0_111 = arith.constant 0 : index
    %562 = vector.load %arg32[%c0_110, %c0_111] : memref<4x9xf32, #tpu.memory_space<vmem>>, vector<4x9xf32>
    %cst_112 = arith.constant 0.000000e+00 : f32
    %563 = vector.broadcast %cst_112 : f32 to vector<4x128xf32>
    %cst_113 = arith.constant 0.000000e+00 : f32
    %564 = vector.broadcast %cst_113 : f32 to vector<3x128xf32>
    %565 = vector.extract_strided_slice %560 {offsets = [0, 0], sizes = [1, 128], strides = [1, 1]} : vector<4x128xf32> to vector<1x128xf32>
    %566 = tpu.concatenate %564, %565 in 0 : vector<3x128xf32>, vector<1x128xf32> -> vector<4x128xf32>
    %567 = vector.extract_strided_slice %562 {offsets = [0, 0], sizes = [4, 1], strides = [1, 1]} : vector<4x9xf32> to vector<4x1xf32>
    %568 = vector.broadcast %567 : vector<4x1xf32> to vector<4x128xf32>
    %569 = arith.mulf %566, %568 : vector<4x128xf32>
    %570 = vector.extract_strided_slice %561 {offsets = [0, 0], sizes = [1, 128], strides = [1, 1]} : vector<9x128xf32> to vector<1x128xf32>
    %571 = vector.broadcast %570 : vector<1x128xf32> to vector<4x128xf32>
    %572 = arith.mulf %569, %571 : vector<4x128xf32>
    %573 = arith.addf %563, %572 : vector<4x128xf32>
    %cst_114 = arith.constant 0.000000e+00 : f32
    %574 = vector.broadcast %cst_114 : f32 to vector<2x128xf32>
    %575 = vector.extract_strided_slice %560 {offsets = [0, 0], sizes = [2, 128], strides = [1, 1]} : vector<4x128xf32> to vector<2x128xf32>
    %576 = tpu.concatenate %574, %575 in 0 : vector<2x128xf32>, vector<2x128xf32> -> vector<4x128xf32>
    %577 = vector.extract_strided_slice %562 {offsets = [0, 1], sizes = [4, 1], strides = [1, 1]} : vector<4x9xf32> to vector<4x1xf32>
    %578 = vector.broadcast %577 : vector<4x1xf32> to vector<4x128xf32>
    %579 = arith.mulf %576, %578 : vector<4x128xf32>
    %580 = vector.extract_strided_slice %561 {offsets = [1, 0], sizes = [1, 128], strides = [1, 1]} : vector<9x128xf32> to vector<1x128xf32>
    %581 = vector.broadcast %580 : vector<1x128xf32> to vector<4x128xf32>
    %582 = arith.mulf %579, %581 : vector<4x128xf32>
    %583 = arith.addf %573, %582 : vector<4x128xf32>
    %cst_115 = arith.constant 0.000000e+00 : f32
    %584 = vector.broadcast %cst_115 : f32 to vector<1x128xf32>
    %585 = vector.extract_strided_slice %560 {offsets = [0, 0], sizes = [3, 128], strides = [1, 1]} : vector<4x128xf32> to vector<3x128xf32>
    %586 = tpu.concatenate %584, %585 in 0 : vector<1x128xf32>, vector<3x128xf32> -> vector<4x128xf32>
    %587 = vector.extract_strided_slice %562 {offsets = [0, 2], sizes = [4, 1], strides = [1, 1]} : vector<4x9xf32> to vector<4x1xf32>
    %588 = vector.broadcast %587 : vector<4x1xf32> to vector<4x128xf32>
    %589 = arith.mulf %586, %588 : vector<4x128xf32>
    %590 = vector.extract_strided_slice %561 {offsets = [2, 0], sizes = [1, 128], strides = [1, 1]} : vector<9x128xf32> to vector<1x128xf32>
    %591 = vector.broadcast %590 : vector<1x128xf32> to vector<4x128xf32>
    %592 = arith.mulf %589, %591 : vector<4x128xf32>
    %593 = arith.addf %583, %592 : vector<4x128xf32>
    %cst_116 = arith.constant 0.000000e+00 : f32
    %594 = vector.broadcast %cst_116 : f32 to vector<1x128xf32>
    %595 = vector.extract_strided_slice %560 {offsets = [0, 0], sizes = [3, 128], strides = [1, 1]} : vector<4x128xf32> to vector<3x128xf32>
    %596 = tpu.concatenate %594, %595 in 0 : vector<1x128xf32>, vector<3x128xf32> -> vector<4x128xf32>
    %597 = vector.extract_strided_slice %562 {offsets = [0, 3], sizes = [4, 1], strides = [1, 1]} : vector<4x9xf32> to vector<4x1xf32>
    %598 = vector.broadcast %597 : vector<4x1xf32> to vector<4x128xf32>
    %599 = arith.mulf %596, %598 : vector<4x128xf32>
    %600 = vector.extract_strided_slice %561 {offsets = [3, 0], sizes = [1, 128], strides = [1, 1]} : vector<9x128xf32> to vector<1x128xf32>
    %601 = vector.broadcast %600 : vector<1x128xf32> to vector<4x128xf32>
    %602 = arith.mulf %599, %601 : vector<4x128xf32>
    %603 = arith.addf %593, %602 : vector<4x128xf32>
    %604 = vector.extract_strided_slice %562 {offsets = [0, 4], sizes = [4, 1], strides = [1, 1]} : vector<4x9xf32> to vector<4x1xf32>
    %605 = vector.broadcast %604 : vector<4x1xf32> to vector<4x128xf32>
    %606 = arith.mulf %560, %605 : vector<4x128xf32>
    %607 = vector.extract_strided_slice %561 {offsets = [4, 0], sizes = [1, 128], strides = [1, 1]} : vector<9x128xf32> to vector<1x128xf32>
    %608 = vector.broadcast %607 : vector<1x128xf32> to vector<4x128xf32>
    %609 = arith.mulf %606, %608 : vector<4x128xf32>
    %610 = arith.addf %603, %609 : vector<4x128xf32>
    %cst_117 = arith.constant 0.000000e+00 : f32
    %611 = vector.broadcast %cst_117 : f32 to vector<1x128xf32>
    %612 = vector.extract_strided_slice %560 {offsets = [1, 0], sizes = [3, 128], strides = [1, 1]} : vector<4x128xf32> to vector<3x128xf32>
    %613 = tpu.concatenate %612, %611 in 0 : vector<3x128xf32>, vector<1x128xf32> -> vector<4x128xf32>
    %614 = vector.extract_strided_slice %562 {offsets = [0, 5], sizes = [4, 1], strides = [1, 1]} : vector<4x9xf32> to vector<4x1xf32>
    %615 = vector.broadcast %614 : vector<4x1xf32> to vector<4x128xf32>
    %616 = arith.mulf %613, %615 : vector<4x128xf32>
    %617 = vector.extract_strided_slice %561 {offsets = [5, 0], sizes = [1, 128], strides = [1, 1]} : vector<9x128xf32> to vector<1x128xf32>
    %618 = vector.broadcast %617 : vector<1x128xf32> to vector<4x128xf32>
    %619 = arith.mulf %616, %618 : vector<4x128xf32>
    %620 = arith.addf %610, %619 : vector<4x128xf32>
    %cst_118 = arith.constant 0.000000e+00 : f32
    %621 = vector.broadcast %cst_118 : f32 to vector<1x128xf32>
    %622 = vector.extract_strided_slice %560 {offsets = [1, 0], sizes = [3, 128], strides = [1, 1]} : vector<4x128xf32> to vector<3x128xf32>
    %623 = tpu.concatenate %622, %621 in 0 : vector<3x128xf32>, vector<1x128xf32> -> vector<4x128xf32>
    %624 = vector.extract_strided_slice %562 {offsets = [0, 6], sizes = [4, 1], strides = [1, 1]} : vector<4x9xf32> to vector<4x1xf32>
    %625 = vector.broadcast %624 : vector<4x1xf32> to vector<4x128xf32>
    %626 = arith.mulf %623, %625 : vector<4x128xf32>
    %627 = vector.extract_strided_slice %561 {offsets = [6, 0], sizes = [1, 128], strides = [1, 1]} : vector<9x128xf32> to vector<1x128xf32>
    %628 = vector.broadcast %627 : vector<1x128xf32> to vector<4x128xf32>
    %629 = arith.mulf %626, %628 : vector<4x128xf32>
    %630 = arith.addf %620, %629 : vector<4x128xf32>
    %cst_119 = arith.constant 0.000000e+00 : f32
    %631 = vector.broadcast %cst_119 : f32 to vector<2x128xf32>
    %632 = vector.extract_strided_slice %560 {offsets = [2, 0], sizes = [2, 128], strides = [1, 1]} : vector<4x128xf32> to vector<2x128xf32>
    %633 = tpu.concatenate %632, %631 in 0 : vector<2x128xf32>, vector<2x128xf32> -> vector<4x128xf32>
    %634 = vector.extract_strided_slice %562 {offsets = [0, 7], sizes = [4, 1], strides = [1, 1]} : vector<4x9xf32> to vector<4x1xf32>
    %635 = vector.broadcast %634 : vector<4x1xf32> to vector<4x128xf32>
    %636 = arith.mulf %633, %635 : vector<4x128xf32>
    %637 = vector.extract_strided_slice %561 {offsets = [7, 0], sizes = [1, 128], strides = [1, 1]} : vector<9x128xf32> to vector<1x128xf32>
    %638 = vector.broadcast %637 : vector<1x128xf32> to vector<4x128xf32>
    %639 = arith.mulf %636, %638 : vector<4x128xf32>
    %640 = arith.addf %630, %639 : vector<4x128xf32>
    %cst_120 = arith.constant 0.000000e+00 : f32
    %641 = vector.broadcast %cst_120 : f32 to vector<3x128xf32>
    %642 = vector.extract_strided_slice %560 {offsets = [3, 0], sizes = [1, 128], strides = [1, 1]} : vector<4x128xf32> to vector<1x128xf32>
    %643 = tpu.concatenate %642, %641 in 0 : vector<1x128xf32>, vector<3x128xf32> -> vector<4x128xf32>
    %644 = vector.extract_strided_slice %562 {offsets = [0, 8], sizes = [4, 1], strides = [1, 1]} : vector<4x9xf32> to vector<4x1xf32>
    %645 = vector.broadcast %644 : vector<4x1xf32> to vector<4x128xf32>
    %646 = arith.mulf %643, %645 : vector<4x128xf32>
    %647 = vector.extract_strided_slice %561 {offsets = [8, 0], sizes = [1, 128], strides = [1, 1]} : vector<9x128xf32> to vector<1x128xf32>
    %648 = vector.broadcast %647 : vector<1x128xf32> to vector<4x128xf32>
    %649 = arith.mulf %646, %648 : vector<4x128xf32>
    %650 = arith.addf %640, %649 : vector<4x128xf32>
    %c0_121 = arith.constant 0 : index
    %c0_122 = arith.constant 0 : index
    %651 = vector.load %arg22[%c0_121, %c0_122] : memref<128x128xf32, #tpu.memory_space<vmem>>, vector<128x128xf32>
    %cst_123 = arith.constant dense<0.000000e+00> : vector<4x128xf32>
    %652 = tpu.matmul %650, %651, %cst_123 {dimension_numbers = #tpu.dot_dimension_numbers<[1], [0], [0], [1], [0, 0, 1, 1], [], []>} : vector<4x128xf32>, vector<128x128xf32>, vector<4x128xf32> -> vector<4x128xf32>
    %c0_124 = arith.constant 0 : index
    %c0_125 = arith.constant 0 : index
    %653 = vector.load %arg10[%c0_124, %c0_125] : memref<9x128xf32, #tpu.memory_space<vmem>>, vector<9x128xf32>
    %c0_126 = arith.constant 0 : index
    %c0_127 = arith.constant 0 : index
    %654 = vector.load %arg32[%c0_126, %c0_127] : memref<4x9xf32, #tpu.memory_space<vmem>>, vector<4x9xf32>
    %cst_128 = arith.constant 0.000000e+00 : f32
    %655 = vector.broadcast %cst_128 : f32 to vector<4x128xf32>
    %cst_129 = arith.constant 0.000000e+00 : f32
    %656 = vector.broadcast %cst_129 : f32 to vector<3x128xf32>
    %657 = vector.extract_strided_slice %652 {offsets = [0, 0], sizes = [1, 128], strides = [1, 1]} : vector<4x128xf32> to vector<1x128xf32>
    %658 = tpu.concatenate %656, %657 in 0 : vector<3x128xf32>, vector<1x128xf32> -> vector<4x128xf32>
    %659 = vector.extract_strided_slice %654 {offsets = [0, 0], sizes = [4, 1], strides = [1, 1]} : vector<4x9xf32> to vector<4x1xf32>
    %660 = vector.broadcast %659 : vector<4x1xf32> to vector<4x128xf32>
    %661 = arith.mulf %658, %660 : vector<4x128xf32>
    %662 = vector.extract_strided_slice %653 {offsets = [0, 0], sizes = [1, 128], strides = [1, 1]} : vector<9x128xf32> to vector<1x128xf32>
    %663 = vector.broadcast %662 : vector<1x128xf32> to vector<4x128xf32>
    %664 = arith.mulf %661, %663 : vector<4x128xf32>
    %665 = arith.addf %655, %664 : vector<4x128xf32>
    %cst_130 = arith.constant 0.000000e+00 : f32
    %666 = vector.broadcast %cst_130 : f32 to vector<2x128xf32>
    %667 = vector.extract_strided_slice %652 {offsets = [0, 0], sizes = [2, 128], strides = [1, 1]} : vector<4x128xf32> to vector<2x128xf32>
    %668 = tpu.concatenate %666, %667 in 0 : vector<2x128xf32>, vector<2x128xf32> -> vector<4x128xf32>
    %669 = vector.extract_strided_slice %654 {offsets = [0, 1], sizes = [4, 1], strides = [1, 1]} : vector<4x9xf32> to vector<4x1xf32>
    %670 = vector.broadcast %669 : vector<4x1xf32> to vector<4x128xf32>
    %671 = arith.mulf %668, %670 : vector<4x128xf32>
    %672 = vector.extract_strided_slice %653 {offsets = [1, 0], sizes = [1, 128], strides = [1, 1]} : vector<9x128xf32> to vector<1x128xf32>
    %673 = vector.broadcast %672 : vector<1x128xf32> to vector<4x128xf32>
    %674 = arith.mulf %671, %673 : vector<4x128xf32>
    %675 = arith.addf %665, %674 : vector<4x128xf32>
    %cst_131 = arith.constant 0.000000e+00 : f32
    %676 = vector.broadcast %cst_131 : f32 to vector<1x128xf32>
    %677 = vector.extract_strided_slice %652 {offsets = [0, 0], sizes = [3, 128], strides = [1, 1]} : vector<4x128xf32> to vector<3x128xf32>
    %678 = tpu.concatenate %676, %677 in 0 : vector<1x128xf32>, vector<3x128xf32> -> vector<4x128xf32>
    %679 = vector.extract_strided_slice %654 {offsets = [0, 2], sizes = [4, 1], strides = [1, 1]} : vector<4x9xf32> to vector<4x1xf32>
    %680 = vector.broadcast %679 : vector<4x1xf32> to vector<4x128xf32>
    %681 = arith.mulf %678, %680 : vector<4x128xf32>
    %682 = vector.extract_strided_slice %653 {offsets = [2, 0], sizes = [1, 128], strides = [1, 1]} : vector<9x128xf32> to vector<1x128xf32>
    %683 = vector.broadcast %682 : vector<1x128xf32> to vector<4x128xf32>
    %684 = arith.mulf %681, %683 : vector<4x128xf32>
    %685 = arith.addf %675, %684 : vector<4x128xf32>
    %cst_132 = arith.constant 0.000000e+00 : f32
    %686 = vector.broadcast %cst_132 : f32 to vector<1x128xf32>
    %687 = vector.extract_strided_slice %652 {offsets = [0, 0], sizes = [3, 128], strides = [1, 1]} : vector<4x128xf32> to vector<3x128xf32>
    %688 = tpu.concatenate %686, %687 in 0 : vector<1x128xf32>, vector<3x128xf32> -> vector<4x128xf32>
    %689 = vector.extract_strided_slice %654 {offsets = [0, 3], sizes = [4, 1], strides = [1, 1]} : vector<4x9xf32> to vector<4x1xf32>
    %690 = vector.broadcast %689 : vector<4x1xf32> to vector<4x128xf32>
    %691 = arith.mulf %688, %690 : vector<4x128xf32>
    %692 = vector.extract_strided_slice %653 {offsets = [3, 0], sizes = [1, 128], strides = [1, 1]} : vector<9x128xf32> to vector<1x128xf32>
    %693 = vector.broadcast %692 : vector<1x128xf32> to vector<4x128xf32>
    %694 = arith.mulf %691, %693 : vector<4x128xf32>
    %695 = arith.addf %685, %694 : vector<4x128xf32>
    %696 = vector.extract_strided_slice %654 {offsets = [0, 4], sizes = [4, 1], strides = [1, 1]} : vector<4x9xf32> to vector<4x1xf32>
    %697 = vector.broadcast %696 : vector<4x1xf32> to vector<4x128xf32>
    %698 = arith.mulf %652, %697 : vector<4x128xf32>
    %699 = vector.extract_strided_slice %653 {offsets = [4, 0], sizes = [1, 128], strides = [1, 1]} : vector<9x128xf32> to vector<1x128xf32>
    %700 = vector.broadcast %699 : vector<1x128xf32> to vector<4x128xf32>
    %701 = arith.mulf %698, %700 : vector<4x128xf32>
    %702 = arith.addf %695, %701 : vector<4x128xf32>
    %cst_133 = arith.constant 0.000000e+00 : f32
    %703 = vector.broadcast %cst_133 : f32 to vector<1x128xf32>
    %704 = vector.extract_strided_slice %652 {offsets = [1, 0], sizes = [3, 128], strides = [1, 1]} : vector<4x128xf32> to vector<3x128xf32>
    %705 = tpu.concatenate %704, %703 in 0 : vector<3x128xf32>, vector<1x128xf32> -> vector<4x128xf32>
    %706 = vector.extract_strided_slice %654 {offsets = [0, 5], sizes = [4, 1], strides = [1, 1]} : vector<4x9xf32> to vector<4x1xf32>
    %707 = vector.broadcast %706 : vector<4x1xf32> to vector<4x128xf32>
    %708 = arith.mulf %705, %707 : vector<4x128xf32>
    %709 = vector.extract_strided_slice %653 {offsets = [5, 0], sizes = [1, 128], strides = [1, 1]} : vector<9x128xf32> to vector<1x128xf32>
    %710 = vector.broadcast %709 : vector<1x128xf32> to vector<4x128xf32>
    %711 = arith.mulf %708, %710 : vector<4x128xf32>
    %712 = arith.addf %702, %711 : vector<4x128xf32>
    %cst_134 = arith.constant 0.000000e+00 : f32
    %713 = vector.broadcast %cst_134 : f32 to vector<1x128xf32>
    %714 = vector.extract_strided_slice %652 {offsets = [1, 0], sizes = [3, 128], strides = [1, 1]} : vector<4x128xf32> to vector<3x128xf32>
    %715 = tpu.concatenate %714, %713 in 0 : vector<3x128xf32>, vector<1x128xf32> -> vector<4x128xf32>
    %716 = vector.extract_strided_slice %654 {offsets = [0, 6], sizes = [4, 1], strides = [1, 1]} : vector<4x9xf32> to vector<4x1xf32>
    %717 = vector.broadcast %716 : vector<4x1xf32> to vector<4x128xf32>
    %718 = arith.mulf %715, %717 : vector<4x128xf32>
    %719 = vector.extract_strided_slice %653 {offsets = [6, 0], sizes = [1, 128], strides = [1, 1]} : vector<9x128xf32> to vector<1x128xf32>
    %720 = vector.broadcast %719 : vector<1x128xf32> to vector<4x128xf32>
    %721 = arith.mulf %718, %720 : vector<4x128xf32>
    %722 = arith.addf %712, %721 : vector<4x128xf32>
    %cst_135 = arith.constant 0.000000e+00 : f32
    %723 = vector.broadcast %cst_135 : f32 to vector<2x128xf32>
    %724 = vector.extract_strided_slice %652 {offsets = [2, 0], sizes = [2, 128], strides = [1, 1]} : vector<4x128xf32> to vector<2x128xf32>
    %725 = tpu.concatenate %724, %723 in 0 : vector<2x128xf32>, vector<2x128xf32> -> vector<4x128xf32>
    %726 = vector.extract_strided_slice %654 {offsets = [0, 7], sizes = [4, 1], strides = [1, 1]} : vector<4x9xf32> to vector<4x1xf32>
    %727 = vector.broadcast %726 : vector<4x1xf32> to vector<4x128xf32>
    %728 = arith.mulf %725, %727 : vector<4x128xf32>
    %729 = vector.extract_strided_slice %653 {offsets = [7, 0], sizes = [1, 128], strides = [1, 1]} : vector<9x128xf32> to vector<1x128xf32>
    %730 = vector.broadcast %729 : vector<1x128xf32> to vector<4x128xf32>
    %731 = arith.mulf %728, %730 : vector<4x128xf32>
    %732 = arith.addf %722, %731 : vector<4x128xf32>
    %cst_136 = arith.constant 0.000000e+00 : f32
    %733 = vector.broadcast %cst_136 : f32 to vector<3x128xf32>
    %734 = vector.extract_strided_slice %652 {offsets = [3, 0], sizes = [1, 128], strides = [1, 1]} : vector<4x128xf32> to vector<1x128xf32>
    %735 = tpu.concatenate %734, %733 in 0 : vector<1x128xf32>, vector<3x128xf32> -> vector<4x128xf32>
    %736 = vector.extract_strided_slice %654 {offsets = [0, 8], sizes = [4, 1], strides = [1, 1]} : vector<4x9xf32> to vector<4x1xf32>
    %737 = vector.broadcast %736 : vector<4x1xf32> to vector<4x128xf32>
    %738 = arith.mulf %735, %737 : vector<4x128xf32>
    %739 = vector.extract_strided_slice %653 {offsets = [8, 0], sizes = [1, 128], strides = [1, 1]} : vector<9x128xf32> to vector<1x128xf32>
    %740 = vector.broadcast %739 : vector<1x128xf32> to vector<4x128xf32>
    %741 = arith.mulf %738, %740 : vector<4x128xf32>
    %742 = arith.addf %732, %741 : vector<4x128xf32>
    %c0_137 = arith.constant 0 : index
    %c0_138 = arith.constant 0 : index
    %743 = vector.load %arg23[%c0_137, %c0_138] : memref<128x128xf32, #tpu.memory_space<vmem>>, vector<128x128xf32>
    %cst_139 = arith.constant dense<0.000000e+00> : vector<4x128xf32>
    %744 = tpu.matmul %742, %743, %cst_139 {dimension_numbers = #tpu.dot_dimension_numbers<[1], [0], [0], [1], [0, 0, 1, 1], [], []>} : vector<4x128xf32>, vector<128x128xf32>, vector<4x128xf32> -> vector<4x128xf32>
    %c0_140 = arith.constant 0 : index
    %c0_141 = arith.constant 0 : index
    %745 = vector.load %arg11[%c0_140, %c0_141] : memref<9x128xf32, #tpu.memory_space<vmem>>, vector<9x128xf32>
    %c0_142 = arith.constant 0 : index
    %c0_143 = arith.constant 0 : index
    %746 = vector.load %arg32[%c0_142, %c0_143] : memref<4x9xf32, #tpu.memory_space<vmem>>, vector<4x9xf32>
    %cst_144 = arith.constant 0.000000e+00 : f32
    %747 = vector.broadcast %cst_144 : f32 to vector<4x128xf32>
    %cst_145 = arith.constant 0.000000e+00 : f32
    %748 = vector.broadcast %cst_145 : f32 to vector<3x128xf32>
    %749 = vector.extract_strided_slice %744 {offsets = [0, 0], sizes = [1, 128], strides = [1, 1]} : vector<4x128xf32> to vector<1x128xf32>
    %750 = tpu.concatenate %748, %749 in 0 : vector<3x128xf32>, vector<1x128xf32> -> vector<4x128xf32>
    %751 = vector.extract_strided_slice %746 {offsets = [0, 0], sizes = [4, 1], strides = [1, 1]} : vector<4x9xf32> to vector<4x1xf32>
    %752 = vector.broadcast %751 : vector<4x1xf32> to vector<4x128xf32>
    %753 = arith.mulf %750, %752 : vector<4x128xf32>
    %754 = vector.extract_strided_slice %745 {offsets = [0, 0], sizes = [1, 128], strides = [1, 1]} : vector<9x128xf32> to vector<1x128xf32>
    %755 = vector.broadcast %754 : vector<1x128xf32> to vector<4x128xf32>
    %756 = arith.mulf %753, %755 : vector<4x128xf32>
    %757 = arith.addf %747, %756 : vector<4x128xf32>
    %cst_146 = arith.constant 0.000000e+00 : f32
    %758 = vector.broadcast %cst_146 : f32 to vector<2x128xf32>
    %759 = vector.extract_strided_slice %744 {offsets = [0, 0], sizes = [2, 128], strides = [1, 1]} : vector<4x128xf32> to vector<2x128xf32>
    %760 = tpu.concatenate %758, %759 in 0 : vector<2x128xf32>, vector<2x128xf32> -> vector<4x128xf32>
    %761 = vector.extract_strided_slice %746 {offsets = [0, 1], sizes = [4, 1], strides = [1, 1]} : vector<4x9xf32> to vector<4x1xf32>
    %762 = vector.broadcast %761 : vector<4x1xf32> to vector<4x128xf32>
    %763 = arith.mulf %760, %762 : vector<4x128xf32>
    %764 = vector.extract_strided_slice %745 {offsets = [1, 0], sizes = [1, 128], strides = [1, 1]} : vector<9x128xf32> to vector<1x128xf32>
    %765 = vector.broadcast %764 : vector<1x128xf32> to vector<4x128xf32>
    %766 = arith.mulf %763, %765 : vector<4x128xf32>
    %767 = arith.addf %757, %766 : vector<4x128xf32>
    %cst_147 = arith.constant 0.000000e+00 : f32
    %768 = vector.broadcast %cst_147 : f32 to vector<1x128xf32>
    %769 = vector.extract_strided_slice %744 {offsets = [0, 0], sizes = [3, 128], strides = [1, 1]} : vector<4x128xf32> to vector<3x128xf32>
    %770 = tpu.concatenate %768, %769 in 0 : vector<1x128xf32>, vector<3x128xf32> -> vector<4x128xf32>
    %771 = vector.extract_strided_slice %746 {offsets = [0, 2], sizes = [4, 1], strides = [1, 1]} : vector<4x9xf32> to vector<4x1xf32>
    %772 = vector.broadcast %771 : vector<4x1xf32> to vector<4x128xf32>
    %773 = arith.mulf %770, %772 : vector<4x128xf32>
    %774 = vector.extract_strided_slice %745 {offsets = [2, 0], sizes = [1, 128], strides = [1, 1]} : vector<9x128xf32> to vector<1x128xf32>
    %775 = vector.broadcast %774 : vector<1x128xf32> to vector<4x128xf32>
    %776 = arith.mulf %773, %775 : vector<4x128xf32>
    %777 = arith.addf %767, %776 : vector<4x128xf32>
    %cst_148 = arith.constant 0.000000e+00 : f32
    %778 = vector.broadcast %cst_148 : f32 to vector<1x128xf32>
    %779 = vector.extract_strided_slice %744 {offsets = [0, 0], sizes = [3, 128], strides = [1, 1]} : vector<4x128xf32> to vector<3x128xf32>
    %780 = tpu.concatenate %778, %779 in 0 : vector<1x128xf32>, vector<3x128xf32> -> vector<4x128xf32>
    %781 = vector.extract_strided_slice %746 {offsets = [0, 3], sizes = [4, 1], strides = [1, 1]} : vector<4x9xf32> to vector<4x1xf32>
    %782 = vector.broadcast %781 : vector<4x1xf32> to vector<4x128xf32>
    %783 = arith.mulf %780, %782 : vector<4x128xf32>
    %784 = vector.extract_strided_slice %745 {offsets = [3, 0], sizes = [1, 128], strides = [1, 1]} : vector<9x128xf32> to vector<1x128xf32>
    %785 = vector.broadcast %784 : vector<1x128xf32> to vector<4x128xf32>
    %786 = arith.mulf %783, %785 : vector<4x128xf32>
    %787 = arith.addf %777, %786 : vector<4x128xf32>
    %788 = vector.extract_strided_slice %746 {offsets = [0, 4], sizes = [4, 1], strides = [1, 1]} : vector<4x9xf32> to vector<4x1xf32>
    %789 = vector.broadcast %788 : vector<4x1xf32> to vector<4x128xf32>
    %790 = arith.mulf %744, %789 : vector<4x128xf32>
    %791 = vector.extract_strided_slice %745 {offsets = [4, 0], sizes = [1, 128], strides = [1, 1]} : vector<9x128xf32> to vector<1x128xf32>
    %792 = vector.broadcast %791 : vector<1x128xf32> to vector<4x128xf32>
    %793 = arith.mulf %790, %792 : vector<4x128xf32>
    %794 = arith.addf %787, %793 : vector<4x128xf32>
    %cst_149 = arith.constant 0.000000e+00 : f32
    %795 = vector.broadcast %cst_149 : f32 to vector<1x128xf32>
    %796 = vector.extract_strided_slice %744 {offsets = [1, 0], sizes = [3, 128], strides = [1, 1]} : vector<4x128xf32> to vector<3x128xf32>
    %797 = tpu.concatenate %796, %795 in 0 : vector<3x128xf32>, vector<1x128xf32> -> vector<4x128xf32>
    %798 = vector.extract_strided_slice %746 {offsets = [0, 5], sizes = [4, 1], strides = [1, 1]} : vector<4x9xf32> to vector<4x1xf32>
    %799 = vector.broadcast %798 : vector<4x1xf32> to vector<4x128xf32>
    %800 = arith.mulf %797, %799 : vector<4x128xf32>
    %801 = vector.extract_strided_slice %745 {offsets = [5, 0], sizes = [1, 128], strides = [1, 1]} : vector<9x128xf32> to vector<1x128xf32>
    %802 = vector.broadcast %801 : vector<1x128xf32> to vector<4x128xf32>
    %803 = arith.mulf %800, %802 : vector<4x128xf32>
    %804 = arith.addf %794, %803 : vector<4x128xf32>
    %cst_150 = arith.constant 0.000000e+00 : f32
    %805 = vector.broadcast %cst_150 : f32 to vector<1x128xf32>
    %806 = vector.extract_strided_slice %744 {offsets = [1, 0], sizes = [3, 128], strides = [1, 1]} : vector<4x128xf32> to vector<3x128xf32>
    %807 = tpu.concatenate %806, %805 in 0 : vector<3x128xf32>, vector<1x128xf32> -> vector<4x128xf32>
    %808 = vector.extract_strided_slice %746 {offsets = [0, 6], sizes = [4, 1], strides = [1, 1]} : vector<4x9xf32> to vector<4x1xf32>
    %809 = vector.broadcast %808 : vector<4x1xf32> to vector<4x128xf32>
    %810 = arith.mulf %807, %809 : vector<4x128xf32>
    %811 = vector.extract_strided_slice %745 {offsets = [6, 0], sizes = [1, 128], strides = [1, 1]} : vector<9x128xf32> to vector<1x128xf32>
    %812 = vector.broadcast %811 : vector<1x128xf32> to vector<4x128xf32>
    %813 = arith.mulf %810, %812 : vector<4x128xf32>
    %814 = arith.addf %804, %813 : vector<4x128xf32>
    %cst_151 = arith.constant 0.000000e+00 : f32
    %815 = vector.broadcast %cst_151 : f32 to vector<2x128xf32>
    %816 = vector.extract_strided_slice %744 {offsets = [2, 0], sizes = [2, 128], strides = [1, 1]} : vector<4x128xf32> to vector<2x128xf32>
    %817 = tpu.concatenate %816, %815 in 0 : vector<2x128xf32>, vector<2x128xf32> -> vector<4x128xf32>
    %818 = vector.extract_strided_slice %746 {offsets = [0, 7], sizes = [4, 1], strides = [1, 1]} : vector<4x9xf32> to vector<4x1xf32>
    %819 = vector.broadcast %818 : vector<4x1xf32> to vector<4x128xf32>
    %820 = arith.mulf %817, %819 : vector<4x128xf32>
    %821 = vector.extract_strided_slice %745 {offsets = [7, 0], sizes = [1, 128], strides = [1, 1]} : vector<9x128xf32> to vector<1x128xf32>
    %822 = vector.broadcast %821 : vector<1x128xf32> to vector<4x128xf32>
    %823 = arith.mulf %820, %822 : vector<4x128xf32>
    %824 = arith.addf %814, %823 : vector<4x128xf32>
    %cst_152 = arith.constant 0.000000e+00 : f32
    %825 = vector.broadcast %cst_152 : f32 to vector<3x128xf32>
    %826 = vector.extract_strided_slice %744 {offsets = [3, 0], sizes = [1, 128], strides = [1, 1]} : vector<4x128xf32> to vector<1x128xf32>
    %827 = tpu.concatenate %826, %825 in 0 : vector<1x128xf32>, vector<3x128xf32> -> vector<4x128xf32>
    %828 = vector.extract_strided_slice %746 {offsets = [0, 8], sizes = [4, 1], strides = [1, 1]} : vector<4x9xf32> to vector<4x1xf32>
    %829 = vector.broadcast %828 : vector<4x1xf32> to vector<4x128xf32>
    %830 = arith.mulf %827, %829 : vector<4x128xf32>
    %831 = vector.extract_strided_slice %745 {offsets = [8, 0], sizes = [1, 128], strides = [1, 1]} : vector<9x128xf32> to vector<1x128xf32>
    %832 = vector.broadcast %831 : vector<1x128xf32> to vector<4x128xf32>
    %833 = arith.mulf %830, %832 : vector<4x128xf32>
    %834 = arith.addf %824, %833 : vector<4x128xf32>
    %c0_153 = arith.constant 0 : index
    %c0_154 = arith.constant 0 : index
    %835 = vector.load %arg24[%c0_153, %c0_154] : memref<128x128xf32, #tpu.memory_space<vmem>>, vector<128x128xf32>
    %cst_155 = arith.constant dense<0.000000e+00> : vector<4x128xf32>
    %836 = tpu.matmul %834, %835, %cst_155 {dimension_numbers = #tpu.dot_dimension_numbers<[1], [0], [0], [1], [0, 0, 1, 1], [], []>} : vector<4x128xf32>, vector<128x128xf32>, vector<4x128xf32> -> vector<4x128xf32>
    %c0_156 = arith.constant 0 : index
    %c0_157 = arith.constant 0 : index
    %837 = vector.load %arg12[%c0_156, %c0_157] : memref<9x128xf32, #tpu.memory_space<vmem>>, vector<9x128xf32>
    %c0_158 = arith.constant 0 : index
    %c0_159 = arith.constant 0 : index
    %838 = vector.load %arg32[%c0_158, %c0_159] : memref<4x9xf32, #tpu.memory_space<vmem>>, vector<4x9xf32>
    %cst_160 = arith.constant 0.000000e+00 : f32
    %839 = vector.broadcast %cst_160 : f32 to vector<4x128xf32>
    %cst_161 = arith.constant 0.000000e+00 : f32
    %840 = vector.broadcast %cst_161 : f32 to vector<3x128xf32>
    %841 = vector.extract_strided_slice %836 {offsets = [0, 0], sizes = [1, 128], strides = [1, 1]} : vector<4x128xf32> to vector<1x128xf32>
    %842 = tpu.concatenate %840, %841 in 0 : vector<3x128xf32>, vector<1x128xf32> -> vector<4x128xf32>
    %843 = vector.extract_strided_slice %838 {offsets = [0, 0], sizes = [4, 1], strides = [1, 1]} : vector<4x9xf32> to vector<4x1xf32>
    %844 = vector.broadcast %843 : vector<4x1xf32> to vector<4x128xf32>
    %845 = arith.mulf %842, %844 : vector<4x128xf32>
    %846 = vector.extract_strided_slice %837 {offsets = [0, 0], sizes = [1, 128], strides = [1, 1]} : vector<9x128xf32> to vector<1x128xf32>
    %847 = vector.broadcast %846 : vector<1x128xf32> to vector<4x128xf32>
    %848 = arith.mulf %845, %847 : vector<4x128xf32>
    %849 = arith.addf %839, %848 : vector<4x128xf32>
    %cst_162 = arith.constant 0.000000e+00 : f32
    %850 = vector.broadcast %cst_162 : f32 to vector<2x128xf32>
    %851 = vector.extract_strided_slice %836 {offsets = [0, 0], sizes = [2, 128], strides = [1, 1]} : vector<4x128xf32> to vector<2x128xf32>
    %852 = tpu.concatenate %850, %851 in 0 : vector<2x128xf32>, vector<2x128xf32> -> vector<4x128xf32>
    %853 = vector.extract_strided_slice %838 {offsets = [0, 1], sizes = [4, 1], strides = [1, 1]} : vector<4x9xf32> to vector<4x1xf32>
    %854 = vector.broadcast %853 : vector<4x1xf32> to vector<4x128xf32>
    %855 = arith.mulf %852, %854 : vector<4x128xf32>
    %856 = vector.extract_strided_slice %837 {offsets = [1, 0], sizes = [1, 128], strides = [1, 1]} : vector<9x128xf32> to vector<1x128xf32>
    %857 = vector.broadcast %856 : vector<1x128xf32> to vector<4x128xf32>
    %858 = arith.mulf %855, %857 : vector<4x128xf32>
    %859 = arith.addf %849, %858 : vector<4x128xf32>
    %cst_163 = arith.constant 0.000000e+00 : f32
    %860 = vector.broadcast %cst_163 : f32 to vector<1x128xf32>
    %861 = vector.extract_strided_slice %836 {offsets = [0, 0], sizes = [3, 128], strides = [1, 1]} : vector<4x128xf32> to vector<3x128xf32>
    %862 = tpu.concatenate %860, %861 in 0 : vector<1x128xf32>, vector<3x128xf32> -> vector<4x128xf32>
    %863 = vector.extract_strided_slice %838 {offsets = [0, 2], sizes = [4, 1], strides = [1, 1]} : vector<4x9xf32> to vector<4x1xf32>
    %864 = vector.broadcast %863 : vector<4x1xf32> to vector<4x128xf32>
    %865 = arith.mulf %862, %864 : vector<4x128xf32>
    %866 = vector.extract_strided_slice %837 {offsets = [2, 0], sizes = [1, 128], strides = [1, 1]} : vector<9x128xf32> to vector<1x128xf32>
    %867 = vector.broadcast %866 : vector<1x128xf32> to vector<4x128xf32>
    %868 = arith.mulf %865, %867 : vector<4x128xf32>
    %869 = arith.addf %859, %868 : vector<4x128xf32>
    %cst_164 = arith.constant 0.000000e+00 : f32
    %870 = vector.broadcast %cst_164 : f32 to vector<1x128xf32>
    %871 = vector.extract_strided_slice %836 {offsets = [0, 0], sizes = [3, 128], strides = [1, 1]} : vector<4x128xf32> to vector<3x128xf32>
    %872 = tpu.concatenate %870, %871 in 0 : vector<1x128xf32>, vector<3x128xf32> -> vector<4x128xf32>
    %873 = vector.extract_strided_slice %838 {offsets = [0, 3], sizes = [4, 1], strides = [1, 1]} : vector<4x9xf32> to vector<4x1xf32>
    %874 = vector.broadcast %873 : vector<4x1xf32> to vector<4x128xf32>
    %875 = arith.mulf %872, %874 : vector<4x128xf32>
    %876 = vector.extract_strided_slice %837 {offsets = [3, 0], sizes = [1, 128], strides = [1, 1]} : vector<9x128xf32> to vector<1x128xf32>
    %877 = vector.broadcast %876 : vector<1x128xf32> to vector<4x128xf32>
    %878 = arith.mulf %875, %877 : vector<4x128xf32>
    %879 = arith.addf %869, %878 : vector<4x128xf32>
    %880 = vector.extract_strided_slice %838 {offsets = [0, 4], sizes = [4, 1], strides = [1, 1]} : vector<4x9xf32> to vector<4x1xf32>
    %881 = vector.broadcast %880 : vector<4x1xf32> to vector<4x128xf32>
    %882 = arith.mulf %836, %881 : vector<4x128xf32>
    %883 = vector.extract_strided_slice %837 {offsets = [4, 0], sizes = [1, 128], strides = [1, 1]} : vector<9x128xf32> to vector<1x128xf32>
    %884 = vector.broadcast %883 : vector<1x128xf32> to vector<4x128xf32>
    %885 = arith.mulf %882, %884 : vector<4x128xf32>
    %886 = arith.addf %879, %885 : vector<4x128xf32>
    %cst_165 = arith.constant 0.000000e+00 : f32
    %887 = vector.broadcast %cst_165 : f32 to vector<1x128xf32>
    %888 = vector.extract_strided_slice %836 {offsets = [1, 0], sizes = [3, 128], strides = [1, 1]} : vector<4x128xf32> to vector<3x128xf32>
    %889 = tpu.concatenate %888, %887 in 0 : vector<3x128xf32>, vector<1x128xf32> -> vector<4x128xf32>
    %890 = vector.extract_strided_slice %838 {offsets = [0, 5], sizes = [4, 1], strides = [1, 1]} : vector<4x9xf32> to vector<4x1xf32>
    %891 = vector.broadcast %890 : vector<4x1xf32> to vector<4x128xf32>
    %892 = arith.mulf %889, %891 : vector<4x128xf32>
    %893 = vector.extract_strided_slice %837 {offsets = [5, 0], sizes = [1, 128], strides = [1, 1]} : vector<9x128xf32> to vector<1x128xf32>
    %894 = vector.broadcast %893 : vector<1x128xf32> to vector<4x128xf32>
    %895 = arith.mulf %892, %894 : vector<4x128xf32>
    %896 = arith.addf %886, %895 : vector<4x128xf32>
    %cst_166 = arith.constant 0.000000e+00 : f32
    %897 = vector.broadcast %cst_166 : f32 to vector<1x128xf32>
    %898 = vector.extract_strided_slice %836 {offsets = [1, 0], sizes = [3, 128], strides = [1, 1]} : vector<4x128xf32> to vector<3x128xf32>
    %899 = tpu.concatenate %898, %897 in 0 : vector<3x128xf32>, vector<1x128xf32> -> vector<4x128xf32>
    %900 = vector.extract_strided_slice %838 {offsets = [0, 6], sizes = [4, 1], strides = [1, 1]} : vector<4x9xf32> to vector<4x1xf32>
    %901 = vector.broadcast %900 : vector<4x1xf32> to vector<4x128xf32>
    %902 = arith.mulf %899, %901 : vector<4x128xf32>
    %903 = vector.extract_strided_slice %837 {offsets = [6, 0], sizes = [1, 128], strides = [1, 1]} : vector<9x128xf32> to vector<1x128xf32>
    %904 = vector.broadcast %903 : vector<1x128xf32> to vector<4x128xf32>
    %905 = arith.mulf %902, %904 : vector<4x128xf32>
    %906 = arith.addf %896, %905 : vector<4x128xf32>
    %cst_167 = arith.constant 0.000000e+00 : f32
    %907 = vector.broadcast %cst_167 : f32 to vector<2x128xf32>
    %908 = vector.extract_strided_slice %836 {offsets = [2, 0], sizes = [2, 128], strides = [1, 1]} : vector<4x128xf32> to vector<2x128xf32>
    %909 = tpu.concatenate %908, %907 in 0 : vector<2x128xf32>, vector<2x128xf32> -> vector<4x128xf32>
    %910 = vector.extract_strided_slice %838 {offsets = [0, 7], sizes = [4, 1], strides = [1, 1]} : vector<4x9xf32> to vector<4x1xf32>
    %911 = vector.broadcast %910 : vector<4x1xf32> to vector<4x128xf32>
    %912 = arith.mulf %909, %911 : vector<4x128xf32>
    %913 = vector.extract_strided_slice %837 {offsets = [7, 0], sizes = [1, 128], strides = [1, 1]} : vector<9x128xf32> to vector<1x128xf32>
    %914 = vector.broadcast %913 : vector<1x128xf32> to vector<4x128xf32>
    %915 = arith.mulf %912, %914 : vector<4x128xf32>
    %916 = arith.addf %906, %915 : vector<4x128xf32>
    %cst_168 = arith.constant 0.000000e+00 : f32
    %917 = vector.broadcast %cst_168 : f32 to vector<3x128xf32>
    %918 = vector.extract_strided_slice %836 {offsets = [3, 0], sizes = [1, 128], strides = [1, 1]} : vector<4x128xf32> to vector<1x128xf32>
    %919 = tpu.concatenate %918, %917 in 0 : vector<1x128xf32>, vector<3x128xf32> -> vector<4x128xf32>
    %920 = vector.extract_strided_slice %838 {offsets = [0, 8], sizes = [4, 1], strides = [1, 1]} : vector<4x9xf32> to vector<4x1xf32>
    %921 = vector.broadcast %920 : vector<4x1xf32> to vector<4x128xf32>
    %922 = arith.mulf %919, %921 : vector<4x128xf32>
    %923 = vector.extract_strided_slice %837 {offsets = [8, 0], sizes = [1, 128], strides = [1, 1]} : vector<9x128xf32> to vector<1x128xf32>
    %924 = vector.broadcast %923 : vector<1x128xf32> to vector<4x128xf32>
    %925 = arith.mulf %922, %924 : vector<4x128xf32>
    %926 = arith.addf %916, %925 : vector<4x128xf32>
    %c0_169 = arith.constant 0 : index
    %c0_170 = arith.constant 0 : index
    %927 = vector.load %arg25[%c0_169, %c0_170] : memref<128x128xf32, #tpu.memory_space<vmem>>, vector<128x128xf32>
    %cst_171 = arith.constant dense<0.000000e+00> : vector<4x128xf32>
    %928 = tpu.matmul %926, %927, %cst_171 {dimension_numbers = #tpu.dot_dimension_numbers<[1], [0], [0], [1], [0, 0, 1, 1], [], []>} : vector<4x128xf32>, vector<128x128xf32>, vector<4x128xf32> -> vector<4x128xf32>
    %c0_172 = arith.constant 0 : index
    %c0_173 = arith.constant 0 : index
    %929 = vector.load %arg13[%c0_172, %c0_173] : memref<9x128xf32, #tpu.memory_space<vmem>>, vector<9x128xf32>
    %c0_174 = arith.constant 0 : index
    %c0_175 = arith.constant 0 : index
    %930 = vector.load %arg32[%c0_174, %c0_175] : memref<4x9xf32, #tpu.memory_space<vmem>>, vector<4x9xf32>
    %cst_176 = arith.constant 0.000000e+00 : f32
    %931 = vector.broadcast %cst_176 : f32 to vector<4x128xf32>
    %cst_177 = arith.constant 0.000000e+00 : f32
    %932 = vector.broadcast %cst_177 : f32 to vector<3x128xf32>
    %933 = vector.extract_strided_slice %928 {offsets = [0, 0], sizes = [1, 128], strides = [1, 1]} : vector<4x128xf32> to vector<1x128xf32>
    %934 = tpu.concatenate %932, %933 in 0 : vector<3x128xf32>, vector<1x128xf32> -> vector<4x128xf32>
    %935 = vector.extract_strided_slice %930 {offsets = [0, 0], sizes = [4, 1], strides = [1, 1]} : vector<4x9xf32> to vector<4x1xf32>
    %936 = vector.broadcast %935 : vector<4x1xf32> to vector<4x128xf32>
    %937 = arith.mulf %934, %936 : vector<4x128xf32>
    %938 = vector.extract_strided_slice %929 {offsets = [0, 0], sizes = [1, 128], strides = [1, 1]} : vector<9x128xf32> to vector<1x128xf32>
    %939 = vector.broadcast %938 : vector<1x128xf32> to vector<4x128xf32>
    %940 = arith.mulf %937, %939 : vector<4x128xf32>
    %941 = arith.addf %931, %940 : vector<4x128xf32>
    %cst_178 = arith.constant 0.000000e+00 : f32
    %942 = vector.broadcast %cst_178 : f32 to vector<2x128xf32>
    %943 = vector.extract_strided_slice %928 {offsets = [0, 0], sizes = [2, 128], strides = [1, 1]} : vector<4x128xf32> to vector<2x128xf32>
    %944 = tpu.concatenate %942, %943 in 0 : vector<2x128xf32>, vector<2x128xf32> -> vector<4x128xf32>
    %945 = vector.extract_strided_slice %930 {offsets = [0, 1], sizes = [4, 1], strides = [1, 1]} : vector<4x9xf32> to vector<4x1xf32>
    %946 = vector.broadcast %945 : vector<4x1xf32> to vector<4x128xf32>
    %947 = arith.mulf %944, %946 : vector<4x128xf32>
    %948 = vector.extract_strided_slice %929 {offsets = [1, 0], sizes = [1, 128], strides = [1, 1]} : vector<9x128xf32> to vector<1x128xf32>
    %949 = vector.broadcast %948 : vector<1x128xf32> to vector<4x128xf32>
    %950 = arith.mulf %947, %949 : vector<4x128xf32>
    %951 = arith.addf %941, %950 : vector<4x128xf32>
    %cst_179 = arith.constant 0.000000e+00 : f32
    %952 = vector.broadcast %cst_179 : f32 to vector<1x128xf32>
    %953 = vector.extract_strided_slice %928 {offsets = [0, 0], sizes = [3, 128], strides = [1, 1]} : vector<4x128xf32> to vector<3x128xf32>
    %954 = tpu.concatenate %952, %953 in 0 : vector<1x128xf32>, vector<3x128xf32> -> vector<4x128xf32>
    %955 = vector.extract_strided_slice %930 {offsets = [0, 2], sizes = [4, 1], strides = [1, 1]} : vector<4x9xf32> to vector<4x1xf32>
    %956 = vector.broadcast %955 : vector<4x1xf32> to vector<4x128xf32>
    %957 = arith.mulf %954, %956 : vector<4x128xf32>
    %958 = vector.extract_strided_slice %929 {offsets = [2, 0], sizes = [1, 128], strides = [1, 1]} : vector<9x128xf32> to vector<1x128xf32>
    %959 = vector.broadcast %958 : vector<1x128xf32> to vector<4x128xf32>
    %960 = arith.mulf %957, %959 : vector<4x128xf32>
    %961 = arith.addf %951, %960 : vector<4x128xf32>
    %cst_180 = arith.constant 0.000000e+00 : f32
    %962 = vector.broadcast %cst_180 : f32 to vector<1x128xf32>
    %963 = vector.extract_strided_slice %928 {offsets = [0, 0], sizes = [3, 128], strides = [1, 1]} : vector<4x128xf32> to vector<3x128xf32>
    %964 = tpu.concatenate %962, %963 in 0 : vector<1x128xf32>, vector<3x128xf32> -> vector<4x128xf32>
    %965 = vector.extract_strided_slice %930 {offsets = [0, 3], sizes = [4, 1], strides = [1, 1]} : vector<4x9xf32> to vector<4x1xf32>
    %966 = vector.broadcast %965 : vector<4x1xf32> to vector<4x128xf32>
    %967 = arith.mulf %964, %966 : vector<4x128xf32>
    %968 = vector.extract_strided_slice %929 {offsets = [3, 0], sizes = [1, 128], strides = [1, 1]} : vector<9x128xf32> to vector<1x128xf32>
    %969 = vector.broadcast %968 : vector<1x128xf32> to vector<4x128xf32>
    %970 = arith.mulf %967, %969 : vector<4x128xf32>
    %971 = arith.addf %961, %970 : vector<4x128xf32>
    %972 = vector.extract_strided_slice %930 {offsets = [0, 4], sizes = [4, 1], strides = [1, 1]} : vector<4x9xf32> to vector<4x1xf32>
    %973 = vector.broadcast %972 : vector<4x1xf32> to vector<4x128xf32>
    %974 = arith.mulf %928, %973 : vector<4x128xf32>
    %975 = vector.extract_strided_slice %929 {offsets = [4, 0], sizes = [1, 128], strides = [1, 1]} : vector<9x128xf32> to vector<1x128xf32>
    %976 = vector.broadcast %975 : vector<1x128xf32> to vector<4x128xf32>
    %977 = arith.mulf %974, %976 : vector<4x128xf32>
    %978 = arith.addf %971, %977 : vector<4x128xf32>
    %cst_181 = arith.constant 0.000000e+00 : f32
    %979 = vector.broadcast %cst_181 : f32 to vector<1x128xf32>
    %980 = vector.extract_strided_slice %928 {offsets = [1, 0], sizes = [3, 128], strides = [1, 1]} : vector<4x128xf32> to vector<3x128xf32>
    %981 = tpu.concatenate %980, %979 in 0 : vector<3x128xf32>, vector<1x128xf32> -> vector<4x128xf32>
    %982 = vector.extract_strided_slice %930 {offsets = [0, 5], sizes = [4, 1], strides = [1, 1]} : vector<4x9xf32> to vector<4x1xf32>
    %983 = vector.broadcast %982 : vector<4x1xf32> to vector<4x128xf32>
    %984 = arith.mulf %981, %983 : vector<4x128xf32>
    %985 = vector.extract_strided_slice %929 {offsets = [5, 0], sizes = [1, 128], strides = [1, 1]} : vector<9x128xf32> to vector<1x128xf32>
    %986 = vector.broadcast %985 : vector<1x128xf32> to vector<4x128xf32>
    %987 = arith.mulf %984, %986 : vector<4x128xf32>
    %988 = arith.addf %978, %987 : vector<4x128xf32>
    %cst_182 = arith.constant 0.000000e+00 : f32
    %989 = vector.broadcast %cst_182 : f32 to vector<1x128xf32>
    %990 = vector.extract_strided_slice %928 {offsets = [1, 0], sizes = [3, 128], strides = [1, 1]} : vector<4x128xf32> to vector<3x128xf32>
    %991 = tpu.concatenate %990, %989 in 0 : vector<3x128xf32>, vector<1x128xf32> -> vector<4x128xf32>
    %992 = vector.extract_strided_slice %930 {offsets = [0, 6], sizes = [4, 1], strides = [1, 1]} : vector<4x9xf32> to vector<4x1xf32>
    %993 = vector.broadcast %992 : vector<4x1xf32> to vector<4x128xf32>
    %994 = arith.mulf %991, %993 : vector<4x128xf32>
    %995 = vector.extract_strided_slice %929 {offsets = [6, 0], sizes = [1, 128], strides = [1, 1]} : vector<9x128xf32> to vector<1x128xf32>
    %996 = vector.broadcast %995 : vector<1x128xf32> to vector<4x128xf32>
    %997 = arith.mulf %994, %996 : vector<4x128xf32>
    %998 = arith.addf %988, %997 : vector<4x128xf32>
    %cst_183 = arith.constant 0.000000e+00 : f32
    %999 = vector.broadcast %cst_183 : f32 to vector<2x128xf32>
    %1000 = vector.extract_strided_slice %928 {offsets = [2, 0], sizes = [2, 128], strides = [1, 1]} : vector<4x128xf32> to vector<2x128xf32>
    %1001 = tpu.concatenate %1000, %999 in 0 : vector<2x128xf32>, vector<2x128xf32> -> vector<4x128xf32>
    %1002 = vector.extract_strided_slice %930 {offsets = [0, 7], sizes = [4, 1], strides = [1, 1]} : vector<4x9xf32> to vector<4x1xf32>
    %1003 = vector.broadcast %1002 : vector<4x1xf32> to vector<4x128xf32>
    %1004 = arith.mulf %1001, %1003 : vector<4x128xf32>
    %1005 = vector.extract_strided_slice %929 {offsets = [7, 0], sizes = [1, 128], strides = [1, 1]} : vector<9x128xf32> to vector<1x128xf32>
    %1006 = vector.broadcast %1005 : vector<1x128xf32> to vector<4x128xf32>
    %1007 = arith.mulf %1004, %1006 : vector<4x128xf32>
    %1008 = arith.addf %998, %1007 : vector<4x128xf32>
    %cst_184 = arith.constant 0.000000e+00 : f32
    %1009 = vector.broadcast %cst_184 : f32 to vector<3x128xf32>
    %1010 = vector.extract_strided_slice %928 {offsets = [3, 0], sizes = [1, 128], strides = [1, 1]} : vector<4x128xf32> to vector<1x128xf32>
    %1011 = tpu.concatenate %1010, %1009 in 0 : vector<1x128xf32>, vector<3x128xf32> -> vector<4x128xf32>
    %1012 = vector.extract_strided_slice %930 {offsets = [0, 8], sizes = [4, 1], strides = [1, 1]} : vector<4x9xf32> to vector<4x1xf32>
    %1013 = vector.broadcast %1012 : vector<4x1xf32> to vector<4x128xf32>
    %1014 = arith.mulf %1011, %1013 : vector<4x128xf32>
    %1015 = vector.extract_strided_slice %929 {offsets = [8, 0], sizes = [1, 128], strides = [1, 1]} : vector<9x128xf32> to vector<1x128xf32>
    %1016 = vector.broadcast %1015 : vector<1x128xf32> to vector<4x128xf32>
    %1017 = arith.mulf %1014, %1016 : vector<4x128xf32>
    %1018 = arith.addf %1008, %1017 : vector<4x128xf32>
    %c0_185 = arith.constant 0 : index
    %c0_186 = arith.constant 0 : index
    %1019 = vector.load %arg26[%c0_185, %c0_186] : memref<128x128xf32, #tpu.memory_space<vmem>>, vector<128x128xf32>
    %cst_187 = arith.constant dense<0.000000e+00> : vector<4x128xf32>
    %1020 = tpu.matmul %1018, %1019, %cst_187 {dimension_numbers = #tpu.dot_dimension_numbers<[1], [0], [0], [1], [0, 0, 1, 1], [], []>} : vector<4x128xf32>, vector<128x128xf32>, vector<4x128xf32> -> vector<4x128xf32>
    %c0_188 = arith.constant 0 : index
    %c0_189 = arith.constant 0 : index
    %1021 = vector.load %arg14[%c0_188, %c0_189] : memref<9x128xf32, #tpu.memory_space<vmem>>, vector<9x128xf32>
    %c0_190 = arith.constant 0 : index
    %c0_191 = arith.constant 0 : index
    %1022 = vector.load %arg32[%c0_190, %c0_191] : memref<4x9xf32, #tpu.memory_space<vmem>>, vector<4x9xf32>
    %cst_192 = arith.constant 0.000000e+00 : f32
    %1023 = vector.broadcast %cst_192 : f32 to vector<4x128xf32>
    %cst_193 = arith.constant 0.000000e+00 : f32
    %1024 = vector.broadcast %cst_193 : f32 to vector<3x128xf32>
    %1025 = vector.extract_strided_slice %1020 {offsets = [0, 0], sizes = [1, 128], strides = [1, 1]} : vector<4x128xf32> to vector<1x128xf32>
    %1026 = tpu.concatenate %1024, %1025 in 0 : vector<3x128xf32>, vector<1x128xf32> -> vector<4x128xf32>
    %1027 = vector.extract_strided_slice %1022 {offsets = [0, 0], sizes = [4, 1], strides = [1, 1]} : vector<4x9xf32> to vector<4x1xf32>
    %1028 = vector.broadcast %1027 : vector<4x1xf32> to vector<4x128xf32>
    %1029 = arith.mulf %1026, %1028 : vector<4x128xf32>
    %1030 = vector.extract_strided_slice %1021 {offsets = [0, 0], sizes = [1, 128], strides = [1, 1]} : vector<9x128xf32> to vector<1x128xf32>
    %1031 = vector.broadcast %1030 : vector<1x128xf32> to vector<4x128xf32>
    %1032 = arith.mulf %1029, %1031 : vector<4x128xf32>
    %1033 = arith.addf %1023, %1032 : vector<4x128xf32>
    %cst_194 = arith.constant 0.000000e+00 : f32
    %1034 = vector.broadcast %cst_194 : f32 to vector<2x128xf32>
    %1035 = vector.extract_strided_slice %1020 {offsets = [0, 0], sizes = [2, 128], strides = [1, 1]} : vector<4x128xf32> to vector<2x128xf32>
    %1036 = tpu.concatenate %1034, %1035 in 0 : vector<2x128xf32>, vector<2x128xf32> -> vector<4x128xf32>
    %1037 = vector.extract_strided_slice %1022 {offsets = [0, 1], sizes = [4, 1], strides = [1, 1]} : vector<4x9xf32> to vector<4x1xf32>
    %1038 = vector.broadcast %1037 : vector<4x1xf32> to vector<4x128xf32>
    %1039 = arith.mulf %1036, %1038 : vector<4x128xf32>
    %1040 = vector.extract_strided_slice %1021 {offsets = [1, 0], sizes = [1, 128], strides = [1, 1]} : vector<9x128xf32> to vector<1x128xf32>
    %1041 = vector.broadcast %1040 : vector<1x128xf32> to vector<4x128xf32>
    %1042 = arith.mulf %1039, %1041 : vector<4x128xf32>
    %1043 = arith.addf %1033, %1042 : vector<4x128xf32>
    %cst_195 = arith.constant 0.000000e+00 : f32
    %1044 = vector.broadcast %cst_195 : f32 to vector<1x128xf32>
    %1045 = vector.extract_strided_slice %1020 {offsets = [0, 0], sizes = [3, 128], strides = [1, 1]} : vector<4x128xf32> to vector<3x128xf32>
    %1046 = tpu.concatenate %1044, %1045 in 0 : vector<1x128xf32>, vector<3x128xf32> -> vector<4x128xf32>
    %1047 = vector.extract_strided_slice %1022 {offsets = [0, 2], sizes = [4, 1], strides = [1, 1]} : vector<4x9xf32> to vector<4x1xf32>
    %1048 = vector.broadcast %1047 : vector<4x1xf32> to vector<4x128xf32>
    %1049 = arith.mulf %1046, %1048 : vector<4x128xf32>
    %1050 = vector.extract_strided_slice %1021 {offsets = [2, 0], sizes = [1, 128], strides = [1, 1]} : vector<9x128xf32> to vector<1x128xf32>
    %1051 = vector.broadcast %1050 : vector<1x128xf32> to vector<4x128xf32>
    %1052 = arith.mulf %1049, %1051 : vector<4x128xf32>
    %1053 = arith.addf %1043, %1052 : vector<4x128xf32>
    %cst_196 = arith.constant 0.000000e+00 : f32
    %1054 = vector.broadcast %cst_196 : f32 to vector<1x128xf32>
    %1055 = vector.extract_strided_slice %1020 {offsets = [0, 0], sizes = [3, 128], strides = [1, 1]} : vector<4x128xf32> to vector<3x128xf32>
    %1056 = tpu.concatenate %1054, %1055 in 0 : vector<1x128xf32>, vector<3x128xf32> -> vector<4x128xf32>
    %1057 = vector.extract_strided_slice %1022 {offsets = [0, 3], sizes = [4, 1], strides = [1, 1]} : vector<4x9xf32> to vector<4x1xf32>
    %1058 = vector.broadcast %1057 : vector<4x1xf32> to vector<4x128xf32>
    %1059 = arith.mulf %1056, %1058 : vector<4x128xf32>
    %1060 = vector.extract_strided_slice %1021 {offsets = [3, 0], sizes = [1, 128], strides = [1, 1]} : vector<9x128xf32> to vector<1x128xf32>
    %1061 = vector.broadcast %1060 : vector<1x128xf32> to vector<4x128xf32>
    %1062 = arith.mulf %1059, %1061 : vector<4x128xf32>
    %1063 = arith.addf %1053, %1062 : vector<4x128xf32>
    %1064 = vector.extract_strided_slice %1022 {offsets = [0, 4], sizes = [4, 1], strides = [1, 1]} : vector<4x9xf32> to vector<4x1xf32>
    %1065 = vector.broadcast %1064 : vector<4x1xf32> to vector<4x128xf32>
    %1066 = arith.mulf %1020, %1065 : vector<4x128xf32>
    %1067 = vector.extract_strided_slice %1021 {offsets = [4, 0], sizes = [1, 128], strides = [1, 1]} : vector<9x128xf32> to vector<1x128xf32>
    %1068 = vector.broadcast %1067 : vector<1x128xf32> to vector<4x128xf32>
    %1069 = arith.mulf %1066, %1068 : vector<4x128xf32>
    %1070 = arith.addf %1063, %1069 : vector<4x128xf32>
    %cst_197 = arith.constant 0.000000e+00 : f32
    %1071 = vector.broadcast %cst_197 : f32 to vector<1x128xf32>
    %1072 = vector.extract_strided_slice %1020 {offsets = [1, 0], sizes = [3, 128], strides = [1, 1]} : vector<4x128xf32> to vector<3x128xf32>
    %1073 = tpu.concatenate %1072, %1071 in 0 : vector<3x128xf32>, vector<1x128xf32> -> vector<4x128xf32>
    %1074 = vector.extract_strided_slice %1022 {offsets = [0, 5], sizes = [4, 1], strides = [1, 1]} : vector<4x9xf32> to vector<4x1xf32>
    %1075 = vector.broadcast %1074 : vector<4x1xf32> to vector<4x128xf32>
    %1076 = arith.mulf %1073, %1075 : vector<4x128xf32>
    %1077 = vector.extract_strided_slice %1021 {offsets = [5, 0], sizes = [1, 128], strides = [1, 1]} : vector<9x128xf32> to vector<1x128xf32>
    %1078 = vector.broadcast %1077 : vector<1x128xf32> to vector<4x128xf32>
    %1079 = arith.mulf %1076, %1078 : vector<4x128xf32>
    %1080 = arith.addf %1070, %1079 : vector<4x128xf32>
    %cst_198 = arith.constant 0.000000e+00 : f32
    %1081 = vector.broadcast %cst_198 : f32 to vector<1x128xf32>
    %1082 = vector.extract_strided_slice %1020 {offsets = [1, 0], sizes = [3, 128], strides = [1, 1]} : vector<4x128xf32> to vector<3x128xf32>
    %1083 = tpu.concatenate %1082, %1081 in 0 : vector<3x128xf32>, vector<1x128xf32> -> vector<4x128xf32>
    %1084 = vector.extract_strided_slice %1022 {offsets = [0, 6], sizes = [4, 1], strides = [1, 1]} : vector<4x9xf32> to vector<4x1xf32>
    %1085 = vector.broadcast %1084 : vector<4x1xf32> to vector<4x128xf32>
    %1086 = arith.mulf %1083, %1085 : vector<4x128xf32>
    %1087 = vector.extract_strided_slice %1021 {offsets = [6, 0], sizes = [1, 128], strides = [1, 1]} : vector<9x128xf32> to vector<1x128xf32>
    %1088 = vector.broadcast %1087 : vector<1x128xf32> to vector<4x128xf32>
    %1089 = arith.mulf %1086, %1088 : vector<4x128xf32>
    %1090 = arith.addf %1080, %1089 : vector<4x128xf32>
    %cst_199 = arith.constant 0.000000e+00 : f32
    %1091 = vector.broadcast %cst_199 : f32 to vector<2x128xf32>
    %1092 = vector.extract_strided_slice %1020 {offsets = [2, 0], sizes = [2, 128], strides = [1, 1]} : vector<4x128xf32> to vector<2x128xf32>
    %1093 = tpu.concatenate %1092, %1091 in 0 : vector<2x128xf32>, vector<2x128xf32> -> vector<4x128xf32>
    %1094 = vector.extract_strided_slice %1022 {offsets = [0, 7], sizes = [4, 1], strides = [1, 1]} : vector<4x9xf32> to vector<4x1xf32>
    %1095 = vector.broadcast %1094 : vector<4x1xf32> to vector<4x128xf32>
    %1096 = arith.mulf %1093, %1095 : vector<4x128xf32>
    %1097 = vector.extract_strided_slice %1021 {offsets = [7, 0], sizes = [1, 128], strides = [1, 1]} : vector<9x128xf32> to vector<1x128xf32>
    %1098 = vector.broadcast %1097 : vector<1x128xf32> to vector<4x128xf32>
    %1099 = arith.mulf %1096, %1098 : vector<4x128xf32>
    %1100 = arith.addf %1090, %1099 : vector<4x128xf32>
    %cst_200 = arith.constant 0.000000e+00 : f32
    %1101 = vector.broadcast %cst_200 : f32 to vector<3x128xf32>
    %1102 = vector.extract_strided_slice %1020 {offsets = [3, 0], sizes = [1, 128], strides = [1, 1]} : vector<4x128xf32> to vector<1x128xf32>
    %1103 = tpu.concatenate %1102, %1101 in 0 : vector<1x128xf32>, vector<3x128xf32> -> vector<4x128xf32>
    %1104 = vector.extract_strided_slice %1022 {offsets = [0, 8], sizes = [4, 1], strides = [1, 1]} : vector<4x9xf32> to vector<4x1xf32>
    %1105 = vector.broadcast %1104 : vector<4x1xf32> to vector<4x128xf32>
    %1106 = arith.mulf %1103, %1105 : vector<4x128xf32>
    %1107 = vector.extract_strided_slice %1021 {offsets = [8, 0], sizes = [1, 128], strides = [1, 1]} : vector<9x128xf32> to vector<1x128xf32>
    %1108 = vector.broadcast %1107 : vector<1x128xf32> to vector<4x128xf32>
    %1109 = arith.mulf %1106, %1108 : vector<4x128xf32>
    %1110 = arith.addf %1100, %1109 : vector<4x128xf32>
    %c0_201 = arith.constant 0 : index
    %c0_202 = arith.constant 0 : index
    %1111 = vector.load %arg37[%c0_201, %c0_202] : memref<1x4xf32, #tpu.memory_space<vmem>>, vector<1x4xf32>
    %cst_203 = arith.constant dense<0.000000e+00> : vector<1x128xf32>
    %1112 = tpu.matmul %1111, %1110, %cst_203 {dimension_numbers = #tpu.dot_dimension_numbers<[1], [0], [0], [1], [0, 0, 1, 1], [], []>} : vector<1x4xf32>, vector<4x128xf32>, vector<1x128xf32> -> vector<1x128xf32>
    %c0_204 = arith.constant 0 : index
    %c0_205 = arith.constant 0 : index
    %1113 = vector.load %arg27[%c0_204, %c0_205] : memref<128x256xf32, #tpu.memory_space<vmem>>, vector<128x256xf32>
    %cst_206 = arith.constant dense<0.000000e+00> : vector<1x256xf32>
    %1114 = tpu.matmul %1112, %1113, %cst_206 {dimension_numbers = #tpu.dot_dimension_numbers<[1], [0], [0], [1], [0, 0, 1, 1], [], []>} : vector<1x128xf32>, vector<128x256xf32>, vector<1x256xf32> -> vector<1x256xf32>
    %c0_207 = arith.constant 0 : index
    %c0_208 = arith.constant 0 : index
    %1115 = vector.load %arg15[%c0_207, %c0_208] : memref<9x256xf32, #tpu.memory_space<vmem>>, vector<9x256xf32>
    %c0_209 = arith.constant 0 : index
    %c0_210 = arith.constant 0 : index
    %1116 = vector.load %arg33[%c0_209, %c0_210] : memref<1x9xf32, #tpu.memory_space<vmem>>, vector<1x9xf32>
    %cst_211 = arith.constant 0.000000e+00 : f32
    %1117 = vector.broadcast %cst_211 : f32 to vector<1x256xf32>
    %cst_212 = arith.constant 0.000000e+00 : f32
    %1118 = vector.broadcast %cst_212 : f32 to vector<1x256xf32>
    %1119 = vector.extract_strided_slice %1116 {offsets = [0, 0], sizes = [1, 1], strides = [1, 1]} : vector<1x9xf32> to vector<1x1xf32>
    %1120 = vector.broadcast %1119 : vector<1x1xf32> to vector<1x256xf32>
    %1121 = arith.mulf %1118, %1120 : vector<1x256xf32>
    %1122 = vector.extract_strided_slice %1115 {offsets = [0, 0], sizes = [1, 256], strides = [1, 1]} : vector<9x256xf32> to vector<1x256xf32>
    %1123 = arith.mulf %1121, %1122 : vector<1x256xf32>
    %1124 = arith.addf %1117, %1123 : vector<1x256xf32>
    %cst_213 = arith.constant 0.000000e+00 : f32
    %1125 = vector.broadcast %cst_213 : f32 to vector<1x256xf32>
    %1126 = vector.extract_strided_slice %1116 {offsets = [0, 1], sizes = [1, 1], strides = [1, 1]} : vector<1x9xf32> to vector<1x1xf32>
    %1127 = vector.broadcast %1126 : vector<1x1xf32> to vector<1x256xf32>
    %1128 = arith.mulf %1125, %1127 : vector<1x256xf32>
    %1129 = vector.extract_strided_slice %1115 {offsets = [1, 0], sizes = [1, 256], strides = [1, 1]} : vector<9x256xf32> to vector<1x256xf32>
    %1130 = arith.mulf %1128, %1129 : vector<1x256xf32>
    %1131 = arith.addf %1124, %1130 : vector<1x256xf32>
    %1132 = vector.extract_strided_slice %1116 {offsets = [0, 2], sizes = [1, 1], strides = [1, 1]} : vector<1x9xf32> to vector<1x1xf32>
    %1133 = vector.broadcast %1132 : vector<1x1xf32> to vector<1x256xf32>
    %1134 = arith.mulf %1114, %1133 : vector<1x256xf32>
    %1135 = vector.extract_strided_slice %1115 {offsets = [2, 0], sizes = [1, 256], strides = [1, 1]} : vector<9x256xf32> to vector<1x256xf32>
    %1136 = arith.mulf %1134, %1135 : vector<1x256xf32>
    %1137 = arith.addf %1131, %1136 : vector<1x256xf32>
    %cst_214 = arith.constant 0.000000e+00 : f32
    %1138 = vector.broadcast %cst_214 : f32 to vector<1x256xf32>
    %1139 = vector.extract_strided_slice %1116 {offsets = [0, 3], sizes = [1, 1], strides = [1, 1]} : vector<1x9xf32> to vector<1x1xf32>
    %1140 = vector.broadcast %1139 : vector<1x1xf32> to vector<1x256xf32>
    %1141 = arith.mulf %1138, %1140 : vector<1x256xf32>
    %1142 = vector.extract_strided_slice %1115 {offsets = [3, 0], sizes = [1, 256], strides = [1, 1]} : vector<9x256xf32> to vector<1x256xf32>
    %1143 = arith.mulf %1141, %1142 : vector<1x256xf32>
    %1144 = arith.addf %1137, %1143 : vector<1x256xf32>
    %1145 = vector.extract_strided_slice %1116 {offsets = [0, 4], sizes = [1, 1], strides = [1, 1]} : vector<1x9xf32> to vector<1x1xf32>
    %1146 = vector.broadcast %1145 : vector<1x1xf32> to vector<1x256xf32>
    %1147 = arith.mulf %1114, %1146 : vector<1x256xf32>
    %1148 = vector.extract_strided_slice %1115 {offsets = [4, 0], sizes = [1, 256], strides = [1, 1]} : vector<9x256xf32> to vector<1x256xf32>
    %1149 = arith.mulf %1147, %1148 : vector<1x256xf32>
    %1150 = arith.addf %1144, %1149 : vector<1x256xf32>
    %cst_215 = arith.constant 0.000000e+00 : f32
    %1151 = vector.broadcast %cst_215 : f32 to vector<1x256xf32>
    %1152 = vector.extract_strided_slice %1116 {offsets = [0, 5], sizes = [1, 1], strides = [1, 1]} : vector<1x9xf32> to vector<1x1xf32>
    %1153 = vector.broadcast %1152 : vector<1x1xf32> to vector<1x256xf32>
    %1154 = arith.mulf %1151, %1153 : vector<1x256xf32>
    %1155 = vector.extract_strided_slice %1115 {offsets = [5, 0], sizes = [1, 256], strides = [1, 1]} : vector<9x256xf32> to vector<1x256xf32>
    %1156 = arith.mulf %1154, %1155 : vector<1x256xf32>
    %1157 = arith.addf %1150, %1156 : vector<1x256xf32>
    %1158 = vector.extract_strided_slice %1116 {offsets = [0, 6], sizes = [1, 1], strides = [1, 1]} : vector<1x9xf32> to vector<1x1xf32>
    %1159 = vector.broadcast %1158 : vector<1x1xf32> to vector<1x256xf32>
    %1160 = arith.mulf %1114, %1159 : vector<1x256xf32>
    %1161 = vector.extract_strided_slice %1115 {offsets = [6, 0], sizes = [1, 256], strides = [1, 1]} : vector<9x256xf32> to vector<1x256xf32>
    %1162 = arith.mulf %1160, %1161 : vector<1x256xf32>
    %1163 = arith.addf %1157, %1162 : vector<1x256xf32>
    %cst_216 = arith.constant 0.000000e+00 : f32
    %1164 = vector.broadcast %cst_216 : f32 to vector<1x256xf32>
    %1165 = vector.extract_strided_slice %1116 {offsets = [0, 7], sizes = [1, 1], strides = [1, 1]} : vector<1x9xf32> to vector<1x1xf32>
    %1166 = vector.broadcast %1165 : vector<1x1xf32> to vector<1x256xf32>
    %1167 = arith.mulf %1164, %1166 : vector<1x256xf32>
    %1168 = vector.extract_strided_slice %1115 {offsets = [7, 0], sizes = [1, 256], strides = [1, 1]} : vector<9x256xf32> to vector<1x256xf32>
    %1169 = arith.mulf %1167, %1168 : vector<1x256xf32>
    %1170 = arith.addf %1163, %1169 : vector<1x256xf32>
    %cst_217 = arith.constant 0.000000e+00 : f32
    %1171 = vector.broadcast %cst_217 : f32 to vector<1x256xf32>
    %1172 = vector.extract_strided_slice %1116 {offsets = [0, 8], sizes = [1, 1], strides = [1, 1]} : vector<1x9xf32> to vector<1x1xf32>
    %1173 = vector.broadcast %1172 : vector<1x1xf32> to vector<1x256xf32>
    %1174 = arith.mulf %1171, %1173 : vector<1x256xf32>
    %1175 = vector.extract_strided_slice %1115 {offsets = [8, 0], sizes = [1, 256], strides = [1, 1]} : vector<9x256xf32> to vector<1x256xf32>
    %1176 = arith.mulf %1174, %1175 : vector<1x256xf32>
    %1177 = arith.addf %1170, %1176 : vector<1x256xf32>
    %c0_218 = arith.constant 0 : index
    %c0_219 = arith.constant 0 : index
    %1178 = vector.load %arg28[%c0_218, %c0_219] : memref<256x256xf32, #tpu.memory_space<vmem>>, vector<256x256xf32>
    %cst_220 = arith.constant dense<0.000000e+00> : vector<1x256xf32>
    %1179 = tpu.matmul %1177, %1178, %cst_220 {dimension_numbers = #tpu.dot_dimension_numbers<[1], [0], [0], [1], [0, 0, 1, 1], [], []>} : vector<1x256xf32>, vector<256x256xf32>, vector<1x256xf32> -> vector<1x256xf32>
    %cst_221 = arith.constant dense<0.000000e+00> : vector<256xf32>
    %1180 = vector.multi_reduction <add>, %1179, %cst_221 [0] : vector<1x256xf32> to vector<256xf32>
    %1181 = vector.shape_cast %1180 : vector<256xf32> to vector<1x256xf32>
    %cst_222 = arith.constant 1.000000e+00 : f32
    %1182 = vector.broadcast %cst_222 : f32 to vector<1x256xf32>
    %1183 = arith.divf %1181, %1182 : vector<1x256xf32>
    %c0_223 = arith.constant 0 : index
    %c0_224 = arith.constant 0 : index
    %1184 = vector.load %arg38[%c0_223, %c0_224] : memref<256x2xf32, #tpu.memory_space<vmem>>, vector<256x2xf32>
    %cst_225 = arith.constant dense<0.000000e+00> : vector<1x2xf32>
    %1185 = tpu.matmul %1183, %1184, %cst_225 {dimension_numbers = #tpu.dot_dimension_numbers<[1], [0], [0], [1], [0, 0, 1, 1], [], []>} : vector<1x256xf32>, vector<256x2xf32>, vector<1x2xf32> -> vector<1x2xf32>
    %c0_226 = arith.constant 0 : index
    %c0_227 = arith.constant 0 : index
    %1186 = vector.load %arg39[%c0_226, %c0_227] : memref<1x2xf32, #tpu.memory_space<vmem>>, vector<1x2xf32>
    %1187 = arith.addf %1185, %1186 : vector<1x2xf32>
    %c0_228 = arith.constant 0 : index
    %c0_229 = arith.constant 0 : index
    %c0_230 = arith.constant 0 : index
    %1188 = vector.load %arg40[%c0_228, %c0_229, %c0_230] : memref<1x1x2xf32, #tpu.memory_space<vmem>>, vector<1x1x2xf32>
    %1189 = vector.shape_cast %1188 : vector<1x1x2xf32> to vector<1x2xf32>
    %1190 = vector.shape_cast %1187 : vector<1x2xf32> to vector<1x1x2xf32>
    tpu.vector_store %arg40[%c0_228, %c0_229, %c0_230], %1190 {strides = array<i32>} : memref<1x1x2xf32, #tpu.memory_space<vmem>>, vector<1x1x2xf32>,
    return
  }
  func.func @transform_0(%arg0: i32) -> (i32, i32) {
    %c0_i32 = arith.constant 0 : i32
    %c0_i32_0 = arith.constant 0 : i32
    return %arg0, %c0_i32 : i32, i32
  }
  func.func @transform_1(%arg0: i32) -> (i32, i32) {
    %c0_i32 = arith.constant 0 : i32
    %c0_i32_0 = arith.constant 0 : i32
    %c0_i32_1 = arith.constant 0 : i32
    return %c0_i32, %c0_i32_0 : i32, i32
  }
  func.func @transform_2(%arg0: i32) -> (i32, i32) {
    %c0_i32 = arith.constant 0 : i32
    %c0_i32_0 = arith.constant 0 : i32
    %c0_i32_1 = arith.constant 0 : i32
    return %c0_i32, %c0_i32_0 : i32, i32
  }
  func.func @transform_3(%arg0: i32) -> (i32, i32) {
    %c0_i32 = arith.constant 0 : i32
    %c0_i32_0 = arith.constant 0 : i32
    %c0_i32_1 = arith.constant 0 : i32
    return %c0_i32, %c0_i32_0 : i32, i32
  }
  func.func @transform_4(%arg0: i32) -> (i32, i32) {
    %c0_i32 = arith.constant 0 : i32
    %c0_i32_0 = arith.constant 0 : i32
    %c0_i32_1 = arith.constant 0 : i32
    return %c0_i32, %c0_i32_0 : i32, i32
  }
  func.func @transform_5(%arg0: i32) -> (i32, i32) {
    %c0_i32 = arith.constant 0 : i32
    %c0_i32_0 = arith.constant 0 : i32
    %c0_i32_1 = arith.constant 0 : i32
    return %c0_i32, %c0_i32_0 : i32, i32
  }
  func.func @transform_6(%arg0: i32) -> (i32, i32) {
    %c0_i32 = arith.constant 0 : i32
    %c0_i32_0 = arith.constant 0 : i32
    %c0_i32_1 = arith.constant 0 : i32
    return %c0_i32, %c0_i32_0 : i32, i32
  }
  func.func @transform_7(%arg0: i32) -> (i32, i32) {
    %c0_i32 = arith.constant 0 : i32
    %c0_i32_0 = arith.constant 0 : i32
    %c0_i32_1 = arith.constant 0 : i32
    return %c0_i32, %c0_i32_0 : i32, i32
  }
  func.func @transform_8(%arg0: i32) -> (i32, i32) {
    %c0_i32 = arith.constant 0 : i32
    %c0_i32_0 = arith.constant 0 : i32
    %c0_i32_1 = arith.constant 0 : i32
    return %c0_i32, %c0_i32_0 : i32, i32
  }
  func.func @transform_9(%arg0: i32) -> (i32, i32) {
    %c0_i32 = arith.constant 0 : i32
    %c0_i32_0 = arith.constant 0 : i32
    %c0_i32_1 = arith.constant 0 : i32
    return %c0_i32, %c0_i32_0 : i32, i32
  }
  func.func @transform_10(%arg0: i32) -> (i32, i32) {
    %c0_i32 = arith.constant 0 : i32
    %c0_i32_0 = arith.constant 0 : i32
    %c0_i32_1 = arith.constant 0 : i32
    return %c0_i32, %c0_i32_0 : i32, i32
  }
  func.func @transform_11(%arg0: i32) -> (i32, i32) {
    %c0_i32 = arith.constant 0 : i32
    %c0_i32_0 = arith.constant 0 : i32
    %c0_i32_1 = arith.constant 0 : i32
    return %c0_i32, %c0_i32_0 : i32, i32
  }
  func.func @transform_12(%arg0: i32) -> (i32, i32) {
    %c0_i32 = arith.constant 0 : i32
    %c0_i32_0 = arith.constant 0 : i32
    %c0_i32_1 = arith.constant 0 : i32
    return %c0_i32, %c0_i32_0 : i32, i32
  }
  func.func @transform_13(%arg0: i32) -> (i32, i32) {
    %c0_i32 = arith.constant 0 : i32
    %c0_i32_0 = arith.constant 0 : i32
    %c0_i32_1 = arith.constant 0 : i32
    return %c0_i32, %c0_i32_0 : i32, i32
  }
  func.func @transform_14(%arg0: i32) -> (i32, i32) {
    %c0_i32 = arith.constant 0 : i32
    %c0_i32_0 = arith.constant 0 : i32
    %c0_i32_1 = arith.constant 0 : i32
    return %c0_i32, %c0_i32_0 : i32, i32
  }
  func.func @transform_15(%arg0: i32) -> (i32, i32) {
    %c0_i32 = arith.constant 0 : i32
    %c0_i32_0 = arith.constant 0 : i32
    %c0_i32_1 = arith.constant 0 : i32
    return %c0_i32, %c0_i32_0 : i32, i32
  }
  func.func @transform_16(%arg0: i32) -> (i32, i32) {
    %c0_i32 = arith.constant 0 : i32
    %c0_i32_0 = arith.constant 0 : i32
    %c0_i32_1 = arith.constant 0 : i32
    return %c0_i32, %c0_i32_0 : i32, i32
  }
  func.func @transform_17(%arg0: i32) -> (i32, i32) {
    %c0_i32 = arith.constant 0 : i32
    %c0_i32_0 = arith.constant 0 : i32
    %c0_i32_1 = arith.constant 0 : i32
    return %c0_i32, %c0_i32_0 : i32, i32
  }
  func.func @transform_18(%arg0: i32) -> (i32, i32) {
    %c0_i32 = arith.constant 0 : i32
    %c0_i32_0 = arith.constant 0 : i32
    %c0_i32_1 = arith.constant 0 : i32
    return %c0_i32, %c0_i32_0 : i32, i32
  }
  func.func @transform_19(%arg0: i32) -> (i32, i32) {
    %c0_i32 = arith.constant 0 : i32
    %c0_i32_0 = arith.constant 0 : i32
    %c0_i32_1 = arith.constant 0 : i32
    return %c0_i32, %c0_i32_0 : i32, i32
  }
  func.func @transform_20(%arg0: i32) -> (i32, i32) {
    %c0_i32 = arith.constant 0 : i32
    %c0_i32_0 = arith.constant 0 : i32
    %c0_i32_1 = arith.constant 0 : i32
    return %c0_i32, %c0_i32_0 : i32, i32
  }
  func.func @transform_21(%arg0: i32) -> (i32, i32) {
    %c0_i32 = arith.constant 0 : i32
    %c0_i32_0 = arith.constant 0 : i32
    %c0_i32_1 = arith.constant 0 : i32
    return %c0_i32, %c0_i32_0 : i32, i32
  }
  func.func @transform_22(%arg0: i32) -> (i32, i32) {
    %c0_i32 = arith.constant 0 : i32
    %c0_i32_0 = arith.constant 0 : i32
    %c0_i32_1 = arith.constant 0 : i32
    return %c0_i32, %c0_i32_0 : i32, i32
  }
  func.func @transform_23(%arg0: i32) -> (i32, i32) {
    %c0_i32 = arith.constant 0 : i32
    %c0_i32_0 = arith.constant 0 : i32
    %c0_i32_1 = arith.constant 0 : i32
    return %c0_i32, %c0_i32_0 : i32, i32
  }
  func.func @transform_24(%arg0: i32) -> (i32, i32) {
    %c0_i32 = arith.constant 0 : i32
    %c0_i32_0 = arith.constant 0 : i32
    %c0_i32_1 = arith.constant 0 : i32
    return %c0_i32, %c0_i32_0 : i32, i32
  }
  func.func @transform_25(%arg0: i32) -> (i32, i32) {
    %c0_i32 = arith.constant 0 : i32
    %c0_i32_0 = arith.constant 0 : i32
    %c0_i32_1 = arith.constant 0 : i32
    return %c0_i32, %c0_i32_0 : i32, i32
  }
  func.func @transform_26(%arg0: i32) -> (i32, i32) {
    %c0_i32 = arith.constant 0 : i32
    %c0_i32_0 = arith.constant 0 : i32
    %c0_i32_1 = arith.constant 0 : i32
    return %c0_i32, %c0_i32_0 : i32, i32
  }
  func.func @transform_27(%arg0: i32) -> (i32, i32) {
    %c0_i32 = arith.constant 0 : i32
    %c0_i32_0 = arith.constant 0 : i32
    %c0_i32_1 = arith.constant 0 : i32
    return %c0_i32, %c0_i32_0 : i32, i32
  }
  func.func @transform_28(%arg0: i32) -> (i32, i32) {
    %c0_i32 = arith.constant 0 : i32
    %c0_i32_0 = arith.constant 0 : i32
    %c0_i32_1 = arith.constant 0 : i32
    return %c0_i32, %c0_i32_0 : i32, i32
  }
  func.func @transform_29(%arg0: i32) -> (i32, i32) {
    %c0_i32 = arith.constant 0 : i32
    %c0_i32_0 = arith.constant 0 : i32
    %c0_i32_1 = arith.constant 0 : i32
    return %c0_i32, %c0_i32_0 : i32, i32
  }
  func.func @transform_30(%arg0: i32) -> (i32, i32) {
    %c0_i32 = arith.constant 0 : i32
    %c0_i32_0 = arith.constant 0 : i32
    %c0_i32_1 = arith.constant 0 : i32
    return %c0_i32, %c0_i32_0 : i32, i32
  }
  func.func @transform_31(%arg0: i32) -> (i32, i32) {
    %c0_i32 = arith.constant 0 : i32
    %c0_i32_0 = arith.constant 0 : i32
    %c0_i32_1 = arith.constant 0 : i32
    return %c0_i32, %c0_i32_0 : i32, i32
  }
  func.func @transform_32(%arg0: i32) -> (i32, i32) {
    %c0_i32 = arith.constant 0 : i32
    %c0_i32_0 = arith.constant 0 : i32
    %c0_i32_1 = arith.constant 0 : i32
    return %c0_i32, %c0_i32_0 : i32, i32
  }
  func.func @transform_33(%arg0: i32) -> (i32, i32) {
    %c0_i32 = arith.constant 0 : i32
    %c0_i32_0 = arith.constant 0 : i32
    %c0_i32_1 = arith.constant 0 : i32
    return %c0_i32, %c0_i32_0 : i32, i32
  }
  func.func @transform_34(%arg0: i32) -> (i32, i32) {
    %c0_i32 = arith.constant 0 : i32
    %c0_i32_0 = arith.constant 0 : i32
    %c0_i32_1 = arith.constant 0 : i32
    return %c0_i32, %c0_i32_0 : i32, i32
  }
  func.func @transform_35(%arg0: i32) -> (i32, i32) {
    %c0_i32 = arith.constant 0 : i32
    %c0_i32_0 = arith.constant 0 : i32
    %c0_i32_1 = arith.constant 0 : i32
    return %c0_i32, %c0_i32_0 : i32, i32
  }
  func.func @transform_36(%arg0: i32) -> (i32, i32) {
    %c0_i32 = arith.constant 0 : i32
    %c0_i32_0 = arith.constant 0 : i32
    %c0_i32_1 = arith.constant 0 : i32
    return %c0_i32, %c0_i32_0 : i32, i32
  }
  func.func @transform_37(%arg0: i32) -> (i32, i32) {
    %c0_i32 = arith.constant 0 : i32
    %c0_i32_0 = arith.constant 0 : i32
    %c0_i32_1 = arith.constant 0 : i32
    return %c0_i32, %c0_i32_0 : i32, i32
  }
  func.func @transform_38(%arg0: i32) -> (i32, i32) {
    %c0_i32 = arith.constant 0 : i32
    %c0_i32_0 = arith.constant 0 : i32
    %c0_i32_1 = arith.constant 0 : i32
    return %c0_i32, %c0_i32_0 : i32, i32
  }
  func.func @transform_39(%arg0: i32) -> (i32, i32, i32) {
    %c0_i32 = arith.constant 0 : i32
    %c0_i32_0 = arith.constant 0 : i32
    %c0_i32_1 = arith.constant 0 : i32
    return %arg0, %c0_i32, %c0_i32_0 : i32, i32, i32
  }
}

</mosaic_0001>

<llo_original>
// kernel: tinyml_mobilenetv1_forward.1
$region0: #{tinyml_mobilenetv1_forward.1}
  #allocation0 [shape = 'u32[]', space=smem, size = 0x4, offset = 0x4, fixed_abs, tag = 'smem constant byte address 0x4 - core index']
  #allocation1 [shape = 'u32[144,128]{1,0:T(1,128)}', space=vmem, size = 0x12000, scoped, tag = 'internal scratch']
  %s0 = inlined_call_operand.smem [shape: u32[40], index: -1, kind: input, shape index: {}]
  %s1 = sld [smem:[%s0]]
  %s2 = scalar_lea.smem %s0, 1
  %s3 = sld [smem:[%s2]]
  %s4 = scalar_lea.smem %s0, 2
  %s5 = sld [smem:[%s4]]
  %s6 = scalar_lea.smem %s0, 3
  %s7 = sld [smem:[%s6]]
  %s8 = scalar_lea.smem %s0, 4
  %s9 = sld [smem:[%s8]]
  %s10 = scalar_lea.smem %s0, 5
  %s11 = sld [smem:[%s10]]
  %s12 = scalar_lea.smem %s0, 6
  %s13 = sld [smem:[%s12]]
  %s14 = scalar_lea.smem %s0, 7
  %s15 = sld [smem:[%s14]]
  %s16 = scalar_lea.smem %s0, 8
  %s17 = sld [smem:[%s16]]
  %s18 = scalar_lea.smem %s0, 9
  %s19 = sld [smem:[%s18]]
  %s20 = scalar_lea.smem %s0, 10
  %s21 = sld [smem:[%s20]]
  %s22 = scalar_lea.smem %s0, 11
  %s23 = sld [smem:[%s22]]
  %s24 = scalar_lea.smem %s0, 12
  %s25 = sld [smem:[%s24]]
  %s26 = scalar_lea.smem %s0, 13
  %s27 = sld [smem:[%s26]]
  %s28 = scalar_lea.smem %s0, 14
  %s29 = sld [smem:[%s28]]
  %s30 = scalar_lea.smem %s0, 15
  %s31 = sld [smem:[%s30]]
  %s32 = scalar_lea.smem %s0, 16
  %s33 = sld [smem:[%s32]]
  %s34 = scalar_lea.smem %s0, 17
  %s35 = sld [smem:[%s34]]
  %s36 = scalar_lea.smem %s0, 18
  %s37 = sld [smem:[%s36]]
  %s38 = scalar_lea.smem %s0, 19
  %s39 = sld [smem:[%s38]]
  %s40 = scalar_lea.smem %s0, 20
  %s41 = sld [smem:[%s40]]
  %s42 = scalar_lea.smem %s0, 21
  %s43 = sld [smem:[%s42]]
  %s44 = scalar_lea.smem %s0, 22
  %s45 = sld [smem:[%s44]]
  %s46 = scalar_lea.smem %s0, 23
  %s47 = sld [smem:[%s46]]
  %s48 = scalar_lea.smem %s0, 24
  %s49 = sld [smem:[%s48]]
  %s50 = scalar_lea.smem %s0, 25
  %s51 = sld [smem:[%s50]]
  %s52 = scalar_lea.smem %s0, 26
  %s53 = sld [smem:[%s52]]
  %s54 = scalar_lea.smem %s0, 27
  %s55 = sld [smem:[%s54]]
  %s56 = scalar_lea.smem %s0, 28
  %s57 = sld [smem:[%s56]]
  %s58 = scalar_lea.smem %s0, 29
  %s59 = sld [smem:[%s58]]
  %s60 = scalar_lea.smem %s0, 30
  %s61 = sld [smem:[%s60]]
  %s62 = scalar_lea.smem %s0, 31
  %s63 = sld [smem:[%s62]]
  %s64 = scalar_lea.smem %s0, 32
  %s65 = sld [smem:[%s64]]
  %s66 = scalar_lea.smem %s0, 33
  %s67 = sld [smem:[%s66]]
  %s68 = scalar_lea.smem %s0, 34
  %s69 = sld [smem:[%s68]]
  %s70 = scalar_lea.smem %s0, 35
  %s71 = sld [smem:[%s70]]
  %s72 = scalar_lea.smem %s0, 36
  %s73 = sld [smem:[%s72]]
  %s74 = scalar_lea.smem %s0, 37
  %s75 = sld [smem:[%s74]]
  %s76 = scalar_lea.smem %s0, 38
  %s77 = sld [smem:[%s76]]
  %s78 = scalar_lea.smem %s0, 39
  %s79 = sld [smem:[%s78]]
  %s80 = sld [smem:[#allocation0]]
  $region189: #{tinyml_mobilenetv1_forward.1} parent=0
    _
  %s82 = ssub.s32 1, %s80
  %s83 = scalar_select 0, %s82, %s80
  $region1: #{tinyml_mobilenetv1_forward.1} parent=0
    #allocation2 [shape = 'u8[1024]{0}', space=vmem, size = 0x400, scoped, tag = 'output window, operand 0']
    #allocation3 [shape = 's32[2]{0}', space=sflag, size = 0x8, scoped, tag = 'scoped memory for tinyml_mobilenetv1_forward.1']
    %84 = vsyncpa [#allocation3], 0
    %s85 = scalar_lea.sflag [#allocation3], 1
    %86 = vsyncpa %s85, 0
    loop: start=0, step=1, limit=4
    $region2: #{tinyml_mobilenetv1_forward.1} parent=1 // loop_pre_header
      _
    $region3: #{tinyml_mobilenetv1_forward.1} parent=1 // loop_header
      %s88 = sphi 0, %s92
      %p89 = scmp.ge.s32.totalorder %s88, 4
      %s98 = sphi 0, %s100
      %s101 = sphi 0, %s98
      %s102 = sphi 0, %s101
      %s118 = sphi 0, %s102
      %s122 = sphi 0, %s122
      %s124 = sphi 0, %s122
      %s125 = sphi 0, %s124
      %s139 = sphi 0, %s125
      %s143 = sphi 0, %s143
      %s145 = sphi 0, %s143
      %s146 = sphi 0, %s145
      %s160 = sphi 0, %s146
      %s164 = sphi 0, %s164
      %s166 = sphi 0, %s164
      %s167 = sphi 0, %s166
      %s181 = sphi 0, %s167
      %s185 = sphi 0, %s185
      %s187 = sphi 0, %s185
      %s188 = sphi 0, %s187
      %s202 = sphi 0, %s188
      %s206 = sphi 0, %s206
      %s208 = sphi 0, %s206
      %s209 = sphi 0, %s208
      %s223 = sphi 0, %s209
      %s227 = sphi 0, %s227
      %s229 = sphi 0, %s227
      %s230 = sphi 0, %s229
      %s244 = sphi 0, %s230
      %s248 = sphi 0, %s248
      %s250 = sphi 0, %s248
      %s251 = sphi 0, %s250
      %s265 = sphi 0, %s251
      %s269 = sphi 0, %s269
      %s271 = sphi 0, %s269
      %s272 = sphi 0, %s271
      %s286 = sphi 0, %s272
      %s290 = sphi 0, %s290
      %s292 = sphi 0, %s290
      %s293 = sphi 0, %s292
      %s307 = sphi 0, %s293
      %s311 = sphi 0, %s311
      %s313 = sphi 0, %s311
      %s314 = sphi 0, %s313
      %s328 = sphi 0, %s314
      %s332 = sphi 0, %s332
      %s334 = sphi 0, %s332
      %s335 = sphi 0, %s334
      %s349 = sphi 0, %s335
      %s353 = sphi 0, %s353
      %s355 = sphi 0, %s353
      %s356 = sphi 0, %s355
      %s370 = sphi 0, %s356
      %s374 = sphi 0, %s374
      %s376 = sphi 0, %s374
      %s377 = sphi 0, %s376
      %s391 = sphi 0, %s377
      %s395 = sphi 0, %s395
      %s397 = sphi 0, %s395
      %s398 = sphi 0, %s397
      %s412 = sphi 0, %s398
      %s416 = sphi 0, %s416
      %s418 = sphi 0, %s416
      %s419 = sphi 0, %s418
      %s433 = sphi 0, %s419
      %s437 = sphi 0, %s437
      %s439 = sphi 0, %s437
      %s440 = sphi 0, %s439
      %s454 = sphi 0, %s440
      %s458 = sphi 0, %s458
      %s460 = sphi 0, %s458
      %s461 = sphi 0, %s460
      %s475 = sphi 0, %s461
      %s479 = sphi 0, %s479
      %s481 = sphi 0, %s479
      %s482 = sphi 0, %s481
      %s496 = sphi 0, %s482
      %s500 = sphi 0, %s500
      %s502 = sphi 0, %s500
      %s503 = sphi 0, %s502
      %s517 = sphi 0, %s503
      %s521 = sphi 0, %s521
      %s523 = sphi 0, %s521
      %s524 = sphi 0, %s523
      %s538 = sphi 0, %s524
      %s542 = sphi 0, %s542
      %s544 = sphi 0, %s542
      %s545 = sphi 0, %s544
      %s559 = sphi 0, %s545
      %s563 = sphi 0, %s563
      %s565 = sphi 0, %s563
      %s566 = sphi 0, %s565
      %s580 = sphi 0, %s566
      %s584 = sphi 0, %s584
      %s586 = sphi 0, %s584
      %s587 = sphi 0, %s586
      %s601 = sphi 0, %s587
      %s605 = sphi 0, %s605
      %s607 = sphi 0, %s605
      %s608 = sphi 0, %s607
      %s622 = sphi 0, %s608
      %s626 = sphi 0, %s626
      %s628 = sphi 0, %s626
      %s629 = sphi 0, %s628
      %s643 = sphi 0, %s629
      %s647 = sphi 0, %s647
      %s649 = sphi 0, %s647
      %s650 = sphi 0, %s649
      %s664 = sphi 0, %s650
      %s668 = sphi 0, %s668
      %s670 = sphi 0, %s668
      %s671 = sphi 0, %s670
      %s685 = sphi 0, %s671
      %s689 = sphi 0, %s689
      %s691 = sphi 0, %s689
      %s692 = sphi 0, %s691
      %s706 = sphi 0, %s692
      %s710 = sphi 0, %s710
      %s712 = sphi 0, %s710
      %s713 = sphi 0, %s712
      %s727 = sphi 0, %s713
      %s731 = sphi 0, %s731
      %s733 = sphi 0, %s731
      %s734 = sphi 0, %s733
      %s748 = sphi 0, %s734
      %s752 = sphi 0, %s752
      %s754 = sphi 0, %s752
      %s755 = sphi 0, %s754
      %s769 = sphi 0, %s755
      %s773 = sphi 0, %s773
      %s775 = sphi 0, %s773
      %s776 = sphi 0, %s775
      %s790 = sphi 0, %s776
      %s794 = sphi 0, %s794
      %s796 = sphi 0, %s794
      %s797 = sphi 0, %s796
      %s811 = sphi 0, %s797
      %s815 = sphi 0, %s815
      %s817 = sphi 0, %s815
      %s818 = sphi 0, %s817
      %s832 = sphi 0, %s818
      %s836 = sphi 0, %s836
      %s838 = sphi 0, %s836
      %s839 = sphi 0, %s838
      %s853 = sphi 0, %s839
      %s857 = sphi 0, %s857
      %s859 = sphi 0, %s857
      %s860 = sphi 0, %s859
      %s874 = sphi 0, %s860
      %s878 = sphi 0, %s878
      %s880 = sphi 0, %s878
      %s881 = sphi 0, %s880
      %s895 = sphi 0, %s881
      %s899 = sphi 0, %s899
      %s901 = sphi 0, %s899
      %s902 = sphi 0, %s901
      %s916 = sphi 0, %s902
      %s922 = sphi 0, %s924
      %s925 = sphi 0, %s922
      %s926 = sphi 0, %s925
      %s942 = sphi 0, %s926
    $region4: #{tinyml_mobilenetv1_forward.1} parent=1 // loop_header_branch
      %91 = sbr.rel (%p89) target = $region8
    $region5: #{tinyml_mobilenetv1_forward.1} parent=1 // loop_body
      %s93 = ssub.s32 %s88, 1
      %s94 = ssub.s32 %s88, 2
      %s95 = sadd.s32 %s88, 1
      %s96 = ssub.s32 %s88, %s95
      %p97 = scmp.eq.s32.totalorder %s96, 0
      %s99 = sadd.s32 %s98, 1
      %s100 = scalar_select %p97, %s98, %s99
      %p103 = pneg %p97
      %p104 = scmp.eq.s32.totalorder %s88, 1
      %p105 = por %p103, %p104
      %p106 = scmp.ne.s32.totalorder %s98, %s101
      %p107 = scmp.eq.s32.totalorder %s88, 0
      %p108 = por %p106, %p107
      %p109 = scmp.ne.s32.totalorder %s98, %s101
      %p110 = scmp.eq.s32.totalorder %s93, 1
      %p111 = por %p109, %p110
      %p112 = scmp.ne.s32.totalorder %s101, %s102
      %p113 = scmp.eq.s32.totalorder %s93, 0
      %p114 = por %p112, %p113
      %p115 = scmp.ne.s32.totalorder %s101, %s102
      %p116 = scmp.eq.s32.totalorder %s94, 1
      %p117 = por %p115, %p116
      %p119 = scmp.ne.s32.totalorder %s102, %s118
      %p120 = scmp.eq.s32.totalorder %s94, 0
      %p121 = por %p119, %p120
      %s123 = sadd.s32 %s122, 1
      %p126 = scmp.eq.s32.totalorder %s88, 1
      %p127 = scmp.ne.s32.totalorder %s122, %s124
      %p128 = scmp.eq.s32.totalorder %s88, 0
      %p129 = por %p127, %p128
      %p130 = scmp.ne.s32.totalorder %s122, %s124
      %p131 = scmp.eq.s32.totalorder %s93, 1
      %p132 = por %p130, %p131
      %p133 = scmp.ne.s32.totalorder %s124, %s125
      %p134 = scmp.eq.s32.totalorder %s93, 0
      %p135 = por %p133, %p134
      %p136 = scmp.ne.s32.totalorder %s124, %s125
      %p137 = scmp.eq.s32.totalorder %s94, 1
      %p138 = por %p136, %p137
      %p140 = scmp.ne.s32.totalorder %s125, %s139
      %p141 = scmp.eq.s32.totalorder %s94, 0
      %p142 = por %p140, %p141
      %s144 = sadd.s32 %s143, 1
      %p147 = scmp.eq.s32.totalorder %s88, 1
      %p148 = scmp.ne.s32.totalorder %s143, %s145
      %p149 = scmp.eq.s32.totalorder %s88, 0
      %p150 = por %p148, %p149
      %p151 = scmp.ne.s32.totalorder %s143, %s145
      %p152 = scmp.eq.s32.totalorder %s93, 1
      %p153 = por %p151, %p152
      %p154 = scmp.ne.s32.totalorder %s145, %s146
      %p155 = scmp.eq.s32.totalorder %s93, 0
      %p156 = por %p154, %p155
      %p157 = scmp.ne.s32.totalorder %s145, %s146
      %p158 = scmp.eq.s32.totalorder %s94, 1
      %p159 = por %p157, %p158
      %p161 = scmp.ne.s32.totalorder %s146, %s160
      %p162 = scmp.eq.s32.totalorder %s94, 0
      %p163 = por %p161, %p162
      %s165 = sadd.s32 %s164, 1
      %p168 = scmp.eq.s32.totalorder %s88, 1
      %p169 = scmp.ne.s32.totalorder %s164, %s166
      %p170 = scmp.eq.s32.totalorder %s88, 0
      %p171 = por %p169, %p170
      %p172 = scmp.ne.s32.totalorder %s164, %s166
      %p173 = scmp.eq.s32.totalorder %s93, 1
      %p174 = por %p172, %p173
      %p175 = scmp.ne.s32.totalorder %s166, %s167
      %p176 = scmp.eq.s32.totalorder %s93, 0
      %p177 = por %p175, %p176
      %p178 = scmp.ne.s32.totalorder %s166, %s167
      %p179 = scmp.eq.s32.totalorder %s94, 1
      %p180 = por %p178, %p179
      %p182 = scmp.ne.s32.totalorder %s167, %s181
      %p183 = scmp.eq.s32.totalorder %s94, 0
      %p184 = por %p182, %p183
      %s186 = sadd.s32 %s185, 1
      %p189 = scmp.eq.s32.totalorder %s88, 1
      %p190 = scmp.ne.s32.totalorder %s185, %s187
      %p191 = scmp.eq.s32.totalorder %s88, 0
      %p192 = por %p190, %p191
      %p193 = scmp.ne.s32.totalorder %s185, %s187
      %p194 = scmp.eq.s32.totalorder %s93, 1
      %p195 = por %p193, %p194
      %p196 = scmp.ne.s32.totalorder %s187, %s188
      %p197 = scmp.eq.s32.totalorder %s93, 0
      %p198 = por %p196, %p197
      %p199 = scmp.ne.s32.totalorder %s187, %s188
      %p200 = scmp.eq.s32.totalorder %s94, 1
      %p201 = por %p199, %p200
      %p203 = scmp.ne.s32.totalorder %s188, %s202
      %p204 = scmp.eq.s32.totalorder %s94, 0
      %p205 = por %p203, %p204
      %s207 = sadd.s32 %s206, 1
      %p210 = scmp.eq.s32.totalorder %s88, 1
      %p211 = scmp.ne.s32.totalorder %s206, %s208
      %p212 = scmp.eq.s32.totalorder %s88, 0
      %p213 = por %p211, %p212
      %p214 = scmp.ne.s32.totalorder %s206, %s208
      %p215 = scmp.eq.s32.totalorder %s93, 1
      %p216 = por %p214, %p215
      %p217 = scmp.ne.s32.totalorder %s208, %s209
      %p218 = scmp.eq.s32.totalorder %s93, 0
      %p219 = por %p217, %p218
      %p220 = scmp.ne.s32.totalorder %s208, %s209
      %p221 = scmp.eq.s32.totalorder %s94, 1
      %p222 = por %p220, %p221
      %p224 = scmp.ne.s32.totalorder %s209, %s223
      %p225 = scmp.eq.s32.totalorder %s94, 0
      %p226 = por %p224, %p225
      %s228 = sadd.s32 %s227, 1
      %p231 = scmp.eq.s32.totalorder %s88, 1
      %p232 = scmp.ne.s32.totalorder %s227, %s229
      %p233 = scmp.eq.s32.totalorder %s88, 0
      %p234 = por %p232, %p233
      %p235 = scmp.ne.s32.totalorder %s227, %s229
      %p236 = scmp.eq.s32.totalorder %s93, 1
      %p237 = por %p235, %p236
      %p238 = scmp.ne.s32.totalorder %s229, %s230
      %p239 = scmp.eq.s32.totalorder %s93, 0
      %p240 = por %p238, %p239
      %p241 = scmp.ne.s32.totalorder %s229, %s230
      %p242 = scmp.eq.s32.totalorder %s94, 1
      %p243 = por %p241, %p242
      %p245 = scmp.ne.s32.totalorder %s230, %s244
      %p246 = scmp.eq.s32.totalorder %s94, 0
      %p247 = por %p245, %p246
      %s249 = sadd.s32 %s248, 1
      %p252 = scmp.eq.s32.totalorder %s88, 1
      %p253 = scmp.ne.s32.totalorder %s248, %s250
      %p254 = scmp.eq.s32.totalorder %s88, 0
      %p255 = por %p253, %p254
      %p256 = scmp.ne.s32.totalorder %s248, %s250
      %p257 = scmp.eq.s32.totalorder %s93, 1
      %p258 = por %p256, %p257
      %p259 = scmp.ne.s32.totalorder %s250, %s251
      %p260 = scmp.eq.s32.totalorder %s93, 0
      %p261 = por %p259, %p260
      %p262 = scmp.ne.s32.totalorder %s250, %s251
      %p263 = scmp.eq.s32.totalorder %s94, 1
      %p264 = por %p262, %p263
      %p266 = scmp.ne.s32.totalorder %s251, %s265
      %p267 = scmp.eq.s32.totalorder %s94, 0
      %p268 = por %p266, %p267
      %s270 = sadd.s32 %s269, 1
      %p273 = scmp.eq.s32.totalorder %s88, 1
      %p274 = scmp.ne.s32.totalorder %s269, %s271
      %p275 = scmp.eq.s32.totalorder %s88, 0
      %p276 = por %p274, %p275
      %p277 = scmp.ne.s32.totalorder %s269, %s271
      %p278 = scmp.eq.s32.totalorder %s93, 1
      %p279 = por %p277, %p278
      %p280 = scmp.ne.s32.totalorder %s271, %s272
      %p281 = scmp.eq.s32.totalorder %s93, 0
      %p282 = por %p280, %p281
      %p283 = scmp.ne.s32.totalorder %s271, %s272
      %p284 = scmp.eq.s32.totalorder %s94, 1
      %p285 = por %p283, %p284
      %p287 = scmp.ne.s32.totalorder %s272, %s286
      %p288 = scmp.eq.s32.totalorder %s94, 0
      %p289 = por %p287, %p288
      %s291 = sadd.s32 %s290, 1
      %p294 = scmp.eq.s32.totalorder %s88, 1
      %p295 = scmp.ne.s32.totalorder %s290, %s292
      %p296 = scmp.eq.s32.totalorder %s88, 0
      %p297 = por %p295, %p296
      %p298 = scmp.ne.s32.totalorder %s290, %s292
      %p299 = scmp.eq.s32.totalorder %s93, 1
      %p300 = por %p298, %p299
      %p301 = scmp.ne.s32.totalorder %s292, %s293
      %p302 = scmp.eq.s32.totalorder %s93, 0
      %p303 = por %p301, %p302
      %p304 = scmp.ne.s32.totalorder %s292, %s293
      %p305 = scmp.eq.s32.totalorder %s94, 1
      %p306 = por %p304, %p305
      %p308 = scmp.ne.s32.totalorder %s293, %s307
      %p309 = scmp.eq.s32.totalorder %s94, 0
      %p310 = por %p308, %p309
      %s312 = sadd.s32 %s311, 1
      %p315 = scmp.eq.s32.totalorder %s88, 1
      %p316 = scmp.ne.s32.totalorder %s311, %s313
      %p317 = scmp.eq.s32.totalorder %s88, 0
      %p318 = por %p316, %p317
      %p319 = scmp.ne.s32.totalorder %s311, %s313
      %p320 = scmp.eq.s32.totalorder %s93, 1
      %p321 = por %p319, %p320
      %p322 = scmp.ne.s32.totalorder %s313, %s314
      %p323 = scmp.eq.s32.totalorder %s93, 0
      %p324 = por %p322, %p323
      %p325 = scmp.ne.s32.totalorder %s313, %s314
      %p326 = scmp.eq.s32.totalorder %s94, 1
      %p327 = por %p325, %p326
      %p329 = scmp.ne.s32.totalorder %s314, %s328
      %p330 = scmp.eq.s32.totalorder %s94, 0
      %p331 = por %p329, %p330
      %s333 = sadd.s32 %s332, 1
      %p336 = scmp.eq.s32.totalorder %s88, 1
      %p337 = scmp.ne.s32.totalorder %s332, %s334
      %p338 = scmp.eq.s32.totalorder %s88, 0
      %p339 = por %p337, %p338
      %p340 = scmp.ne.s32.totalorder %s332, %s334
      %p341 = scmp.eq.s32.totalorder %s93, 1
      %p342 = por %p340, %p341
      %p343 = scmp.ne.s32.totalorder %s334, %s335
      %p344 = scmp.eq.s32.totalorder %s93, 0
      %p345 = por %p343, %p344
      %p346 = scmp.ne.s32.totalorder %s334, %s335
      %p347 = scmp.eq.s32.totalorder %s94, 1
      %p348 = por %p346, %p347
      %p350 = scmp.ne.s32.totalorder %s335, %s349
      %p351 = scmp.eq.s32.totalorder %s94, 0
      %p352 = por %p350, %p351
      %s354 = sadd.s32 %s353, 1
      %p357 = scmp.eq.s32.totalorder %s88, 1
      %p358 = scmp.ne.s32.totalorder %s353, %s355
      %p359 = scmp.eq.s32.totalorder %s88, 0
      %p360 = por %p358, %p359
      %p361 = scmp.ne.s32.totalorder %s353, %s355
      %p362 = scmp.eq.s32.totalorder %s93, 1
      %p363 = por %p361, %p362
      %p364 = scmp.ne.s32.totalorder %s355, %s356
      %p365 = scmp.eq.s32.totalorder %s93, 0
      %p366 = por %p364, %p365
      %p367 = scmp.ne.s32.totalorder %s355, %s356
      %p368 = scmp.eq.s32.totalorder %s94, 1
      %p369 = por %p367, %p368
      %p371 = scmp.ne.s32.totalorder %s356, %s370
      %p372 = scmp.eq.s32.totalorder %s94, 0
      %p373 = por %p371, %p372
      %s375 = sadd.s32 %s374, 1
      %p378 = scmp.eq.s32.totalorder %s88, 1
      %p379 = scmp.ne.s32.totalorder %s374, %s376
      %p380 = scmp.eq.s32.totalorder %s88, 0
      %p381 = por %p379, %p380
      %p382 = scmp.ne.s32.totalorder %s374, %s376
      %p383 = scmp.eq.s32.totalorder %s93, 1
      %p384 = por %p382, %p383
      %p385 = scmp.ne.s32.totalorder %s376, %s377
      %p386 = scmp.eq.s32.totalorder %s93, 0
      %p387 = por %p385, %p386
      %p388 = scmp.ne.s32.totalorder %s376, %s377
      %p389 = scmp.eq.s32.totalorder %s94, 1
      %p390 = por %p388, %p389
      %p392 = scmp.ne.s32.totalorder %s377, %s391
      %p393 = scmp.eq.s32.totalorder %s94, 0
      %p394 = por %p392, %p393
      %s396 = sadd.s32 %s395, 1
      %p399 = scmp.eq.s32.totalorder %s88, 1
      %p400 = scmp.ne.s32.totalorder %s395, %s397
      %p401 = scmp.eq.s32.totalorder %s88, 0
      %p402 = por %p400, %p401
      %p403 = scmp.ne.s32.totalorder %s395, %s397
      %p404 = scmp.eq.s32.totalorder %s93, 1
      %p405 = por %p403, %p404
      %p406 = scmp.ne.s32.totalorder %s397, %s398
      %p407 = scmp.eq.s32.totalorder %s93, 0
      %p408 = por %p406, %p407
      %p409 = scmp.ne.s32.totalorder %s397, %s398
      %p410 = scmp.eq.s32.totalorder %s94, 1
      %p411 = por %p409, %p410
      %p413 = scmp.ne.s32.totalorder %s398, %s412
      %p414 = scmp.eq.s32.totalorder %s94, 0
      %p415 = por %p413, %p414
      %s417 = sadd.s32 %s416, 1
      %p420 = scmp.eq.s32.totalorder %s88, 1
      %p421 = scmp.ne.s32.totalorder %s416, %s418
      %p422 = scmp.eq.s32.totalorder %s88, 0
      %p423 = por %p421, %p422
      %p424 = scmp.ne.s32.totalorder %s416, %s418
      %p425 = scmp.eq.s32.totalorder %s93, 1
      %p426 = por %p424, %p425
      %p427 = scmp.ne.s32.totalorder %s418, %s419
      %p428 = scmp.eq.s32.totalorder %s93, 0
      %p429 = por %p427, %p428
      %p430 = scmp.ne.s32.totalorder %s418, %s419
      %p431 = scmp.eq.s32.totalorder %s94, 1
      %p432 = por %p430, %p431
      %p434 = scmp.ne.s32.totalorder %s419, %s433
      %p435 = scmp.eq.s32.totalorder %s94, 0
      %p436 = por %p434, %p435
      %s438 = sadd.s32 %s437, 1
      %p441 = scmp.eq.s32.totalorder %s88, 1
      %p442 = scmp.ne.s32.totalorder %s437, %s439
      %p443 = scmp.eq.s32.totalorder %s88, 0
      %p444 = por %p442, %p443
      %p445 = scmp.ne.s32.totalorder %s437, %s439
      %p446 = scmp.eq.s32.totalorder %s93, 1
      %p447 = por %p445, %p446
      %p448 = scmp.ne.s32.totalorder %s439, %s440
      %p449 = scmp.eq.s32.totalorder %s93, 0
      %p450 = por %p448, %p449
      %p451 = scmp.ne.s32.totalorder %s439, %s440
      %p452 = scmp.eq.s32.totalorder %s94, 1
      %p453 = por %p451, %p452
      %p455 = scmp.ne.s32.totalorder %s440, %s454
      %p456 = scmp.eq.s32.totalorder %s94, 0
      %p457 = por %p455, %p456
      %s459 = sadd.s32 %s458, 1
      %p462 = scmp.eq.s32.totalorder %s88, 1
      %p463 = scmp.ne.s32.totalorder %s458, %s460
      %p464 = scmp.eq.s32.totalorder %s88, 0
      %p465 = por %p463, %p464
      %p466 = scmp.ne.s32.totalorder %s458, %s460
      %p467 = scmp.eq.s32.totalorder %s93, 1
      %p468 = por %p466, %p467
      %p469 = scmp.ne.s32.totalorder %s460, %s461
      %p470 = scmp.eq.s32.totalorder %s93, 0
      %p471 = por %p469, %p470
      %p472 = scmp.ne.s32.totalorder %s460, %s461
      %p473 = scmp.eq.s32.totalorder %s94, 1
      %p474 = por %p472, %p473
      %p476 = scmp.ne.s32.totalorder %s461, %s475
      %p477 = scmp.eq.s32.totalorder %s94, 0
      %p478 = por %p476, %p477
      %s480 = sadd.s32 %s479, 1
      %p483 = scmp.eq.s32.totalorder %s88, 1
      %p484 = scmp.ne.s32.totalorder %s479, %s481
      %p485 = scmp.eq.s32.totalorder %s88, 0
      %p486 = por %p484, %p485
      %p487 = scmp.ne.s32.totalorder %s479, %s481
      %p488 = scmp.eq.s32.totalorder %s93, 1
      %p489 = por %p487, %p488
      %p490 = scmp.ne.s32.totalorder %s481, %s482
      %p491 = scmp.eq.s32.totalorder %s93, 0
      %p492 = por %p490, %p491
      %p493 = scmp.ne.s32.totalorder %s481, %s482
      %p494 = scmp.eq.s32.totalorder %s94, 1
      %p495 = por %p493, %p494
      %p497 = scmp.ne.s32.totalorder %s482, %s496
      %p498 = scmp.eq.s32.totalorder %s94, 0
      %p499 = por %p497, %p498
      %s501 = sadd.s32 %s500, 1
      %p504 = scmp.eq.s32.totalorder %s88, 1
      %p505 = scmp.ne.s32.totalorder %s500, %s502
      %p506 = scmp.eq.s32.totalorder %s88, 0
      %p507 = por %p505, %p506
      %p508 = scmp.ne.s32.totalorder %s500, %s502
      %p509 = scmp.eq.s32.totalorder %s93, 1
      %p510 = por %p508, %p509
      %p511 = scmp.ne.s32.totalorder %s502, %s503
      %p512 = scmp.eq.s32.totalorder %s93, 0
      %p513 = por %p511, %p512
      %p514 = scmp.ne.s32.totalorder %s502, %s503
      %p515 = scmp.eq.s32.totalorder %s94, 1
      %p516 = por %p514, %p515
      %p518 = scmp.ne.s32.totalorder %s503, %s517
      %p519 = scmp.eq.s32.totalorder %s94, 0
      %p520 = por %p518, %p519
      %s522 = sadd.s32 %s521, 1
      %p525 = scmp.eq.s32.totalorder %s88, 1
      %p526 = scmp.ne.s32.totalorder %s521, %s523
      %p527 = scmp.eq.s32.totalorder %s88, 0
      %p528 = por %p526, %p527
      %p529 = scmp.ne.s32.totalorder %s521, %s523
      %p530 = scmp.eq.s32.totalorder %s93, 1
      %p531 = por %p529, %p530
      %p532 = scmp.ne.s32.totalorder %s523, %s524
      %p533 = scmp.eq.s32.totalorder %s93, 0
      %p534 = por %p532, %p533
      %p535 = scmp.ne.s32.totalorder %s523, %s524
      %p536 = scmp.eq.s32.totalorder %s94, 1
      %p537 = por %p535, %p536
      %p539 = scmp.ne.s32.totalorder %s524, %s538
      %p540 = scmp.eq.s32.totalorder %s94, 0
      %p541 = por %p539, %p540
      %s543 = sadd.s32 %s542, 1
      %p546 = scmp.eq.s32.totalorder %s88, 1
      %p547 = scmp.ne.s32.totalorder %s542, %s544
      %p548 = scmp.eq.s32.totalorder %s88, 0
      %p549 = por %p547, %p548
      %p550 = scmp.ne.s32.totalorder %s542, %s544
      %p551 = scmp.eq.s32.totalorder %s93, 1
      %p552 = por %p550, %p551
      %p553 = scmp.ne.s32.totalorder %s544, %s545
      %p554 = scmp.eq.s32.totalorder %s93, 0
      %p555 = por %p553, %p554
      %p556 = scmp.ne.s32.totalorder %s544, %s545
      %p557 = scmp.eq.s32.totalorder %s94, 1
      %p558 = por %p556, %p557
      %p560 = scmp.ne.s32.totalorder %s545, %s559
      %p561 = scmp.eq.s32.totalorder %s94, 0
      %p562 = por %p560, %p561
      %s564 = sadd.s32 %s563, 1
      %p567 = scmp.eq.s32.totalorder %s88, 1
      %p568 = scmp.ne.s32.totalorder %s563, %s565
      %p569 = scmp.eq.s32.totalorder %s88, 0
      %p570 = por %p568, %p569
      %p571 = scmp.ne.s32.totalorder %s563, %s565
      %p572 = scmp.eq.s32.totalorder %s93, 1
      %p573 = por %p571, %p572
      %p574 = scmp.ne.s32.totalorder %s565, %s566
      %p575 = scmp.eq.s32.totalorder %s93, 0
      %p576 = por %p574, %p575
      %p577 = scmp.ne.s32.totalorder %s565, %s566
      %p578 = scmp.eq.s32.totalorder %s94, 1
      %p579 = por %p577, %p578
      %p581 = scmp.ne.s32.totalorder %s566, %s580
      %p582 = scmp.eq.s32.totalorder %s94, 0
      %p583 = por %p581, %p582
      %s585 = sadd.s32 %s584, 1
      %p588 = scmp.eq.s32.totalorder %s88, 1
      %p589 = scmp.ne.s32.totalorder %s584, %s586
      %p590 = scmp.eq.s32.totalorder %s88, 0
      %p591 = por %p589, %p590
      %p592 = scmp.ne.s32.totalorder %s584, %s586
      %p593 = scmp.eq.s32.totalorder %s93, 1
      %p594 = por %p592, %p593
      %p595 = scmp.ne.s32.totalorder %s586, %s587
      %p596 = scmp.eq.s32.totalorder %s93, 0
      %p597 = por %p595, %p596
      %p598 = scmp.ne.s32.totalorder %s586, %s587
      %p599 = scmp.eq.s32.totalorder %s94, 1
      %p600 = por %p598, %p599
      %p602 = scmp.ne.s32.totalorder %s587, %s601
      %p603 = scmp.eq.s32.totalorder %s94, 0
      %p604 = por %p602, %p603
      %s606 = sadd.s32 %s605, 1
      %p609 = scmp.eq.s32.totalorder %s88, 1
      %p610 = scmp.ne.s32.totalorder %s605, %s607
      %p611 = scmp.eq.s32.totalorder %s88, 0
      %p612 = por %p610, %p611
      %p613 = scmp.ne.s32.totalorder %s605, %s607
      %p614 = scmp.eq.s32.totalorder %s93, 1
      %p615 = por %p613, %p614
      %p616 = scmp.ne.s32.totalorder %s607, %s608
      %p617 = scmp.eq.s32.totalorder %s93, 0
      %p618 = por %p616, %p617
      %p619 = scmp.ne.s32.totalorder %s607, %s608
      %p620 = scmp.eq.s32.totalorder %s94, 1
      %p621 = por %p619, %p620
      %p623 = scmp.ne.s32.totalorder %s608, %s622
      %p624 = scmp.eq.s32.totalorder %s94, 0
      %p625 = por %p623, %p624
      %s627 = sadd.s32 %s626, 1
      %p630 = scmp.eq.s32.totalorder %s88, 1
      %p631 = scmp.ne.s32.totalorder %s626, %s628
      %p632 = scmp.eq.s32.totalorder %s88, 0
      %p633 = por %p631, %p632
      %p634 = scmp.ne.s32.totalorder %s626, %s628
      %p635 = scmp.eq.s32.totalorder %s93, 1
      %p636 = por %p634, %p635
      %p637 = scmp.ne.s32.totalorder %s628, %s629
      %p638 = scmp.eq.s32.totalorder %s93, 0
      %p639 = por %p637, %p638
      %p640 = scmp.ne.s32.totalorder %s628, %s629
      %p641 = scmp.eq.s32.totalorder %s94, 1
      %p642 = por %p640, %p641
      %p644 = scmp.ne.s32.totalorder %s629, %s643
      %p645 = scmp.eq.s32.totalorder %s94, 0
      %p646 = por %p644, %p645
      %s648 = sadd.s32 %s647, 1
      %p651 = scmp.eq.s32.totalorder %s88, 1
      %p652 = scmp.ne.s32.totalorder %s647, %s649
      %p653 = scmp.eq.s32.totalorder %s88, 0
      %p654 = por %p652, %p653
      %p655 = scmp.ne.s32.totalorder %s647, %s649
      %p656 = scmp.eq.s32.totalorder %s93, 1
      %p657 = por %p655, %p656
      %p658 = scmp.ne.s32.totalorder %s649, %s650
      %p659 = scmp.eq.s32.totalorder %s93, 0
      %p660 = por %p658, %p659
      %p661 = scmp.ne.s32.totalorder %s649, %s650
      %p662 = scmp.eq.s32.totalorder %s94, 1
      %p663 = por %p661, %p662
      %p665 = scmp.ne.s32.totalorder %s650, %s664
      %p666 = scmp.eq.s32.totalorder %s94, 0
      %p667 = por %p665, %p666
      %s669 = sadd.s32 %s668, 1
      %p672 = scmp.eq.s32.totalorder %s88, 1
      %p673 = scmp.ne.s32.totalorder %s668, %s670
      %p674 = scmp.eq.s32.totalorder %s88, 0
      %p675 = por %p673, %p674
      %p676 = scmp.ne.s32.totalorder %s668, %s670
      %p677 = scmp.eq.s32.totalorder %s93, 1
      %p678 = por %p676, %p677
      %p679 = scmp.ne.s32.totalorder %s670, %s671
      %p680 = scmp.eq.s32.totalorder %s93, 0
      %p681 = por %p679, %p680
      %p682 = scmp.ne.s32.totalorder %s670, %s671
      %p683 = scmp.eq.s32.totalorder %s94, 1
      %p684 = por %p682, %p683
      %p686 = scmp.ne.s32.totalorder %s671, %s685
      %p687 = scmp.eq.s32.totalorder %s94, 0
      %p688 = por %p686, %p687
      %s690 = sadd.s32 %s689, 1
      %p693 = scmp.eq.s32.totalorder %s88, 1
      %p694 = scmp.ne.s32.totalorder %s689, %s691
      %p695 = scmp.eq.s32.totalorder %s88, 0
      %p696 = por %p694, %p695
      %p697 = scmp.ne.s32.totalorder %s689, %s691
      %p698 = scmp.eq.s32.totalorder %s93, 1
      %p699 = por %p697, %p698
      %p700 = scmp.ne.s32.totalorder %s691, %s692
      %p701 = scmp.eq.s32.totalorder %s93, 0
      %p702 = por %p700, %p701
      %p703 = scmp.ne.s32.totalorder %s691, %s692
      %p704 = scmp.eq.s32.totalorder %s94, 1
      %p705 = por %p703, %p704
      %p707 = scmp.ne.s32.totalorder %s692, %s706
      %p708 = scmp.eq.s32.totalorder %s94, 0
      %p709 = por %p707, %p708
      %s711 = sadd.s32 %s710, 1
      %p714 = scmp.eq.s32.totalorder %s88, 1
      %p715 = scmp.ne.s32.totalorder %s710, %s712
      %p716 = scmp.eq.s32.totalorder %s88, 0
      %p717 = por %p715, %p716
      %p718 = scmp.ne.s32.totalorder %s710, %s712
      %p719 = scmp.eq.s32.totalorder %s93, 1
      %p720 = por %p718, %p719
      %p721 = scmp.ne.s32.totalorder %s712, %s713
      %p722 = scmp.eq.s32.totalorder %s93, 0
      %p723 = por %p721, %p722
      %p724 = scmp.ne.s32.totalorder %s712, %s713
      %p725 = scmp.eq.s32.totalorder %s94, 1
      %p726 = por %p724, %p725
      %p728 = scmp.ne.s32.totalorder %s713, %s727
      %p729 = scmp.eq.s32.totalorder %s94, 0
      %p730 = por %p728, %p729
      %s732 = sadd.s32 %s731, 1
      %p735 = scmp.eq.s32.totalorder %s88, 1
      %p736 = scmp.ne.s32.totalorder %s731, %s733
      %p737 = scmp.eq.s32.totalorder %s88, 0
      %p738 = por %p736, %p737
      %p739 = scmp.ne.s32.totalorder %s731, %s733
      %p740 = scmp.eq.s32.totalorder %s93, 1
      %p741 = por %p739, %p740
      %p742 = scmp.ne.s32.totalorder %s733, %s734
      %p743 = scmp.eq.s32.totalorder %s93, 0
      %p744 = por %p742, %p743
      %p745 = scmp.ne.s32.totalorder %s733, %s734
      %p746 = scmp.eq.s32.totalorder %s94, 1
      %p747 = por %p745, %p746
      %p749 = scmp.ne.s32.totalorder %s734, %s748
      %p750 = scmp.eq.s32.totalorder %s94, 0
      %p751 = por %p749, %p750
      %s753 = sadd.s32 %s752, 1
      %p756 = scmp.eq.s32.totalorder %s88, 1
      %p757 = scmp.ne.s32.totalorder %s752, %s754
      %p758 = scmp.eq.s32.totalorder %s88, 0
      %p759 = por %p757, %p758
      %p760 = scmp.ne.s32.totalorder %s752, %s754
      %p761 = scmp.eq.s32.totalorder %s93, 1
      %p762 = por %p760, %p761
      %p763 = scmp.ne.s32.totalorder %s754, %s755
      %p764 = scmp.eq.s32.totalorder %s93, 0
      %p765 = por %p763, %p764
      %p766 = scmp.ne.s32.totalorder %s754, %s755
      %p767 = scmp.eq.s32.totalorder %s94, 1
      %p768 = por %p766, %p767
      %p770 = scmp.ne.s32.totalorder %s755, %s769
      %p771 = scmp.eq.s32.totalorder %s94, 0
      %p772 = por %p770, %p771
      %s774 = sadd.s32 %s773, 1
      %p777 = scmp.eq.s32.totalorder %s88, 1
      %p778 = scmp.ne.s32.totalorder %s773, %s775
      %p779 = scmp.eq.s32.totalorder %s88, 0
      %p780 = por %p778, %p779
      %p781 = scmp.ne.s32.totalorder %s773, %s775
      %p782 = scmp.eq.s32.totalorder %s93, 1
      %p783 = por %p781, %p782
      %p784 = scmp.ne.s32.totalorder %s775, %s776
      %p785 = scmp.eq.s32.totalorder %s93, 0
      %p786 = por %p784, %p785
      %p787 = scmp.ne.s32.totalorder %s775, %s776
      %p788 = scmp.eq.s32.totalorder %s94, 1
      %p789 = por %p787, %p788
      %p791 = scmp.ne.s32.totalorder %s776, %s790
      %p792 = scmp.eq.s32.totalorder %s94, 0
      %p793 = por %p791, %p792
      %s795 = sadd.s32 %s794, 1
      %p798 = scmp.eq.s32.totalorder %s88, 1
      %p799 = scmp.ne.s32.totalorder %s794, %s796
      %p800 = scmp.eq.s32.totalorder %s88, 0
      %p801 = por %p799, %p800
      %p802 = scmp.ne.s32.totalorder %s794, %s796
      %p803 = scmp.eq.s32.totalorder %s93, 1
      %p804 = por %p802, %p803
      %p805 = scmp.ne.s32.totalorder %s796, %s797
      %p806 = scmp.eq.s32.totalorder %s93, 0
      %p807 = por %p805, %p806
      %p808 = scmp.ne.s32.totalorder %s796, %s797
      %p809 = scmp.eq.s32.totalorder %s94, 1
      %p810 = por %p808, %p809
      %p812 = scmp.ne.s32.totalorder %s797, %s811
      %p813 = scmp.eq.s32.totalorder %s94, 0
      %p814 = por %p812, %p813
      %s816 = sadd.s32 %s815, 1
      %p819 = scmp.eq.s32.totalorder %s88, 1
      %p820 = scmp.ne.s32.totalorder %s815, %s817
      %p821 = scmp.eq.s32.totalorder %s88, 0
      %p822 = por %p820, %p821
      %p823 = scmp.ne.s32.totalorder %s815, %s817
      %p824 = scmp.eq.s32.totalorder %s93, 1
      %p825 = por %p823, %p824
      %p826 = scmp.ne.s32.totalorder %s817, %s818
      %p827 = scmp.eq.s32.totalorder %s93, 0
      %p828 = por %p826, %p827
      %p829 = scmp.ne.s32.totalorder %s817, %s818
      %p830 = scmp.eq.s32.totalorder %s94, 1
      %p831 = por %p829, %p830
      %p833 = scmp.ne.s32.totalorder %s818, %s832
      %p834 = scmp.eq.s32.totalorder %s94, 0
      %p835 = por %p833, %p834
      %s837 = sadd.s32 %s836, 1
      %p840 = scmp.eq.s32.totalorder %s88, 1
      %p841 = scmp.ne.s32.totalorder %s836, %s838
      %p842 = scmp.eq.s32.totalorder %s88, 0
      %p843 = por %p841, %p842
      %p844 = scmp.ne.s32.totalorder %s836, %s838
      %p845 = scmp.eq.s32.totalorder %s93, 1
      %p846 = por %p844, %p845
      %p847 = scmp.ne.s32.totalorder %s838, %s839
      %p848 = scmp.eq.s32.totalorder %s93, 0
      %p849 = por %p847, %p848
      %p850 = scmp.ne.s32.totalorder %s838, %s839
      %p851 = scmp.eq.s32.totalorder %s94, 1
      %p852 = por %p850, %p851
      %p854 = scmp.ne.s32.totalorder %s839, %s853
      %p855 = scmp.eq.s32.totalorder %s94, 0
      %p856 = por %p854, %p855
      %s858 = sadd.s32 %s857, 1
      %p861 = scmp.eq.s32.totalorder %s88, 1
      %p862 = scmp.ne.s32.totalorder %s857, %s859
      %p863 = scmp.eq.s32.totalorder %s88, 0
      %p864 = por %p862, %p863
      %p865 = scmp.ne.s32.totalorder %s857, %s859
      %p866 = scmp.eq.s32.totalorder %s93, 1
      %p867 = por %p865, %p866
      %p868 = scmp.ne.s32.totalorder %s859, %s860
      %p869 = scmp.eq.s32.totalorder %s93, 0
      %p870 = por %p868, %p869
      %p871 = scmp.ne.s32.totalorder %s859, %s860
      %p872 = scmp.eq.s32.totalorder %s94, 1
      %p873 = por %p871, %p872
      %p875 = scmp.ne.s32.totalorder %s860, %s874
      %p876 = scmp.eq.s32.totalorder %s94, 0
      %p877 = por %p875, %p876
      %s879 = sadd.s32 %s878, 1
      %p882 = scmp.eq.s32.totalorder %s88, 1
      %p883 = scmp.ne.s32.totalorder %s878, %s880
      %p884 = scmp.eq.s32.totalorder %s88, 0
      %p885 = por %p883, %p884
      %p886 = scmp.ne.s32.totalorder %s878, %s880
      %p887 = scmp.eq.s32.totalorder %s93, 1
      %p888 = por %p886, %p887
      %p889 = scmp.ne.s32.totalorder %s880, %s881
      %p890 = scmp.eq.s32.totalorder %s93, 0
      %p891 = por %p889, %p890
      %p892 = scmp.ne.s32.totalorder %s880, %s881
      %p893 = scmp.eq.s32.totalorder %s94, 1
      %p894 = por %p892, %p893
      %p896 = scmp.ne.s32.totalorder %s881, %s895
      %p897 = scmp.eq.s32.totalorder %s94, 0
      %p898 = por %p896, %p897
      %s900 = sadd.s32 %s899, 1
      %p903 = scmp.eq.s32.totalorder %s88, 1
      %p904 = scmp.ne.s32.totalorder %s899, %s901
      %p905 = scmp.eq.s32.totalorder %s88, 0
      %p906 = por %p904, %p905
      %p907 = scmp.ne.s32.totalorder %s899, %s901
      %p908 = scmp.eq.s32.totalorder %s93, 1
      %p909 = por %p907, %p908
      %p910 = scmp.ne.s32.totalorder %s901, %s902
      %p911 = scmp.eq.s32.totalorder %s93, 0
      %p912 = por %p910, %p911
      %p913 = scmp.ne.s32.totalorder %s901, %s902
      %p914 = scmp.eq.s32.totalorder %s94, 1
      %p915 = por %p913, %p914
      %p917 = scmp.ne.s32.totalorder %s902, %s916
      %p918 = scmp.eq.s32.totalorder %s94, 0
      %p919 = por %p917, %p918
      %s920 = ssub.s32 %s88, %s95
      %p921 = scmp.eq.s32.totalorder %s920, 0
      %s923 = sadd.s32 %s922, 1
      %s924 = scalar_select %p921, %s922, %s923
      %p927 = pneg %p921
      %p928 = scmp.eq.s32.totalorder %s88, 1
      %p929 = por %p927, %p928
      %p930 = scmp.ne.s32.totalorder %s922, %s925
      %p931 = scmp.eq.s32.totalorder %s88, 0
      %p932 = por %p930, %p931
      %p933 = scmp.ne.s32.totalorder %s922, %s925
      %p934 = scmp.eq.s32.totalorder %s93, 1
      %p935 = por %p933, %p934
      %p936 = scmp.ne.s32.totalorder %s925, %s926
      %p937 = scmp.eq.s32.totalorder %s93, 0
      %p938 = por %p936, %p937
      %p939 = scmp.ne.s32.totalorder %s925, %s926
      %p940 = scmp.eq.s32.totalorder %s94, 1
      %p941 = por %p939, %p940
      %p943 = scmp.ne.s32.totalorder %s926, %s942
      %p944 = scmp.eq.s32.totalorder %s94, 0
      %p945 = por %p943, %p944
      %p946 = scmp.le.s32.totalorder 1, %s88
      %p947 = scmp.lt.s32.totalorder %s88, 3
      %p948 = pnand %p946, %p947
      %p949 = pneg %p948
      // Predicated region
      $region9: #{tinyml_mobilenetv1_forward.1} parent=5 // pred_check
        _
      $region10: #{tinyml_mobilenetv1_forward.1} parent=5 // pred_check_branch
        %951 = sbr.rel (%p948) target = $region12
      $region11: #{tinyml_mobilenetv1_forward.1} parent=5 // pred_region
        %s952 = ssub.s32 %s88, 1
        // Predicated region
        $region13: #{tinyml_mobilenetv1_forward.1} parent=11 // pred_check
          %p953 = pneg %p135
        $region14: #{tinyml_mobilenetv1_forward.1} parent=11 // pred_check_branch
          %955 = sbr.rel (%p953) target = $region16
        $region15: #{tinyml_mobilenetv1_forward.1} parent=11 // pred_region
          _
        $region16: #{tinyml_mobilenetv1_forward.1} parent=11 // pred_fallthru
          _
        // Predicated region
        $region17: #{tinyml_mobilenetv1_forward.1} parent=11 // pred_check
          %p956 = pneg %p156
        $region18: #{tinyml_mobilenetv1_forward.1} parent=11 // pred_check_branch
          %958 = sbr.rel (%p956) target = $region20
        $region19: #{tinyml_mobilenetv1_forward.1} parent=11 // pred_region
          _
        $region20: #{tinyml_mobilenetv1_forward.1} parent=11 // pred_fallthru
          _
        // Predicated region
        $region21: #{tinyml_mobilenetv1_forward.1} parent=11 // pred_check
          %p959 = pneg %p177
        $region22: #{tinyml_mobilenetv1_forward.1} parent=11 // pred_check_branch
          %961 = sbr.rel (%p959) target = $region24
        $region23: #{tinyml_mobilenetv1_forward.1} parent=11 // pred_region
          _
        $region24: #{tinyml_mobilenetv1_forward.1} parent=11 // pred_fallthru
          _
        // Predicated region
        $region25: #{tinyml_mobilenetv1_forward.1} parent=11 // pred_check
          %p962 = pneg %p198
        $region26: #{tinyml_mobilenetv1_forward.1} parent=11 // pred_check_branch
          %964 = sbr.rel (%p962) target = $region28
        $region27: #{tinyml_mobilenetv1_forward.1} parent=11 // pred_region
          _
        $region28: #{tinyml_mobilenetv1_forward.1} parent=11 // pred_fallthru
          _
        // Predicated region
        $region29: #{tinyml_mobilenetv1_forward.1} parent=11 // pred_check
          %p965 = pneg %p219
        $region30: #{tinyml_mobilenetv1_forward.1} parent=11 // pred_check_branch
          %967 = sbr.rel (%p965) target = $region32
        $region31: #{tinyml_mobilenetv1_forward.1} parent=11 // pred_region
          _
        $region32: #{tinyml_mobilenetv1_forward.1} parent=11 // pred_fallthru
          _
        // Predicated region
        $region33: #{tinyml_mobilenetv1_forward.1} parent=11 // pred_check
          %p968 = pneg %p240
        $region34: #{tinyml_mobilenetv1_forward.1} parent=11 // pred_check_branch
          %970 = sbr.rel (%p968) target = $region36
        $region35: #{tinyml_mobilenetv1_forward.1} parent=11 // pred_region
          _
        $region36: #{tinyml_mobilenetv1_forward.1} parent=11 // pred_fallthru
          _
        // Predicated region
        $region37: #{tinyml_mobilenetv1_forward.1} parent=11 // pred_check
          %p971 = pneg %p261
        $region38: #{tinyml_mobilenetv1_forward.1} parent=11 // pred_check_branch
          %973 = sbr.rel (%p971) target = $region40
        $region39: #{tinyml_mobilenetv1_forward.1} parent=11 // pred_region
          _
        $region40: #{tinyml_mobilenetv1_forward.1} parent=11 // pred_fallthru
          _
        // Predicated region
        $region41: #{tinyml_mobilenetv1_forward.1} parent=11 // pred_check
          %p974 = pneg %p282
        $region42: #{tinyml_mobilenetv1_forward.1} parent=11 // pred_check_branch
          %976 = sbr.rel (%p974) target = $region44
        $region43: #{tinyml_mobilenetv1_forward.1} parent=11 // pred_region
          _
        $region44: #{tinyml_mobilenetv1_forward.1} parent=11 // pred_fallthru
          _
        // Predicated region
        $region45: #{tinyml_mobilenetv1_forward.1} parent=11 // pred_check
          %p977 = pneg %p303
        $region46: #{tinyml_mobilenetv1_forward.1} parent=11 // pred_check_branch
          %979 = sbr.rel (%p977) target = $region48
        $region47: #{tinyml_mobilenetv1_forward.1} parent=11 // pred_region
          _
        $region48: #{tinyml_mobilenetv1_forward.1} parent=11 // pred_fallthru
          _
        // Predicated region
        $region49: #{tinyml_mobilenetv1_forward.1} parent=11 // pred_check
          %p980 = pneg %p324
        $region50: #{tinyml_mobilenetv1_forward.1} parent=11 // pred_check_branch
          %982 = sbr.rel (%p980) target = $region52
        $region51: #{tinyml_mobilenetv1_forward.1} parent=11 // pred_region
          _
        $region52: #{tinyml_mobilenetv1_forward.1} parent=11 // pred_fallthru
          _
        // Predicated region
        $region53: #{tinyml_mobilenetv1_forward.1} parent=11 // pred_check
          %p983 = pneg %p345
        $region54: #{tinyml_mobilenetv1_forward.1} parent=11 // pred_check_branch
          %985 = sbr.rel (%p983) target = $region56
        $region55: #{tinyml_mobilenetv1_forward.1} parent=11 // pred_region
          _
        $region56: #{tinyml_mobilenetv1_forward.1} parent=11 // pred_fallthru
          _
        // Predicated region
        $region57: #{tinyml_mobilenetv1_forward.1} parent=11 // pred_check
          %p986 = pneg %p366
        $region58: #{tinyml_mobilenetv1_forward.1} parent=11 // pred_check_branch
          %988 = sbr.rel (%p986) target = $region60
        $region59: #{tinyml_mobilenetv1_forward.1} parent=11 // pred_region
          _
        $region60: #{tinyml_mobilenetv1_forward.1} parent=11 // pred_fallthru
          _
        // Predicated region
        $region61: #{tinyml_mobilenetv1_forward.1} parent=11 // pred_check
          %p989 = pneg %p387
        $region62: #{tinyml_mobilenetv1_forward.1} parent=11 // pred_check_branch
          %991 = sbr.rel (%p989) target = $region64
        $region63: #{tinyml_mobilenetv1_forward.1} parent=11 // pred_region
          _
        $region64: #{tinyml_mobilenetv1_forward.1} parent=11 // pred_fallthru
          _
        // Predicated region
        $region65: #{tinyml_mobilenetv1_forward.1} parent=11 // pred_check
          %p992 = pneg %p408
        $region66: #{tinyml_mobilenetv1_forward.1} parent=11 // pred_check_branch
          %994 = sbr.rel (%p992) target = $region68
        $region67: #{tinyml_mobilenetv1_forward.1} parent=11 // pred_region
          _
        $region68: #{tinyml_mobilenetv1_forward.1} parent=11 // pred_fallthru
          _
        // Predicated region
        $region69: #{tinyml_mobilenetv1_forward.1} parent=11 // pred_check
          %p995 = pneg %p429
        $region70: #{tinyml_mobilenetv1_forward.1} parent=11 // pred_check_branch
          %997 = sbr.rel (%p995) target = $region72
        $region71: #{tinyml_mobilenetv1_forward.1} parent=11 // pred_region
          _
        $region72: #{tinyml_mobilenetv1_forward.1} parent=11 // pred_fallthru
          _
        // Predicated region
        $region73: #{tinyml_mobilenetv1_forward.1} parent=11 // pred_check
          %p998 = pneg %p450
        $region74: #{tinyml_mobilenetv1_forward.1} parent=11 // pred_check_branch
          %1000 = sbr.rel (%p998) target = $region76
        $region75: #{tinyml_mobilenetv1_forward.1} parent=11 // pred_region
          _
        $region76: #{tinyml_mobilenetv1_forward.1} parent=11 // pred_fallthru
          _
        // Predicated region
        $region77: #{tinyml_mobilenetv1_forward.1} parent=11 // pred_check
          %p1001 = pneg %p471
        $region78: #{tinyml_mobilenetv1_forward.1} parent=11 // pred_check_branch
          %1003 = sbr.rel (%p1001) target = $region80
        $region79: #{tinyml_mobilenetv1_forward.1} parent=11 // pred_region
          _
        $region80: #{tinyml_mobilenetv1_forward.1} parent=11 // pred_fallthru
          _
        // Predicated region
        $region81: #{tinyml_mobilenetv1_forward.1} parent=11 // pred_check
          %p1004 = pneg %p492
        $region82: #{tinyml_mobilenetv1_forward.1} parent=11 // pred_check_branch
          %1006 = sbr.rel (%p1004) target = $region84
        $region83: #{tinyml_mobilenetv1_forward.1} parent=11 // pred_region
          _
        $region84: #{tinyml_mobilenetv1_forward.1} parent=11 // pred_fallthru
          _
        // Predicated region
        $region85: #{tinyml_mobilenetv1_forward.1} parent=11 // pred_check
          %p1007 = pneg %p513
        $region86: #{tinyml_mobilenetv1_forward.1} parent=11 // pred_check_branch
          %1009 = sbr.rel (%p1007) target = $region88
        $region87: #{tinyml_mobilenetv1_forward.1} parent=11 // pred_region
          _
        $region88: #{tinyml_mobilenetv1_forward.1} parent=11 // pred_fallthru
          _
        // Predicated region
        $region89: #{tinyml_mobilenetv1_forward.1} parent=11 // pred_check
          %p1010 = pneg %p534
        $region90: #{tinyml_mobilenetv1_forward.1} parent=11 // pred_check_branch
          %1012 = sbr.rel (%p1010) target = $region92
        $region91: #{tinyml_mobilenetv1_forward.1} parent=11 // pred_region
          _
        $region92: #{tinyml_mobilenetv1_forward.1} parent=11 // pred_fallthru
          _
        // Predicated region
        $region93: #{tinyml_mobilenetv1_forward.1} parent=11 // pred_check
          %p1013 = pneg %p555
        $region94: #{tinyml_mobilenetv1_forward.1} parent=11 // pred_check_branch
          %1015 = sbr.rel (%p1013) target = $region96
        $region95: #{tinyml_mobilenetv1_forward.1} parent=11 // pred_region
          _
        $region96: #{tinyml_mobilenetv1_forward.1} parent=11 // pred_fallthru
          _
        // Predicated region
        $region97: #{tinyml_mobilenetv1_forward.1} parent=11 // pred_check
          %p1016 = pneg %p576
        $region98: #{tinyml_mobilenetv1_forward.1} parent=11 // pred_check_branch
          %1018 = sbr.rel (%p1016) target = $region100
        $region99: #{tinyml_mobilenetv1_forward.1} parent=11 // pred_region
          _
        $region100: #{tinyml_mobilenetv1_forward.1} parent=11 // pred_fallthru
          _
        // Predicated region
        $region101: #{tinyml_mobilenetv1_forward.1} parent=11 // pred_check
          %p1019 = pneg %p597
        $region102: #{tinyml_mobilenetv1_forward.1} parent=11 // pred_check_branch
          %1021 = sbr.rel (%p1019) target = $region104
        $region103: #{tinyml_mobilenetv1_forward.1} parent=11 // pred_region
          _
        $region104: #{tinyml_mobilenetv1_forward.1} parent=11 // pred_fallthru
          _
        // Predicated region
        $region105: #{tinyml_mobilenetv1_forward.1} parent=11 // pred_check
          %p1022 = pneg %p618
        $region106: #{tinyml_mobilenetv1_forward.1} parent=11 // pred_check_branch
          %1024 = sbr.rel (%p1022) target = $region108
        $region107: #{tinyml_mobilenetv1_forward.1} parent=11 // pred_region
          _
        $region108: #{tinyml_mobilenetv1_forward.1} parent=11 // pred_fallthru
          _
        // Predicated region
        $region109: #{tinyml_mobilenetv1_forward.1} parent=11 // pred_check
          %p1025 = pneg %p639
        $region110: #{tinyml_mobilenetv1_forward.1} parent=11 // pred_check_branch
          %1027 = sbr.rel (%p1025) target = $region112
        $region111: #{tinyml_mobilenetv1_forward.1} parent=11 // pred_region
          _
        $region112: #{tinyml_mobilenetv1_forward.1} parent=11 // pred_fallthru
          _
        // Predicated region
        $region113: #{tinyml_mobilenetv1_forward.1} parent=11 // pred_check
          %p1028 = pneg %p660
        $region114: #{tinyml_mobilenetv1_forward.1} parent=11 // pred_check_branch
          %1030 = sbr.rel (%p1028) target = $region116
        $region115: #{tinyml_mobilenetv1_forward.1} parent=11 // pred_region
          _
        $region116: #{tinyml_mobilenetv1_forward.1} parent=11 // pred_fallthru
          _
        // Predicated region
        $region117: #{tinyml_mobilenetv1_forward.1} parent=11 // pred_check
          %p1031 = pneg %p681
        $region118: #{tinyml_mobilenetv1_forward.1} parent=11 // pred_check_branch
          %1033 = sbr.rel (%p1031) target = $region120
        $region119: #{tinyml_mobilenetv1_forward.1} parent=11 // pred_region
          _
        $region120: #{tinyml_mobilenetv1_forward.1} parent=11 // pred_fallthru
          _
        // Predicated region
        $region121: #{tinyml_mobilenetv1_forward.1} parent=11 // pred_check
          %p1034 = pneg %p702
        $region122: #{tinyml_mobilenetv1_forward.1} parent=11 // pred_check_branch
          %1036 = sbr.rel (%p1034) target = $region124
        $region123: #{tinyml_mobilenetv1_forward.1} parent=11 // pred_region
          _
        $region124: #{tinyml_mobilenetv1_forward.1} parent=11 // pred_fallthru
          _
        // Predicated region
        $region125: #{tinyml_mobilenetv1_forward.1} parent=11 // pred_check
          %p1037 = pneg %p723
        $region126: #{tinyml_mobilenetv1_forward.1} parent=11 // pred_check_branch
          %1039 = sbr.rel (%p1037) target = $region128
        $region127: #{tinyml_mobilenetv1_forward.1} parent=11 // pred_region
          _
        $region128: #{tinyml_mobilenetv1_forward.1} parent=11 // pred_fallthru
          _
        // Predicated region
        $region129: #{tinyml_mobilenetv1_forward.1} parent=11 // pred_check
          %p1040 = pneg %p744
        $region130: #{tinyml_mobilenetv1_forward.1} parent=11 // pred_check_branch
          %1042 = sbr.rel (%p1040) target = $region132
        $region131: #{tinyml_mobilenetv1_forward.1} parent=11 // pred_region
          _
        $region132: #{tinyml_mobilenetv1_forward.1} parent=11 // pred_fallthru
          _
        // Predicated region
        $region133: #{tinyml_mobilenetv1_forward.1} parent=11 // pred_check
          %p1043 = pneg %p765
        $region134: #{tinyml_mobilenetv1_forward.1} parent=11 // pred_check_branch
          %1045 = sbr.rel (%p1043) target = $region136
        $region135: #{tinyml_mobilenetv1_forward.1} parent=11 // pred_region
          _
        $region136: #{tinyml_mobilenetv1_forward.1} parent=11 // pred_fallthru
          _
        // Predicated region
        $region137: #{tinyml_mobilenetv1_forward.1} parent=11 // pred_check
          %p1046 = pneg %p786
        $region138: #{tinyml_mobilenetv1_forward.1} parent=11 // pred_check_branch
          %1048 = sbr.rel (%p1046) target = $region140
        $region139: #{tinyml_mobilenetv1_forward.1} parent=11 // pred_region
          _
        $region140: #{tinyml_mobilenetv1_forward.1} parent=11 // pred_fallthru
          _
        // Predicated region
        $region141: #{tinyml_mobilenetv1_forward.1} parent=11 // pred_check
          %p1049 = pneg %p807
        $region142: #{tinyml_mobilenetv1_forward.1} parent=11 // pred_check_branch
          %1051 = sbr.rel (%p1049) target = $region144
        $region143: #{tinyml_mobilenetv1_forward.1} parent=11 // pred_region
          _
        $region144: #{tinyml_mobilenetv1_forward.1} parent=11 // pred_fallthru
          _
        // Predicated region
        $region145: #{tinyml_mobilenetv1_forward.1} parent=11 // pred_check
          %p1052 = pneg %p828
        $region146: #{tinyml_mobilenetv1_forward.1} parent=11 // pred_check_branch
          %1054 = sbr.rel (%p1052) target = $region148
        $region147: #{tinyml_mobilenetv1_forward.1} parent=11 // pred_region
          _
        $region148: #{tinyml_mobilenetv1_forward.1} parent=11 // pred_fallthru
          _
        // Predicated region
        $region149: #{tinyml_mobilenetv1_forward.1} parent=11 // pred_check
          %p1055 = pneg %p849
        $region150: #{tinyml_mobilenetv1_forward.1} parent=11 // pred_check_branch
          %1057 = sbr.rel (%p1055) target = $region152
        $region151: #{tinyml_mobilenetv1_forward.1} parent=11 // pred_region
          _
        $region152: #{tinyml_mobilenetv1_forward.1} parent=11 // pred_fallthru
          _
        // Predicated region
        $region153: #{tinyml_mobilenetv1_forward.1} parent=11 // pred_check
          %p1058 = pneg %p870
        $region154: #{tinyml_mobilenetv1_forward.1} parent=11 // pred_check_branch
          %1060 = sbr.rel (%p1058) target = $region156
        $region155: #{tinyml_mobilenetv1_forward.1} parent=11 // pred_region
          _
        $region156: #{tinyml_mobilenetv1_forward.1} parent=11 // pred_fallthru
          _
        // Predicated region
        $region157: #{tinyml_mobilenetv1_forward.1} parent=11 // pred_check
          %p1061 = pneg %p891
        $region158: #{tinyml_mobilenetv1_forward.1} parent=11 // pred_check_branch
          %1063 = sbr.rel (%p1061) target = $region160
        $region159: #{tinyml_mobilenetv1_forward.1} parent=11 // pred_region
          _
        $region160: #{tinyml_mobilenetv1_forward.1} parent=11 // pred_fallthru
          _
        // Predicated region
        $region161: #{tinyml_mobilenetv1_forward.1} parent=11 // pred_check
          %p1064 = pneg %p912
        $region162: #{tinyml_mobilenetv1_forward.1} parent=11 // pred_check_branch
          %1066 = sbr.rel (%p1064) target = $region164
        $region163: #{tinyml_mobilenetv1_forward.1} parent=11 // pred_region
          _
        $region164: #{tinyml_mobilenetv1_forward.1} parent=11 // pred_fallthru
          _
      $region12: #{tinyml_mobilenetv1_forward.1} parent=5 // pred_fallthru
        _
      %p1067 = scmp.lt.s32.totalorder %s88, 2
      // Predicated region
      $region165: #{tinyml_mobilenetv1_forward.1} parent=5 // pred_check
        %p1068 = pneg %p1067
      $region166: #{tinyml_mobilenetv1_forward.1} parent=5 // pred_check_branch
        %1070 = sbr.rel (%p1068) target = $region168
      $region167: #{tinyml_mobilenetv1_forward.1} parent=5 // pred_region
        // Predicated region
        $region169: #{tinyml_mobilenetv1_forward.1} parent=167 // pred_check
          %p1071 = pneg %p108
        $region170: #{tinyml_mobilenetv1_forward.1} parent=167 // pred_check_branch
          %1073 = sbr.rel (%p1071) target = $region172
        $region171: #{tinyml_mobilenetv1_forward.1} parent=167 // pred_region
          %s1074 = smul.u32 32, %s88
          %p1075 = scmp.lt.s32.totalorder %s1074, 63
          %s1076 = scalar_select %p1075, %s1074, 63
          %s1077 = smul.addr %s1076, 8
          %s1078 = scalar_lea.vmem %s1, %s1077
          %s1079 = smul.u32 32, %s88
        $region172: #{tinyml_mobilenetv1_forward.1} parent=167 // pred_fallthru
          _
      $region168: #{tinyml_mobilenetv1_forward.1} parent=5 // pred_fallthru
        _
      %p1080 = scmp.le.s32.totalorder 1, %s88
      %p1081 = scmp.lt.s32.totalorder %s88, 3
      %p1082 = pnand %p1080, %p1081
      %p1083 = pneg %p1082
      // Predicated region
      $region173: #{tinyml_mobilenetv1_forward.1} parent=5 // pred_check
        _
      $region174: #{tinyml_mobilenetv1_forward.1} parent=5 // pred_check_branch
        %1085 = sbr.rel (%p1082) target = $region176
      $region175: #{tinyml_mobilenetv1_forward.1} parent=5 // pred_region
        %s1086 = ssub.s32 %s88, 1
        %s1087 = smul.u32 32, %s93
        %p1088 = scmp.lt.s32.totalorder %s1087, 63
        %s1089 = scalar_select %p1088, %s1087, 63
        %s1090 = smul.addr %s1089, 8
        %s1091 = scalar_lea.vmem %s1, %s1090
        %p1092 = pneg %p114
        %p1093 = pneg %p111
        %p1094 = pneg %p135
        %p1095 = pneg %p132
        %p1096 = pneg %p156
        %p1097 = pneg %p153
        %p1098 = pneg %p177
        %p1099 = pneg %p174
        %p1100 = pneg %p198
        %p1101 = pneg %p195
        %p1102 = pneg %p219
        %p1103 = pneg %p216
        %p1104 = pneg %p240
        %p1105 = pneg %p237
        %p1106 = pneg %p261
        %p1107 = pneg %p258
        %p1108 = pneg %p282
        %p1109 = pneg %p279
        %p1110 = pneg %p303
        %p1111 = pneg %p300
        %p1112 = pneg %p324
        %p1113 = pneg %p321
        %p1114 = pneg %p345
        %p1115 = pneg %p342
        %p1116 = pneg %p366
        %p1117 = pneg %p363
        %p1118 = pneg %p387
        %p1119 = pneg %p384
        %p1120 = pneg %p408
        %p1121 = pneg %p405
        %p1122 = pneg %p429
        %p1123 = pneg %p426
        %p1124 = pneg %p450
        %p1125 = pneg %p447
        %p1126 = pneg %p471
        %p1127 = pneg %p468
        %p1128 = pneg %p492
        %p1129 = pneg %p489
        %p1130 = pneg %p513
        %p1131 = pneg %p510
        %p1132 = pneg %p534
        %p1133 = pneg %p531
        %p1134 = pneg %p555
        %p1135 = pneg %p552
        %p1136 = pneg %p576
        %p1137 = pneg %p573
        %p1138 = pneg %p597
        %p1139 = pneg %p594
        %p1140 = pneg %p618
        %p1141 = pneg %p615
        %p1142 = pneg %p639
        %p1143 = pneg %p636
        %p1144 = pneg %p660
        %p1145 = pneg %p657
        %p1146 = pneg %p681
        %p1147 = pneg %p678
        %p1148 = pneg %p702
        %p1149 = pneg %p699
        %p1150 = pneg %p723
        %p1151 = pneg %p720
        %p1152 = pneg %p744
        %p1153 = pneg %p741
        %p1154 = pneg %p765
        %p1155 = pneg %p762
        %p1156 = pneg %p786
        %p1157 = pneg %p783
        %p1158 = pneg %p807
        %p1159 = pneg %p804
        %p1160 = pneg %p828
        %p1161 = pneg %p825
        %p1162 = pneg %p849
        %p1163 = pneg %p846
        %p1164 = pneg %p870
        %p1165 = pneg %p867
        %p1166 = pneg %p891
        %p1167 = pneg %p888
        %p1168 = pneg %p912
        %p1169 = pneg %p909
        %p1170 = pneg %p938
        %p1171 = pneg %p935
        %s1172 = sand.u32 %s925, 1
        %s1173 = scalar_lea.sflag [#allocation3], %s1172
        %s1174 = sand.u32 %s925, 1
        %s1175 = scalar_lea.vmem [#allocation2], %s1174
        %s1176 = smul.u32 32, %s93
        %p1177 = scmp.lt.s32.totalorder %s1176, 63
        %s1178 = scalar_select %p1177, %s1176, 63
        %s1179 = smul.addr %s1178, 8
        %s1180 = scalar_lea.vmem %s1, %s1179
        %s1181 = smul.u32 32, %s93
        %v1182 = vld [vmem:[%s1180] sm:$0xff]
        %v1183 = vld [vmem:[%s1180 + $0x8] sm:$0xff]
        %v1184 = vld [vmem:[%s1180 + $0x10] sm:$0xff]
        %v1185 = vld [vmem:[%s1180 + $0x18] sm:$0xff]
        %v1186 = vld [vmem:[%s1180 + $0x20] sm:$0xff]
        %v1187 = vld [vmem:[%s1180 + $0x28] sm:$0xff]
        %v1188 = vld [vmem:[%s1180 + $0x30] sm:$0xff]
        %v1189 = vld [vmem:[%s1180 + $0x38] sm:$0xff]
        %v1190 = vld [vmem:[%s1180 + $0x40] sm:$0xff]
        %v1191 = vld [vmem:[%s1180 + $0x48] sm:$0xff]
        %v1192 = vld [vmem:[%s1180 + $0x50] sm:$0xff]
        %v1193 = vld [vmem:[%s1180 + $0x58] sm:$0xff]
        %v1194 = vld [vmem:[%s1180 + $0x60] sm:$0xff]
        %v1195 = vld [vmem:[%s1180 + $0x68] sm:$0xff]
        %v1196 = vld [vmem:[%s1180 + $0x70] sm:$0xff]
        %v1197 = vld [vmem:[%s1180 + $0x78] sm:$0xff]
        %v1198 = vld [vmem:[%s1180 + $0x80] sm:$0xff]
        %v1199 = vld [vmem:[%s1180 + $0x88] sm:$0xff]
        %v1200 = vld [vmem:[%s1180 + $0x90] sm:$0xff]
        %v1201 = vld [vmem:[%s1180 + $0x98] sm:$0xff]
        %v1202 = vld [vmem:[%s1180 + $0xa0] sm:$0xff]
        %v1203 = vld [vmem:[%s1180 + $0xa8] sm:$0xff]
        %v1204 = vld [vmem:[%s1180 + $0xb0] sm:$0xff]
        %v1205 = vld [vmem:[%s1180 + $0xb8] sm:$0xff]
        %v1206 = vld [vmem:[%s1180 + $0xc0] sm:$0xff]
        %v1207 = vld [vmem:[%s1180 + $0xc8] sm:$0xff]
        %v1208 = vld [vmem:[%s1180 + $0xd0] sm:$0xff]
        %v1209 = vld [vmem:[%s1180 + $0xd8] sm:$0xff]
        %v1210 = vld [vmem:[%s1180 + $0xe0] sm:$0xff]
        %v1211 = vld [vmem:[%s1180 + $0xe8] sm:$0xff]
        %v1212 = vld [vmem:[%s1180 + $0xf0] sm:$0xff]
        %v1213 = vld [vmem:[%s1180 + $0xf8] sm:$0xff]
        %v1214 = vld [vmem:[%s3] sm:$0xff]
        %v1215 = vld [vmem:[%s3 + $0x8] sm:$0xff]
        %v1216 = vld [vmem:[%s3 + $0x10] sm:$0xff]
        %v1217 = vld [vmem:[%s3 + $0x18] sm:$0x7]
        %vm1218 = vcmask 220160
        %v1220 = vsel %vm1218, %v1182, 0
        %v1223 = vsel %vm1218, %v1183, 0
        %v1226 = vsel %vm1218, %v1184, 0
        %v1229 = vsel %vm1218, %v1185, 0
        %v1232 = vsel %vm1218, %v1186, 0
        %v1235 = vsel %vm1218, %v1187, 0
        %v1238 = vsel %vm1218, %v1188, 0
        %v1241 = vsel %vm1218, %v1189, 0
        %v1244 = vsel %vm1218, %v1190, 0
        %v1247 = vsel %vm1218, %v1191, 0
        %v1250 = vsel %vm1218, %v1192, 0
        %v1253 = vsel %vm1218, %v1193, 0
        %v1256 = vsel %vm1218, %v1194, 0
        %v1259 = vsel %vm1218, %v1195, 0
        %v1262 = vsel %vm1218, %v1196, 0
        %v1265 = vsel %vm1218, %v1197, 0
        %v1268 = vsel %vm1218, %v1198, 0
        %v1271 = vsel %vm1218, %v1199, 0
        %v1274 = vsel %vm1218, %v1200, 0
        %v1277 = vsel %vm1218, %v1201, 0
        %v1280 = vsel %vm1218, %v1202, 0
        %v1283 = vsel %vm1218, %v1203, 0
        %v1286 = vsel %vm1218, %v1204, 0
        %v1289 = vsel %vm1218, %v1205, 0
        %v1292 = vsel %vm1218, %v1206, 0
        %v1295 = vsel %vm1218, %v1207, 0
        %v1298 = vsel %vm1218, %v1208, 0
        %v1301 = vsel %vm1218, %v1209, 0
        %v1304 = vsel %vm1218, %v1210, 0
        %v1307 = vsel %vm1218, %v1211, 0
        %v1310 = vsel %vm1218, %v1212, 0
        %v1313 = vsel %vm1218, %v1213, 0
        %vm1315 = vcmask 1042432
        %v1317 = vsel %vm1315, %v1217, 0
        %1319 = vmatprep.subr.mxu0 0.0
        %1320 = vmatpush1.msra.mxu0 0.0
        %1321 = vmatprep.subr.mxu0 0.0
        %1322 = vmatpush1.msra.mxu0 0.0
        %1323 = vmatprep.subr.mxu0 0.0
        %1324 = vmatpush1.msra.mxu0 0.0
        %1325 = vmatprep.subr.mxu0 0.0
        %1326 = vmatpush1.msra.mxu0 0.0
        %1327 = vmatprep.subr.mxu0 0.0
        %1328 = vmatpush1.msra.mxu0 0.0
        %1329 = vmatprep.subr.mxu0 0.0
        %1330 = vmatpush1.msra.mxu0 0.0
        %1331 = vmatprep.subr.mxu0 0.0
        %1332 = vmatpush1.msra.mxu0 0.0
        %1333 = vmatprep.subr.mxu0 0.0
        %1334 = vmatpush1.msra.mxu0 0.0
        %1335 = vmatprep.subr.mxu0 0.0
        %1336 = vmatpush1.msra.mxu0 0.0
        %1337 = vmatprep.subr.mxu0 0.0
        %1338 = vmatpush1.msra.mxu0 0.0
        %1339 = vmatprep.subr.mxu0 0.0
        %1340 = vmatpush1.msra.mxu0 0.0
        %1341 = vmatprep.subr.mxu0 0.0
        %1342 = vmatpush1.msra.mxu0 0.0
        %1343 = vmatprep.subr.mxu0 0.0
        %1344 = vmatpush1.msra.mxu0 %v1317
        %1345 = vmatprep.subr.mxu0 0.0
        %1346 = vmatpush1.msra.mxu0 %v1216
        %1347 = vmatprep.subr.mxu0 0.0
        %1348 = vmatpush1.msra.mxu0 %v1215
        %1349 = vmatprep.subr.mxu0 0.0
        %1350 = vmatpush1.msra.mxu0 %v1214
        %1351 = vmatprep.subr.mxu0 0.0
        %1352 = vmatpush2.msra.mxu0 0.0
        %1353 = vmatprep.subr.mxu0 0.0
        %1354 = vmatpush2.msra.mxu0 0.0
        %1355 = vmatprep.subr.mxu0 0.0
        %1356 = vmatpush2.msra.mxu0 0.0
        %1357 = vmatprep.subr.mxu0 0.0
        %1358 = vmatpush2.msra.mxu0 0.0
        %1359 = vmatprep.subr.mxu0 0.0
        %1360 = vmatpush2.msra.mxu0 0.0
        %1361 = vmatprep.subr.mxu0 0.0
        %1362 = vmatpush2.msra.mxu0 0.0
        %1363 = vmatprep.subr.mxu0 0.0
        %1364 = vmatpush2.msra.mxu0 0.0
        %1365 = vmatprep.subr.mxu0 0.0
        %1366 = vmatpush2.msra.mxu0 0.0
        %1367 = vmatprep.subr.mxu0 0.0
        %1368 = vmatpush2.msra.mxu0 0.0
        %1369 = vmatprep.subr.mxu0 0.0
        %1370 = vmatpush2.msra.mxu0 0.0
        %1371 = vmatprep.subr.mxu0 0.0
        %1372 = vmatpush2.msra.mxu0 0.0
        %1373 = vmatprep.subr.mxu0 0.0
        %1374 = vmatpush2.msra.mxu0 0.0
        %1375 = vmatprep.subr.mxu0 0.0
        %1376 = vmatpush2.msra.mxu0 0.0
        %1377 = vmatprep.subr.mxu0 0.0
        %1378 = vmatpush2.msra.mxu0 0.0
        %1379 = vmatprep.subr.mxu0 0.0
        %1380 = vmatpush2.msra.mxu0 0.0
        %1381 = vmatprep.subr.mxu0 0.0
        %1382 = vmatpush2.msra.mxu0 0.0
        %1383 = vmatprep.mubr.f32.mxu0 0.0
        %1384 = vmatmul.mubr.f32.gmra.mxu0 %v1220
        %v1385 = vpop.f32.mrf.mxu0
        %v1386 = vadd.f32 0.0, %v1385
        %v1387 = vpop.f32.mrf.mxu0
        %1388 = vmatprep.mubr.f32.mxu0 0.0
        %1389 = vmatmul.mubr.f32.gmra.mxu0 %v1223
        %v1390 = vpop.f32.mrf.mxu0
        %v1391 = vadd.f32 0.0, %v1390
        %v1392 = vpop.f32.mrf.mxu0
        %1393 = vmatprep.mubr.f32.mxu0 0.0
        %1394 = vmatmul.mubr.f32.gmra.mxu0 %v1226
        %v1395 = vpop.f32.mrf.mxu0
        %v1396 = vadd.f32 0.0, %v1395
        %v1397 = vpop.f32.mrf.mxu0
        %1398 = vmatprep.mubr.f32.mxu0 0.0
        %1399 = vmatmul.mubr.f32.gmra.mxu0 %v1229
        %v1400 = vpop.f32.mrf.mxu0
        %v1401 = vadd.f32 0.0, %v1400
        %v1402 = vpop.f32.mrf.mxu0
        %1403 = vmatprep.mubr.f32.mxu0 0.0
        %1404 = vmatmul.mubr.f32.gmra.mxu0 %v1232
        %v1405 = vpop.f32.mrf.mxu0
        %v1406 = vadd.f32 0.0, %v1405
        %v1407 = vpop.f32.mrf.mxu0
        %1408 = vmatprep.mubr.f32.mxu0 0.0
        %1409 = vmatmul.mubr.f32.gmra.mxu0 %v1235
        %v1410 = vpop.f32.mrf.mxu0
        %v1411 = vadd.f32 0.0, %v1410
        %v1412 = vpop.f32.mrf.mxu0
        %1413 = vmatprep.mubr.f32.mxu0 0.0
        %1414 = vmatmul.mubr.f32.gmra.mxu0 %v1238
        %v1415 = vpop.f32.mrf.mxu0
        %v1416 = vadd.f32 0.0, %v1415
        %v1417 = vpop.f32.mrf.mxu0
        %1418 = vmatprep.mubr.f32.mxu0 0.0
        %1419 = vmatmul.mubr.f32.gmra.mxu0 %v1241
        %v1420 = vpop.f32.mrf.mxu0
        %v1421 = vadd.f32 0.0, %v1420
        %v1422 = vpop.f32.mrf.mxu0
        %1423 = vmatprep.mubr.f32.mxu0 0.0
        %1424 = vmatmul.mubr.f32.gmra.mxu0 %v1244
        %v1425 = vpop.f32.mrf.mxu0
        %v1426 = vadd.f32 0.0, %v1425
        %v1427 = vpop.f32.mrf.mxu0
        %1428 = vmatprep.mubr.f32.mxu0 0.0
        %1429 = vmatmul.mubr.f32.gmra.mxu0 %v1247
        %v1430 = vpop.f32.mrf.mxu0
        %v1431 = vadd.f32 0.0, %v1430
        %v1432 = vpop.f32.mrf.mxu0
        %1433 = vmatprep.mubr.f32.mxu0 0.0
        %1434 = vmatmul.mubr.f32.gmra.mxu0 %v1250
        %v1435 = vpop.f32.mrf.mxu0
        %v1436 = vadd.f32 0.0, %v1435
        %v1437 = vpop.f32.mrf.mxu0
        %1438 = vmatprep.mubr.f32.mxu0 0.0
        %1439 = vmatmul.mubr.f32.gmra.mxu0 %v1253
        %v1440 = vpop.f32.mrf.mxu0
        %v1441 = vadd.f32 0.0, %v1440
        %v1442 = vpop.f32.mrf.mxu0
        %1443 = vmatprep.mubr.f32.mxu0 0.0
        %1444 = vmatmul.mubr.f32.gmra.mxu0 %v1256
        %v1445 = vpop.f32.mrf.mxu0
        %v1446 = vadd.f32 0.0, %v1445
        %v1447 = vpop.f32.mrf.mxu0
        %1448 = vmatprep.mubr.f32.mxu0 0.0
        %1449 = vmatmul.mubr.f32.gmra.mxu0 %v1259
        %v1450 = vpop.f32.mrf.mxu0
        %v1451 = vadd.f32 0.0, %v1450
        %v1452 = vpop.f32.mrf.mxu0
        %1453 = vmatprep.mubr.f32.mxu0 0.0
        %1454 = vmatmul.mubr.f32.gmra.mxu0 %v1262
        %v1455 = vpop.f32.mrf.mxu0
        %v1456 = vadd.f32 0.0, %v1455
        %v1457 = vpop.f32.mrf.mxu0
        %1458 = vmatprep.mubr.f32.mxu0 0.0
        %1459 = vmatmul.mubr.f32.gmra.mxu0 %v1265
        %v1460 = vpop.f32.mrf.mxu0
        %v1461 = vadd.f32 0.0, %v1460
        %v1462 = vpop.f32.mrf.mxu0
        %1463 = vmatprep.mubr.f32.mxu0 0.0
        %1464 = vmatmul.mubr.f32.gmra.mxu0 %v1268
        %v1465 = vpop.f32.mrf.mxu0
        %v1466 = vadd.f32 0.0, %v1465
        %v1467 = vpop.f32.mrf.mxu0
        %1468 = vmatprep.mubr.f32.mxu0 0.0
        %1469 = vmatmul.mubr.f32.gmra.mxu0 %v1271
        %v1470 = vpop.f32.mrf.mxu0
        %v1471 = vadd.f32 0.0, %v1470
        %v1472 = vpop.f32.mrf.mxu0
        %1473 = vmatprep.mubr.f32.mxu0 0.0
        %1474 = vmatmul.mubr.f32.gmra.mxu0 %v1274
        %v1475 = vpop.f32.mrf.mxu0
        %v1476 = vadd.f32 0.0, %v1475
        %v1477 = vpop.f32.mrf.mxu0
        %1478 = vmatprep.mubr.f32.mxu0 0.0
        %1479 = vmatmul.mubr.f32.gmra.mxu0 %v1277
        %v1480 = vpop.f32.mrf.mxu0
        %v1481 = vadd.f32 0.0, %v1480
        %v1482 = vpop.f32.mrf.mxu0
        %1483 = vmatprep.mubr.f32.mxu0 0.0
        %1484 = vmatmul.mubr.f32.gmra.mxu0 %v1280
        %v1485 = vpop.f32.mrf.mxu0
        %v1486 = vadd.f32 0.0, %v1485
        %v1487 = vpop.f32.mrf.mxu0
        %1488 = vmatprep.mubr.f32.mxu0 0.0
        %1489 = vmatmul.mubr.f32.gmra.mxu0 %v1283
        %v1490 = vpop.f32.mrf.mxu0
        %v1491 = vadd.f32 0.0, %v1490
        %v1492 = vpop.f32.mrf.mxu0
        %1493 = vmatprep.mubr.f32.mxu0 0.0
        %1494 = vmatmul.mubr.f32.gmra.mxu0 %v1286
        %v1495 = vpop.f32.mrf.mxu0
        %v1496 = vadd.f32 0.0, %v1495
        %v1497 = vpop.f32.mrf.mxu0
        %1498 = vmatprep.mubr.f32.mxu0 0.0
        %1499 = vmatmul.mubr.f32.gmra.mxu0 %v1289
        %v1500 = vpop.f32.mrf.mxu0
        %v1501 = vadd.f32 0.0, %v1500
        %v1502 = vpop.f32.mrf.mxu0
        %1503 = vmatprep.mubr.f32.mxu0 0.0
        %1504 = vmatmul.mubr.f32.gmra.mxu0 %v1292
        %v1505 = vpop.f32.mrf.mxu0
        %v1506 = vadd.f32 0.0, %v1505
        %v1507 = vpop.f32.mrf.mxu0
        %1508 = vmatprep.mubr.f32.mxu0 0.0
        %1509 = vmatmul.mubr.f32.gmra.mxu0 %v1295
        %v1510 = vpop.f32.mrf.mxu0
        %v1511 = vadd.f32 0.0, %v1510
        %v1512 = vpop.f32.mrf.mxu0
        %1513 = vmatprep.mubr.f32.mxu0 0.0
        %1514 = vmatmul.mubr.f32.gmra.mxu0 %v1298
        %v1515 = vpop.f32.mrf.mxu0
        %v1516 = vadd.f32 0.0, %v1515
        %v1517 = vpop.f32.mrf.mxu0
        %1518 = vmatprep.mubr.f32.mxu0 0.0
        %1519 = vmatmul.mubr.f32.gmra.mxu0 %v1301
        %v1520 = vpop.f32.mrf.mxu0
        %v1521 = vadd.f32 0.0, %v1520
        %v1522 = vpop.f32.mrf.mxu0
        %1523 = vmatprep.mubr.f32.mxu0 0.0
        %1524 = vmatmul.mubr.f32.gmra.mxu0 %v1304
        %v1525 = vpop.f32.mrf.mxu0
        %v1526 = vadd.f32 0.0, %v1525
        %v1527 = vpop.f32.mrf.mxu0
        %1528 = vmatprep.mubr.f32.mxu0 0.0
        %1529 = vmatmul.mubr.f32.gmra.mxu0 %v1307
        %v1530 = vpop.f32.mrf.mxu0
        %v1531 = vadd.f32 0.0, %v1530
        %v1532 = vpop.f32.mrf.mxu0
        %1533 = vmatprep.mubr.f32.mxu0 0.0
        %1534 = vmatmul.mubr.f32.gmra.mxu0 %v1310
        %v1535 = vpop.f32.mrf.mxu0
        %v1536 = vadd.f32 0.0, %v1535
        %v1537 = vpop.f32.mrf.mxu0
        %1538 = vmatprep.mubr.f32.mxu0 0.0
        %1539 = vmatmul.mubr.f32.gmra.mxu0 %v1313
        %v1540 = vpop.f32.mrf.mxu0
        %v1541 = vadd.f32 0.0, %v1540
        %v1542 = vpop.f32.mrf.mxu0
        %1543 = vdwg.mxu0
        %v1544 = vld [vmem:[%s5] sm:$0xff]
        %v1545 = vld [vmem:[%s5 + $0x8] sm:$0x1]
        %v1546 = vld [vmem:[%s57] sm:$0xff]
        %v1547 = vld [vmem:[%s57 + $0x8] sm:$0xff]
        %v1548 = vld [vmem:[%s57 + $0x10] sm:$0xff]
        %v1549 = vld [vmem:[%s57 + $0x18] sm:$0xff]
        %v1550 = vld [vmem:[%s57 + $0x20] sm:$0xff]
        %v1551 = vld [vmem:[%s57 + $0x28] sm:$0xff]
        %v1552 = vld [vmem:[%s57 + $0x30] sm:$0xff]
        %v1553 = vld [vmem:[%s57 + $0x38] sm:$0xff]
        %v1554 = vld [vmem:[%s57 + $0x40] sm:$0xff]
        %v1555 = vld [vmem:[%s57 + $0x48] sm:$0xff]
        %v1556 = vld [vmem:[%s57 + $0x50] sm:$0xff]
        %v1557 = vld [vmem:[%s57 + $0x58] sm:$0xff]
        %v1558 = vld [vmem:[%s57 + $0x60] sm:$0xff]
        %v1559 = vld [vmem:[%s57 + $0x68] sm:$0xff]
        %v1560 = vld [vmem:[%s57 + $0x70] sm:$0xff]
        %v1561 = vld [vmem:[%s57 + $0x78] sm:$0xff]
        %v1562 = vld [vmem:[%s57 + $0x80] sm:$0xff]
        %v1563 = vld [vmem:[%s57 + $0x88] sm:$0xff]
        %v1564 = vld [vmem:[%s57 + $0x90] sm:$0xff]
        %v1565 = vld [vmem:[%s57 + $0x98] sm:$0xff]
        %v1566 = vld [vmem:[%s57 + $0xa0] sm:$0xff]
        %v1567 = vld [vmem:[%s57 + $0xa8] sm:$0xff]
        %v1568 = vld [vmem:[%s57 + $0xb0] sm:$0xff]
        %v1569 = vld [vmem:[%s57 + $0xb8] sm:$0xff]
        %v1570 = vld [vmem:[%s57 + $0xc0] sm:$0xff]
        %v1571 = vld [vmem:[%s57 + $0xc8] sm:$0xff]
        %v1572 = vld [vmem:[%s57 + $0xd0] sm:$0xff]
        %v1573 = vld [vmem:[%s57 + $0xd8] sm:$0xff]
        %v1574 = vld [vmem:[%s57 + $0xe0] sm:$0xff]
        %v1575 = vld [vmem:[%s57 + $0xe8] sm:$0xff]
        %v1576 = vld [vmem:[%s57 + $0xf0] sm:$0xff]
        %v1577 = vld [vmem:[%s57 + $0xf8] sm:$0xff]
        %vm1608 = vcmask 1040384
        %v1609 = vrot.slane %v1386, 7
        %v1610 = vrot.slane %v1391, 7
        %v1611 = vsel %vm1608, %v1609, %v1610
        %v1612 = vrot.slane %v1396, 7
        %v1613 = vsel %vm1608, %v1610, %v1612
        %v1614 = vrot.slane %v1401, 7
        %v1615 = vsel %vm1608, %v1612, %v1614
        %v1616 = vrot.slane %v1406, 7
        %v1617 = vsel %vm1608, %v1614, %v1616
        %v1618 = vrot.slane %v1411, 7
        %v1619 = vsel %vm1608, %v1616, %v1618
        %v1620 = vrot.slane %v1416, 7
        %v1621 = vsel %vm1608, %v1618, %v1620
        %v1622 = vrot.slane %v1421, 7
        %v1623 = vsel %vm1608, %v1620, %v1622
        %v1624 = vrot.slane %v1426, 7
        %v1625 = vsel %vm1608, %v1622, %v1624
        %v1626 = vrot.slane %v1431, 7
        %v1627 = vsel %vm1608, %v1624, %v1626
        %v1628 = vrot.slane %v1436, 7
        %v1629 = vsel %vm1608, %v1626, %v1628
        %v1630 = vrot.slane %v1441, 7
        %v1631 = vsel %vm1608, %v1628, %v1630
        %v1632 = vrot.slane %v1446, 7
        %v1633 = vsel %vm1608, %v1630, %v1632
        %v1634 = vrot.slane %v1451, 7
        %v1635 = vsel %vm1608, %v1632, %v1634
        %v1636 = vrot.slane %v1456, 7
        %v1637 = vsel %vm1608, %v1634, %v1636
        %v1638 = vrot.slane %v1461, 7
        %v1639 = vsel %vm1608, %v1636, %v1638
        %v1640 = vrot.slane %v1466, 7
        %v1641 = vsel %vm1608, %v1638, %v1640
        %v1642 = vrot.slane %v1471, 7
        %v1643 = vsel %vm1608, %v1640, %v1642
        %v1644 = vrot.slane %v1476, 7
        %v1645 = vsel %vm1608, %v1642, %v1644
        %v1646 = vrot.slane %v1481, 7
        %v1647 = vsel %vm1608, %v1644, %v1646
        %v1648 = vrot.slane %v1486, 7
        %v1649 = vsel %vm1608, %v1646, %v1648
        %v1650 = vrot.slane %v1491, 7
        %v1651 = vsel %vm1608, %v1648, %v1650
        %v1652 = vrot.slane %v1496, 7
        %v1653 = vsel %vm1608, %v1650, %v1652
        %v1654 = vrot.slane %v1501, 7
        %v1655 = vsel %vm1608, %v1652, %v1654
        %v1656 = vrot.slane %v1506, 7
        %v1657 = vsel %vm1608, %v1654, %v1656
        %v1658 = vrot.slane %v1511, 7
        %v1659 = vsel %vm1608, %v1656, %v1658
        %v1660 = vrot.slane %v1516, 7
        %v1661 = vsel %vm1608, %v1658, %v1660
        %v1662 = vrot.slane %v1521, 7
        %v1663 = vsel %vm1608, %v1660, %v1662
        %v1664 = vrot.slane %v1526, 7
        %v1665 = vsel %vm1608, %v1662, %v1664
        %v1666 = vrot.slane %v1531, 7
        %v1667 = vsel %vm1608, %v1664, %v1666
        %v1698 = vsel %vm1608, 0.0, %v1609
        %1700 = vset.pattern.permute.xlu0 0
        %1701 = vperm.xlu0 %1700, %v1546
        %v1702 = vpop.permute.xlu0 %1701
        %1705 = vset.pattern.permute.xlu0 0
        %1706 = vperm.xlu0 %1705, %v1547
        %v1707 = vpop.permute.xlu0 %1706
        %1710 = vset.pattern.permute.xlu0 0
        %1711 = vperm.xlu0 %1710, %v1548
        %v1712 = vpop.permute.xlu0 %1711
        %1715 = vset.pattern.permute.xlu0 0
        %1716 = vperm.xlu0 %1715, %v1549
        %v1717 = vpop.permute.xlu0 %1716
        %1720 = vset.pattern.permute.xlu0 0
        %1721 = vperm.xlu0 %1720, %v1550
        %v1722 = vpop.permute.xlu0 %1721
        %1725 = vset.pattern.permute.xlu0 0
        %1726 = vperm.xlu0 %1725, %v1551
        %v1727 = vpop.permute.xlu0 %1726
        %1730 = vset.pattern.permute.xlu0 0
        %1731 = vperm.xlu0 %1730, %v1552
        %v1732 = vpop.permute.xlu0 %1731
        %1735 = vset.pattern.permute.xlu0 0
        %1736 = vperm.xlu0 %1735, %v1553
        %v1737 = vpop.permute.xlu0 %1736
        %1740 = vset.pattern.permute.xlu0 0
        %1741 = vperm.xlu0 %1740, %v1554
        %v1742 = vpop.permute.xlu0 %1741
        %1745 = vset.pattern.permute.xlu0 0
        %1746 = vperm.xlu0 %1745, %v1555
        %v1747 = vpop.permute.xlu0 %1746
        %1750 = vset.pattern.permute.xlu0 0
        %1751 = vperm.xlu0 %1750, %v1556
        %v1752 = vpop.permute.xlu0 %1751
        %1755 = vset.pattern.permute.xlu0 0
        %1756 = vperm.xlu0 %1755, %v1557
        %v1757 = vpop.permute.xlu0 %1756
        %1760 = vset.pattern.permute.xlu0 0
        %1761 = vperm.xlu0 %1760, %v1558
        %v1762 = vpop.permute.xlu0 %1761
        %1765 = vset.pattern.permute.xlu0 0
        %1766 = vperm.xlu0 %1765, %v1559
        %v1767 = vpop.permute.xlu0 %1766
        %1770 = vset.pattern.permute.xlu0 0
        %1771 = vperm.xlu0 %1770, %v1560
        %v1772 = vpop.permute.xlu0 %1771
        %1775 = vset.pattern.permute.xlu0 0
        %1776 = vperm.xlu0 %1775, %v1561
        %v1777 = vpop.permute.xlu0 %1776
        %1780 = vset.pattern.permute.xlu0 0
        %1781 = vperm.xlu0 %1780, %v1562
        %v1782 = vpop.permute.xlu0 %1781
        %1785 = vset.pattern.permute.xlu0 0
        %1786 = vperm.xlu0 %1785, %v1563
        %v1787 = vpop.permute.xlu0 %1786
        %1790 = vset.pattern.permute.xlu0 0
        %1791 = vperm.xlu0 %1790, %v1564
        %v1792 = vpop.permute.xlu0 %1791
        %1795 = vset.pattern.permute.xlu0 0
        %1796 = vperm.xlu0 %1795, %v1565
        %v1797 = vpop.permute.xlu0 %1796
        %1800 = vset.pattern.permute.xlu0 0
        %1801 = vperm.xlu0 %1800, %v1566
        %v1802 = vpop.permute.xlu0 %1801
        %1805 = vset.pattern.permute.xlu0 0
        %1806 = vperm.xlu0 %1805, %v1567
        %v1807 = vpop.permute.xlu0 %1806
        %1810 = vset.pattern.permute.xlu0 0
        %1811 = vperm.xlu0 %1810, %v1568
        %v1812 = vpop.permute.xlu0 %1811
        %1815 = vset.pattern.permute.xlu0 0
        %1816 = vperm.xlu0 %1815, %v1569
        %v1817 = vpop.permute.xlu0 %1816
        %1820 = vset.pattern.permute.xlu0 0
        %1821 = vperm.xlu0 %1820, %v1570
        %v1822 = vpop.permute.xlu0 %1821
        %1825 = vset.pattern.permute.xlu0 0
        %1826 = vperm.xlu0 %1825, %v1571
        %v1827 = vpop.permute.xlu0 %1826
        %1830 = vset.pattern.permute.xlu0 0
        %1831 = vperm.xlu0 %1830, %v1572
        %v1832 = vpop.permute.xlu0 %1831
        %1835 = vset.pattern.permute.xlu0 0
        %1836 = vperm.xlu0 %1835, %v1573
        %v1837 = vpop.permute.xlu0 %1836
        %1840 = vset.pattern.permute.xlu0 0
        %1841 = vperm.xlu0 %1840, %v1574
        %v1842 = vpop.permute.xlu0 %1841
        %1845 = vset.pattern.permute.xlu0 0
        %1846 = vperm.xlu0 %1845, %v1575
        %v1847 = vpop.permute.xlu0 %1846
        %1850 = vset.pattern.permute.xlu0 0
        %1851 = vperm.xlu0 %1850, %v1576
        %v1852 = vpop.permute.xlu0 %1851
        %1855 = vset.pattern.permute.xlu0 0
        %1856 = vperm.xlu0 %1855, %v1577
        %v1857 = vpop.permute.xlu0 %1856
        %v1859 = vmul.f32 %v1702, 0.0
        %v1860 = vmul.f32 %v1707, 0.0
        %v1861 = vmul.f32 %v1698, %v1712
        %v1862 = vmul.f32 %v1611, %v1717
        %v1863 = vmul.f32 %v1613, %v1722
        %v1864 = vmul.f32 %v1615, %v1727
        %v1865 = vmul.f32 %v1617, %v1732
        %v1866 = vmul.f32 %v1619, %v1737
        %v1867 = vmul.f32 %v1621, %v1742
        %v1868 = vmul.f32 %v1623, %v1747
        %v1869 = vmul.f32 %v1625, %v1752
        %v1870 = vmul.f32 %v1627, %v1757
        %v1871 = vmul.f32 %v1629, %v1762
        %v1872 = vmul.f32 %v1631, %v1767
        %v1873 = vmul.f32 %v1633, %v1772
        %v1874 = vmul.f32 %v1635, %v1777
        %v1875 = vmul.f32 %v1637, %v1782
        %v1876 = vmul.f32 %v1639, %v1787
        %v1877 = vmul.f32 %v1641, %v1792
        %v1878 = vmul.f32 %v1643, %v1797
        %v1879 = vmul.f32 %v1645, %v1802
        %v1880 = vmul.f32 %v1647, %v1807
        %v1881 = vmul.f32 %v1649, %v1812
        %v1882 = vmul.f32 %v1651, %v1817
        %v1883 = vmul.f32 %v1653, %v1822
        %v1884 = vmul.f32 %v1655, %v1827
        %v1885 = vmul.f32 %v1657, %v1832
        %v1886 = vmul.f32 %v1659, %v1837
        %v1887 = vmul.f32 %v1661, %v1842
        %v1888 = vmul.f32 %v1663, %v1847
        %v1889 = vmul.f32 %v1665, %v1852
        %v1890 = vmul.f32 %v1667, %v1857
        %v1891 = vlaneseq
        %v1892 = vshrl.u32 %v1891, 7
        %v1893 = vsub.s32 0, %v1892
        %v1894 = vrot.slane %v1544, %v1893
        %v1895 = vmul.f32 %v1859, %v1894
        %v1896 = vmul.f32 %v1860, %v1894
        %v1897 = vmul.f32 %v1861, %v1894
        %v1898 = vmul.f32 %v1862, %v1894
        %v1899 = vmul.f32 %v1863, %v1894
        %v1900 = vmul.f32 %v1864, %v1894
        %v1901 = vmul.f32 %v1865, %v1894
        %v1902 = vmul.f32 %v1866, %v1894
        %v1903 = vmul.f32 %v1867, %v1894
        %v1904 = vmul.f32 %v1868, %v1894
        %v1905 = vmul.f32 %v1869, %v1894
        %v1906 = vmul.f32 %v1870, %v1894
        %v1907 = vmul.f32 %v1871, %v1894
        %v1908 = vmul.f32 %v1872, %v1894
        %v1909 = vmul.f32 %v1873, %v1894
        %v1910 = vmul.f32 %v1874, %v1894
        %v1911 = vmul.f32 %v1875, %v1894
        %v1912 = vmul.f32 %v1876, %v1894
        %v1913 = vmul.f32 %v1877, %v1894
        %v1914 = vmul.f32 %v1878, %v1894
        %v1915 = vmul.f32 %v1879, %v1894
        %v1916 = vmul.f32 %v1880, %v1894
        %v1917 = vmul.f32 %v1881, %v1894
        %v1918 = vmul.f32 %v1882, %v1894
        %v1919 = vmul.f32 %v1883, %v1894
        %v1920 = vmul.f32 %v1884, %v1894
        %v1921 = vmul.f32 %v1885, %v1894
        %v1922 = vmul.f32 %v1886, %v1894
        %v1923 = vmul.f32 %v1887, %v1894
        %v1924 = vmul.f32 %v1888, %v1894
        %v1925 = vmul.f32 %v1889, %v1894
        %v1926 = vmul.f32 %v1890, %v1894
        %v1927 = vadd.f32 %v1895, 0.0
        %v1928 = vadd.f32 %v1896, 0.0
        %v1929 = vadd.f32 %v1897, 0.0
        %v1930 = vadd.f32 %v1898, 0.0
        %v1931 = vadd.f32 %v1899, 0.0
        %v1932 = vadd.f32 %v1900, 0.0
        %v1933 = vadd.f32 %v1901, 0.0
        %v1934 = vadd.f32 %v1902, 0.0
        %v1935 = vadd.f32 %v1903, 0.0
        %v1936 = vadd.f32 %v1904, 0.0
        %v1937 = vadd.f32 %v1905, 0.0
        %v1938 = vadd.f32 %v1906, 0.0
        %v1939 = vadd.f32 %v1907, 0.0
        %v1940 = vadd.f32 %v1908, 0.0
        %v1941 = vadd.f32 %v1909, 0.0
        %v1942 = vadd.f32 %v1910, 0.0
        %v1943 = vadd.f32 %v1911, 0.0
        %v1944 = vadd.f32 %v1912, 0.0
        %v1945 = vadd.f32 %v1913, 0.0
        %v1946 = vadd.f32 %v1914, 0.0
        %v1947 = vadd.f32 %v1915, 0.0
        %v1948 = vadd.f32 %v1916, 0.0
        %v1949 = vadd.f32 %v1917, 0.0
        %v1950 = vadd.f32 %v1918, 0.0
        %v1951 = vadd.f32 %v1919, 0.0
        %v1952 = vadd.f32 %v1920, 0.0
        %v1953 = vadd.f32 %v1921, 0.0
        %v1954 = vadd.f32 %v1922, 0.0
        %v1955 = vadd.f32 %v1923, 0.0
        %v1956 = vadd.f32 %v1924, 0.0
        %v1957 = vadd.f32 %v1925, 0.0
        %v1958 = vadd.f32 %v1926, 0.0
        %1959 = vset.pattern.permute.xlu0 1
        %1960 = vperm.xlu0 %1959, %v1546
        %v1961 = vpop.permute.xlu0 %1960
        %1963 = vset.pattern.permute.xlu0 1
        %1964 = vperm.xlu0 %1963, %v1547
        %v1965 = vpop.permute.xlu0 %1964
        %1967 = vset.pattern.permute.xlu0 1
        %1968 = vperm.xlu0 %1967, %v1548
        %v1969 = vpop.permute.xlu0 %1968
        %1971 = vset.pattern.permute.xlu0 1
        %1972 = vperm.xlu0 %1971, %v1549
        %v1973 = vpop.permute.xlu0 %1972
        %1975 = vset.pattern.permute.xlu0 1
        %1976 = vperm.xlu0 %1975, %v1550
        %v1977 = vpop.permute.xlu0 %1976
        %1979 = vset.pattern.permute.xlu0 1
        %1980 = vperm.xlu0 %1979, %v1551
        %v1981 = vpop.permute.xlu0 %1980
        %1983 = vset.pattern.permute.xlu0 1
        %1984 = vperm.xlu0 %1983, %v1552
        %v1985 = vpop.permute.xlu0 %1984
        %1987 = vset.pattern.permute.xlu0 1
        %1988 = vperm.xlu0 %1987, %v1553
        %v1989 = vpop.permute.xlu0 %1988
        %1991 = vset.pattern.permute.xlu0 1
        %1992 = vperm.xlu0 %1991, %v1554
        %v1993 = vpop.permute.xlu0 %1992
        %1995 = vset.pattern.permute.xlu0 1
        %1996 = vperm.xlu0 %1995, %v1555
        %v1997 = vpop.permute.xlu0 %1996
        %1999 = vset.pattern.permute.xlu0 1
        %2000 = vperm.xlu0 %1999, %v1556
        %v2001 = vpop.permute.xlu0 %2000
        %2003 = vset.pattern.permute.xlu0 1
        %2004 = vperm.xlu0 %2003, %v1557
        %v2005 = vpop.permute.xlu0 %2004
        %2007 = vset.pattern.permute.xlu0 1
        %2008 = vperm.xlu0 %2007, %v1558
        %v2009 = vpop.permute.xlu0 %2008
        %2011 = vset.pattern.permute.xlu0 1
        %2012 = vperm.xlu0 %2011, %v1559
        %v2013 = vpop.permute.xlu0 %2012
        %2015 = vset.pattern.permute.xlu0 1
        %2016 = vperm.xlu0 %2015, %v1560
        %v2017 = vpop.permute.xlu0 %2016
        %2019 = vset.pattern.permute.xlu0 1
        %2020 = vperm.xlu0 %2019, %v1561
        %v2021 = vpop.permute.xlu0 %2020
        %2023 = vset.pattern.permute.xlu0 1
        %2024 = vperm.xlu0 %2023, %v1562
        %v2025 = vpop.permute.xlu0 %2024
        %2027 = vset.pattern.permute.xlu0 1
        %2028 = vperm.xlu0 %2027, %v1563
        %v2029 = vpop.permute.xlu0 %2028
        %2031 = vset.pattern.permute.xlu0 1
        %2032 = vperm.xlu0 %2031, %v1564
        %v2033 = vpop.permute.xlu0 %2032
        %2035 = vset.pattern.permute.xlu0 1
        %2036 = vperm.xlu0 %2035, %v1565
        %v2037 = vpop.permute.xlu0 %2036
        %2039 = vset.pattern.permute.xlu0 1
        %2040 = vperm.xlu0 %2039, %v1566
        %v2041 = vpop.permute.xlu0 %2040
        %2043 = vset.pattern.permute.xlu0 1
        %2044 = vperm.xlu0 %2043, %v1567
        %v2045 = vpop.permute.xlu0 %2044
        %2047 = vset.pattern.permute.xlu0 1
        %2048 = vperm.xlu0 %2047, %v1568
        %v2049 = vpop.permute.xlu0 %2048
        %2051 = vset.pattern.permute.xlu0 1
        %2052 = vperm.xlu0 %2051, %v1569
        %v2053 = vpop.permute.xlu0 %2052
        %2055 = vset.pattern.permute.xlu0 1
        %2056 = vperm.xlu0 %2055, %v1570
        %v2057 = vpop.permute.xlu0 %2056
        %2059 = vset.pattern.permute.xlu0 1
        %2060 = vperm.xlu0 %2059, %v1571
        %v2061 = vpop.permute.xlu0 %2060
        %2063 = vset.pattern.permute.xlu0 1
        %2064 = vperm.xlu0 %2063, %v1572
        %v2065 = vpop.permute.xlu0 %2064
        %2067 = vset.pattern.permute.xlu0 1
        %2068 = vperm.xlu0 %2067, %v1573
        %v2069 = vpop.permute.xlu0 %2068
        %2071 = vset.pattern.permute.xlu0 1
        %2072 = vperm.xlu0 %2071, %v1574
        %v2073 = vpop.permute.xlu0 %2072
        %2075 = vset.pattern.permute.xlu0 1
        %2076 = vperm.xlu0 %2075, %v1575
        %v2077 = vpop.permute.xlu0 %2076
        %2079 = vset.pattern.permute.xlu0 1
        %2080 = vperm.xlu0 %2079, %v1576
        %v2081 = vpop.permute.xlu0 %2080
        %2083 = vset.pattern.permute.xlu0 1
        %2084 = vperm.xlu0 %2083, %v1577
        %v2085 = vpop.permute.xlu0 %2084
        %v2087 = vmul.f32 %v1961, 0.0
        %v2088 = vmul.f32 %v1965, 0.0
        %v2089 = vmul.f32 %v1386, %v1969
        %v2090 = vmul.f32 %v1391, %v1973
        %v2091 = vmul.f32 %v1396, %v1977
        %v2092 = vmul.f32 %v1401, %v1981
        %v2093 = vmul.f32 %v1406, %v1985
        %v2094 = vmul.f32 %v1411, %v1989
        %v2095 = vmul.f32 %v1416, %v1993
        %v2096 = vmul.f32 %v1421, %v1997
        %v2097 = vmul.f32 %v1426, %v2001
        %v2098 = vmul.f32 %v1431, %v2005
        %v2099 = vmul.f32 %v1436, %v2009
        %v2100 = vmul.f32 %v1441, %v2013
        %v2101 = vmul.f32 %v1446, %v2017
        %v2102 = vmul.f32 %v1451, %v2021
        %v2103 = vmul.f32 %v1456, %v2025
        %v2104 = vmul.f32 %v1461, %v2029
        %v2105 = vmul.f32 %v1466, %v2033
        %v2106 = vmul.f32 %v1471, %v2037
        %v2107 = vmul.f32 %v1476, %v2041
        %v2108 = vmul.f32 %v1481, %v2045
        %v2109 = vmul.f32 %v1486, %v2049
        %v2110 = vmul.f32 %v1491, %v2053
        %v2111 = vmul.f32 %v1496, %v2057
        %v2112 = vmul.f32 %v1501, %v2061
        %v2113 = vmul.f32 %v1506, %v2065
        %v2114 = vmul.f32 %v1511, %v2069
        %v2115 = vmul.f32 %v1516, %v2073
        %v2116 = vmul.f32 %v1521, %v2077
        %v2117 = vmul.f32 %v1526, %v2081
        %v2118 = vmul.f32 %v1531, %v2085
        %v2119 = vlaneseq
        %v2120 = vshrl.u32 %v2119, 7
        %v2121 = vsub.s32 1, %v2120
        %v2122 = vrot.slane %v1544, %v2121
        %v2123 = vmul.f32 %v2087, %v2122
        %v2124 = vmul.f32 %v2088, %v2122
        %v2125 = vmul.f32 %v2089, %v2122
        %v2126 = vmul.f32 %v2090, %v2122
        %v2127 = vmul.f32 %v2091, %v2122
        %v2128 = vmul.f32 %v2092, %v2122
        %v2129 = vmul.f32 %v2093, %v2122
        %v2130 = vmul.f32 %v2094, %v2122
        %v2131 = vmul.f32 %v2095, %v2122
        %v2132 = vmul.f32 %v2096, %v2122
        %v2133 = vmul.f32 %v2097, %v2122
        %v2134 = vmul.f32 %v2098, %v2122
        %v2135 = vmul.f32 %v2099, %v2122
        %v2136 = vmul.f32 %v2100, %v2122
        %v2137 = vmul.f32 %v2101, %v2122
        %v2138 = vmul.f32 %v2102, %v2122
        %v2139 = vmul.f32 %v2103, %v2122
        %v2140 = vmul.f32 %v2104, %v2122
        %v2141 = vmul.f32 %v2105, %v2122
        %v2142 = vmul.f32 %v2106, %v2122
        %v2143 = vmul.f32 %v2107, %v2122
        %v2144 = vmul.f32 %v2108, %v2122
        %v2145 = vmul.f32 %v2109, %v2122
        %v2146 = vmul.f32 %v2110, %v2122
        %v2147 = vmul.f32 %v2111, %v2122
        %v2148 = vmul.f32 %v2112, %v2122
        %v2149 = vmul.f32 %v2113, %v2122
        %v2150 = vmul.f32 %v2114, %v2122
        %v2151 = vmul.f32 %v2115, %v2122
        %v2152 = vmul.f32 %v2116, %v2122
        %v2153 = vmul.f32 %v2117, %v2122
        %v2154 = vmul.f32 %v2118, %v2122
        %v2155 = vadd.f32 %v1927, %v2123
        %v2156 = vadd.f32 %v1928, %v2124
        %v2157 = vadd.f32 %v1929, %v2125
        %v2158 = vadd.f32 %v1930, %v2126
        %v2159 = vadd.f32 %v1931, %v2127
        %v2160 = vadd.f32 %v1932, %v2128
        %v2161 = vadd.f32 %v1933, %v2129
        %v2162 = vadd.f32 %v1934, %v2130
        %v2163 = vadd.f32 %v1935, %v2131
        %v2164 = vadd.f32 %v1936, %v2132
        %v2165 = vadd.f32 %v1937, %v2133
        %v2166 = vadd.f32 %v1938, %v2134
        %v2167 = vadd.f32 %v1939, %v2135
        %v2168 = vadd.f32 %v1940, %v2136
        %v2169 = vadd.f32 %v1941, %v2137
        %v2170 = vadd.f32 %v1942, %v2138
        %v2171 = vadd.f32 %v1943, %v2139
        %v2172 = vadd.f32 %v1944, %v2140
        %v2173 = vadd.f32 %v1945, %v2141
        %v2174 = vadd.f32 %v1946, %v2142
        %v2175 = vadd.f32 %v1947, %v2143
        %v2176 = vadd.f32 %v1948, %v2144
        %v2177 = vadd.f32 %v1949, %v2145
        %v2178 = vadd.f32 %v1950, %v2146
        %v2179 = vadd.f32 %v1951, %v2147
        %v2180 = vadd.f32 %v1952, %v2148
        %v2181 = vadd.f32 %v1953, %v2149
        %v2182 = vadd.f32 %v1954, %v2150
        %v2183 = vadd.f32 %v1955, %v2151
        %v2184 = vadd.f32 %v1956, %v2152
        %v2185 = vadd.f32 %v1957, %v2153
        %v2186 = vadd.f32 %v1958, %v2154
        %vm2188 = vcmask 1046528
        %v2189 = vrot.slane %v1386, 1
        %v2190 = vrot.slane %v1391, 1
        %v2191 = vsel %vm2188, %v2189, %v2190
        %v2192 = vrot.slane %v1396, 1
        %v2193 = vsel %vm2188, %v2190, %v2192
        %v2194 = vrot.slane %v1401, 1
        %v2195 = vsel %vm2188, %v2192, %v2194
        %v2196 = vrot.slane %v1406, 1
        %v2197 = vsel %vm2188, %v2194, %v2196
        %v2198 = vrot.slane %v1411, 1
        %v2199 = vsel %vm2188, %v2196, %v2198
        %v2200 = vrot.slane %v1416, 1
        %v2201 = vsel %vm2188, %v2198, %v2200
        %v2202 = vrot.slane %v1421, 1
        %v2203 = vsel %vm2188, %v2200, %v2202
        %v2204 = vrot.slane %v1426, 1
        %v2205 = vsel %vm2188, %v2202, %v2204
        %v2206 = vrot.slane %v1431, 1
        %v2207 = vsel %vm2188, %v2204, %v2206
        %v2208 = vrot.slane %v1436, 1
        %v2209 = vsel %vm2188, %v2206, %v2208
        %v2210 = vrot.slane %v1441, 1
        %v2211 = vsel %vm2188, %v2208, %v2210
        %v2212 = vrot.slane %v1446, 1
        %v2213 = vsel %vm2188, %v2210, %v2212
        %v2214 = vrot.slane %v1451, 1
        %v2215 = vsel %vm2188, %v2212, %v2214
        %v2216 = vrot.slane %v1456, 1
        %v2217 = vsel %vm2188, %v2214, %v2216
        %v2218 = vrot.slane %v1461, 1
        %v2219 = vsel %vm2188, %v2216, %v2218
        %v2220 = vrot.slane %v1466, 1
        %v2221 = vsel %vm2188, %v2218, %v2220
        %v2222 = vrot.slane %v1471, 1
        %v2223 = vsel %vm2188, %v2220, %v2222
        %v2224 = vrot.slane %v1476, 1
        %v2225 = vsel %vm2188, %v2222, %v2224
        %v2226 = vrot.slane %v1481, 1
        %v2227 = vsel %vm2188, %v2224, %v2226
        %v2228 = vrot.slane %v1486, 1
        %v2229 = vsel %vm2188, %v2226, %v2228
        %v2230 = vrot.slane %v1491, 1
        %v2231 = vsel %vm2188, %v2228, %v2230
        %v2232 = vrot.slane %v1496, 1
        %v2233 = vsel %vm2188, %v2230, %v2232
        %v2234 = vrot.slane %v1501, 1
        %v2235 = vsel %vm2188, %v2232, %v2234
        %v2236 = vrot.slane %v1506, 1
        %v2237 = vsel %vm2188, %v2234, %v2236
        %v2238 = vrot.slane %v1511, 1
        %v2239 = vsel %vm2188, %v2236, %v2238
        %v2240 = vrot.slane %v1516, 1
        %v2241 = vsel %vm2188, %v2238, %v2240
        %v2242 = vrot.slane %v1521, 1
        %v2243 = vsel %vm2188, %v2240, %v2242
        %v2244 = vrot.slane %v1526, 1
        %v2245 = vsel %vm2188, %v2242, %v2244
        %v2246 = vrot.slane %v1531, 1
        %v2247 = vsel %vm2188, %v2244, %v2246
        %v2248 = vrot.slane %v1536, 1
        %v2249 = vsel %vm2188, %v2246, %v2248
        %v2281 = vsel %vm2188, 0.0, %v2189
        %2282 = vset.pattern.permute.xlu0 2
        %2283 = vperm.xlu0 %2282, %v1546
        %v2284 = vpop.permute.xlu0 %2283
        %2286 = vset.pattern.permute.xlu0 2
        %2287 = vperm.xlu0 %2286, %v1547
        %v2288 = vpop.permute.xlu0 %2287
        %2290 = vset.pattern.permute.xlu0 2
        %2291 = vperm.xlu0 %2290, %v1548
        %v2292 = vpop.permute.xlu0 %2291
        %2294 = vset.pattern.permute.xlu0 2
        %2295 = vperm.xlu0 %2294, %v1549
        %v2296 = vpop.permute.xlu0 %2295
        %2298 = vset.pattern.permute.xlu0 2
        %2299 = vperm.xlu0 %2298, %v1550
        %v2300 = vpop.permute.xlu0 %2299
        %2302 = vset.pattern.permute.xlu0 2
        %2303 = vperm.xlu0 %2302, %v1551
        %v2304 = vpop.permute.xlu0 %2303
        %2306 = vset.pattern.permute.xlu0 2
        %2307 = vperm.xlu0 %2306, %v1552
        %v2308 = vpop.permute.xlu0 %2307
        %2310 = vset.pattern.permute.xlu0 2
        %2311 = vperm.xlu0 %2310, %v1553
        %v2312 = vpop.permute.xlu0 %2311
        %2314 = vset.pattern.permute.xlu0 2
        %2315 = vperm.xlu0 %2314, %v1554
        %v2316 = vpop.permute.xlu0 %2315
        %2318 = vset.pattern.permute.xlu0 2
        %2319 = vperm.xlu0 %2318, %v1555
        %v2320 = vpop.permute.xlu0 %2319
        %2322 = vset.pattern.permute.xlu0 2
        %2323 = vperm.xlu0 %2322, %v1556
        %v2324 = vpop.permute.xlu0 %2323
        %2326 = vset.pattern.permute.xlu0 2
        %2327 = vperm.xlu0 %2326, %v1557
        %v2328 = vpop.permute.xlu0 %2327
        %2330 = vset.pattern.permute.xlu0 2
        %2331 = vperm.xlu0 %2330, %v1558
        %v2332 = vpop.permute.xlu0 %2331
        %2334 = vset.pattern.permute.xlu0 2
        %2335 = vperm.xlu0 %2334, %v1559
        %v2336 = vpop.permute.xlu0 %2335
        %2338 = vset.pattern.permute.xlu0 2
        %2339 = vperm.xlu0 %2338, %v1560
        %v2340 = vpop.permute.xlu0 %2339
        %2342 = vset.pattern.permute.xlu0 2
        %2343 = vperm.xlu0 %2342, %v1561
        %v2344 = vpop.permute.xlu0 %2343
        %2346 = vset.pattern.permute.xlu0 2
        %2347 = vperm.xlu0 %2346, %v1562
        %v2348 = vpop.permute.xlu0 %2347
        %2350 = vset.pattern.permute.xlu0 2
        %2351 = vperm.xlu0 %2350, %v1563
        %v2352 = vpop.permute.xlu0 %2351
        %2354 = vset.pattern.permute.xlu0 2
        %2355 = vperm.xlu0 %2354, %v1564
        %v2356 = vpop.permute.xlu0 %2355
        %2358 = vset.pattern.permute.xlu0 2
        %2359 = vperm.xlu0 %2358, %v1565
        %v2360 = vpop.permute.xlu0 %2359
        %2362 = vset.pattern.permute.xlu0 2
        %2363 = vperm.xlu0 %2362, %v1566
        %v2364 = vpop.permute.xlu0 %2363
        %2366 = vset.pattern.permute.xlu0 2
        %2367 = vperm.xlu0 %2366, %v1567
        %v2368 = vpop.permute.xlu0 %2367
        %2370 = vset.pattern.permute.xlu0 2
        %2371 = vperm.xlu0 %2370, %v1568
        %v2372 = vpop.permute.xlu0 %2371
        %2374 = vset.pattern.permute.xlu0 2
        %2375 = vperm.xlu0 %2374, %v1569
        %v2376 = vpop.permute.xlu0 %2375
        %2378 = vset.pattern.permute.xlu0 2
        %2379 = vperm.xlu0 %2378, %v1570
        %v2380 = vpop.permute.xlu0 %2379
        %2382 = vset.pattern.permute.xlu0 2
        %2383 = vperm.xlu0 %2382, %v1571
        %v2384 = vpop.permute.xlu0 %2383
        %2386 = vset.pattern.permute.xlu0 2
        %2387 = vperm.xlu0 %2386, %v1572
        %v2388 = vpop.permute.xlu0 %2387
        %2390 = vset.pattern.permute.xlu0 2
        %2391 = vperm.xlu0 %2390, %v1573
        %v2392 = vpop.permute.xlu0 %2391
        %2394 = vset.pattern.permute.xlu0 2
        %2395 = vperm.xlu0 %2394, %v1574
        %v2396 = vpop.permute.xlu0 %2395
        %2398 = vset.pattern.permute.xlu0 2
        %2399 = vperm.xlu0 %2398, %v1575
        %v2400 = vpop.permute.xlu0 %2399
        %2402 = vset.pattern.permute.xlu0 2
        %2403 = vperm.xlu0 %2402, %v1576
        %v2404 = vpop.permute.xlu0 %2403
        %2406 = vset.pattern.permute.xlu0 2
        %2407 = vperm.xlu0 %2406, %v1577
        %v2408 = vpop.permute.xlu0 %2407
        %v2410 = vmul.f32 %v2284, 0.0
        %v2411 = vmul.f32 %v2281, %v2288
        %v2412 = vmul.f32 %v2191, %v2292
        %v2413 = vmul.f32 %v2193, %v2296
        %v2414 = vmul.f32 %v2195, %v2300
        %v2415 = vmul.f32 %v2197, %v2304
        %v2416 = vmul.f32 %v2199, %v2308
        %v2417 = vmul.f32 %v2201, %v2312
        %v2418 = vmul.f32 %v2203, %v2316
        %v2419 = vmul.f32 %v2205, %v2320
        %v2420 = vmul.f32 %v2207, %v2324
        %v2421 = vmul.f32 %v2209, %v2328
        %v2422 = vmul.f32 %v2211, %v2332
        %v2423 = vmul.f32 %v2213, %v2336
        %v2424 = vmul.f32 %v2215, %v2340
        %v2425 = vmul.f32 %v2217, %v2344
        %v2426 = vmul.f32 %v2219, %v2348
        %v2427 = vmul.f32 %v2221, %v2352
        %v2428 = vmul.f32 %v2223, %v2356
        %v2429 = vmul.f32 %v2225, %v2360
        %v2430 = vmul.f32 %v2227, %v2364
        %v2431 = vmul.f32 %v2229, %v2368
        %v2432 = vmul.f32 %v2231, %v2372
        %v2433 = vmul.f32 %v2233, %v2376
        %v2434 = vmul.f32 %v2235, %v2380
        %v2435 = vmul.f32 %v2237, %v2384
        %v2436 = vmul.f32 %v2239, %v2388
        %v2437 = vmul.f32 %v2241, %v2392
        %v2438 = vmul.f32 %v2243, %v2396
        %v2439 = vmul.f32 %v2245, %v2400
        %v2440 = vmul.f32 %v2247, %v2404
        %v2441 = vmul.f32 %v2249, %v2408
        %v2442 = vlaneseq
        %v2443 = vshrl.u32 %v2442, 7
        %v2444 = vsub.s32 2, %v2443
        %v2445 = vrot.slane %v1544, %v2444
        %v2446 = vmul.f32 %v2410, %v2445
        %v2447 = vmul.f32 %v2411, %v2445
        %v2448 = vmul.f32 %v2412, %v2445
        %v2449 = vmul.f32 %v2413, %v2445
        %v2450 = vmul.f32 %v2414, %v2445
        %v2451 = vmul.f32 %v2415, %v2445
        %v2452 = vmul.f32 %v2416, %v2445
        %v2453 = vmul.f32 %v2417, %v2445
        %v2454 = vmul.f32 %v2418, %v2445
        %v2455 = vmul.f32 %v2419, %v2445
        %v2456 = vmul.f32 %v2420, %v2445
        %v2457 = vmul.f32 %v2421, %v2445
        %v2458 = vmul.f32 %v2422, %v2445
        %v2459 = vmul.f32 %v2423, %v2445
        %v2460 = vmul.f32 %v2424, %v2445
        %v2461 = vmul.f32 %v2425, %v2445
        %v2462 = vmul.f32 %v2426, %v2445
        %v2463 = vmul.f32 %v2427, %v2445
        %v2464 = vmul.f32 %v2428, %v2445
        %v2465 = vmul.f32 %v2429, %v2445
        %v2466 = vmul.f32 %v2430, %v2445
        %v2467 = vmul.f32 %v2431, %v2445
        %v2468 = vmul.f32 %v2432, %v2445
        %v2469 = vmul.f32 %v2433, %v2445
        %v2470 = vmul.f32 %v2434, %v2445
        %v2471 = vmul.f32 %v2435, %v2445
        %v2472 = vmul.f32 %v2436, %v2445
        %v2473 = vmul.f32 %v2437, %v2445
        %v2474 = vmul.f32 %v2438, %v2445
        %v2475 = vmul.f32 %v2439, %v2445
        %v2476 = vmul.f32 %v2440, %v2445
        %v2477 = vmul.f32 %v2441, %v2445
        %v2478 = vadd.f32 %v2155, %v2446
        %v2479 = vadd.f32 %v2156, %v2447
        %v2480 = vadd.f32 %v2157, %v2448
        %v2481 = vadd.f32 %v2158, %v2449
        %v2482 = vadd.f32 %v2159, %v2450
        %v2483 = vadd.f32 %v2160, %v2451
        %v2484 = vadd.f32 %v2161, %v2452
        %v2485 = vadd.f32 %v2162, %v2453
        %v2486 = vadd.f32 %v2163, %v2454
        %v2487 = vadd.f32 %v2164, %v2455
        %v2488 = vadd.f32 %v2165, %v2456
        %v2489 = vadd.f32 %v2166, %v2457
        %v2490 = vadd.f32 %v2167, %v2458
        %v2491 = vadd.f32 %v2168, %v2459
        %v2492 = vadd.f32 %v2169, %v2460
        %v2493 = vadd.f32 %v2170, %v2461
        %v2494 = vadd.f32 %v2171, %v2462
        %v2495 = vadd.f32 %v2172, %v2463
        %v2496 = vadd.f32 %v2173, %v2464
        %v2497 = vadd.f32 %v2174, %v2465
        %v2498 = vadd.f32 %v2175, %v2466
        %v2499 = vadd.f32 %v2176, %v2467
        %v2500 = vadd.f32 %v2177, %v2468
        %v2501 = vadd.f32 %v2178, %v2469
        %v2502 = vadd.f32 %v2179, %v2470
        %v2503 = vadd.f32 %v2180, %v2471
        %v2504 = vadd.f32 %v2181, %v2472
        %v2505 = vadd.f32 %v2182, %v2473
        %v2506 = vadd.f32 %v2183, %v2474
        %v2507 = vadd.f32 %v2184, %v2475
        %v2508 = vadd.f32 %v2185, %v2476
        %v2509 = vadd.f32 %v2186, %v2477
        %v2511 = vrot.slane %v1536, 7
        %v2512 = vsel %vm1608, %v1666, %v2511
        %v2513 = vrot.slane %v1541, 7
        %v2514 = vsel %vm1608, %v2511, %v2513
        %2517 = vset.pattern.permute.xlu0 3
        %2518 = vperm.xlu0 %2517, %v1546
        %v2519 = vpop.permute.xlu0 %2518
        %2521 = vset.pattern.permute.xlu0 3
        %2522 = vperm.xlu0 %2521, %v1547
        %v2523 = vpop.permute.xlu0 %2522
        %2525 = vset.pattern.permute.xlu0 3
        %2526 = vperm.xlu0 %2525, %v1548
        %v2527 = vpop.permute.xlu0 %2526
        %2529 = vset.pattern.permute.xlu0 3
        %2530 = vperm.xlu0 %2529, %v1549
        %v2531 = vpop.permute.xlu0 %2530
        %2533 = vset.pattern.permute.xlu0 3
        %2534 = vperm.xlu0 %2533, %v1550
        %v2535 = vpop.permute.xlu0 %2534
        %2537 = vset.pattern.permute.xlu0 3
        %2538 = vperm.xlu0 %2537, %v1551
        %v2539 = vpop.permute.xlu0 %2538
        %2541 = vset.pattern.permute.xlu0 3
        %2542 = vperm.xlu0 %2541, %v1552
        %v2543 = vpop.permute.xlu0 %2542
        %2545 = vset.pattern.permute.xlu0 3
        %2546 = vperm.xlu0 %2545, %v1553
        %v2547 = vpop.permute.xlu0 %2546
        %2549 = vset.pattern.permute.xlu0 3
        %2550 = vperm.xlu0 %2549, %v1554
        %v2551 = vpop.permute.xlu0 %2550
        %2553 = vset.pattern.permute.xlu0 3
        %2554 = vperm.xlu0 %2553, %v1555
        %v2555 = vpop.permute.xlu0 %2554
        %2557 = vset.pattern.permute.xlu0 3
        %2558 = vperm.xlu0 %2557, %v1556
        %v2559 = vpop.permute.xlu0 %2558
        %2561 = vset.pattern.permute.xlu0 3
        %2562 = vperm.xlu0 %2561, %v1557
        %v2563 = vpop.permute.xlu0 %2562
        %2565 = vset.pattern.permute.xlu0 3
        %2566 = vperm.xlu0 %2565, %v1558
        %v2567 = vpop.permute.xlu0 %2566
        %2569 = vset.pattern.permute.xlu0 3
        %2570 = vperm.xlu0 %2569, %v1559
        %v2571 = vpop.permute.xlu0 %2570
        %2573 = vset.pattern.permute.xlu0 3
        %2574 = vperm.xlu0 %2573, %v1560
        %v2575 = vpop.permute.xlu0 %2574
        %2577 = vset.pattern.permute.xlu0 3
        %2578 = vperm.xlu0 %2577, %v1561
        %v2579 = vpop.permute.xlu0 %2578
        %2581 = vset.pattern.permute.xlu0 3
        %2582 = vperm.xlu0 %2581, %v1562
        %v2583 = vpop.permute.xlu0 %2582
        %2585 = vset.pattern.permute.xlu0 3
        %2586 = vperm.xlu0 %2585, %v1563
        %v2587 = vpop.permute.xlu0 %2586
        %2589 = vset.pattern.permute.xlu0 3
        %2590 = vperm.xlu0 %2589, %v1564
        %v2591 = vpop.permute.xlu0 %2590
        %2593 = vset.pattern.permute.xlu0 3
        %2594 = vperm.xlu0 %2593, %v1565
        %v2595 = vpop.permute.xlu0 %2594
        %2597 = vset.pattern.permute.xlu0 3
        %2598 = vperm.xlu0 %2597, %v1566
        %v2599 = vpop.permute.xlu0 %2598
        %2601 = vset.pattern.permute.xlu0 3
        %2602 = vperm.xlu0 %2601, %v1567
        %v2603 = vpop.permute.xlu0 %2602
        %2605 = vset.pattern.permute.xlu0 3
        %2606 = vperm.xlu0 %2605, %v1568
        %v2607 = vpop.permute.xlu0 %2606
        %2609 = vset.pattern.permute.xlu0 3
        %2610 = vperm.xlu0 %2609, %v1569
        %v2611 = vpop.permute.xlu0 %2610
        %2613 = vset.pattern.permute.xlu0 3
        %2614 = vperm.xlu0 %2613, %v1570
        %v2615 = vpop.permute.xlu0 %2614
        %2617 = vset.pattern.permute.xlu0 3
        %2618 = vperm.xlu0 %2617, %v1571
        %v2619 = vpop.permute.xlu0 %2618
        %2621 = vset.pattern.permute.xlu0 3
        %2622 = vperm.xlu0 %2621, %v1572
        %v2623 = vpop.permute.xlu0 %2622
        %2625 = vset.pattern.permute.xlu0 3
        %2626 = vperm.xlu0 %2625, %v1573
        %v2627 = vpop.permute.xlu0 %2626
        %2629 = vset.pattern.permute.xlu0 3
        %2630 = vperm.xlu0 %2629, %v1574
        %v2631 = vpop.permute.xlu0 %2630
        %2633 = vset.pattern.permute.xlu0 3
        %2634 = vperm.xlu0 %2633, %v1575
        %v2635 = vpop.permute.xlu0 %2634
        %2637 = vset.pattern.permute.xlu0 3
        %2638 = vperm.xlu0 %2637, %v1576
        %v2639 = vpop.permute.xlu0 %2638
        %2641 = vset.pattern.permute.xlu0 3
        %2642 = vperm.xlu0 %2641, %v1577
        %v2643 = vpop.permute.xlu0 %2642
        %v2645 = vmul.f32 %v1698, %v2519
        %v2646 = vmul.f32 %v1611, %v2523
        %v2647 = vmul.f32 %v1613, %v2527
        %v2648 = vmul.f32 %v1615, %v2531
        %v2649 = vmul.f32 %v1617, %v2535
        %v2650 = vmul.f32 %v1619, %v2539
        %v2651 = vmul.f32 %v1621, %v2543
        %v2652 = vmul.f32 %v1623, %v2547
        %v2653 = vmul.f32 %v1625, %v2551
        %v2654 = vmul.f32 %v1627, %v2555
        %v2655 = vmul.f32 %v1629, %v2559
        %v2656 = vmul.f32 %v1631, %v2563
        %v2657 = vmul.f32 %v1633, %v2567
        %v2658 = vmul.f32 %v1635, %v2571
        %v2659 = vmul.f32 %v1637, %v2575
        %v2660 = vmul.f32 %v1639, %v2579
        %v2661 = vmul.f32 %v1641, %v2583
        %v2662 = vmul.f32 %v1643, %v2587
        %v2663 = vmul.f32 %v1645, %v2591
        %v2664 = vmul.f32 %v1647, %v2595
        %v2665 = vmul.f32 %v1649, %v2599
        %v2666 = vmul.f32 %v1651, %v2603
        %v2667 = vmul.f32 %v1653, %v2607
        %v2668 = vmul.f32 %v1655, %v2611
        %v2669 = vmul.f32 %v1657, %v2615
        %v2670 = vmul.f32 %v1659, %v2619
        %v2671 = vmul.f32 %v1661, %v2623
        %v2672 = vmul.f32 %v1663, %v2627
        %v2673 = vmul.f32 %v1665, %v2631
        %v2674 = vmul.f32 %v1667, %v2635
        %v2675 = vmul.f32 %v2512, %v2639
        %v2676 = vmul.f32 %v2514, %v2643
        %v2677 = vlaneseq
        %v2678 = vshrl.u32 %v2677, 7
        %v2679 = vsub.s32 3, %v2678
        %v2680 = vrot.slane %v1544, %v2679
        %v2681 = vmul.f32 %v2645, %v2680
        %v2682 = vmul.f32 %v2646, %v2680
        %v2683 = vmul.f32 %v2647, %v2680
        %v2684 = vmul.f32 %v2648, %v2680
        %v2685 = vmul.f32 %v2649, %v2680
        %v2686 = vmul.f32 %v2650, %v2680
        %v2687 = vmul.f32 %v2651, %v2680
        %v2688 = vmul.f32 %v2652, %v2680
        %v2689 = vmul.f32 %v2653, %v2680
        %v2690 = vmul.f32 %v2654, %v2680
        %v2691 = vmul.f32 %v2655, %v2680
        %v2692 = vmul.f32 %v2656, %v2680
        %v2693 = vmul.f32 %v2657, %v2680
        %v2694 = vmul.f32 %v2658, %v2680
        %v2695 = vmul.f32 %v2659, %v2680
        %v2696 = vmul.f32 %v2660, %v2680
        %v2697 = vmul.f32 %v2661, %v2680
        %v2698 = vmul.f32 %v2662, %v2680
        %v2699 = vmul.f32 %v2663, %v2680
        %v2700 = vmul.f32 %v2664, %v2680
        %v2701 = vmul.f32 %v2665, %v2680
        %v2702 = vmul.f32 %v2666, %v2680
        %v2703 = vmul.f32 %v2667, %v2680
        %v2704 = vmul.f32 %v2668, %v2680
        %v2705 = vmul.f32 %v2669, %v2680
        %v2706 = vmul.f32 %v2670, %v2680
        %v2707 = vmul.f32 %v2671, %v2680
        %v2708 = vmul.f32 %v2672, %v2680
        %v2709 = vmul.f32 %v2673, %v2680
        %v2710 = vmul.f32 %v2674, %v2680
        %v2711 = vmul.f32 %v2675, %v2680
        %v2712 = vmul.f32 %v2676, %v2680
        %v2713 = vadd.f32 %v2478, %v2681
        %v2714 = vadd.f32 %v2479, %v2682
        %v2715 = vadd.f32 %v2480, %v2683
        %v2716 = vadd.f32 %v2481, %v2684
        %v2717 = vadd.f32 %v2482, %v2685
        %v2718 = vadd.f32 %v2483, %v2686
        %v2719 = vadd.f32 %v2484, %v2687
        %v2720 = vadd.f32 %v2485, %v2688
        %v2721 = vadd.f32 %v2486, %v2689
        %v2722 = vadd.f32 %v2487, %v2690
        %v2723 = vadd.f32 %v2488, %v2691
        %v2724 = vadd.f32 %v2489, %v2692
        %v2725 = vadd.f32 %v2490, %v2693
        %v2726 = vadd.f32 %v2491, %v2694
        %v2727 = vadd.f32 %v2492, %v2695
        %v2728 = vadd.f32 %v2493, %v2696
        %v2729 = vadd.f32 %v2494, %v2697
        %v2730 = vadd.f32 %v2495, %v2698
        %v2731 = vadd.f32 %v2496, %v2699
        %v2732 = vadd.f32 %v2497, %v2700
        %v2733 = vadd.f32 %v2498, %v2701
        %v2734 = vadd.f32 %v2499, %v2702
        %v2735 = vadd.f32 %v2500, %v2703
        %v2736 = vadd.f32 %v2501, %v2704
        %v2737 = vadd.f32 %v2502, %v2705
        %v2738 = vadd.f32 %v2503, %v2706
        %v2739 = vadd.f32 %v2504, %v2707
        %v2740 = vadd.f32 %v2505, %v2708
        %v2741 = vadd.f32 %v2506, %v2709
        %v2742 = vadd.f32 %v2507, %v2710
        %v2743 = vadd.f32 %v2508, %v2711
        %v2744 = vadd.f32 %v2509, %v2712
        %2745 = vset.pattern.permute.xlu0 4
        %2746 = vperm.xlu0 %2745, %v1546
        %v2747 = vpop.permute.xlu0 %2746
        %2749 = vset.pattern.permute.xlu0 4
        %2750 = vperm.xlu0 %2749, %v1547
        %v2751 = vpop.permute.xlu0 %2750
        %2753 = vset.pattern.permute.xlu0 4
        %2754 = vperm.xlu0 %2753, %v1548
        %v2755 = vpop.permute.xlu0 %2754
        %2757 = vset.pattern.permute.xlu0 4
        %2758 = vperm.xlu0 %2757, %v1549
        %v2759 = vpop.permute.xlu0 %2758
        %2761 = vset.pattern.permute.xlu0 4
        %2762 = vperm.xlu0 %2761, %v1550
        %v2763 = vpop.permute.xlu0 %2762
        %2765 = vset.pattern.permute.xlu0 4
        %2766 = vperm.xlu0 %2765, %v1551
        %v2767 = vpop.permute.xlu0 %2766
        %2769 = vset.pattern.permute.xlu0 4
        %2770 = vperm.xlu0 %2769, %v1552
        %v2771 = vpop.permute.xlu0 %2770
        %2773 = vset.pattern.permute.xlu0 4
        %2774 = vperm.xlu0 %2773, %v1553
        %v2775 = vpop.permute.xlu0 %2774
        %2777 = vset.pattern.permute.xlu0 4
        %2778 = vperm.xlu0 %2777, %v1554
        %v2779 = vpop.permute.xlu0 %2778
        %2781 = vset.pattern.permute.xlu0 4
        %2782 = vperm.xlu0 %2781, %v1555
        %v2783 = vpop.permute.xlu0 %2782
        %2785 = vset.pattern.permute.xlu0 4
        %2786 = vperm.xlu0 %2785, %v1556
        %v2787 = vpop.permute.xlu0 %2786
        %2789 = vset.pattern.permute.xlu0 4
        %2790 = vperm.xlu0 %2789, %v1557
        %v2791 = vpop.permute.xlu0 %2790
        %2793 = vset.pattern.permute.xlu0 4
        %2794 = vperm.xlu0 %2793, %v1558
        %v2795 = vpop.permute.xlu0 %2794
        %2797 = vset.pattern.permute.xlu0 4
        %2798 = vperm.xlu0 %2797, %v1559
        %v2799 = vpop.permute.xlu0 %2798
        %2801 = vset.pattern.permute.xlu0 4
        %2802 = vperm.xlu0 %2801, %v1560
        %v2803 = vpop.permute.xlu0 %2802
        %2805 = vset.pattern.permute.xlu0 4
        %2806 = vperm.xlu0 %2805, %v1561
        %v2807 = vpop.permute.xlu0 %2806
        %2809 = vset.pattern.permute.xlu0 4
        %2810 = vperm.xlu0 %2809, %v1562
        %v2811 = vpop.permute.xlu0 %2810
        %2813 = vset.pattern.permute.xlu0 4
        %2814 = vperm.xlu0 %2813, %v1563
        %v2815 = vpop.permute.xlu0 %2814
        %2817 = vset.pattern.permute.xlu0 4
        %2818 = vperm.xlu0 %2817, %v1564
        %v2819 = vpop.permute.xlu0 %2818
        %2821 = vset.pattern.permute.xlu0 4
        %2822 = vperm.xlu0 %2821, %v1565
        %v2823 = vpop.permute.xlu0 %2822
        %2825 = vset.pattern.permute.xlu0 4
        %2826 = vperm.xlu0 %2825, %v1566
        %v2827 = vpop.permute.xlu0 %2826
        %2829 = vset.pattern.permute.xlu0 4
        %2830 = vperm.xlu0 %2829, %v1567
        %v2831 = vpop.permute.xlu0 %2830
        %2833 = vset.pattern.permute.xlu0 4
        %2834 = vperm.xlu0 %2833, %v1568
        %v2835 = vpop.permute.xlu0 %2834
        %2837 = vset.pattern.permute.xlu0 4
        %2838 = vperm.xlu0 %2837, %v1569
        %v2839 = vpop.permute.xlu0 %2838
        %2841 = vset.pattern.permute.xlu0 4
        %2842 = vperm.xlu0 %2841, %v1570
        %v2843 = vpop.permute.xlu0 %2842
        %2845 = vset.pattern.permute.xlu0 4
        %2846 = vperm.xlu0 %2845, %v1571
        %v2847 = vpop.permute.xlu0 %2846
        %2849 = vset.pattern.permute.xlu0 4
        %2850 = vperm.xlu0 %2849, %v1572
        %v2851 = vpop.permute.xlu0 %2850
        %2853 = vset.pattern.permute.xlu0 4
        %2854 = vperm.xlu0 %2853, %v1573
        %v2855 = vpop.permute.xlu0 %2854
        %2857 = vset.pattern.permute.xlu0 4
        %2858 = vperm.xlu0 %2857, %v1574
        %v2859 = vpop.permute.xlu0 %2858
        %2861 = vset.pattern.permute.xlu0 4
        %2862 = vperm.xlu0 %2861, %v1575
        %v2863 = vpop.permute.xlu0 %2862
        %2865 = vset.pattern.permute.xlu0 4
        %2866 = vperm.xlu0 %2865, %v1576
        %v2867 = vpop.permute.xlu0 %2866
        %2869 = vset.pattern.permute.xlu0 4
        %2870 = vperm.xlu0 %2869, %v1577
        %v2871 = vpop.permute.xlu0 %2870
        %v2873 = vmul.f32 %v1386, %v2747
        %v2874 = vmul.f32 %v1391, %v2751
        %v2875 = vmul.f32 %v1396, %v2755
        %v2876 = vmul.f32 %v1401, %v2759
        %v2877 = vmul.f32 %v1406, %v2763
        %v2878 = vmul.f32 %v1411, %v2767
        %v2879 = vmul.f32 %v1416, %v2771
        %v2880 = vmul.f32 %v1421, %v2775
        %v2881 = vmul.f32 %v1426, %v2779
        %v2882 = vmul.f32 %v1431, %v2783
        %v2883 = vmul.f32 %v1436, %v2787
        %v2884 = vmul.f32 %v1441, %v2791
        %v2885 = vmul.f32 %v1446, %v2795
        %v2886 = vmul.f32 %v1451, %v2799
        %v2887 = vmul.f32 %v1456, %v2803
        %v2888 = vmul.f32 %v1461, %v2807
        %v2889 = vmul.f32 %v1466, %v2811
        %v2890 = vmul.f32 %v1471, %v2815
        %v2891 = vmul.f32 %v1476, %v2819
        %v2892 = vmul.f32 %v1481, %v2823
        %v2893 = vmul.f32 %v1486, %v2827
        %v2894 = vmul.f32 %v1491, %v2831
        %v2895 = vmul.f32 %v1496, %v2835
        %v2896 = vmul.f32 %v1501, %v2839
        %v2897 = vmul.f32 %v1506, %v2843
        %v2898 = vmul.f32 %v1511, %v2847
        %v2899 = vmul.f32 %v1516, %v2851
        %v2900 = vmul.f32 %v1521, %v2855
        %v2901 = vmul.f32 %v1526, %v2859
        %v2902 = vmul.f32 %v1531, %v2863
        %v2903 = vmul.f32 %v1536, %v2867
        %v2904 = vmul.f32 %v1541, %v2871
        %v2905 = vlaneseq
        %v2906 = vshrl.u32 %v2905, 7
        %v2907 = vsub.s32 4, %v2906
        %v2908 = vrot.slane %v1544, %v2907
        %v2909 = vmul.f32 %v2873, %v2908
        %v2910 = vmul.f32 %v2874, %v2908
        %v2911 = vmul.f32 %v2875, %v2908
        %v2912 = vmul.f32 %v2876, %v2908
        %v2913 = vmul.f32 %v2877, %v2908
        %v2914 = vmul.f32 %v2878, %v2908
        %v2915 = vmul.f32 %v2879, %v2908
        %v2916 = vmul.f32 %v2880, %v2908
        %v2917 = vmul.f32 %v2881, %v2908
        %v2918 = vmul.f32 %v2882, %v2908
        %v2919 = vmul.f32 %v2883, %v2908
        %v2920 = vmul.f32 %v2884, %v2908
        %v2921 = vmul.f32 %v2885, %v2908
        %v2922 = vmul.f32 %v2886, %v2908
        %v2923 = vmul.f32 %v2887, %v2908
        %v2924 = vmul.f32 %v2888, %v2908
        %v2925 = vmul.f32 %v2889, %v2908
        %v2926 = vmul.f32 %v2890, %v2908
        %v2927 = vmul.f32 %v2891, %v2908
        %v2928 = vmul.f32 %v2892, %v2908
        %v2929 = vmul.f32 %v2893, %v2908
        %v2930 = vmul.f32 %v2894, %v2908
        %v2931 = vmul.f32 %v2895, %v2908
        %v2932 = vmul.f32 %v2896, %v2908
        %v2933 = vmul.f32 %v2897, %v2908
        %v2934 = vmul.f32 %v2898, %v2908
        %v2935 = vmul.f32 %v2899, %v2908
        %v2936 = vmul.f32 %v2900, %v2908
        %v2937 = vmul.f32 %v2901, %v2908
        %v2938 = vmul.f32 %v2902, %v2908
        %v2939 = vmul.f32 %v2903, %v2908
        %v2940 = vmul.f32 %v2904, %v2908
        %v2941 = vadd.f32 %v2713, %v2909
        %v2942 = vadd.f32 %v2714, %v2910
        %v2943 = vadd.f32 %v2715, %v2911
        %v2944 = vadd.f32 %v2716, %v2912
        %v2945 = vadd.f32 %v2717, %v2913
        %v2946 = vadd.f32 %v2718, %v2914
        %v2947 = vadd.f32 %v2719, %v2915
        %v2948 = vadd.f32 %v2720, %v2916
        %v2949 = vadd.f32 %v2721, %v2917
        %v2950 = vadd.f32 %v2722, %v2918
        %v2951 = vadd.f32 %v2723, %v2919
        %v2952 = vadd.f32 %v2724, %v2920
        %v2953 = vadd.f32 %v2725, %v2921
        %v2954 = vadd.f32 %v2726, %v2922
        %v2955 = vadd.f32 %v2727, %v2923
        %v2956 = vadd.f32 %v2728, %v2924
        %v2957 = vadd.f32 %v2729, %v2925
        %v2958 = vadd.f32 %v2730, %v2926
        %v2959 = vadd.f32 %v2731, %v2927
        %v2960 = vadd.f32 %v2732, %v2928
        %v2961 = vadd.f32 %v2733, %v2929
        %v2962 = vadd.f32 %v2734, %v2930
        %v2963 = vadd.f32 %v2735, %v2931
        %v2964 = vadd.f32 %v2736, %v2932
        %v2965 = vadd.f32 %v2737, %v2933
        %v2966 = vadd.f32 %v2738, %v2934
        %v2967 = vadd.f32 %v2739, %v2935
        %v2968 = vadd.f32 %v2740, %v2936
        %v2969 = vadd.f32 %v2741, %v2937
        %v2970 = vadd.f32 %v2742, %v2938
        %v2971 = vadd.f32 %v2743, %v2939
        %v2972 = vadd.f32 %v2744, %v2940
        %v2973 = vrot.slane %v1541, 1
        %v2974 = vsel %vm2188, %v2248, %v2973
        %v2977 = vsel %vm2188, %v2973, 0.0
        %2978 = vset.pattern.permute.xlu0 5
        %2979 = vperm.xlu0 %2978, %v1546
        %v2980 = vpop.permute.xlu0 %2979
        %2982 = vset.pattern.permute.xlu0 5
        %2983 = vperm.xlu0 %2982, %v1547
        %v2984 = vpop.permute.xlu0 %2983
        %2986 = vset.pattern.permute.xlu0 5
        %2987 = vperm.xlu0 %2986, %v1548
        %v2988 = vpop.permute.xlu0 %2987
        %2990 = vset.pattern.permute.xlu0 5
        %2991 = vperm.xlu0 %2990, %v1549
        %v2992 = vpop.permute.xlu0 %2991
        %2994 = vset.pattern.permute.xlu0 5
        %2995 = vperm.xlu0 %2994, %v1550
        %v2996 = vpop.permute.xlu0 %2995
        %2998 = vset.pattern.permute.xlu0 5
        %2999 = vperm.xlu0 %2998, %v1551
        %v3000 = vpop.permute.xlu0 %2999
        %3002 = vset.pattern.permute.xlu0 5
        %3003 = vperm.xlu0 %3002, %v1552
        %v3004 = vpop.permute.xlu0 %3003
        %3006 = vset.pattern.permute.xlu0 5
        %3007 = vperm.xlu0 %3006, %v1553
        %v3008 = vpop.permute.xlu0 %3007
        %3010 = vset.pattern.permute.xlu0 5
        %3011 = vperm.xlu0 %3010, %v1554
        %v3012 = vpop.permute.xlu0 %3011
        %3014 = vset.pattern.permute.xlu0 5
        %3015 = vperm.xlu0 %3014, %v1555
        %v3016 = vpop.permute.xlu0 %3015
        %3018 = vset.pattern.permute.xlu0 5
        %3019 = vperm.xlu0 %3018, %v1556
        %v3020 = vpop.permute.xlu0 %3019
        %3022 = vset.pattern.permute.xlu0 5
        %3023 = vperm.xlu0 %3022, %v1557
        %v3024 = vpop.permute.xlu0 %3023
        %3026 = vset.pattern.permute.xlu0 5
        %3027 = vperm.xlu0 %3026, %v1558
        %v3028 = vpop.permute.xlu0 %3027
        %3030 = vset.pattern.permute.xlu0 5
        %3031 = vperm.xlu0 %3030, %v1559
        %v3032 = vpop.permute.xlu0 %3031
        %3034 = vset.pattern.permute.xlu0 5
        %3035 = vperm.xlu0 %3034, %v1560
        %v3036 = vpop.permute.xlu0 %3035
        %3038 = vset.pattern.permute.xlu0 5
        %3039 = vperm.xlu0 %3038, %v1561
        %v3040 = vpop.permute.xlu0 %3039
        %3042 = vset.pattern.permute.xlu0 5
        %3043 = vperm.xlu0 %3042, %v1562
        %v3044 = vpop.permute.xlu0 %3043
        %3046 = vset.pattern.permute.xlu0 5
        %3047 = vperm.xlu0 %3046, %v1563
        %v3048 = vpop.permute.xlu0 %3047
        %3050 = vset.pattern.permute.xlu0 5
        %3051 = vperm.xlu0 %3050, %v1564
        %v3052 = vpop.permute.xlu0 %3051
        %3054 = vset.pattern.permute.xlu0 5
        %3055 = vperm.xlu0 %3054, %v1565
        %v3056 = vpop.permute.xlu0 %3055
        %3058 = vset.pattern.permute.xlu0 5
        %3059 = vperm.xlu0 %3058, %v1566
        %v3060 = vpop.permute.xlu0 %3059
        %3062 = vset.pattern.permute.xlu0 5
        %3063 = vperm.xlu0 %3062, %v1567
        %v3064 = vpop.permute.xlu0 %3063
        %3066 = vset.pattern.permute.xlu0 5
        %3067 = vperm.xlu0 %3066, %v1568
        %v3068 = vpop.permute.xlu0 %3067
        %3070 = vset.pattern.permute.xlu0 5
        %3071 = vperm.xlu0 %3070, %v1569
        %v3072 = vpop.permute.xlu0 %3071
        %3074 = vset.pattern.permute.xlu0 5
        %3075 = vperm.xlu0 %3074, %v1570
        %v3076 = vpop.permute.xlu0 %3075
        %3078 = vset.pattern.permute.xlu0 5
        %3079 = vperm.xlu0 %3078, %v1571
        %v3080 = vpop.permute.xlu0 %3079
        %3082 = vset.pattern.permute.xlu0 5
        %3083 = vperm.xlu0 %3082, %v1572
        %v3084 = vpop.permute.xlu0 %3083
        %3086 = vset.pattern.permute.xlu0 5
        %3087 = vperm.xlu0 %3086, %v1573
        %v3088 = vpop.permute.xlu0 %3087
        %3090 = vset.pattern.permute.xlu0 5
        %3091 = vperm.xlu0 %3090, %v1574
        %v3092 = vpop.permute.xlu0 %3091
        %3094 = vset.pattern.permute.xlu0 5
        %3095 = vperm.xlu0 %3094, %v1575
        %v3096 = vpop.permute.xlu0 %3095
        %3098 = vset.pattern.permute.xlu0 5
        %3099 = vperm.xlu0 %3098, %v1576
        %v3100 = vpop.permute.xlu0 %3099
        %3102 = vset.pattern.permute.xlu0 5
        %3103 = vperm.xlu0 %3102, %v1577
        %v3104 = vpop.permute.xlu0 %3103
        %v3106 = vmul.f32 %v2191, %v2980
        %v3107 = vmul.f32 %v2193, %v2984
        %v3108 = vmul.f32 %v2195, %v2988
        %v3109 = vmul.f32 %v2197, %v2992
        %v3110 = vmul.f32 %v2199, %v2996
        %v3111 = vmul.f32 %v2201, %v3000
        %v3112 = vmul.f32 %v2203, %v3004
        %v3113 = vmul.f32 %v2205, %v3008
        %v3114 = vmul.f32 %v2207, %v3012
        %v3115 = vmul.f32 %v2209, %v3016
        %v3116 = vmul.f32 %v2211, %v3020
        %v3117 = vmul.f32 %v2213, %v3024
        %v3118 = vmul.f32 %v2215, %v3028
        %v3119 = vmul.f32 %v2217, %v3032
        %v3120 = vmul.f32 %v2219, %v3036
        %v3121 = vmul.f32 %v2221, %v3040
        %v3122 = vmul.f32 %v2223, %v3044
        %v3123 = vmul.f32 %v2225, %v3048
        %v3124 = vmul.f32 %v2227, %v3052
        %v3125 = vmul.f32 %v2229, %v3056
        %v3126 = vmul.f32 %v2231, %v3060
        %v3127 = vmul.f32 %v2233, %v3064
        %v3128 = vmul.f32 %v2235, %v3068
        %v3129 = vmul.f32 %v2237, %v3072
        %v3130 = vmul.f32 %v2239, %v3076
        %v3131 = vmul.f32 %v2241, %v3080
        %v3132 = vmul.f32 %v2243, %v3084
        %v3133 = vmul.f32 %v2245, %v3088
        %v3134 = vmul.f32 %v2247, %v3092
        %v3135 = vmul.f32 %v2249, %v3096
        %v3136 = vmul.f32 %v2974, %v3100
        %v3137 = vmul.f32 %v2977, %v3104
        %v3138 = vlaneseq
        %v3139 = vshrl.u32 %v3138, 7
        %v3140 = vsub.s32 5, %v3139
        %v3141 = vrot.slane %v1544, %v3140
        %v3142 = vmul.f32 %v3106, %v3141
        %v3143 = vmul.f32 %v3107, %v3141
        %v3144 = vmul.f32 %v3108, %v3141
        %v3145 = vmul.f32 %v3109, %v3141
        %v3146 = vmul.f32 %v3110, %v3141
        %v3147 = vmul.f32 %v3111, %v3141
        %v3148 = vmul.f32 %v3112, %v3141
        %v3149 = vmul.f32 %v3113, %v3141
        %v3150 = vmul.f32 %v3114, %v3141
        %v3151 = vmul.f32 %v3115, %v3141
        %v3152 = vmul.f32 %v3116, %v3141
        %v3153 = vmul.f32 %v3117, %v3141
        %v3154 = vmul.f32 %v3118, %v3141
        %v3155 = vmul.f32 %v3119, %v3141
        %v3156 = vmul.f32 %v3120, %v3141
        %v3157 = vmul.f32 %v3121, %v3141
        %v3158 = vmul.f32 %v3122, %v3141
        %v3159 = vmul.f32 %v3123, %v3141
        %v3160 = vmul.f32 %v3124, %v3141
        %v3161 = vmul.f32 %v3125, %v3141
        %v3162 = vmul.f32 %v3126, %v3141
        %v3163 = vmul.f32 %v3127, %v3141
        %v3164 = vmul.f32 %v3128, %v3141
        %v3165 = vmul.f32 %v3129, %v3141
        %v3166 = vmul.f32 %v3130, %v3141
        %v3167 = vmul.f32 %v3131, %v3141
        %v3168 = vmul.f32 %v3132, %v3141
        %v3169 = vmul.f32 %v3133, %v3141
        %v3170 = vmul.f32 %v3134, %v3141
        %v3171 = vmul.f32 %v3135, %v3141
        %v3172 = vmul.f32 %v3136, %v3141
        %v3173 = vmul.f32 %v3137, %v3141
        %v3174 = vadd.f32 %v2941, %v3142
        %v3175 = vadd.f32 %v2942, %v3143
        %v3176 = vadd.f32 %v2943, %v3144
        %v3177 = vadd.f32 %v2944, %v3145
        %v3178 = vadd.f32 %v2945, %v3146
        %v3179 = vadd.f32 %v2946, %v3147
        %v3180 = vadd.f32 %v2947, %v3148
        %v3181 = vadd.f32 %v2948, %v3149
        %v3182 = vadd.f32 %v2949, %v3150
        %v3183 = vadd.f32 %v2950, %v3151
        %v3184 = vadd.f32 %v2951, %v3152
        %v3185 = vadd.f32 %v2952, %v3153
        %v3186 = vadd.f32 %v2953, %v3154
        %v3187 = vadd.f32 %v2954, %v3155
        %v3188 = vadd.f32 %v2955, %v3156
        %v3189 = vadd.f32 %v2956, %v3157
        %v3190 = vadd.f32 %v2957, %v3158
        %v3191 = vadd.f32 %v2958, %v3159
        %v3192 = vadd.f32 %v2959, %v3160
        %v3193 = vadd.f32 %v2960, %v3161
        %v3194 = vadd.f32 %v2961, %v3162
        %v3195 = vadd.f32 %v2962, %v3163
        %v3196 = vadd.f32 %v2963, %v3164
        %v3197 = vadd.f32 %v2964, %v3165
        %v3198 = vadd.f32 %v2965, %v3166
        %v3199 = vadd.f32 %v2966, %v3167
        %v3200 = vadd.f32 %v2967, %v3168
        %v3201 = vadd.f32 %v2968, %v3169
        %v3202 = vadd.f32 %v2969, %v3170
        %v3203 = vadd.f32 %v2970, %v3171
        %v3204 = vadd.f32 %v2971, %v3172
        %v3205 = vadd.f32 %v2972, %v3173
        %v3207 = vsel %vm1608, %v2513, 0.0
        %3208 = vset.pattern.permute.xlu0 6
        %3209 = vperm.xlu0 %3208, %v1546
        %v3210 = vpop.permute.xlu0 %3209
        %3212 = vset.pattern.permute.xlu0 6
        %3213 = vperm.xlu0 %3212, %v1547
        %v3214 = vpop.permute.xlu0 %3213
        %3216 = vset.pattern.permute.xlu0 6
        %3217 = vperm.xlu0 %3216, %v1548
        %v3218 = vpop.permute.xlu0 %3217
        %3220 = vset.pattern.permute.xlu0 6
        %3221 = vperm.xlu0 %3220, %v1549
        %v3222 = vpop.permute.xlu0 %3221
        %3224 = vset.pattern.permute.xlu0 6
        %3225 = vperm.xlu0 %3224, %v1550
        %v3226 = vpop.permute.xlu0 %3225
        %3228 = vset.pattern.permute.xlu0 6
        %3229 = vperm.xlu0 %3228, %v1551
        %v3230 = vpop.permute.xlu0 %3229
        %3232 = vset.pattern.permute.xlu0 6
        %3233 = vperm.xlu0 %3232, %v1552
        %v3234 = vpop.permute.xlu0 %3233
        %3236 = vset.pattern.permute.xlu0 6
        %3237 = vperm.xlu0 %3236, %v1553
        %v3238 = vpop.permute.xlu0 %3237
        %3240 = vset.pattern.permute.xlu0 6
        %3241 = vperm.xlu0 %3240, %v1554
        %v3242 = vpop.permute.xlu0 %3241
        %3244 = vset.pattern.permute.xlu0 6
        %3245 = vperm.xlu0 %3244, %v1555
        %v3246 = vpop.permute.xlu0 %3245
        %3248 = vset.pattern.permute.xlu0 6
        %3249 = vperm.xlu0 %3248, %v1556
        %v3250 = vpop.permute.xlu0 %3249
        %3252 = vset.pattern.permute.xlu0 6
        %3253 = vperm.xlu0 %3252, %v1557
        %v3254 = vpop.permute.xlu0 %3253
        %3256 = vset.pattern.permute.xlu0 6
        %3257 = vperm.xlu0 %3256, %v1558
        %v3258 = vpop.permute.xlu0 %3257
        %3260 = vset.pattern.permute.xlu0 6
        %3261 = vperm.xlu0 %3260, %v1559
        %v3262 = vpop.permute.xlu0 %3261
        %3264 = vset.pattern.permute.xlu0 6
        %3265 = vperm.xlu0 %3264, %v1560
        %v3266 = vpop.permute.xlu0 %3265
        %3268 = vset.pattern.permute.xlu0 6
        %3269 = vperm.xlu0 %3268, %v1561
        %v3270 = vpop.permute.xlu0 %3269
        %3272 = vset.pattern.permute.xlu0 6
        %3273 = vperm.xlu0 %3272, %v1562
        %v3274 = vpop.permute.xlu0 %3273
        %3276 = vset.pattern.permute.xlu0 6
        %3277 = vperm.xlu0 %3276, %v1563
        %v3278 = vpop.permute.xlu0 %3277
        %3280 = vset.pattern.permute.xlu0 6
        %3281 = vperm.xlu0 %3280, %v1564
        %v3282 = vpop.permute.xlu0 %3281
        %3284 = vset.pattern.permute.xlu0 6
        %3285 = vperm.xlu0 %3284, %v1565
        %v3286 = vpop.permute.xlu0 %3285
        %3288 = vset.pattern.permute.xlu0 6
        %3289 = vperm.xlu0 %3288, %v1566
        %v3290 = vpop.permute.xlu0 %3289
        %3292 = vset.pattern.permute.xlu0 6
        %3293 = vperm.xlu0 %3292, %v1567
        %v3294 = vpop.permute.xlu0 %3293
        %3296 = vset.pattern.permute.xlu0 6
        %3297 = vperm.xlu0 %3296, %v1568
        %v3298 = vpop.permute.xlu0 %3297
        %3300 = vset.pattern.permute.xlu0 6
        %3301 = vperm.xlu0 %3300, %v1569
        %v3302 = vpop.permute.xlu0 %3301
        %3304 = vset.pattern.permute.xlu0 6
        %3305 = vperm.xlu0 %3304, %v1570
        %v3306 = vpop.permute.xlu0 %3305
        %3308 = vset.pattern.permute.xlu0 6
        %3309 = vperm.xlu0 %3308, %v1571
        %v3310 = vpop.permute.xlu0 %3309
        %3312 = vset.pattern.permute.xlu0 6
        %3313 = vperm.xlu0 %3312, %v1572
        %v3314 = vpop.permute.xlu0 %3313
        %3316 = vset.pattern.permute.xlu0 6
        %3317 = vperm.xlu0 %3316, %v1573
        %v3318 = vpop.permute.xlu0 %3317
        %3320 = vset.pattern.permute.xlu0 6
        %3321 = vperm.xlu0 %3320, %v1574
        %v3322 = vpop.permute.xlu0 %3321
        %3324 = vset.pattern.permute.xlu0 6
        %3325 = vperm.xlu0 %3324, %v1575
        %v3326 = vpop.permute.xlu0 %3325
        %3328 = vset.pattern.permute.xlu0 6
        %3329 = vperm.xlu0 %3328, %v1576
        %v3330 = vpop.permute.xlu0 %3329
        %3332 = vset.pattern.permute.xlu0 6
        %3333 = vperm.xlu0 %3332, %v1577
        %v3334 = vpop.permute.xlu0 %3333
        %v3336 = vmul.f32 %v1613, %v3210
        %v3337 = vmul.f32 %v1615, %v3214
        %v3338 = vmul.f32 %v1617, %v3218
        %v3339 = vmul.f32 %v1619, %v3222
        %v3340 = vmul.f32 %v1621, %v3226
        %v3341 = vmul.f32 %v1623, %v3230
        %v3342 = vmul.f32 %v1625, %v3234
        %v3343 = vmul.f32 %v1627, %v3238
        %v3344 = vmul.f32 %v1629, %v3242
        %v3345 = vmul.f32 %v1631, %v3246
        %v3346 = vmul.f32 %v1633, %v3250
        %v3347 = vmul.f32 %v1635, %v3254
        %v3348 = vmul.f32 %v1637, %v3258
        %v3349 = vmul.f32 %v1639, %v3262
        %v3350 = vmul.f32 %v1641, %v3266
        %v3351 = vmul.f32 %v1643, %v3270
        %v3352 = vmul.f32 %v1645, %v3274
        %v3353 = vmul.f32 %v1647, %v3278
        %v3354 = vmul.f32 %v1649, %v3282
        %v3355 = vmul.f32 %v1651, %v3286
        %v3356 = vmul.f32 %v1653, %v3290
        %v3357 = vmul.f32 %v1655, %v3294
        %v3358 = vmul.f32 %v1657, %v3298
        %v3359 = vmul.f32 %v1659, %v3302
        %v3360 = vmul.f32 %v1661, %v3306
        %v3361 = vmul.f32 %v1663, %v3310
        %v3362 = vmul.f32 %v1665, %v3314
        %v3363 = vmul.f32 %v1667, %v3318
        %v3364 = vmul.f32 %v2512, %v3322
        %v3365 = vmul.f32 %v2514, %v3326
        %v3366 = vmul.f32 %v3207, %v3330
        %v3367 = vmul.f32 %v3334, 0.0
        %v3368 = vlaneseq
        %v3369 = vshrl.u32 %v3368, 7
        %v3370 = vsub.s32 6, %v3369
        %v3371 = vrot.slane %v1544, %v3370
        %v3372 = vmul.f32 %v3336, %v3371
        %v3373 = vmul.f32 %v3337, %v3371
        %v3374 = vmul.f32 %v3338, %v3371
        %v3375 = vmul.f32 %v3339, %v3371
        %v3376 = vmul.f32 %v3340, %v3371
        %v3377 = vmul.f32 %v3341, %v3371
        %v3378 = vmul.f32 %v3342, %v3371
        %v3379 = vmul.f32 %v3343, %v3371
        %v3380 = vmul.f32 %v3344, %v3371
        %v3381 = vmul.f32 %v3345, %v3371
        %v3382 = vmul.f32 %v3346, %v3371
        %v3383 = vmul.f32 %v3347, %v3371
        %v3384 = vmul.f32 %v3348, %v3371
        %v3385 = vmul.f32 %v3349, %v3371
        %v3386 = vmul.f32 %v3350, %v3371
        %v3387 = vmul.f32 %v3351, %v3371
        %v3388 = vmul.f32 %v3352, %v3371
        %v3389 = vmul.f32 %v3353, %v3371
        %v3390 = vmul.f32 %v3354, %v3371
        %v3391 = vmul.f32 %v3355, %v3371
        %v3392 = vmul.f32 %v3356, %v3371
        %v3393 = vmul.f32 %v3357, %v3371
        %v3394 = vmul.f32 %v3358, %v3371
        %v3395 = vmul.f32 %v3359, %v3371
        %v3396 = vmul.f32 %v3360, %v3371
        %v3397 = vmul.f32 %v3361, %v3371
        %v3398 = vmul.f32 %v3362, %v3371
        %v3399 = vmul.f32 %v3363, %v3371
        %v3400 = vmul.f32 %v3364, %v3371
        %v3401 = vmul.f32 %v3365, %v3371
        %v3402 = vmul.f32 %v3366, %v3371
        %v3403 = vmul.f32 %v3367, %v3371
        %v3404 = vadd.f32 %v3174, %v3372
        %v3405 = vadd.f32 %v3175, %v3373
        %v3406 = vadd.f32 %v3176, %v3374
        %v3407 = vadd.f32 %v3177, %v3375
        %v3408 = vadd.f32 %v3178, %v3376
        %v3409 = vadd.f32 %v3179, %v3377
        %v3410 = vadd.f32 %v3180, %v3378
        %v3411 = vadd.f32 %v3181, %v3379
        %v3412 = vadd.f32 %v3182, %v3380
        %v3413 = vadd.f32 %v3183, %v3381
        %v3414 = vadd.f32 %v3184, %v3382
        %v3415 = vadd.f32 %v3185, %v3383
        %v3416 = vadd.f32 %v3186, %v3384
        %v3417 = vadd.f32 %v3187, %v3385
        %v3418 = vadd.f32 %v3188, %v3386
        %v3419 = vadd.f32 %v3189, %v3387
        %v3420 = vadd.f32 %v3190, %v3388
        %v3421 = vadd.f32 %v3191, %v3389
        %v3422 = vadd.f32 %v3192, %v3390
        %v3423 = vadd.f32 %v3193, %v3391
        %v3424 = vadd.f32 %v3194, %v3392
        %v3425 = vadd.f32 %v3195, %v3393
        %v3426 = vadd.f32 %v3196, %v3394
        %v3427 = vadd.f32 %v3197, %v3395
        %v3428 = vadd.f32 %v3198, %v3396
        %v3429 = vadd.f32 %v3199, %v3397
        %v3430 = vadd.f32 %v3200, %v3398
        %v3431 = vadd.f32 %v3201, %v3399
        %v3432 = vadd.f32 %v3202, %v3400
        %v3433 = vadd.f32 %v3203, %v3401
        %v3434 = vadd.f32 %v3204, %v3402
        %v3435 = vadd.f32 %v3205, %v3403
        %3436 = vset.pattern.permute.xlu0 7
        %3437 = vperm.xlu0 %3436, %v1546
        %v3438 = vpop.permute.xlu0 %3437
        %3440 = vset.pattern.permute.xlu0 7
        %3441 = vperm.xlu0 %3440, %v1547
        %v3442 = vpop.permute.xlu0 %3441
        %3444 = vset.pattern.permute.xlu0 7
        %3445 = vperm.xlu0 %3444, %v1548
        %v3446 = vpop.permute.xlu0 %3445
        %3448 = vset.pattern.permute.xlu0 7
        %3449 = vperm.xlu0 %3448, %v1549
        %v3450 = vpop.permute.xlu0 %3449
        %3452 = vset.pattern.permute.xlu0 7
        %3453 = vperm.xlu0 %3452, %v1550
        %v3454 = vpop.permute.xlu0 %3453
        %3456 = vset.pattern.permute.xlu0 7
        %3457 = vperm.xlu0 %3456, %v1551
        %v3458 = vpop.permute.xlu0 %3457
        %3460 = vset.pattern.permute.xlu0 7
        %3461 = vperm.xlu0 %3460, %v1552
        %v3462 = vpop.permute.xlu0 %3461
        %3464 = vset.pattern.permute.xlu0 7
        %3465 = vperm.xlu0 %3464, %v1553
        %v3466 = vpop.permute.xlu0 %3465
        %3468 = vset.pattern.permute.xlu0 7
        %3469 = vperm.xlu0 %3468, %v1554
        %v3470 = vpop.permute.xlu0 %3469
        %3472 = vset.pattern.permute.xlu0 7
        %3473 = vperm.xlu0 %3472, %v1555
        %v3474 = vpop.permute.xlu0 %3473
        %3476 = vset.pattern.permute.xlu0 7
        %3477 = vperm.xlu0 %3476, %v1556
        %v3478 = vpop.permute.xlu0 %3477
        %3480 = vset.pattern.permute.xlu0 7
        %3481 = vperm.xlu0 %3480, %v1557
        %v3482 = vpop.permute.xlu0 %3481
        %3484 = vset.pattern.permute.xlu0 7
        %3485 = vperm.xlu0 %3484, %v1558
        %v3486 = vpop.permute.xlu0 %3485
        %3488 = vset.pattern.permute.xlu0 7
        %3489 = vperm.xlu0 %3488, %v1559
        %v3490 = vpop.permute.xlu0 %3489
        %3492 = vset.pattern.permute.xlu0 7
        %3493 = vperm.xlu0 %3492, %v1560
        %v3494 = vpop.permute.xlu0 %3493
        %3496 = vset.pattern.permute.xlu0 7
        %3497 = vperm.xlu0 %3496, %v1561
        %v3498 = vpop.permute.xlu0 %3497
        %3500 = vset.pattern.permute.xlu0 7
        %3501 = vperm.xlu0 %3500, %v1562
        %v3502 = vpop.permute.xlu0 %3501
        %3504 = vset.pattern.permute.xlu0 7
        %3505 = vperm.xlu0 %3504, %v1563
        %v3506 = vpop.permute.xlu0 %3505
        %3508 = vset.pattern.permute.xlu0 7
        %3509 = vperm.xlu0 %3508, %v1564
        %v3510 = vpop.permute.xlu0 %3509
        %3512 = vset.pattern.permute.xlu0 7
        %3513 = vperm.xlu0 %3512, %v1565
        %v3514 = vpop.permute.xlu0 %3513
        %3516 = vset.pattern.permute.xlu0 7
        %3517 = vperm.xlu0 %3516, %v1566
        %v3518 = vpop.permute.xlu0 %3517
        %3520 = vset.pattern.permute.xlu0 7
        %3521 = vperm.xlu0 %3520, %v1567
        %v3522 = vpop.permute.xlu0 %3521
        %3524 = vset.pattern.permute.xlu0 7
        %3525 = vperm.xlu0 %3524, %v1568
        %v3526 = vpop.permute.xlu0 %3525
        %3528 = vset.pattern.permute.xlu0 7
        %3529 = vperm.xlu0 %3528, %v1569
        %v3530 = vpop.permute.xlu0 %3529
        %3532 = vset.pattern.permute.xlu0 7
        %3533 = vperm.xlu0 %3532, %v1570
        %v3534 = vpop.permute.xlu0 %3533
        %3536 = vset.pattern.permute.xlu0 7
        %3537 = vperm.xlu0 %3536, %v1571
        %v3538 = vpop.permute.xlu0 %3537
        %3540 = vset.pattern.permute.xlu0 7
        %3541 = vperm.xlu0 %3540, %v1572
        %v3542 = vpop.permute.xlu0 %3541
        %3544 = vset.pattern.permute.xlu0 7
        %3545 = vperm.xlu0 %3544, %v1573
        %v3546 = vpop.permute.xlu0 %3545
        %3548 = vset.pattern.permute.xlu0 7
        %3549 = vperm.xlu0 %3548, %v1574
        %v3550 = vpop.permute.xlu0 %3549
        %3552 = vset.pattern.permute.xlu0 7
        %3553 = vperm.xlu0 %3552, %v1575
        %v3554 = vpop.permute.xlu0 %3553
        %3556 = vset.pattern.permute.xlu0 7
        %3557 = vperm.xlu0 %3556, %v1576
        %v3558 = vpop.permute.xlu0 %3557
        %3560 = vset.pattern.permute.xlu0 7
        %3561 = vperm.xlu0 %3560, %v1577
        %v3562 = vpop.permute.xlu0 %3561
        %v3564 = vmul.f32 %v1396, %v3438
        %v3565 = vmul.f32 %v1401, %v3442
        %v3566 = vmul.f32 %v1406, %v3446
        %v3567 = vmul.f32 %v1411, %v3450
        %v3568 = vmul.f32 %v1416, %v3454
        %v3569 = vmul.f32 %v1421, %v3458
        %v3570 = vmul.f32 %v1426, %v3462
        %v3571 = vmul.f32 %v1431, %v3466
        %v3572 = vmul.f32 %v1436, %v3470
        %v3573 = vmul.f32 %v1441, %v3474
        %v3574 = vmul.f32 %v1446, %v3478
        %v3575 = vmul.f32 %v1451, %v3482
        %v3576 = vmul.f32 %v1456, %v3486
        %v3577 = vmul.f32 %v1461, %v3490
        %v3578 = vmul.f32 %v1466, %v3494
        %v3579 = vmul.f32 %v1471, %v3498
        %v3580 = vmul.f32 %v1476, %v3502
        %v3581 = vmul.f32 %v1481, %v3506
        %v3582 = vmul.f32 %v1486, %v3510
        %v3583 = vmul.f32 %v1491, %v3514
        %v3584 = vmul.f32 %v1496, %v3518
        %v3585 = vmul.f32 %v1501, %v3522
        %v3586 = vmul.f32 %v1506, %v3526
        %v3587 = vmul.f32 %v1511, %v3530
        %v3588 = vmul.f32 %v1516, %v3534
        %v3589 = vmul.f32 %v1521, %v3538
        %v3590 = vmul.f32 %v1526, %v3542
        %v3591 = vmul.f32 %v1531, %v3546
        %v3592 = vmul.f32 %v1536, %v3550
        %v3593 = vmul.f32 %v1541, %v3554
        %v3594 = vmul.f32 %v3558, 0.0
        %v3595 = vmul.f32 %v3562, 0.0
        %v3596 = vlaneseq
        %v3597 = vshrl.u32 %v3596, 7
        %v3598 = vsub.s32 7, %v3597
        %v3599 = vrot.slane %v1544, %v3598
        %v3600 = vmul.f32 %v3564, %v3599
        %v3601 = vmul.f32 %v3565, %v3599
        %v3602 = vmul.f32 %v3566, %v3599
        %v3603 = vmul.f32 %v3567, %v3599
        %v3604 = vmul.f32 %v3568, %v3599
        %v3605 = vmul.f32 %v3569, %v3599
        %v3606 = vmul.f32 %v3570, %v3599
        %v3607 = vmul.f32 %v3571, %v3599
        %v3608 = vmul.f32 %v3572, %v3599
        %v3609 = vmul.f32 %v3573, %v3599
        %v3610 = vmul.f32 %v3574, %v3599
        %v3611 = vmul.f32 %v3575, %v3599
        %v3612 = vmul.f32 %v3576, %v3599
        %v3613 = vmul.f32 %v3577, %v3599
        %v3614 = vmul.f32 %v3578, %v3599
        %v3615 = vmul.f32 %v3579, %v3599
        %v3616 = vmul.f32 %v3580, %v3599
        %v3617 = vmul.f32 %v3581, %v3599
        %v3618 = vmul.f32 %v3582, %v3599
        %v3619 = vmul.f32 %v3583, %v3599
        %v3620 = vmul.f32 %v3584, %v3599
        %v3621 = vmul.f32 %v3585, %v3599
        %v3622 = vmul.f32 %v3586, %v3599
        %v3623 = vmul.f32 %v3587, %v3599
        %v3624 = vmul.f32 %v3588, %v3599
        %v3625 = vmul.f32 %v3589, %v3599
        %v3626 = vmul.f32 %v3590, %v3599
        %v3627 = vmul.f32 %v3591, %v3599
        %v3628 = vmul.f32 %v3592, %v3599
        %v3629 = vmul.f32 %v3593, %v3599
        %v3630 = vmul.f32 %v3594, %v3599
        %v3631 = vmul.f32 %v3595, %v3599
        %v3632 = vadd.f32 %v3404, %v3600
        %v3633 = vadd.f32 %v3405, %v3601
        %v3634 = vadd.f32 %v3406, %v3602
        %v3635 = vadd.f32 %v3407, %v3603
        %v3636 = vadd.f32 %v3408, %v3604
        %v3637 = vadd.f32 %v3409, %v3605
        %v3638 = vadd.f32 %v3410, %v3606
        %v3639 = vadd.f32 %v3411, %v3607
        %v3640 = vadd.f32 %v3412, %v3608
        %v3641 = vadd.f32 %v3413, %v3609
        %v3642 = vadd.f32 %v3414, %v3610
        %v3643 = vadd.f32 %v3415, %v3611
        %v3644 = vadd.f32 %v3416, %v3612
        %v3645 = vadd.f32 %v3417, %v3613
        %v3646 = vadd.f32 %v3418, %v3614
        %v3647 = vadd.f32 %v3419, %v3615
        %v3648 = vadd.f32 %v3420, %v3616
        %v3649 = vadd.f32 %v3421, %v3617
        %v3650 = vadd.f32 %v3422, %v3618
        %v3651 = vadd.f32 %v3423, %v3619
        %v3652 = vadd.f32 %v3424, %v3620
        %v3653 = vadd.f32 %v3425, %v3621
        %v3654 = vadd.f32 %v3426, %v3622
        %v3655 = vadd.f32 %v3427, %v3623
        %v3656 = vadd.f32 %v3428, %v3624
        %v3657 = vadd.f32 %v3429, %v3625
        %v3658 = vadd.f32 %v3430, %v3626
        %v3659 = vadd.f32 %v3431, %v3627
        %v3660 = vadd.f32 %v3432, %v3628
        %v3661 = vadd.f32 %v3433, %v3629
        %v3662 = vadd.f32 %v3434, %v3630
        %v3663 = vadd.f32 %v3435, %v3631
        %3664 = vset.pattern.permute.xlu0 8
        %3665 = vperm.xlu0 %3664, %v1546
        %v3666 = vpop.permute.xlu0 %3665
        %3668 = vset.pattern.permute.xlu0 8
        %3669 = vperm.xlu0 %3668, %v1547
        %v3670 = vpop.permute.xlu0 %3669
        %3672 = vset.pattern.permute.xlu0 8
        %3673 = vperm.xlu0 %3672, %v1548
        %v3674 = vpop.permute.xlu0 %3673
        %3676 = vset.pattern.permute.xlu0 8
        %3677 = vperm.xlu0 %3676, %v1549
        %v3678 = vpop.permute.xlu0 %3677
        %3680 = vset.pattern.permute.xlu0 8
        %3681 = vperm.xlu0 %3680, %v1550
        %v3682 = vpop.permute.xlu0 %3681
        %3684 = vset.pattern.permute.xlu0 8
        %3685 = vperm.xlu0 %3684, %v1551
        %v3686 = vpop.permute.xlu0 %3685
        %3688 = vset.pattern.permute.xlu0 8
        %3689 = vperm.xlu0 %3688, %v1552
        %v3690 = vpop.permute.xlu0 %3689
        %3692 = vset.pattern.permute.xlu0 8
        %3693 = vperm.xlu0 %3692, %v1553
        %v3694 = vpop.permute.xlu0 %3693
        %3696 = vset.pattern.permute.xlu0 8
        %3697 = vperm.xlu0 %3696, %v1554
        %v3698 = vpop.permute.xlu0 %3697
        %3700 = vset.pattern.permute.xlu0 8
        %3701 = vperm.xlu0 %3700, %v1555
        %v3702 = vpop.permute.xlu0 %3701
        %3704 = vset.pattern.permute.xlu0 8
        %3705 = vperm.xlu0 %3704, %v1556
        %v3706 = vpop.permute.xlu0 %3705
        %3708 = vset.pattern.permute.xlu0 8
        %3709 = vperm.xlu0 %3708, %v1557
        %v3710 = vpop.permute.xlu0 %3709
        %3712 = vset.pattern.permute.xlu0 8
        %3713 = vperm.xlu0 %3712, %v1558
        %v3714 = vpop.permute.xlu0 %3713
        %3716 = vset.pattern.permute.xlu0 8
        %3717 = vperm.xlu0 %3716, %v1559
        %v3718 = vpop.permute.xlu0 %3717
        %3720 = vset.pattern.permute.xlu0 8
        %3721 = vperm.xlu0 %3720, %v1560
        %v3722 = vpop.permute.xlu0 %3721
        %3724 = vset.pattern.permute.xlu0 8
        %3725 = vperm.xlu0 %3724, %v1561
        %v3726 = vpop.permute.xlu0 %3725
        %3728 = vset.pattern.permute.xlu0 8
        %3729 = vperm.xlu0 %3728, %v1562
        %v3730 = vpop.permute.xlu0 %3729
        %3732 = vset.pattern.permute.xlu0 8
        %3733 = vperm.xlu0 %3732, %v1563
        %v3734 = vpop.permute.xlu0 %3733
        %3736 = vset.pattern.permute.xlu0 8
        %3737 = vperm.xlu0 %3736, %v1564
        %v3738 = vpop.permute.xlu0 %3737
        %3740 = vset.pattern.permute.xlu0 8
        %3741 = vperm.xlu0 %3740, %v1565
        %v3742 = vpop.permute.xlu0 %3741
        %3744 = vset.pattern.permute.xlu0 8
        %3745 = vperm.xlu0 %3744, %v1566
        %v3746 = vpop.permute.xlu0 %3745
        %3748 = vset.pattern.permute.xlu0 8
        %3749 = vperm.xlu0 %3748, %v1567
        %v3750 = vpop.permute.xlu0 %3749
        %3752 = vset.pattern.permute.xlu0 8
        %3753 = vperm.xlu0 %3752, %v1568
        %v3754 = vpop.permute.xlu0 %3753
        %3756 = vset.pattern.permute.xlu0 8
        %3757 = vperm.xlu0 %3756, %v1569
        %v3758 = vpop.permute.xlu0 %3757
        %3760 = vset.pattern.permute.xlu0 8
        %3761 = vperm.xlu0 %3760, %v1570
        %v3762 = vpop.permute.xlu0 %3761
        %3764 = vset.pattern.permute.xlu0 8
        %3765 = vperm.xlu0 %3764, %v1571
        %v3766 = vpop.permute.xlu0 %3765
        %3768 = vset.pattern.permute.xlu0 8
        %3769 = vperm.xlu0 %3768, %v1572
        %v3770 = vpop.permute.xlu0 %3769
        %3772 = vset.pattern.permute.xlu0 8
        %3773 = vperm.xlu0 %3772, %v1573
        %v3774 = vpop.permute.xlu0 %3773
        %3776 = vset.pattern.permute.xlu0 8
        %3777 = vperm.xlu0 %3776, %v1574
        %v3778 = vpop.permute.xlu0 %3777
        %3780 = vset.pattern.permute.xlu0 8
        %3781 = vperm.xlu0 %3780, %v1575
        %v3782 = vpop.permute.xlu0 %3781
        %3784 = vset.pattern.permute.xlu0 8
        %3785 = vperm.xlu0 %3784, %v1576
        %v3786 = vpop.permute.xlu0 %3785
        %3788 = vset.pattern.permute.xlu0 8
        %3789 = vperm.xlu0 %3788, %v1577
        %v3790 = vpop.permute.xlu0 %3789
        %v3792 = vmul.f32 %v2195, %v3666
        %v3793 = vmul.f32 %v2197, %v3670
        %v3794 = vmul.f32 %v2199, %v3674
        %v3795 = vmul.f32 %v2201, %v3678
        %v3796 = vmul.f32 %v2203, %v3682
        %v3797 = vmul.f32 %v2205, %v3686
        %v3798 = vmul.f32 %v2207, %v3690
        %v3799 = vmul.f32 %v2209, %v3694
        %v3800 = vmul.f32 %v2211, %v3698
        %v3801 = vmul.f32 %v2213, %v3702
        %v3802 = vmul.f32 %v2215, %v3706
        %v3803 = vmul.f32 %v2217, %v3710
        %v3804 = vmul.f32 %v2219, %v3714
        %v3805 = vmul.f32 %v2221, %v3718
        %v3806 = vmul.f32 %v2223, %v3722
        %v3807 = vmul.f32 %v2225, %v3726
        %v3808 = vmul.f32 %v2227, %v3730
        %v3809 = vmul.f32 %v2229, %v3734
        %v3810 = vmul.f32 %v2231, %v3738
        %v3811 = vmul.f32 %v2233, %v3742
        %v3812 = vmul.f32 %v2235, %v3746
        %v3813 = vmul.f32 %v2237, %v3750
        %v3814 = vmul.f32 %v2239, %v3754
        %v3815 = vmul.f32 %v2241, %v3758
        %v3816 = vmul.f32 %v2243, %v3762
        %v3817 = vmul.f32 %v2245, %v3766
        %v3818 = vmul.f32 %v2247, %v3770
        %v3819 = vmul.f32 %v2249, %v3774
        %v3820 = vmul.f32 %v2974, %v3778
        %v3821 = vmul.f32 %v2977, %v3782
        %v3822 = vmul.f32 %v3786, 0.0
        %v3823 = vmul.f32 %v3790, 0.0
        %v3824 = vlaneseq
        %v3825 = vshrl.u32 %v3824, 7
        %v3826 = vsub.s32 0, %v3825
        %v3827 = vrot.slane %v1545, %v3826
        %v3828 = vmul.f32 %v3792, %v3827
        %v3829 = vmul.f32 %v3793, %v3827
        %v3830 = vmul.f32 %v3794, %v3827
        %v3831 = vmul.f32 %v3795, %v3827
        %v3832 = vmul.f32 %v3796, %v3827
        %v3833 = vmul.f32 %v3797, %v3827
        %v3834 = vmul.f32 %v3798, %v3827
        %v3835 = vmul.f32 %v3799, %v3827
        %v3836 = vmul.f32 %v3800, %v3827
        %v3837 = vmul.f32 %v3801, %v3827
        %v3838 = vmul.f32 %v3802, %v3827
        %v3839 = vmul.f32 %v3803, %v3827
        %v3840 = vmul.f32 %v3804, %v3827
        %v3841 = vmul.f32 %v3805, %v3827
        %v3842 = vmul.f32 %v3806, %v3827
        %v3843 = vmul.f32 %v3807, %v3827
        %v3844 = vmul.f32 %v3808, %v3827
        %v3845 = vmul.f32 %v3809, %v3827
        %v3846 = vmul.f32 %v3810, %v3827
        %v3847 = vmul.f32 %v3811, %v3827
        %v3848 = vmul.f32 %v3812, %v3827
        %v3849 = vmul.f32 %v3813, %v3827
        %v3850 = vmul.f32 %v3814, %v3827
        %v3851 = vmul.f32 %v3815, %v3827
        %v3852 = vmul.f32 %v3816, %v3827
        %v3853 = vmul.f32 %v3817, %v3827
        %v3854 = vmul.f32 %v3818, %v3827
        %v3855 = vmul.f32 %v3819, %v3827
        %v3856 = vmul.f32 %v3820, %v3827
        %v3857 = vmul.f32 %v3821, %v3827
        %v3858 = vmul.f32 %v3822, %v3827
        %v3859 = vmul.f32 %v3823, %v3827
        %v3860 = vadd.f32 %v3632, %v3828
        %v3861 = vadd.f32 %v3633, %v3829
        %v3862 = vadd.f32 %v3634, %v3830
        %v3863 = vadd.f32 %v3635, %v3831
        %v3864 = vadd.f32 %v3636, %v3832
        %v3865 = vadd.f32 %v3637, %v3833
        %v3866 = vadd.f32 %v3638, %v3834
        %v3867 = vadd.f32 %v3639, %v3835
        %v3868 = vadd.f32 %v3640, %v3836
        %v3869 = vadd.f32 %v3641, %v3837
        %v3870 = vadd.f32 %v3642, %v3838
        %v3871 = vadd.f32 %v3643, %v3839
        %v3872 = vadd.f32 %v3644, %v3840
        %v3873 = vadd.f32 %v3645, %v3841
        %v3874 = vadd.f32 %v3646, %v3842
        %v3875 = vadd.f32 %v3647, %v3843
        %v3876 = vadd.f32 %v3648, %v3844
        %v3877 = vadd.f32 %v3649, %v3845
        %v3878 = vadd.f32 %v3650, %v3846
        %v3879 = vadd.f32 %v3651, %v3847
        %v3880 = vadd.f32 %v3652, %v3848
        %v3881 = vadd.f32 %v3653, %v3849
        %v3882 = vadd.f32 %v3654, %v3850
        %v3883 = vadd.f32 %v3655, %v3851
        %v3884 = vadd.f32 %v3656, %v3852
        %v3885 = vadd.f32 %v3657, %v3853
        %v3886 = vadd.f32 %v3658, %v3854
        %v3887 = vadd.f32 %v3659, %v3855
        %v3888 = vadd.f32 %v3660, %v3856
        %v3889 = vadd.f32 %v3661, %v3857
        %v3890 = vadd.f32 %v3662, %v3858
        %v3891 = vadd.f32 %v3663, %v3859
        %v3892 = vld [vmem:[%s31] sm:$0xff]
        %vm3893 = vcmask 64512
        %v3895 = vsel %vm3893, %v3860, 0
        %v3898 = vsel %vm3893, %v3861, 0
        %v3901 = vsel %vm3893, %v3862, 0
        %v3904 = vsel %vm3893, %v3863, 0
        %v3907 = vsel %vm3893, %v3864, 0
        %v3910 = vsel %vm3893, %v3865, 0
        %v3913 = vsel %vm3893, %v3866, 0
        %v3916 = vsel %vm3893, %v3867, 0
        %v3919 = vsel %vm3893, %v3868, 0
        %v3922 = vsel %vm3893, %v3869, 0
        %v3925 = vsel %vm3893, %v3870, 0
        %v3928 = vsel %vm3893, %v3871, 0
        %v3931 = vsel %vm3893, %v3872, 0
        %v3934 = vsel %vm3893, %v3873, 0
        %v3937 = vsel %vm3893, %v3874, 0
        %v3940 = vsel %vm3893, %v3875, 0
        %v3943 = vsel %vm3893, %v3876, 0
        %v3946 = vsel %vm3893, %v3877, 0
        %v3949 = vsel %vm3893, %v3878, 0
        %v3952 = vsel %vm3893, %v3879, 0
        %v3955 = vsel %vm3893, %v3880, 0
        %v3958 = vsel %vm3893, %v3881, 0
        %v3961 = vsel %vm3893, %v3882, 0
        %v3964 = vsel %vm3893, %v3883, 0
        %v3967 = vsel %vm3893, %v3884, 0
        %v3970 = vsel %vm3893, %v3885, 0
        %v3973 = vsel %vm3893, %v3886, 0
        %v3976 = vsel %vm3893, %v3887, 0
        %v3979 = vsel %vm3893, %v3888, 0
        %v3982 = vsel %vm3893, %v3889, 0
        %v3985 = vsel %vm3893, %v3890, 0
        %v3988 = vsel %vm3893, %v3891, 0
        %3990 = vmatprep.subr.mxu0 0.0
        %3991 = vmatpush1.msra.mxu0 0.0
        %3992 = vmatprep.subr.mxu0 0.0
        %3993 = vmatpush1.msra.mxu0 0.0
        %3994 = vmatprep.subr.mxu0 0.0
        %3995 = vmatpush1.msra.mxu0 0.0
        %3996 = vmatprep.subr.mxu0 0.0
        %3997 = vmatpush1.msra.mxu0 0.0
        %3998 = vmatprep.subr.mxu0 0.0
        %3999 = vmatpush1.msra.mxu0 0.0
        %4000 = vmatprep.subr.mxu0 0.0
        %4001 = vmatpush1.msra.mxu0 0.0
        %4002 = vmatprep.subr.mxu0 0.0
        %4003 = vmatpush1.msra.mxu0 0.0
        %4004 = vmatprep.subr.mxu0 0.0
        %4005 = vmatpush1.msra.mxu0 0.0
        %4006 = vmatprep.subr.mxu0 0.0
        %4007 = vmatpush1.msra.mxu0 0.0
        %4008 = vmatprep.subr.mxu0 0.0
        %4009 = vmatpush1.msra.mxu0 0.0
        %4010 = vmatprep.subr.mxu0 0.0
        %4011 = vmatpush1.msra.mxu0 0.0
        %4012 = vmatprep.subr.mxu0 0.0
        %4013 = vmatpush1.msra.mxu0 0.0
        %4014 = vmatprep.subr.mxu0 0.0
        %4015 = vmatpush1.msra.mxu0 0.0
        %4016 = vmatprep.subr.mxu0 0.0
        %4017 = vmatpush1.msra.mxu0 0.0
        %4018 = vmatprep.subr.mxu0 0.0
        %4019 = vmatpush1.msra.mxu0 0.0
        %4020 = vmatprep.subr.mxu0 0.0
        %4021 = vmatpush1.msra.mxu0 %v3892
        %4022 = vmatprep.subr.mxu0 0.0
        %4023 = vmatpush2.msra.mxu0 0.0
        %4024 = vmatprep.subr.mxu0 0.0
        %4025 = vmatpush2.msra.mxu0 0.0
        %4026 = vmatprep.subr.mxu0 0.0
        %4027 = vmatpush2.msra.mxu0 0.0
        %4028 = vmatprep.subr.mxu0 0.0
        %4029 = vmatpush2.msra.mxu0 0.0
        %4030 = vmatprep.subr.mxu0 0.0
        %4031 = vmatpush2.msra.mxu0 0.0
        %4032 = vmatprep.subr.mxu0 0.0
        %4033 = vmatpush2.msra.mxu0 0.0
        %4034 = vmatprep.subr.mxu0 0.0
        %4035 = vmatpush2.msra.mxu0 0.0
        %4036 = vmatprep.subr.mxu0 0.0
        %4037 = vmatpush2.msra.mxu0 0.0
        %4038 = vmatprep.subr.mxu0 0.0
        %4039 = vmatpush2.msra.mxu0 0.0
        %4040 = vmatprep.subr.mxu0 0.0
        %4041 = vmatpush2.msra.mxu0 0.0
        %4042 = vmatprep.subr.mxu0 0.0
        %4043 = vmatpush2.msra.mxu0 0.0
        %4044 = vmatprep.subr.mxu0 0.0
        %4045 = vmatpush2.msra.mxu0 0.0
        %4046 = vmatprep.subr.mxu0 0.0
        %4047 = vmatpush2.msra.mxu0 0.0
        %4048 = vmatprep.subr.mxu0 0.0
        %4049 = vmatpush2.msra.mxu0 0.0
        %4050 = vmatprep.subr.mxu0 0.0
        %4051 = vmatpush2.msra.mxu0 0.0
        %4052 = vmatprep.subr.mxu0 0.0
        %4053 = vmatpush2.msra.mxu0 0.0
        %4054 = vmatprep.mubr.f32.mxu0 0.0
        %4055 = vmatmul.mubr.f32.gmra.mxu0 %v3895
        %v4056 = vpop.f32.mrf.mxu0
        %v4057 = vadd.f32 0.0, %v4056
        %v4058 = vpop.f32.mrf.mxu0
        %4059 = vmatprep.mubr.f32.mxu0 0.0
        %4060 = vmatmul.mubr.f32.gmra.mxu0 %v3898
        %v4061 = vpop.f32.mrf.mxu0
        %v4062 = vadd.f32 0.0, %v4061
        %v4063 = vpop.f32.mrf.mxu0
        %4064 = vmatprep.mubr.f32.mxu0 0.0
        %4065 = vmatmul.mubr.f32.gmra.mxu0 %v3901
        %v4066 = vpop.f32.mrf.mxu0
        %v4067 = vadd.f32 0.0, %v4066
        %v4068 = vpop.f32.mrf.mxu0
        %4069 = vmatprep.mubr.f32.mxu0 0.0
        %4070 = vmatmul.mubr.f32.gmra.mxu0 %v3904
        %v4071 = vpop.f32.mrf.mxu0
        %v4072 = vadd.f32 0.0, %v4071
        %v4073 = vpop.f32.mrf.mxu0
        %4074 = vmatprep.mubr.f32.mxu0 0.0
        %4075 = vmatmul.mubr.f32.gmra.mxu0 %v3907
        %v4076 = vpop.f32.mrf.mxu0
        %v4077 = vadd.f32 0.0, %v4076
        %v4078 = vpop.f32.mrf.mxu0
        %4079 = vmatprep.mubr.f32.mxu0 0.0
        %4080 = vmatmul.mubr.f32.gmra.mxu0 %v3910
        %v4081 = vpop.f32.mrf.mxu0
        %v4082 = vadd.f32 0.0, %v4081
        %v4083 = vpop.f32.mrf.mxu0
        %4084 = vmatprep.mubr.f32.mxu0 0.0
        %4085 = vmatmul.mubr.f32.gmra.mxu0 %v3913
        %v4086 = vpop.f32.mrf.mxu0
        %v4087 = vadd.f32 0.0, %v4086
        %v4088 = vpop.f32.mrf.mxu0
        %4089 = vmatprep.mubr.f32.mxu0 0.0
        %4090 = vmatmul.mubr.f32.gmra.mxu0 %v3916
        %v4091 = vpop.f32.mrf.mxu0
        %v4092 = vadd.f32 0.0, %v4091
        %v4093 = vpop.f32.mrf.mxu0
        %4094 = vmatprep.mubr.f32.mxu0 0.0
        %4095 = vmatmul.mubr.f32.gmra.mxu0 %v3919
        %v4096 = vpop.f32.mrf.mxu0
        %v4097 = vadd.f32 0.0, %v4096
        %v4098 = vpop.f32.mrf.mxu0
        %4099 = vmatprep.mubr.f32.mxu0 0.0
        %4100 = vmatmul.mubr.f32.gmra.mxu0 %v3922
        %v4101 = vpop.f32.mrf.mxu0
        %v4102 = vadd.f32 0.0, %v4101
        %v4103 = vpop.f32.mrf.mxu0
        %4104 = vmatprep.mubr.f32.mxu0 0.0
        %4105 = vmatmul.mubr.f32.gmra.mxu0 %v3925
        %v4106 = vpop.f32.mrf.mxu0
        %v4107 = vadd.f32 0.0, %v4106
        %v4108 = vpop.f32.mrf.mxu0
        %4109 = vmatprep.mubr.f32.mxu0 0.0
        %4110 = vmatmul.mubr.f32.gmra.mxu0 %v3928
        %v4111 = vpop.f32.mrf.mxu0
        %v4112 = vadd.f32 0.0, %v4111
        %v4113 = vpop.f32.mrf.mxu0
        %4114 = vmatprep.mubr.f32.mxu0 0.0
        %4115 = vmatmul.mubr.f32.gmra.mxu0 %v3931
        %v4116 = vpop.f32.mrf.mxu0
        %v4117 = vadd.f32 0.0, %v4116
        %v4118 = vpop.f32.mrf.mxu0
        %4119 = vmatprep.mubr.f32.mxu0 0.0
        %4120 = vmatmul.mubr.f32.gmra.mxu0 %v3934
        %v4121 = vpop.f32.mrf.mxu0
        %v4122 = vadd.f32 0.0, %v4121
        %v4123 = vpop.f32.mrf.mxu0
        %4124 = vmatprep.mubr.f32.mxu0 0.0
        %4125 = vmatmul.mubr.f32.gmra.mxu0 %v3937
        %v4126 = vpop.f32.mrf.mxu0
        %v4127 = vadd.f32 0.0, %v4126
        %v4128 = vpop.f32.mrf.mxu0
        %4129 = vmatprep.mubr.f32.mxu0 0.0
        %4130 = vmatmul.mubr.f32.gmra.mxu0 %v3940
        %v4131 = vpop.f32.mrf.mxu0
        %v4132 = vadd.f32 0.0, %v4131
        %v4133 = vpop.f32.mrf.mxu0
        %4134 = vmatprep.mubr.f32.mxu0 0.0
        %4135 = vmatmul.mubr.f32.gmra.mxu0 %v3943
        %v4136 = vpop.f32.mrf.mxu0
        %v4137 = vadd.f32 0.0, %v4136
        %v4138 = vpop.f32.mrf.mxu0
        %4139 = vmatprep.mubr.f32.mxu0 0.0
        %4140 = vmatmul.mubr.f32.gmra.mxu0 %v3946
        %v4141 = vpop.f32.mrf.mxu0
        %v4142 = vadd.f32 0.0, %v4141
        %v4143 = vpop.f32.mrf.mxu0
        %4144 = vmatprep.mubr.f32.mxu0 0.0
        %4145 = vmatmul.mubr.f32.gmra.mxu0 %v3949
        %v4146 = vpop.f32.mrf.mxu0
        %v4147 = vadd.f32 0.0, %v4146
        %v4148 = vpop.f32.mrf.mxu0
        %4149 = vmatprep.mubr.f32.mxu0 0.0
        %4150 = vmatmul.mubr.f32.gmra.mxu0 %v3952
        %v4151 = vpop.f32.mrf.mxu0
        %v4152 = vadd.f32 0.0, %v4151
        %v4153 = vpop.f32.mrf.mxu0
        %4154 = vmatprep.mubr.f32.mxu0 0.0
        %4155 = vmatmul.mubr.f32.gmra.mxu0 %v3955
        %v4156 = vpop.f32.mrf.mxu0
        %v4157 = vadd.f32 0.0, %v4156
        %v4158 = vpop.f32.mrf.mxu0
        %4159 = vmatprep.mubr.f32.mxu0 0.0
        %4160 = vmatmul.mubr.f32.gmra.mxu0 %v3958
        %v4161 = vpop.f32.mrf.mxu0
        %v4162 = vadd.f32 0.0, %v4161
        %v4163 = vpop.f32.mrf.mxu0
        %4164 = vmatprep.mubr.f32.mxu0 0.0
        %4165 = vmatmul.mubr.f32.gmra.mxu0 %v3961
        %v4166 = vpop.f32.mrf.mxu0
        %v4167 = vadd.f32 0.0, %v4166
        %v4168 = vpop.f32.mrf.mxu0
        %4169 = vmatprep.mubr.f32.mxu0 0.0
        %4170 = vmatmul.mubr.f32.gmra.mxu0 %v3964
        %v4171 = vpop.f32.mrf.mxu0
        %v4172 = vadd.f32 0.0, %v4171
        %v4173 = vpop.f32.mrf.mxu0
        %4174 = vmatprep.mubr.f32.mxu0 0.0
        %4175 = vmatmul.mubr.f32.gmra.mxu0 %v3967
        %v4176 = vpop.f32.mrf.mxu0
        %v4177 = vadd.f32 0.0, %v4176
        %v4178 = vpop.f32.mrf.mxu0
        %4179 = vmatprep.mubr.f32.mxu0 0.0
        %4180 = vmatmul.mubr.f32.gmra.mxu0 %v3970
        %v4181 = vpop.f32.mrf.mxu0
        %v4182 = vadd.f32 0.0, %v4181
        %v4183 = vpop.f32.mrf.mxu0
        %4184 = vmatprep.mubr.f32.mxu0 0.0
        %4185 = vmatmul.mubr.f32.gmra.mxu0 %v3973
        %v4186 = vpop.f32.mrf.mxu0
        %v4187 = vadd.f32 0.0, %v4186
        %v4188 = vpop.f32.mrf.mxu0
        %4189 = vmatprep.mubr.f32.mxu0 0.0
        %4190 = vmatmul.mubr.f32.gmra.mxu0 %v3976
        %v4191 = vpop.f32.mrf.mxu0
        %v4192 = vadd.f32 0.0, %v4191
        %v4193 = vpop.f32.mrf.mxu0
        %4194 = vmatprep.mubr.f32.mxu0 0.0
        %4195 = vmatmul.mubr.f32.gmra.mxu0 %v3979
        %v4196 = vpop.f32.mrf.mxu0
        %v4197 = vadd.f32 0.0, %v4196
        %v4198 = vpop.f32.mrf.mxu0
        %4199 = vmatprep.mubr.f32.mxu0 0.0
        %4200 = vmatmul.mubr.f32.gmra.mxu0 %v3982
        %v4201 = vpop.f32.mrf.mxu0
        %v4202 = vadd.f32 0.0, %v4201
        %v4203 = vpop.f32.mrf.mxu0
        %4204 = vmatprep.mubr.f32.mxu0 0.0
        %4205 = vmatmul.mubr.f32.gmra.mxu0 %v3985
        %v4206 = vpop.f32.mrf.mxu0
        %v4207 = vadd.f32 0.0, %v4206
        %v4208 = vpop.f32.mrf.mxu0
        %4209 = vmatprep.mubr.f32.mxu0 0.0
        %4210 = vmatmul.mubr.f32.gmra.mxu0 %v3988
        %v4211 = vpop.f32.mrf.mxu0
        %v4212 = vadd.f32 0.0, %v4211
        %v4213 = vpop.f32.mrf.mxu0
        %4214 = vdwg.mxu0
        %v4215 = vld [vmem:[%s7] sm:$0xff]
        %v4216 = vld [vmem:[%s7 + $0x8] sm:$0x1]
        %v4247 = vrot.slane %v4057, 7
        %v4248 = vrot.slane %v4062, 7
        %v4249 = vsel %vm1608, %v4247, %v4248
        %v4250 = vrot.slane %v4067, 7
        %v4251 = vsel %vm1608, %v4248, %v4250
        %v4252 = vrot.slane %v4072, 7
        %v4253 = vsel %vm1608, %v4250, %v4252
        %v4254 = vrot.slane %v4077, 7
        %v4255 = vsel %vm1608, %v4252, %v4254
        %v4256 = vrot.slane %v4082, 7
        %v4257 = vsel %vm1608, %v4254, %v4256
        %v4258 = vrot.slane %v4087, 7
        %v4259 = vsel %vm1608, %v4256, %v4258
        %v4260 = vrot.slane %v4092, 7
        %v4261 = vsel %vm1608, %v4258, %v4260
        %v4262 = vrot.slane %v4097, 7
        %v4263 = vsel %vm1608, %v4260, %v4262
        %v4264 = vrot.slane %v4102, 7
        %v4265 = vsel %vm1608, %v4262, %v4264
        %v4266 = vrot.slane %v4107, 7
        %v4267 = vsel %vm1608, %v4264, %v4266
        %v4268 = vrot.slane %v4112, 7
        %v4269 = vsel %vm1608, %v4266, %v4268
        %v4270 = vrot.slane %v4117, 7
        %v4271 = vsel %vm1608, %v4268, %v4270
        %v4272 = vrot.slane %v4122, 7
        %v4273 = vsel %vm1608, %v4270, %v4272
        %v4274 = vrot.slane %v4127, 7
        %v4275 = vsel %vm1608, %v4272, %v4274
        %v4276 = vrot.slane %v4132, 7
        %v4277 = vsel %vm1608, %v4274, %v4276
        %v4278 = vrot.slane %v4137, 7
        %v4279 = vsel %vm1608, %v4276, %v4278
        %v4280 = vrot.slane %v4142, 7
        %v4281 = vsel %vm1608, %v4278, %v4280
        %v4282 = vrot.slane %v4147, 7
        %v4283 = vsel %vm1608, %v4280, %v4282
        %v4284 = vrot.slane %v4152, 7
        %v4285 = vsel %vm1608, %v4282, %v4284
        %v4286 = vrot.slane %v4157, 7
        %v4287 = vsel %vm1608, %v4284, %v4286
        %v4288 = vrot.slane %v4162, 7
        %v4289 = vsel %vm1608, %v4286, %v4288
        %v4290 = vrot.slane %v4167, 7
        %v4291 = vsel %vm1608, %v4288, %v4290
        %v4292 = vrot.slane %v4172, 7
        %v4293 = vsel %vm1608, %v4290, %v4292
        %v4294 = vrot.slane %v4177, 7
        %v4295 = vsel %vm1608, %v4292, %v4294
        %v4296 = vrot.slane %v4182, 7
        %v4297 = vsel %vm1608, %v4294, %v4296
        %v4298 = vrot.slane %v4187, 7
        %v4299 = vsel %vm1608, %v4296, %v4298
        %v4300 = vrot.slane %v4192, 7
        %v4301 = vsel %vm1608, %v4298, %v4300
        %v4302 = vrot.slane %v4197, 7
        %v4303 = vsel %vm1608, %v4300, %v4302
        %v4304 = vrot.slane %v4202, 7
        %v4305 = vsel %vm1608, %v4302, %v4304
        %v4336 = vsel %vm1608, 0.0, %v4247
        %v4337 = vmul.f32 %v4336, %v1712
        %v4338 = vmul.f32 %v4249, %v1717
        %v4339 = vmul.f32 %v4251, %v1722
        %v4340 = vmul.f32 %v4253, %v1727
        %v4341 = vmul.f32 %v4255, %v1732
        %v4342 = vmul.f32 %v4257, %v1737
        %v4343 = vmul.f32 %v4259, %v1742
        %v4344 = vmul.f32 %v4261, %v1747
        %v4345 = vmul.f32 %v4263, %v1752
        %v4346 = vmul.f32 %v4265, %v1757
        %v4347 = vmul.f32 %v4267, %v1762
        %v4348 = vmul.f32 %v4269, %v1767
        %v4349 = vmul.f32 %v4271, %v1772
        %v4350 = vmul.f32 %v4273, %v1777
        %v4351 = vmul.f32 %v4275, %v1782
        %v4352 = vmul.f32 %v4277, %v1787
        %v4353 = vmul.f32 %v4279, %v1792
        %v4354 = vmul.f32 %v4281, %v1797
        %v4355 = vmul.f32 %v4283, %v1802
        %v4356 = vmul.f32 %v4285, %v1807
        %v4357 = vmul.f32 %v4287, %v1812
        %v4358 = vmul.f32 %v4289, %v1817
        %v4359 = vmul.f32 %v4291, %v1822
        %v4360 = vmul.f32 %v4293, %v1827
        %v4361 = vmul.f32 %v4295, %v1832
        %v4362 = vmul.f32 %v4297, %v1837
        %v4363 = vmul.f32 %v4299, %v1842
        %v4364 = vmul.f32 %v4301, %v1847
        %v4365 = vmul.f32 %v4303, %v1852
        %v4366 = vmul.f32 %v4305, %v1857
        %v4367 = vlaneseq
        %v4368 = vshrl.u32 %v4367, 7
        %v4369 = vsub.s32 0, %v4368
        %v4370 = vrot.slane %v4215, %v4369
        %v4371 = vmul.f32 %v1859, %v4370
        %v4372 = vmul.f32 %v1860, %v4370
        %v4373 = vmul.f32 %v4337, %v4370
        %v4374 = vmul.f32 %v4338, %v4370
        %v4375 = vmul.f32 %v4339, %v4370
        %v4376 = vmul.f32 %v4340, %v4370
        %v4377 = vmul.f32 %v4341, %v4370
        %v4378 = vmul.f32 %v4342, %v4370
        %v4379 = vmul.f32 %v4343, %v4370
        %v4380 = vmul.f32 %v4344, %v4370
        %v4381 = vmul.f32 %v4345, %v4370
        %v4382 = vmul.f32 %v4346, %v4370
        %v4383 = vmul.f32 %v4347, %v4370
        %v4384 = vmul.f32 %v4348, %v4370
        %v4385 = vmul.f32 %v4349, %v4370
        %v4386 = vmul.f32 %v4350, %v4370
        %v4387 = vmul.f32 %v4351, %v4370
        %v4388 = vmul.f32 %v4352, %v4370
        %v4389 = vmul.f32 %v4353, %v4370
        %v4390 = vmul.f32 %v4354, %v4370
        %v4391 = vmul.f32 %v4355, %v4370
        %v4392 = vmul.f32 %v4356, %v4370
        %v4393 = vmul.f32 %v4357, %v4370
        %v4394 = vmul.f32 %v4358, %v4370
        %v4395 = vmul.f32 %v4359, %v4370
        %v4396 = vmul.f32 %v4360, %v4370
        %v4397 = vmul.f32 %v4361, %v4370
        %v4398 = vmul.f32 %v4362, %v4370
        %v4399 = vmul.f32 %v4363, %v4370
        %v4400 = vmul.f32 %v4364, %v4370
        %v4401 = vmul.f32 %v4365, %v4370
        %v4402 = vmul.f32 %v4366, %v4370
        %v4403 = vadd.f32 %v4371, 0.0
        %v4404 = vadd.f32 %v4372, 0.0
        %v4405 = vadd.f32 %v4373, 0.0
        %v4406 = vadd.f32 %v4374, 0.0
        %v4407 = vadd.f32 %v4375, 0.0
        %v4408 = vadd.f32 %v4376, 0.0
        %v4409 = vadd.f32 %v4377, 0.0
        %v4410 = vadd.f32 %v4378, 0.0
        %v4411 = vadd.f32 %v4379, 0.0
        %v4412 = vadd.f32 %v4380, 0.0
        %v4413 = vadd.f32 %v4381, 0.0
        %v4414 = vadd.f32 %v4382, 0.0
        %v4415 = vadd.f32 %v4383, 0.0
        %v4416 = vadd.f32 %v4384, 0.0
        %v4417 = vadd.f32 %v4385, 0.0
        %v4418 = vadd.f32 %v4386, 0.0
        %v4419 = vadd.f32 %v4387, 0.0
        %v4420 = vadd.f32 %v4388, 0.0
        %v4421 = vadd.f32 %v4389, 0.0
        %v4422 = vadd.f32 %v4390, 0.0
        %v4423 = vadd.f32 %v4391, 0.0
        %v4424 = vadd.f32 %v4392, 0.0
        %v4425 = vadd.f32 %v4393, 0.0
        %v4426 = vadd.f32 %v4394, 0.0
        %v4427 = vadd.f32 %v4395, 0.0
        %v4428 = vadd.f32 %v4396, 0.0
        %v4429 = vadd.f32 %v4397, 0.0
        %v4430 = vadd.f32 %v4398, 0.0
        %v4431 = vadd.f32 %v4399, 0.0
        %v4432 = vadd.f32 %v4400, 0.0
        %v4433 = vadd.f32 %v4401, 0.0
        %v4434 = vadd.f32 %v4402, 0.0
        %v4435 = vmul.f32 %v4057, %v1969
        %v4436 = vmul.f32 %v4062, %v1973
        %v4437 = vmul.f32 %v4067, %v1977
        %v4438 = vmul.f32 %v4072, %v1981
        %v4439 = vmul.f32 %v4077, %v1985
        %v4440 = vmul.f32 %v4082, %v1989
        %v4441 = vmul.f32 %v4087, %v1993
        %v4442 = vmul.f32 %v4092, %v1997
        %v4443 = vmul.f32 %v4097, %v2001
        %v4444 = vmul.f32 %v4102, %v2005
        %v4445 = vmul.f32 %v4107, %v2009
        %v4446 = vmul.f32 %v4112, %v2013
        %v4447 = vmul.f32 %v4117, %v2017
        %v4448 = vmul.f32 %v4122, %v2021
        %v4449 = vmul.f32 %v4127, %v2025
        %v4450 = vmul.f32 %v4132, %v2029
        %v4451 = vmul.f32 %v4137, %v2033
        %v4452 = vmul.f32 %v4142, %v2037
        %v4453 = vmul.f32 %v4147, %v2041
        %v4454 = vmul.f32 %v4152, %v2045
        %v4455 = vmul.f32 %v4157, %v2049
        %v4456 = vmul.f32 %v4162, %v2053
        %v4457 = vmul.f32 %v4167, %v2057
        %v4458 = vmul.f32 %v4172, %v2061
        %v4459 = vmul.f32 %v4177, %v2065
        %v4460 = vmul.f32 %v4182, %v2069
        %v4461 = vmul.f32 %v4187, %v2073
        %v4462 = vmul.f32 %v4192, %v2077
        %v4463 = vmul.f32 %v4197, %v2081
        %v4464 = vmul.f32 %v4202, %v2085
        %v4465 = vlaneseq
        %v4466 = vshrl.u32 %v4465, 7
        %v4467 = vsub.s32 1, %v4466
        %v4468 = vrot.slane %v4215, %v4467
        %v4469 = vmul.f32 %v2087, %v4468
        %v4470 = vmul.f32 %v2088, %v4468
        %v4471 = vmul.f32 %v4435, %v4468
        %v4472 = vmul.f32 %v4436, %v4468
        %v4473 = vmul.f32 %v4437, %v4468
        %v4474 = vmul.f32 %v4438, %v4468
        %v4475 = vmul.f32 %v4439, %v4468
        %v4476 = vmul.f32 %v4440, %v4468
        %v4477 = vmul.f32 %v4441, %v4468
        %v4478 = vmul.f32 %v4442, %v4468
        %v4479 = vmul.f32 %v4443, %v4468
        %v4480 = vmul.f32 %v4444, %v4468
        %v4481 = vmul.f32 %v4445, %v4468
        %v4482 = vmul.f32 %v4446, %v4468
        %v4483 = vmul.f32 %v4447, %v4468
        %v4484 = vmul.f32 %v4448, %v4468
        %v4485 = vmul.f32 %v4449, %v4468
        %v4486 = vmul.f32 %v4450, %v4468
        %v4487 = vmul.f32 %v4451, %v4468
        %v4488 = vmul.f32 %v4452, %v4468
        %v4489 = vmul.f32 %v4453, %v4468
        %v4490 = vmul.f32 %v4454, %v4468
        %v4491 = vmul.f32 %v4455, %v4468
        %v4492 = vmul.f32 %v4456, %v4468
        %v4493 = vmul.f32 %v4457, %v4468
        %v4494 = vmul.f32 %v4458, %v4468
        %v4495 = vmul.f32 %v4459, %v4468
        %v4496 = vmul.f32 %v4460, %v4468
        %v4497 = vmul.f32 %v4461, %v4468
        %v4498 = vmul.f32 %v4462, %v4468
        %v4499 = vmul.f32 %v4463, %v4468
        %v4500 = vmul.f32 %v4464, %v4468
        %v4501 = vadd.f32 %v4403, %v4469
        %v4502 = vadd.f32 %v4404, %v4470
        %v4503 = vadd.f32 %v4405, %v4471
        %v4504 = vadd.f32 %v4406, %v4472
        %v4505 = vadd.f32 %v4407, %v4473
        %v4506 = vadd.f32 %v4408, %v4474
        %v4507 = vadd.f32 %v4409, %v4475
        %v4508 = vadd.f32 %v4410, %v4476
        %v4509 = vadd.f32 %v4411, %v4477
        %v4510 = vadd.f32 %v4412, %v4478
        %v4511 = vadd.f32 %v4413, %v4479
        %v4512 = vadd.f32 %v4414, %v4480
        %v4513 = vadd.f32 %v4415, %v4481
        %v4514 = vadd.f32 %v4416, %v4482
        %v4515 = vadd.f32 %v4417, %v4483
        %v4516 = vadd.f32 %v4418, %v4484
        %v4517 = vadd.f32 %v4419, %v4485
        %v4518 = vadd.f32 %v4420, %v4486
        %v4519 = vadd.f32 %v4421, %v4487
        %v4520 = vadd.f32 %v4422, %v4488
        %v4521 = vadd.f32 %v4423, %v4489
        %v4522 = vadd.f32 %v4424, %v4490
        %v4523 = vadd.f32 %v4425, %v4491
        %v4524 = vadd.f32 %v4426, %v4492
        %v4525 = vadd.f32 %v4427, %v4493
        %v4526 = vadd.f32 %v4428, %v4494
        %v4527 = vadd.f32 %v4429, %v4495
        %v4528 = vadd.f32 %v4430, %v4496
        %v4529 = vadd.f32 %v4431, %v4497
        %v4530 = vadd.f32 %v4432, %v4498
        %v4531 = vadd.f32 %v4433, %v4499
        %v4532 = vadd.f32 %v4434, %v4500
        %v4534 = vrot.slane %v4057, 1
        %v4535 = vrot.slane %v4062, 1
        %v4536 = vsel %vm2188, %v4534, %v4535
        %v4537 = vrot.slane %v4067, 1
        %v4538 = vsel %vm2188, %v4535, %v4537
        %v4539 = vrot.slane %v4072, 1
        %v4540 = vsel %vm2188, %v4537, %v4539
        %v4541 = vrot.slane %v4077, 1
        %v4542 = vsel %vm2188, %v4539, %v4541
        %v4543 = vrot.slane %v4082, 1
        %v4544 = vsel %vm2188, %v4541, %v4543
        %v4545 = vrot.slane %v4087, 1
        %v4546 = vsel %vm2188, %v4543, %v4545
        %v4547 = vrot.slane %v4092, 1
        %v4548 = vsel %vm2188, %v4545, %v4547
        %v4549 = vrot.slane %v4097, 1
        %v4550 = vsel %vm2188, %v4547, %v4549
        %v4551 = vrot.slane %v4102, 1
        %v4552 = vsel %vm2188, %v4549, %v4551
        %v4553 = vrot.slane %v4107, 1
        %v4554 = vsel %vm2188, %v4551, %v4553
        %v4555 = vrot.slane %v4112, 1
        %v4556 = vsel %vm2188, %v4553, %v4555
        %v4557 = vrot.slane %v4117, 1
        %v4558 = vsel %vm2188, %v4555, %v4557
        %v4559 = vrot.slane %v4122, 1
        %v4560 = vsel %vm2188, %v4557, %v4559
        %v4561 = vrot.slane %v4127, 1
        %v4562 = vsel %vm2188, %v4559, %v4561
        %v4563 = vrot.slane %v4132, 1
        %v4564 = vsel %vm2188, %v4561, %v4563
        %v4565 = vrot.slane %v4137, 1
        %v4566 = vsel %vm2188, %v4563, %v4565
        %v4567 = vrot.slane %v4142, 1
        %v4568 = vsel %vm2188, %v4565, %v4567
        %v4569 = vrot.slane %v4147, 1
        %v4570 = vsel %vm2188, %v4567, %v4569
        %v4571 = vrot.slane %v4152, 1
        %v4572 = vsel %vm2188, %v4569, %v4571
        %v4573 = vrot.slane %v4157, 1
        %v4574 = vsel %vm2188, %v4571, %v4573
        %v4575 = vrot.slane %v4162, 1
        %v4576 = vsel %vm2188, %v4573, %v4575
        %v4577 = vrot.slane %v4167, 1
        %v4578 = vsel %vm2188, %v4575, %v4577
        %v4579 = vrot.slane %v4172, 1
        %v4580 = vsel %vm2188, %v4577, %v4579
        %v4581 = vrot.slane %v4177, 1
        %v4582 = vsel %vm2188, %v4579, %v4581
        %v4583 = vrot.slane %v4182, 1
        %v4584 = vsel %vm2188, %v4581, %v4583
        %v4585 = vrot.slane %v4187, 1
        %v4586 = vsel %vm2188, %v4583, %v4585
        %v4587 = vrot.slane %v4192, 1
        %v4588 = vsel %vm2188, %v4585, %v4587
        %v4589 = vrot.slane %v4197, 1
        %v4590 = vsel %vm2188, %v4587, %v4589
        %v4591 = vrot.slane %v4202, 1
        %v4592 = vsel %vm2188, %v4589, %v4591
        %v4593 = vrot.slane %v4207, 1
        %v4594 = vsel %vm2188, %v4591, %v4593
        %v4626 = vsel %vm2188, 0.0, %v4534
        %v4627 = vmul.f32 %v4626, %v2288
        %v4628 = vmul.f32 %v4536, %v2292
        %v4629 = vmul.f32 %v4538, %v2296
        %v4630 = vmul.f32 %v4540, %v2300
        %v4631 = vmul.f32 %v4542, %v2304
        %v4632 = vmul.f32 %v4544, %v2308
        %v4633 = vmul.f32 %v4546, %v2312
        %v4634 = vmul.f32 %v4548, %v2316
        %v4635 = vmul.f32 %v4550, %v2320
        %v4636 = vmul.f32 %v4552, %v2324
        %v4637 = vmul.f32 %v4554, %v2328
        %v4638 = vmul.f32 %v4556, %v2332
        %v4639 = vmul.f32 %v4558, %v2336
        %v4640 = vmul.f32 %v4560, %v2340
        %v4641 = vmul.f32 %v4562, %v2344
        %v4642 = vmul.f32 %v4564, %v2348
        %v4643 = vmul.f32 %v4566, %v2352
        %v4644 = vmul.f32 %v4568, %v2356
        %v4645 = vmul.f32 %v4570, %v2360
        %v4646 = vmul.f32 %v4572, %v2364
        %v4647 = vmul.f32 %v4574, %v2368
        %v4648 = vmul.f32 %v4576, %v2372
        %v4649 = vmul.f32 %v4578, %v2376
        %v4650 = vmul.f32 %v4580, %v2380
        %v4651 = vmul.f32 %v4582, %v2384
        %v4652 = vmul.f32 %v4584, %v2388
        %v4653 = vmul.f32 %v4586, %v2392
        %v4654 = vmul.f32 %v4588, %v2396
        %v4655 = vmul.f32 %v4590, %v2400
        %v4656 = vmul.f32 %v4592, %v2404
        %v4657 = vmul.f32 %v4594, %v2408
        %v4658 = vlaneseq
        %v4659 = vshrl.u32 %v4658, 7
        %v4660 = vsub.s32 2, %v4659
        %v4661 = vrot.slane %v4215, %v4660
        %v4662 = vmul.f32 %v2410, %v4661
        %v4663 = vmul.f32 %v4627, %v4661
        %v4664 = vmul.f32 %v4628, %v4661
        %v4665 = vmul.f32 %v4629, %v4661
        %v4666 = vmul.f32 %v4630, %v4661
        %v4667 = vmul.f32 %v4631, %v4661
        %v4668 = vmul.f32 %v4632, %v4661
        %v4669 = vmul.f32 %v4633, %v4661
        %v4670 = vmul.f32 %v4634, %v4661
        %v4671 = vmul.f32 %v4635, %v4661
        %v4672 = vmul.f32 %v4636, %v4661
        %v4673 = vmul.f32 %v4637, %v4661
        %v4674 = vmul.f32 %v4638, %v4661
        %v4675 = vmul.f32 %v4639, %v4661
        %v4676 = vmul.f32 %v4640, %v4661
        %v4677 = vmul.f32 %v4641, %v4661
        %v4678 = vmul.f32 %v4642, %v4661
        %v4679 = vmul.f32 %v4643, %v4661
        %v4680 = vmul.f32 %v4644, %v4661
        %v4681 = vmul.f32 %v4645, %v4661
        %v4682 = vmul.f32 %v4646, %v4661
        %v4683 = vmul.f32 %v4647, %v4661
        %v4684 = vmul.f32 %v4648, %v4661
        %v4685 = vmul.f32 %v4649, %v4661
        %v4686 = vmul.f32 %v4650, %v4661
        %v4687 = vmul.f32 %v4651, %v4661
        %v4688 = vmul.f32 %v4652, %v4661
        %v4689 = vmul.f32 %v4653, %v4661
        %v4690 = vmul.f32 %v4654, %v4661
        %v4691 = vmul.f32 %v4655, %v4661
        %v4692 = vmul.f32 %v4656, %v4661
        %v4693 = vmul.f32 %v4657, %v4661
        %v4694 = vadd.f32 %v4501, %v4662
        %v4695 = vadd.f32 %v4502, %v4663
        %v4696 = vadd.f32 %v4503, %v4664
        %v4697 = vadd.f32 %v4504, %v4665
        %v4698 = vadd.f32 %v4505, %v4666
        %v4699 = vadd.f32 %v4506, %v4667
        %v4700 = vadd.f32 %v4507, %v4668
        %v4701 = vadd.f32 %v4508, %v4669
        %v4702 = vadd.f32 %v4509, %v4670
        %v4703 = vadd.f32 %v4510, %v4671
        %v4704 = vadd.f32 %v4511, %v4672
        %v4705 = vadd.f32 %v4512, %v4673
        %v4706 = vadd.f32 %v4513, %v4674
        %v4707 = vadd.f32 %v4514, %v4675
        %v4708 = vadd.f32 %v4515, %v4676
        %v4709 = vadd.f32 %v4516, %v4677
        %v4710 = vadd.f32 %v4517, %v4678
        %v4711 = vadd.f32 %v4518, %v4679
        %v4712 = vadd.f32 %v4519, %v4680
        %v4713 = vadd.f32 %v4520, %v4681
        %v4714 = vadd.f32 %v4521, %v4682
        %v4715 = vadd.f32 %v4522, %v4683
        %v4716 = vadd.f32 %v4523, %v4684
        %v4717 = vadd.f32 %v4524, %v4685
        %v4718 = vadd.f32 %v4525, %v4686
        %v4719 = vadd.f32 %v4526, %v4687
        %v4720 = vadd.f32 %v4527, %v4688
        %v4721 = vadd.f32 %v4528, %v4689
        %v4722 = vadd.f32 %v4529, %v4690
        %v4723 = vadd.f32 %v4530, %v4691
        %v4724 = vadd.f32 %v4531, %v4692
        %v4725 = vadd.f32 %v4532, %v4693
        %v4727 = vrot.slane %v4207, 7
        %v4728 = vsel %vm1608, %v4304, %v4727
        %v4729 = vrot.slane %v4212, 7
        %v4730 = vsel %vm1608, %v4727, %v4729
        %v4733 = vmul.f32 %v4336, %v2519
        %v4734 = vmul.f32 %v4249, %v2523
        %v4735 = vmul.f32 %v4251, %v2527
        %v4736 = vmul.f32 %v4253, %v2531
        %v4737 = vmul.f32 %v4255, %v2535
        %v4738 = vmul.f32 %v4257, %v2539
        %v4739 = vmul.f32 %v4259, %v2543
        %v4740 = vmul.f32 %v4261, %v2547
        %v4741 = vmul.f32 %v4263, %v2551
        %v4742 = vmul.f32 %v4265, %v2555
        %v4743 = vmul.f32 %v4267, %v2559
        %v4744 = vmul.f32 %v4269, %v2563
        %v4745 = vmul.f32 %v4271, %v2567
        %v4746 = vmul.f32 %v4273, %v2571
        %v4747 = vmul.f32 %v4275, %v2575
        %v4748 = vmul.f32 %v4277, %v2579
        %v4749 = vmul.f32 %v4279, %v2583
        %v4750 = vmul.f32 %v4281, %v2587
        %v4751 = vmul.f32 %v4283, %v2591
        %v4752 = vmul.f32 %v4285, %v2595
        %v4753 = vmul.f32 %v4287, %v2599
        %v4754 = vmul.f32 %v4289, %v2603
        %v4755 = vmul.f32 %v4291, %v2607
        %v4756 = vmul.f32 %v4293, %v2611
        %v4757 = vmul.f32 %v4295, %v2615
        %v4758 = vmul.f32 %v4297, %v2619
        %v4759 = vmul.f32 %v4299, %v2623
        %v4760 = vmul.f32 %v4301, %v2627
        %v4761 = vmul.f32 %v4303, %v2631
        %v4762 = vmul.f32 %v4305, %v2635
        %v4763 = vmul.f32 %v4728, %v2639
        %v4764 = vmul.f32 %v4730, %v2643
        %v4765 = vlaneseq
        %v4766 = vshrl.u32 %v4765, 7
        %v4767 = vsub.s32 3, %v4766
        %v4768 = vrot.slane %v4215, %v4767
        %v4769 = vmul.f32 %v4733, %v4768
        %v4770 = vmul.f32 %v4734, %v4768
        %v4771 = vmul.f32 %v4735, %v4768
        %v4772 = vmul.f32 %v4736, %v4768
        %v4773 = vmul.f32 %v4737, %v4768
        %v4774 = vmul.f32 %v4738, %v4768
        %v4775 = vmul.f32 %v4739, %v4768
        %v4776 = vmul.f32 %v4740, %v4768
        %v4777 = vmul.f32 %v4741, %v4768
        %v4778 = vmul.f32 %v4742, %v4768
        %v4779 = vmul.f32 %v4743, %v4768
        %v4780 = vmul.f32 %v4744, %v4768
        %v4781 = vmul.f32 %v4745, %v4768
        %v4782 = vmul.f32 %v4746, %v4768
        %v4783 = vmul.f32 %v4747, %v4768
        %v4784 = vmul.f32 %v4748, %v4768
        %v4785 = vmul.f32 %v4749, %v4768
        %v4786 = vmul.f32 %v4750, %v4768
        %v4787 = vmul.f32 %v4751, %v4768
        %v4788 = vmul.f32 %v4752, %v4768
        %v4789 = vmul.f32 %v4753, %v4768
        %v4790 = vmul.f32 %v4754, %v4768
        %v4791 = vmul.f32 %v4755, %v4768
        %v4792 = vmul.f32 %v4756, %v4768
        %v4793 = vmul.f32 %v4757, %v4768
        %v4794 = vmul.f32 %v4758, %v4768
        %v4795 = vmul.f32 %v4759, %v4768
        %v4796 = vmul.f32 %v4760, %v4768
        %v4797 = vmul.f32 %v4761, %v4768
        %v4798 = vmul.f32 %v4762, %v4768
        %v4799 = vmul.f32 %v4763, %v4768
        %v4800 = vmul.f32 %v4764, %v4768
        %v4801 = vadd.f32 %v4694, %v4769
        %v4802 = vadd.f32 %v4695, %v4770
        %v4803 = vadd.f32 %v4696, %v4771
        %v4804 = vadd.f32 %v4697, %v4772
        %v4805 = vadd.f32 %v4698, %v4773
        %v4806 = vadd.f32 %v4699, %v4774
        %v4807 = vadd.f32 %v4700, %v4775
        %v4808 = vadd.f32 %v4701, %v4776
        %v4809 = vadd.f32 %v4702, %v4777
        %v4810 = vadd.f32 %v4703, %v4778
        %v4811 = vadd.f32 %v4704, %v4779
        %v4812 = vadd.f32 %v4705, %v4780
        %v4813 = vadd.f32 %v4706, %v4781
        %v4814 = vadd.f32 %v4707, %v4782
        %v4815 = vadd.f32 %v4708, %v4783
        %v4816 = vadd.f32 %v4709, %v4784
        %v4817 = vadd.f32 %v4710, %v4785
        %v4818 = vadd.f32 %v4711, %v4786
        %v4819 = vadd.f32 %v4712, %v4787
        %v4820 = vadd.f32 %v4713, %v4788
        %v4821 = vadd.f32 %v4714, %v4789
        %v4822 = vadd.f32 %v4715, %v4790
        %v4823 = vadd.f32 %v4716, %v4791
        %v4824 = vadd.f32 %v4717, %v4792
        %v4825 = vadd.f32 %v4718, %v4793
        %v4826 = vadd.f32 %v4719, %v4794
        %v4827 = vadd.f32 %v4720, %v4795
        %v4828 = vadd.f32 %v4721, %v4796
        %v4829 = vadd.f32 %v4722, %v4797
        %v4830 = vadd.f32 %v4723, %v4798
        %v4831 = vadd.f32 %v4724, %v4799
        %v4832 = vadd.f32 %v4725, %v4800
        %v4833 = vmul.f32 %v4057, %v2747
        %v4834 = vmul.f32 %v4062, %v2751
        %v4835 = vmul.f32 %v4067, %v2755
        %v4836 = vmul.f32 %v4072, %v2759
        %v4837 = vmul.f32 %v4077, %v2763
        %v4838 = vmul.f32 %v4082, %v2767
        %v4839 = vmul.f32 %v4087, %v2771
        %v4840 = vmul.f32 %v4092, %v2775
        %v4841 = vmul.f32 %v4097, %v2779
        %v4842 = vmul.f32 %v4102, %v2783
        %v4843 = vmul.f32 %v4107, %v2787
        %v4844 = vmul.f32 %v4112, %v2791
        %v4845 = vmul.f32 %v4117, %v2795
        %v4846 = vmul.f32 %v4122, %v2799
        %v4847 = vmul.f32 %v4127, %v2803
        %v4848 = vmul.f32 %v4132, %v2807
        %v4849 = vmul.f32 %v4137, %v2811
        %v4850 = vmul.f32 %v4142, %v2815
        %v4851 = vmul.f32 %v4147, %v2819
        %v4852 = vmul.f32 %v4152, %v2823
        %v4853 = vmul.f32 %v4157, %v2827
        %v4854 = vmul.f32 %v4162, %v2831
        %v4855 = vmul.f32 %v4167, %v2835
        %v4856 = vmul.f32 %v4172, %v2839
        %v4857 = vmul.f32 %v4177, %v2843
        %v4858 = vmul.f32 %v4182, %v2847
        %v4859 = vmul.f32 %v4187, %v2851
        %v4860 = vmul.f32 %v4192, %v2855
        %v4861 = vmul.f32 %v4197, %v2859
        %v4862 = vmul.f32 %v4202, %v2863
        %v4863 = vmul.f32 %v4207, %v2867
        %v4864 = vmul.f32 %v4212, %v2871
        %v4865 = vlaneseq
        %v4866 = vshrl.u32 %v4865, 7
        %v4867 = vsub.s32 4, %v4866
        %v4868 = vrot.slane %v4215, %v4867
        %v4869 = vmul.f32 %v4833, %v4868
        %v4870 = vmul.f32 %v4834, %v4868
        %v4871 = vmul.f32 %v4835, %v4868
        %v4872 = vmul.f32 %v4836, %v4868
        %v4873 = vmul.f32 %v4837, %v4868
        %v4874 = vmul.f32 %v4838, %v4868
        %v4875 = vmul.f32 %v4839, %v4868
        %v4876 = vmul.f32 %v4840, %v4868
        %v4877 = vmul.f32 %v4841, %v4868
        %v4878 = vmul.f32 %v4842, %v4868
        %v4879 = vmul.f32 %v4843, %v4868
        %v4880 = vmul.f32 %v4844, %v4868
        %v4881 = vmul.f32 %v4845, %v4868
        %v4882 = vmul.f32 %v4846, %v4868
        %v4883 = vmul.f32 %v4847, %v4868
        %v4884 = vmul.f32 %v4848, %v4868
        %v4885 = vmul.f32 %v4849, %v4868
        %v4886 = vmul.f32 %v4850, %v4868
        %v4887 = vmul.f32 %v4851, %v4868
        %v4888 = vmul.f32 %v4852, %v4868
        %v4889 = vmul.f32 %v4853, %v4868
        %v4890 = vmul.f32 %v4854, %v4868
        %v4891 = vmul.f32 %v4855, %v4868
        %v4892 = vmul.f32 %v4856, %v4868
        %v4893 = vmul.f32 %v4857, %v4868
        %v4894 = vmul.f32 %v4858, %v4868
        %v4895 = vmul.f32 %v4859, %v4868
        %v4896 = vmul.f32 %v4860, %v4868
        %v4897 = vmul.f32 %v4861, %v4868
        %v4898 = vmul.f32 %v4862, %v4868
        %v4899 = vmul.f32 %v4863, %v4868
        %v4900 = vmul.f32 %v4864, %v4868
        %v4901 = vadd.f32 %v4801, %v4869
        %v4902 = vadd.f32 %v4802, %v4870
        %v4903 = vadd.f32 %v4803, %v4871
        %v4904 = vadd.f32 %v4804, %v4872
        %v4905 = vadd.f32 %v4805, %v4873
        %v4906 = vadd.f32 %v4806, %v4874
        %v4907 = vadd.f32 %v4807, %v4875
        %v4908 = vadd.f32 %v4808, %v4876
        %v4909 = vadd.f32 %v4809, %v4877
        %v4910 = vadd.f32 %v4810, %v4878
        %v4911 = vadd.f32 %v4811, %v4879
        %v4912 = vadd.f32 %v4812, %v4880
        %v4913 = vadd.f32 %v4813, %v4881
        %v4914 = vadd.f32 %v4814, %v4882
        %v4915 = vadd.f32 %v4815, %v4883
        %v4916 = vadd.f32 %v4816, %v4884
        %v4917 = vadd.f32 %v4817, %v4885
        %v4918 = vadd.f32 %v4818, %v4886
        %v4919 = vadd.f32 %v4819, %v4887
        %v4920 = vadd.f32 %v4820, %v4888
        %v4921 = vadd.f32 %v4821, %v4889
        %v4922 = vadd.f32 %v4822, %v4890
        %v4923 = vadd.f32 %v4823, %v4891
        %v4924 = vadd.f32 %v4824, %v4892
        %v4925 = vadd.f32 %v4825, %v4893
        %v4926 = vadd.f32 %v4826, %v4894
        %v4927 = vadd.f32 %v4827, %v4895
        %v4928 = vadd.f32 %v4828, %v4896
        %v4929 = vadd.f32 %v4829, %v4897
        %v4930 = vadd.f32 %v4830, %v4898
        %v4931 = vadd.f32 %v4831, %v4899
        %v4932 = vadd.f32 %v4832, %v4900
        %v4933 = vrot.slane %v4212, 1
        %v4934 = vsel %vm2188, %v4593, %v4933
        %v4937 = vsel %vm2188, %v4933, 0.0
        %v4938 = vmul.f32 %v4536, %v2980
        %v4939 = vmul.f32 %v4538, %v2984
        %v4940 = vmul.f32 %v4540, %v2988
        %v4941 = vmul.f32 %v4542, %v2992
        %v4942 = vmul.f32 %v4544, %v2996
        %v4943 = vmul.f32 %v4546, %v3000
        %v4944 = vmul.f32 %v4548, %v3004
        %v4945 = vmul.f32 %v4550, %v3008
        %v4946 = vmul.f32 %v4552, %v3012
        %v4947 = vmul.f32 %v4554, %v3016
        %v4948 = vmul.f32 %v4556, %v3020
        %v4949 = vmul.f32 %v4558, %v3024
        %v4950 = vmul.f32 %v4560, %v3028
        %v4951 = vmul.f32 %v4562, %v3032
        %v4952 = vmul.f32 %v4564, %v3036
        %v4953 = vmul.f32 %v4566, %v3040
        %v4954 = vmul.f32 %v4568, %v3044
        %v4955 = vmul.f32 %v4570, %v3048
        %v4956 = vmul.f32 %v4572, %v3052
        %v4957 = vmul.f32 %v4574, %v3056
        %v4958 = vmul.f32 %v4576, %v3060
        %v4959 = vmul.f32 %v4578, %v3064
        %v4960 = vmul.f32 %v4580, %v3068
        %v4961 = vmul.f32 %v4582, %v3072
        %v4962 = vmul.f32 %v4584, %v3076
        %v4963 = vmul.f32 %v4586, %v3080
        %v4964 = vmul.f32 %v4588, %v3084
        %v4965 = vmul.f32 %v4590, %v3088
        %v4966 = vmul.f32 %v4592, %v3092
        %v4967 = vmul.f32 %v4594, %v3096
        %v4968 = vmul.f32 %v4934, %v3100
        %v4969 = vmul.f32 %v4937, %v3104
        %v4970 = vlaneseq
        %v4971 = vshrl.u32 %v4970, 7
        %v4972 = vsub.s32 5, %v4971
        %v4973 = vrot.slane %v4215, %v4972
        %v4974 = vmul.f32 %v4938, %v4973
        %v4975 = vmul.f32 %v4939, %v4973
        %v4976 = vmul.f32 %v4940, %v4973
        %v4977 = vmul.f32 %v4941, %v4973
        %v4978 = vmul.f32 %v4942, %v4973
        %v4979 = vmul.f32 %v4943, %v4973
        %v4980 = vmul.f32 %v4944, %v4973
        %v4981 = vmul.f32 %v4945, %v4973
        %v4982 = vmul.f32 %v4946, %v4973
        %v4983 = vmul.f32 %v4947, %v4973
        %v4984 = vmul.f32 %v4948, %v4973
        %v4985 = vmul.f32 %v4949, %v4973
        %v4986 = vmul.f32 %v4950, %v4973
        %v4987 = vmul.f32 %v4951, %v4973
        %v4988 = vmul.f32 %v4952, %v4973
        %v4989 = vmul.f32 %v4953, %v4973
        %v4990 = vmul.f32 %v4954, %v4973
        %v4991 = vmul.f32 %v4955, %v4973
        %v4992 = vmul.f32 %v4956, %v4973
        %v4993 = vmul.f32 %v4957, %v4973
        %v4994 = vmul.f32 %v4958, %v4973
        %v4995 = vmul.f32 %v4959, %v4973
        %v4996 = vmul.f32 %v4960, %v4973
        %v4997 = vmul.f32 %v4961, %v4973
        %v4998 = vmul.f32 %v4962, %v4973
        %v4999 = vmul.f32 %v4963, %v4973
        %v5000 = vmul.f32 %v4964, %v4973
        %v5001 = vmul.f32 %v4965, %v4973
        %v5002 = vmul.f32 %v4966, %v4973
        %v5003 = vmul.f32 %v4967, %v4973
        %v5004 = vmul.f32 %v4968, %v4973
        %v5005 = vmul.f32 %v4969, %v4973
        %v5006 = vadd.f32 %v4901, %v4974
        %v5007 = vadd.f32 %v4902, %v4975
        %v5008 = vadd.f32 %v4903, %v4976
        %v5009 = vadd.f32 %v4904, %v4977
        %v5010 = vadd.f32 %v4905, %v4978
        %v5011 = vadd.f32 %v4906, %v4979
        %v5012 = vadd.f32 %v4907, %v4980
        %v5013 = vadd.f32 %v4908, %v4981
        %v5014 = vadd.f32 %v4909, %v4982
        %v5015 = vadd.f32 %v4910, %v4983
        %v5016 = vadd.f32 %v4911, %v4984
        %v5017 = vadd.f32 %v4912, %v4985
        %v5018 = vadd.f32 %v4913, %v4986
        %v5019 = vadd.f32 %v4914, %v4987
        %v5020 = vadd.f32 %v4915, %v4988
        %v5021 = vadd.f32 %v4916, %v4989
        %v5022 = vadd.f32 %v4917, %v4990
        %v5023 = vadd.f32 %v4918, %v4991
        %v5024 = vadd.f32 %v4919, %v4992
        %v5025 = vadd.f32 %v4920, %v4993
        %v5026 = vadd.f32 %v4921, %v4994
        %v5027 = vadd.f32 %v4922, %v4995
        %v5028 = vadd.f32 %v4923, %v4996
        %v5029 = vadd.f32 %v4924, %v4997
        %v5030 = vadd.f32 %v4925, %v4998
        %v5031 = vadd.f32 %v4926, %v4999
        %v5032 = vadd.f32 %v4927, %v5000
        %v5033 = vadd.f32 %v4928, %v5001
        %v5034 = vadd.f32 %v4929, %v5002
        %v5035 = vadd.f32 %v4930, %v5003
        %v5036 = vadd.f32 %v4931, %v5004
        %v5037 = vadd.f32 %v4932, %v5005
        %v5039 = vsel %vm1608, %v4729, 0.0
        %v5040 = vmul.f32 %v4251, %v3210
        %v5041 = vmul.f32 %v4253, %v3214
        %v5042 = vmul.f32 %v4255, %v3218
        %v5043 = vmul.f32 %v4257, %v3222
        %v5044 = vmul.f32 %v4259, %v3226
        %v5045 = vmul.f32 %v4261, %v3230
        %v5046 = vmul.f32 %v4263, %v3234
        %v5047 = vmul.f32 %v4265, %v3238
        %v5048 = vmul.f32 %v4267, %v3242
        %v5049 = vmul.f32 %v4269, %v3246
        %v5050 = vmul.f32 %v4271, %v3250
        %v5051 = vmul.f32 %v4273, %v3254
        %v5052 = vmul.f32 %v4275, %v3258
        %v5053 = vmul.f32 %v4277, %v3262
        %v5054 = vmul.f32 %v4279, %v3266
        %v5055 = vmul.f32 %v4281, %v3270
        %v5056 = vmul.f32 %v4283, %v3274
        %v5057 = vmul.f32 %v4285, %v3278
        %v5058 = vmul.f32 %v4287, %v3282
        %v5059 = vmul.f32 %v4289, %v3286
        %v5060 = vmul.f32 %v4291, %v3290
        %v5061 = vmul.f32 %v4293, %v3294
        %v5062 = vmul.f32 %v4295, %v3298
        %v5063 = vmul.f32 %v4297, %v3302
        %v5064 = vmul.f32 %v4299, %v3306
        %v5065 = vmul.f32 %v4301, %v3310
        %v5066 = vmul.f32 %v4303, %v3314
        %v5067 = vmul.f32 %v4305, %v3318
        %v5068 = vmul.f32 %v4728, %v3322
        %v5069 = vmul.f32 %v4730, %v3326
        %v5070 = vmul.f32 %v5039, %v3330
        %v5071 = vlaneseq
        %v5072 = vshrl.u32 %v5071, 7
        %v5073 = vsub.s32 6, %v5072
        %v5074 = vrot.slane %v4215, %v5073
        %v5075 = vmul.f32 %v5040, %v5074
        %v5076 = vmul.f32 %v5041, %v5074
        %v5077 = vmul.f32 %v5042, %v5074
        %v5078 = vmul.f32 %v5043, %v5074
        %v5079 = vmul.f32 %v5044, %v5074
        %v5080 = vmul.f32 %v5045, %v5074
        %v5081 = vmul.f32 %v5046, %v5074
        %v5082 = vmul.f32 %v5047, %v5074
        %v5083 = vmul.f32 %v5048, %v5074
        %v5084 = vmul.f32 %v5049, %v5074
        %v5085 = vmul.f32 %v5050, %v5074
        %v5086 = vmul.f32 %v5051, %v5074
        %v5087 = vmul.f32 %v5052, %v5074
        %v5088 = vmul.f32 %v5053, %v5074
        %v5089 = vmul.f32 %v5054, %v5074
        %v5090 = vmul.f32 %v5055, %v5074
        %v5091 = vmul.f32 %v5056, %v5074
        %v5092 = vmul.f32 %v5057, %v5074
        %v5093 = vmul.f32 %v5058, %v5074
        %v5094 = vmul.f32 %v5059, %v5074
        %v5095 = vmul.f32 %v5060, %v5074
        %v5096 = vmul.f32 %v5061, %v5074
        %v5097 = vmul.f32 %v5062, %v5074
        %v5098 = vmul.f32 %v5063, %v5074
        %v5099 = vmul.f32 %v5064, %v5074
        %v5100 = vmul.f32 %v5065, %v5074
        %v5101 = vmul.f32 %v5066, %v5074
        %v5102 = vmul.f32 %v5067, %v5074
        %v5103 = vmul.f32 %v5068, %v5074
        %v5104 = vmul.f32 %v5069, %v5074
        %v5105 = vmul.f32 %v5070, %v5074
        %v5106 = vmul.f32 %v3367, %v5074
        %v5107 = vadd.f32 %v5006, %v5075
        %v5108 = vadd.f32 %v5007, %v5076
        %v5109 = vadd.f32 %v5008, %v5077
        %v5110 = vadd.f32 %v5009, %v5078
        %v5111 = vadd.f32 %v5010, %v5079
        %v5112 = vadd.f32 %v5011, %v5080
        %v5113 = vadd.f32 %v5012, %v5081
        %v5114 = vadd.f32 %v5013, %v5082
        %v5115 = vadd.f32 %v5014, %v5083
        %v5116 = vadd.f32 %v5015, %v5084
        %v5117 = vadd.f32 %v5016, %v5085
        %v5118 = vadd.f32 %v5017, %v5086
        %v5119 = vadd.f32 %v5018, %v5087
        %v5120 = vadd.f32 %v5019, %v5088
        %v5121 = vadd.f32 %v5020, %v5089
        %v5122 = vadd.f32 %v5021, %v5090
        %v5123 = vadd.f32 %v5022, %v5091
        %v5124 = vadd.f32 %v5023, %v5092
        %v5125 = vadd.f32 %v5024, %v5093
        %v5126 = vadd.f32 %v5025, %v5094
        %v5127 = vadd.f32 %v5026, %v5095
        %v5128 = vadd.f32 %v5027, %v5096
        %v5129 = vadd.f32 %v5028, %v5097
        %v5130 = vadd.f32 %v5029, %v5098
        %v5131 = vadd.f32 %v5030, %v5099
        %v5132 = vadd.f32 %v5031, %v5100
        %v5133 = vadd.f32 %v5032, %v5101
        %v5134 = vadd.f32 %v5033, %v5102
        %v5135 = vadd.f32 %v5034, %v5103
        %v5136 = vadd.f32 %v5035, %v5104
        %v5137 = vadd.f32 %v5036, %v5105
        %v5138 = vadd.f32 %v5037, %v5106
        %v5139 = vmul.f32 %v4067, %v3438
        %v5140 = vmul.f32 %v4072, %v3442
        %v5141 = vmul.f32 %v4077, %v3446
        %v5142 = vmul.f32 %v4082, %v3450
        %v5143 = vmul.f32 %v4087, %v3454
        %v5144 = vmul.f32 %v4092, %v3458
        %v5145 = vmul.f32 %v4097, %v3462
        %v5146 = vmul.f32 %v4102, %v3466
        %v5147 = vmul.f32 %v4107, %v3470
        %v5148 = vmul.f32 %v4112, %v3474
        %v5149 = vmul.f32 %v4117, %v3478
        %v5150 = vmul.f32 %v4122, %v3482
        %v5151 = vmul.f32 %v4127, %v3486
        %v5152 = vmul.f32 %v4132, %v3490
        %v5153 = vmul.f32 %v4137, %v3494
        %v5154 = vmul.f32 %v4142, %v3498
        %v5155 = vmul.f32 %v4147, %v3502
        %v5156 = vmul.f32 %v4152, %v3506
        %v5157 = vmul.f32 %v4157, %v3510
        %v5158 = vmul.f32 %v4162, %v3514
        %v5159 = vmul.f32 %v4167, %v3518
        %v5160 = vmul.f32 %v4172, %v3522
        %v5161 = vmul.f32 %v4177, %v3526
        %v5162 = vmul.f32 %v4182, %v3530
        %v5163 = vmul.f32 %v4187, %v3534
        %v5164 = vmul.f32 %v4192, %v3538
        %v5165 = vmul.f32 %v4197, %v3542
        %v5166 = vmul.f32 %v4202, %v3546
        %v5167 = vmul.f32 %v4207, %v3550
        %v5168 = vmul.f32 %v4212, %v3554
        %v5169 = vlaneseq
        %v5170 = vshrl.u32 %v5169, 7
        %v5171 = vsub.s32 7, %v5170
        %v5172 = vrot.slane %v4215, %v5171
        %v5173 = vmul.f32 %v5139, %v5172
        %v5174 = vmul.f32 %v5140, %v5172
        %v5175 = vmul.f32 %v5141, %v5172
        %v5176 = vmul.f32 %v5142, %v5172
        %v5177 = vmul.f32 %v5143, %v5172
        %v5178 = vmul.f32 %v5144, %v5172
        %v5179 = vmul.f32 %v5145, %v5172
        %v5180 = vmul.f32 %v5146, %v5172
        %v5181 = vmul.f32 %v5147, %v5172
        %v5182 = vmul.f32 %v5148, %v5172
        %v5183 = vmul.f32 %v5149, %v5172
        %v5184 = vmul.f32 %v5150, %v5172
        %v5185 = vmul.f32 %v5151, %v5172
        %v5186 = vmul.f32 %v5152, %v5172
        %v5187 = vmul.f32 %v5153, %v5172
        %v5188 = vmul.f32 %v5154, %v5172
        %v5189 = vmul.f32 %v5155, %v5172
        %v5190 = vmul.f32 %v5156, %v5172
        %v5191 = vmul.f32 %v5157, %v5172
        %v5192 = vmul.f32 %v5158, %v5172
        %v5193 = vmul.f32 %v5159, %v5172
        %v5194 = vmul.f32 %v5160, %v5172
        %v5195 = vmul.f32 %v5161, %v5172
        %v5196 = vmul.f32 %v5162, %v5172
        %v5197 = vmul.f32 %v5163, %v5172
        %v5198 = vmul.f32 %v5164, %v5172
        %v5199 = vmul.f32 %v5165, %v5172
        %v5200 = vmul.f32 %v5166, %v5172
        %v5201 = vmul.f32 %v5167, %v5172
        %v5202 = vmul.f32 %v5168, %v5172
        %v5203 = vmul.f32 %v3594, %v5172
        %v5204 = vmul.f32 %v3595, %v5172
        %v5205 = vadd.f32 %v5107, %v5173
        %v5206 = vadd.f32 %v5108, %v5174
        %v5207 = vadd.f32 %v5109, %v5175
        %v5208 = vadd.f32 %v5110, %v5176
        %v5209 = vadd.f32 %v5111, %v5177
        %v5210 = vadd.f32 %v5112, %v5178
        %v5211 = vadd.f32 %v5113, %v5179
        %v5212 = vadd.f32 %v5114, %v5180
        %v5213 = vadd.f32 %v5115, %v5181
        %v5214 = vadd.f32 %v5116, %v5182
        %v5215 = vadd.f32 %v5117, %v5183
        %v5216 = vadd.f32 %v5118, %v5184
        %v5217 = vadd.f32 %v5119, %v5185
        %v5218 = vadd.f32 %v5120, %v5186
        %v5219 = vadd.f32 %v5121, %v5187
        %v5220 = vadd.f32 %v5122, %v5188
        %v5221 = vadd.f32 %v5123, %v5189
        %v5222 = vadd.f32 %v5124, %v5190
        %v5223 = vadd.f32 %v5125, %v5191
        %v5224 = vadd.f32 %v5126, %v5192
        %v5225 = vadd.f32 %v5127, %v5193
        %v5226 = vadd.f32 %v5128, %v5194
        %v5227 = vadd.f32 %v5129, %v5195
        %v5228 = vadd.f32 %v5130, %v5196
        %v5229 = vadd.f32 %v5131, %v5197
        %v5230 = vadd.f32 %v5132, %v5198
        %v5231 = vadd.f32 %v5133, %v5199
        %v5232 = vadd.f32 %v5134, %v5200
        %v5233 = vadd.f32 %v5135, %v5201
        %v5234 = vadd.f32 %v5136, %v5202
        %v5235 = vadd.f32 %v5137, %v5203
        %v5236 = vadd.f32 %v5138, %v5204
        %v5237 = vmul.f32 %v4540, %v3666
        %v5238 = vmul.f32 %v4542, %v3670
        %v5239 = vmul.f32 %v4544, %v3674
        %v5240 = vmul.f32 %v4546, %v3678
        %v5241 = vmul.f32 %v4548, %v3682
        %v5242 = vmul.f32 %v4550, %v3686
        %v5243 = vmul.f32 %v4552, %v3690
        %v5244 = vmul.f32 %v4554, %v3694
        %v5245 = vmul.f32 %v4556, %v3698
        %v5246 = vmul.f32 %v4558, %v3702
        %v5247 = vmul.f32 %v4560, %v3706
        %v5248 = vmul.f32 %v4562, %v3710
        %v5249 = vmul.f32 %v4564, %v3714
        %v5250 = vmul.f32 %v4566, %v3718
        %v5251 = vmul.f32 %v4568, %v3722
        %v5252 = vmul.f32 %v4570, %v3726
        %v5253 = vmul.f32 %v4572, %v3730
        %v5254 = vmul.f32 %v4574, %v3734
        %v5255 = vmul.f32 %v4576, %v3738
        %v5256 = vmul.f32 %v4578, %v3742
        %v5257 = vmul.f32 %v4580, %v3746
        %v5258 = vmul.f32 %v4582, %v3750
        %v5259 = vmul.f32 %v4584, %v3754
        %v5260 = vmul.f32 %v4586, %v3758
        %v5261 = vmul.f32 %v4588, %v3762
        %v5262 = vmul.f32 %v4590, %v3766
        %v5263 = vmul.f32 %v4592, %v3770
        %v5264 = vmul.f32 %v4594, %v3774
        %v5265 = vmul.f32 %v4934, %v3778
        %v5266 = vmul.f32 %v4937, %v3782
        %v5267 = vlaneseq
        %v5268 = vshrl.u32 %v5267, 7
        %v5269 = vsub.s32 0, %v5268
        %v5270 = vrot.slane %v4216, %v5269
        %v5271 = vmul.f32 %v5237, %v5270
        %v5272 = vmul.f32 %v5238, %v5270
        %v5273 = vmul.f32 %v5239, %v5270
        %v5274 = vmul.f32 %v5240, %v5270
        %v5275 = vmul.f32 %v5241, %v5270
        %v5276 = vmul.f32 %v5242, %v5270
        %v5277 = vmul.f32 %v5243, %v5270
        %v5278 = vmul.f32 %v5244, %v5270
        %v5279 = vmul.f32 %v5245, %v5270
        %v5280 = vmul.f32 %v5246, %v5270
        %v5281 = vmul.f32 %v5247, %v5270
        %v5282 = vmul.f32 %v5248, %v5270
        %v5283 = vmul.f32 %v5249, %v5270
        %v5284 = vmul.f32 %v5250, %v5270
        %v5285 = vmul.f32 %v5251, %v5270
        %v5286 = vmul.f32 %v5252, %v5270
        %v5287 = vmul.f32 %v5253, %v5270
        %v5288 = vmul.f32 %v5254, %v5270
        %v5289 = vmul.f32 %v5255, %v5270
        %v5290 = vmul.f32 %v5256, %v5270
        %v5291 = vmul.f32 %v5257, %v5270
        %v5292 = vmul.f32 %v5258, %v5270
        %v5293 = vmul.f32 %v5259, %v5270
        %v5294 = vmul.f32 %v5260, %v5270
        %v5295 = vmul.f32 %v5261, %v5270
        %v5296 = vmul.f32 %v5262, %v5270
        %v5297 = vmul.f32 %v5263, %v5270
        %v5298 = vmul.f32 %v5264, %v5270
        %v5299 = vmul.f32 %v5265, %v5270
        %v5300 = vmul.f32 %v5266, %v5270
        %v5301 = vmul.f32 %v3822, %v5270
        %v5302 = vmul.f32 %v3823, %v5270
        %v5303 = vadd.f32 %v5205, %v5271
        %v5304 = vadd.f32 %v5206, %v5272
        %v5305 = vadd.f32 %v5207, %v5273
        %v5306 = vadd.f32 %v5208, %v5274
        %v5307 = vadd.f32 %v5209, %v5275
        %v5308 = vadd.f32 %v5210, %v5276
        %v5309 = vadd.f32 %v5211, %v5277
        %v5310 = vadd.f32 %v5212, %v5278
        %v5311 = vadd.f32 %v5213, %v5279
        %v5312 = vadd.f32 %v5214, %v5280
        %v5313 = vadd.f32 %v5215, %v5281
        %v5314 = vadd.f32 %v5216, %v5282
        %v5315 = vadd.f32 %v5217, %v5283
        %v5316 = vadd.f32 %v5218, %v5284
        %v5317 = vadd.f32 %v5219, %v5285
        %v5318 = vadd.f32 %v5220, %v5286
        %v5319 = vadd.f32 %v5221, %v5287
        %v5320 = vadd.f32 %v5222, %v5288
        %v5321 = vadd.f32 %v5223, %v5289
        %v5322 = vadd.f32 %v5224, %v5290
        %v5323 = vadd.f32 %v5225, %v5291
        %v5324 = vadd.f32 %v5226, %v5292
        %v5325 = vadd.f32 %v5227, %v5293
        %v5326 = vadd.f32 %v5228, %v5294
        %v5327 = vadd.f32 %v5229, %v5295
        %v5328 = vadd.f32 %v5230, %v5296
        %v5329 = vadd.f32 %v5231, %v5297
        %v5330 = vadd.f32 %v5232, %v5298
        %v5331 = vadd.f32 %v5233, %v5299
        %v5332 = vadd.f32 %v5234, %v5300
        %v5333 = vadd.f32 %v5235, %v5301
        %v5334 = vadd.f32 %v5236, %v5302
        %v5335 = vld [vmem:[%s67] sm:$0xff]
        %v5336 = vld [vmem:[%s67 + $0x8] sm:$0xff]
        %v5337 = vld [vmem:[%s67 + $0x10] sm:$0xff]
        %v5338 = vld [vmem:[%s67 + $0x18] sm:$0xff]
        %v5339 = vld [vmem:[%s67 + $0x20] sm:$0xff]
        %v5340 = vld [vmem:[%s67 + $0x28] sm:$0xff]
        %v5341 = vld [vmem:[%s67 + $0x30] sm:$0xff]
        %v5342 = vld [vmem:[%s67 + $0x38] sm:$0xff]
        %v5343 = vld [vmem:[%s67 + $0x40] sm:$0xff]
        %v5344 = vld [vmem:[%s67 + $0x48] sm:$0xff]
        %v5345 = vld [vmem:[%s67 + $0x50] sm:$0xff]
        %v5346 = vld [vmem:[%s67 + $0x58] sm:$0xff]
        %v5347 = vld [vmem:[%s67 + $0x60] sm:$0xff]
        %v5348 = vld [vmem:[%s67 + $0x68] sm:$0xff]
        %v5349 = vld [vmem:[%s67 + $0x70] sm:$0xff]
        %v5350 = vld [vmem:[%s67 + $0x78] sm:$0xff]
        %5351 = vmatprep.subr.mxu0 0.0
        %5352 = vmatpush1.msra.mxu0 %v5318
        %5353 = vmatprep.subr.mxu0 0.0
        %5354 = vmatpush1.msra.mxu0 %v5317
        %5355 = vmatprep.subr.mxu0 0.0
        %5356 = vmatpush1.msra.mxu0 %v5316
        %5357 = vmatprep.subr.mxu0 0.0
        %5358 = vmatpush1.msra.mxu0 %v5315
        %5359 = vmatprep.subr.mxu0 0.0
        %5360 = vmatpush1.msra.mxu0 %v5314
        %5361 = vmatprep.subr.mxu0 0.0
        %5362 = vmatpush1.msra.mxu0 %v5313
        %5363 = vmatprep.subr.mxu0 0.0
        %5364 = vmatpush1.msra.mxu0 %v5312
        %5365 = vmatprep.subr.mxu0 0.0
        %5366 = vmatpush1.msra.mxu0 %v5311
        %5367 = vmatprep.subr.mxu0 0.0
        %5368 = vmatpush1.msra.mxu0 %v5310
        %5369 = vmatprep.subr.mxu0 0.0
        %5370 = vmatpush1.msra.mxu0 %v5309
        %5371 = vmatprep.subr.mxu0 0.0
        %5372 = vmatpush1.msra.mxu0 %v5308
        %5373 = vmatprep.subr.mxu0 0.0
        %5374 = vmatpush1.msra.mxu0 %v5307
        %5375 = vmatprep.subr.mxu0 0.0
        %5376 = vmatpush1.msra.mxu0 %v5306
        %5377 = vmatprep.subr.mxu0 0.0
        %5378 = vmatpush1.msra.mxu0 %v5305
        %5379 = vmatprep.subr.mxu0 0.0
        %5380 = vmatpush1.msra.mxu0 %v5304
        %5381 = vmatprep.subr.mxu0 0.0
        %5382 = vmatpush1.msra.mxu0 %v5303
        %5383 = vmatprep.subr.mxu0 0.0
        %5384 = vmatpush2.msra.mxu0 %v5334
        %5385 = vmatprep.subr.mxu0 0.0
        %5386 = vmatpush2.msra.mxu0 %v5333
        %5387 = vmatprep.subr.mxu0 0.0
        %5388 = vmatpush2.msra.mxu0 %v5332
        %5389 = vmatprep.subr.mxu0 0.0
        %5390 = vmatpush2.msra.mxu0 %v5331
        %5391 = vmatprep.subr.mxu0 0.0
        %5392 = vmatpush2.msra.mxu0 %v5330
        %5393 = vmatprep.subr.mxu0 0.0
        %5394 = vmatpush2.msra.mxu0 %v5329
        %5395 = vmatprep.subr.mxu0 0.0
        %5396 = vmatpush2.msra.mxu0 %v5328
        %5397 = vmatprep.subr.mxu0 0.0
        %5398 = vmatpush2.msra.mxu0 %v5327
        %5399 = vmatprep.subr.mxu0 0.0
        %5400 = vmatpush2.msra.mxu0 %v5326
        %5401 = vmatprep.subr.mxu0 0.0
        %5402 = vmatpush2.msra.mxu0 %v5325
        %5403 = vmatprep.subr.mxu0 0.0
        %5404 = vmatpush2.msra.mxu0 %v5324
        %5405 = vmatprep.subr.mxu0 0.0
        %5406 = vmatpush2.msra.mxu0 %v5323
        %5407 = vmatprep.subr.mxu0 0.0
        %5408 = vmatpush2.msra.mxu0 %v5322
        %5409 = vmatprep.subr.mxu0 0.0
        %5410 = vmatpush2.msra.mxu0 %v5321
        %5411 = vmatprep.subr.mxu0 0.0
        %5412 = vmatpush2.msra.mxu0 %v5320
        %5413 = vmatprep.subr.mxu0 0.0
        %5414 = vmatpush2.msra.mxu0 %v5319
        %5415 = vmatprep.mubr.f32.mxu0 %v5336
        %5416 = vmatmul.mubr.f32.gmra.mxu0 %v5335
        %v5417 = vpop.f32.mrf.mxu0
        %v5418 = vadd.f32 0.0, %v5417
        %v5419 = vpop.f32.mrf.mxu0
        %5420 = vmatprep.mubr.f32.mxu0 %v5338
        %5421 = vmatmul.mubr.f32.gmra.mxu0 %v5337
        %v5422 = vpop.f32.mrf.mxu0
        %v5423 = vadd.f32 0.0, %v5422
        %v5424 = vpop.f32.mrf.mxu0
        %5425 = vmatprep.mubr.f32.mxu0 %v5340
        %5426 = vmatmul.mubr.f32.gmra.mxu0 %v5339
        %v5427 = vpop.f32.mrf.mxu0
        %v5428 = vadd.f32 0.0, %v5427
        %v5429 = vpop.f32.mrf.mxu0
        %5430 = vmatprep.mubr.f32.mxu0 %v5342
        %5431 = vmatmul.mubr.f32.gmra.mxu0 %v5341
        %v5432 = vpop.f32.mrf.mxu0
        %v5433 = vadd.f32 0.0, %v5432
        %v5434 = vpop.f32.mrf.mxu0
        %5435 = vmatprep.mubr.f32.mxu0 %v5344
        %5436 = vmatmul.mubr.f32.gmra.mxu0 %v5343
        %v5437 = vpop.f32.mrf.mxu0
        %v5438 = vadd.f32 0.0, %v5437
        %v5439 = vpop.f32.mrf.mxu0
        %5440 = vmatprep.mubr.f32.mxu0 %v5346
        %5441 = vmatmul.mubr.f32.gmra.mxu0 %v5345
        %v5442 = vpop.f32.mrf.mxu0
        %v5443 = vadd.f32 0.0, %v5442
        %v5444 = vpop.f32.mrf.mxu0
        %5445 = vmatprep.mubr.f32.mxu0 %v5348
        %5446 = vmatmul.mubr.f32.gmra.mxu0 %v5347
        %v5447 = vpop.f32.mrf.mxu0
        %v5448 = vadd.f32 0.0, %v5447
        %v5449 = vpop.f32.mrf.mxu0
        %5450 = vmatprep.mubr.f32.mxu0 %v5350
        %5451 = vmatmul.mubr.f32.gmra.mxu0 %v5349
        %v5452 = vpop.f32.mrf.mxu0
        %v5453 = vadd.f32 0.0, %v5452
        %v5454 = vpop.f32.mrf.mxu0
        %5455 = vdwg.mxu0
        %v5456 = vld [vmem:[%s33] sm:$0xff]
        %v5457 = vld [vmem:[%s33 + $0x8] sm:$0xff]
        %vm5458 = vcmask 130048
        %v5460 = vsel %vm5458, %v5418, 0
        %v5463 = vsel %vm5458, %v5423, 0
        %v5466 = vsel %vm5458, %v5428, 0
        %v5469 = vsel %vm5458, %v5433, 0
        %v5472 = vsel %vm5458, %v5438, 0
        %v5475 = vsel %vm5458, %v5443, 0
        %v5478 = vsel %vm5458, %v5448, 0
        %v5481 = vsel %vm5458, %v5453, 0
        %5483 = vmatprep.subr.mxu0 0.0
        %5484 = vmatpush1.msra.mxu0 0.0
        %5485 = vmatprep.subr.mxu0 0.0
        %5486 = vmatpush1.msra.mxu0 0.0
        %5487 = vmatprep.subr.mxu0 0.0
        %5488 = vmatpush1.msra.mxu0 0.0
        %5489 = vmatprep.subr.mxu0 0.0
        %5490 = vmatpush1.msra.mxu0 0.0
        %5491 = vmatprep.subr.mxu0 0.0
        %5492 = vmatpush1.msra.mxu0 0.0
        %5493 = vmatprep.subr.mxu0 0.0
        %5494 = vmatpush1.msra.mxu0 0.0
        %5495 = vmatprep.subr.mxu0 0.0
        %5496 = vmatpush1.msra.mxu0 0.0
        %5497 = vmatprep.subr.mxu0 0.0
        %5498 = vmatpush1.msra.mxu0 0.0
        %5499 = vmatprep.subr.mxu0 0.0
        %5500 = vmatpush1.msra.mxu0 0.0
        %5501 = vmatprep.subr.mxu0 0.0
        %5502 = vmatpush1.msra.mxu0 0.0
        %5503 = vmatprep.subr.mxu0 0.0
        %5504 = vmatpush1.msra.mxu0 0.0
        %5505 = vmatprep.subr.mxu0 0.0
        %5506 = vmatpush1.msra.mxu0 0.0
        %5507 = vmatprep.subr.mxu0 0.0
        %5508 = vmatpush1.msra.mxu0 0.0
        %5509 = vmatprep.subr.mxu0 0.0
        %5510 = vmatpush1.msra.mxu0 0.0
        %5511 = vmatprep.subr.mxu0 0.0
        %5512 = vmatpush1.msra.mxu0 %v5457
        %5513 = vmatprep.subr.mxu0 0.0
        %5514 = vmatpush1.msra.mxu0 %v5456
        %5515 = vmatprep.subr.mxu0 0.0
        %5516 = vmatpush2.msra.mxu0 0.0
        %5517 = vmatprep.subr.mxu0 0.0
        %5518 = vmatpush2.msra.mxu0 0.0
        %5519 = vmatprep.subr.mxu0 0.0
        %5520 = vmatpush2.msra.mxu0 0.0
        %5521 = vmatprep.subr.mxu0 0.0
        %5522 = vmatpush2.msra.mxu0 0.0
        %5523 = vmatprep.subr.mxu0 0.0
        %5524 = vmatpush2.msra.mxu0 0.0
        %5525 = vmatprep.subr.mxu0 0.0
        %5526 = vmatpush2.msra.mxu0 0.0
        %5527 = vmatprep.subr.mxu0 0.0
        %5528 = vmatpush2.msra.mxu0 0.0
        %5529 = vmatprep.subr.mxu0 0.0
        %5530 = vmatpush2.msra.mxu0 0.0
        %5531 = vmatprep.subr.mxu0 0.0
        %5532 = vmatpush2.msra.mxu0 0.0
        %5533 = vmatprep.subr.mxu0 0.0
        %5534 = vmatpush2.msra.mxu0 0.0
        %5535 = vmatprep.subr.mxu0 0.0
        %5536 = vmatpush2.msra.mxu0 0.0
        %5537 = vmatprep.subr.mxu0 0.0
        %5538 = vmatpush2.msra.mxu0 0.0
        %5539 = vmatprep.subr.mxu0 0.0
        %5540 = vmatpush2.msra.mxu0 0.0
        %5541 = vmatprep.subr.mxu0 0.0
        %5542 = vmatpush2.msra.mxu0 0.0
        %5543 = vmatprep.subr.mxu0 0.0
        %5544 = vmatpush2.msra.mxu0 0.0
        %5545 = vmatprep.subr.mxu0 0.0
        %5546 = vmatpush2.msra.mxu0 0.0
        %5547 = vmatprep.mubr.f32.mxu0 0.0
        %5548 = vmatmul.mubr.f32.gmra.mxu0 %v5460
        %v5549 = vpop.f32.mrf.mxu0
        %v5550 = vadd.f32 0.0, %v5549
        %v5551 = vpop.f32.mrf.mxu0
        %5552 = vmatprep.mubr.f32.mxu0 0.0
        %5553 = vmatmul.mubr.f32.gmra.mxu0 %v5463
        %v5554 = vpop.f32.mrf.mxu0
        %v5555 = vadd.f32 0.0, %v5554
        %v5556 = vpop.f32.mrf.mxu0
        %5557 = vmatprep.mubr.f32.mxu0 0.0
        %5558 = vmatmul.mubr.f32.gmra.mxu0 %v5466
        %v5559 = vpop.f32.mrf.mxu0
        %v5560 = vadd.f32 0.0, %v5559
        %v5561 = vpop.f32.mrf.mxu0
        %5562 = vmatprep.mubr.f32.mxu0 0.0
        %5563 = vmatmul.mubr.f32.gmra.mxu0 %v5469
        %v5564 = vpop.f32.mrf.mxu0
        %v5565 = vadd.f32 0.0, %v5564
        %v5566 = vpop.f32.mrf.mxu0
        %5567 = vmatprep.mubr.f32.mxu0 0.0
        %5568 = vmatmul.mubr.f32.gmra.mxu0 %v5472
        %v5569 = vpop.f32.mrf.mxu0
        %v5570 = vadd.f32 0.0, %v5569
        %v5571 = vpop.f32.mrf.mxu0
        %5572 = vmatprep.mubr.f32.mxu0 0.0
        %5573 = vmatmul.mubr.f32.gmra.mxu0 %v5475
        %v5574 = vpop.f32.mrf.mxu0
        %v5575 = vadd.f32 0.0, %v5574
        %v5576 = vpop.f32.mrf.mxu0
        %5577 = vmatprep.mubr.f32.mxu0 0.0
        %5578 = vmatmul.mubr.f32.gmra.mxu0 %v5478
        %v5579 = vpop.f32.mrf.mxu0
        %v5580 = vadd.f32 0.0, %v5579
        %v5581 = vpop.f32.mrf.mxu0
        %5582 = vmatprep.mubr.f32.mxu0 0.0
        %5583 = vmatmul.mubr.f32.gmra.mxu0 %v5481
        %v5584 = vpop.f32.mrf.mxu0
        %v5585 = vadd.f32 0.0, %v5584
        %v5586 = vpop.f32.mrf.mxu0
        %5587 = vdwg.mxu0
        %v5588 = vld [vmem:[%s9] sm:$0xff]
        %v5589 = vld [vmem:[%s9 + $0x8] sm:$0x1]
        %v5590 = vld [vmem:[%s59] sm:$0xff]
        %v5591 = vld [vmem:[%s59 + $0x8] sm:$0xff]
        %v5592 = vld [vmem:[%s59 + $0x10] sm:$0xff]
        %v5593 = vld [vmem:[%s59 + $0x18] sm:$0xff]
        %v5594 = vld [vmem:[%s59 + $0x20] sm:$0xff]
        %v5595 = vld [vmem:[%s59 + $0x28] sm:$0xff]
        %v5596 = vld [vmem:[%s59 + $0x30] sm:$0xff]
        %v5597 = vld [vmem:[%s59 + $0x38] sm:$0xff]
        %v5605 = vrot.slane %v5550, 7
        %v5606 = vrot.slane %v5555, 7
        %v5607 = vsel %vm1608, %v5605, %v5606
        %v5608 = vrot.slane %v5560, 7
        %v5609 = vsel %vm1608, %v5606, %v5608
        %v5610 = vrot.slane %v5565, 7
        %v5611 = vsel %vm1608, %v5608, %v5610
        %v5612 = vrot.slane %v5570, 7
        %v5613 = vsel %vm1608, %v5610, %v5612
        %v5614 = vrot.slane %v5575, 7
        %v5615 = vsel %vm1608, %v5612, %v5614
        %v5616 = vrot.slane %v5580, 7
        %v5617 = vsel %vm1608, %v5614, %v5616
        %v5625 = vsel %vm1608, 0.0, %v5605
        %5627 = vset.pattern.permute.xlu0 0
        %5628 = vperm.xlu0 %5627, %v5590
        %v5629 = vpop.permute.xlu0 %5628
        %5632 = vset.pattern.permute.xlu0 0
        %5633 = vperm.xlu0 %5632, %v5591
        %v5634 = vpop.permute.xlu0 %5633
        %5637 = vset.pattern.permute.xlu0 0
        %5638 = vperm.xlu0 %5637, %v5592
        %v5639 = vpop.permute.xlu0 %5638
        %5642 = vset.pattern.permute.xlu0 0
        %5643 = vperm.xlu0 %5642, %v5593
        %v5644 = vpop.permute.xlu0 %5643
        %5647 = vset.pattern.permute.xlu0 0
        %5648 = vperm.xlu0 %5647, %v5594
        %v5649 = vpop.permute.xlu0 %5648
        %5652 = vset.pattern.permute.xlu0 0
        %5653 = vperm.xlu0 %5652, %v5595
        %v5654 = vpop.permute.xlu0 %5653
        %5657 = vset.pattern.permute.xlu0 0
        %5658 = vperm.xlu0 %5657, %v5596
        %v5659 = vpop.permute.xlu0 %5658
        %5662 = vset.pattern.permute.xlu0 0
        %5663 = vperm.xlu0 %5662, %v5597
        %v5664 = vpop.permute.xlu0 %5663
        %v5666 = vmul.f32 %v5629, 0.0
        %v5667 = vmul.f32 %v5625, %v5634
        %v5668 = vmul.f32 %v5607, %v5639
        %v5669 = vmul.f32 %v5609, %v5644
        %v5670 = vmul.f32 %v5611, %v5649
        %v5671 = vmul.f32 %v5613, %v5654
        %v5672 = vmul.f32 %v5615, %v5659
        %v5673 = vmul.f32 %v5617, %v5664
        %v5674 = vlaneseq
        %v5675 = vshrl.u32 %v5674, 7
        %v5676 = vsub.s32 0, %v5675
        %v5677 = vrot.slane %v5588, %v5676
        %v5678 = vmul.f32 %v5666, %v5677
        %v5679 = vmul.f32 %v5667, %v5677
        %v5680 = vmul.f32 %v5668, %v5677
        %v5681 = vmul.f32 %v5669, %v5677
        %v5682 = vmul.f32 %v5670, %v5677
        %v5683 = vmul.f32 %v5671, %v5677
        %v5684 = vmul.f32 %v5672, %v5677
        %v5685 = vmul.f32 %v5673, %v5677
        %v5686 = vadd.f32 %v5678, 0.0
        %v5687 = vadd.f32 %v5679, 0.0
        %v5688 = vadd.f32 %v5680, 0.0
        %v5689 = vadd.f32 %v5681, 0.0
        %v5690 = vadd.f32 %v5682, 0.0
        %v5691 = vadd.f32 %v5683, 0.0
        %v5692 = vadd.f32 %v5684, 0.0
        %v5693 = vadd.f32 %v5685, 0.0
        %5694 = vset.pattern.permute.xlu0 1
        %5695 = vperm.xlu0 %5694, %v5590
        %v5696 = vpop.permute.xlu0 %5695
        %5698 = vset.pattern.permute.xlu0 1
        %5699 = vperm.xlu0 %5698, %v5591
        %v5700 = vpop.permute.xlu0 %5699
        %5702 = vset.pattern.permute.xlu0 1
        %5703 = vperm.xlu0 %5702, %v5592
        %v5704 = vpop.permute.xlu0 %5703
        %5706 = vset.pattern.permute.xlu0 1
        %5707 = vperm.xlu0 %5706, %v5593
        %v5708 = vpop.permute.xlu0 %5707
        %5710 = vset.pattern.permute.xlu0 1
        %5711 = vperm.xlu0 %5710, %v5594
        %v5712 = vpop.permute.xlu0 %5711
        %5714 = vset.pattern.permute.xlu0 1
        %5715 = vperm.xlu0 %5714, %v5595
        %v5716 = vpop.permute.xlu0 %5715
        %5718 = vset.pattern.permute.xlu0 1
        %5719 = vperm.xlu0 %5718, %v5596
        %v5720 = vpop.permute.xlu0 %5719
        %5722 = vset.pattern.permute.xlu0 1
        %5723 = vperm.xlu0 %5722, %v5597
        %v5724 = vpop.permute.xlu0 %5723
        %v5726 = vmul.f32 %v5696, 0.0
        %v5727 = vmul.f32 %v5550, %v5700
        %v5728 = vmul.f32 %v5555, %v5704
        %v5729 = vmul.f32 %v5560, %v5708
        %v5730 = vmul.f32 %v5565, %v5712
        %v5731 = vmul.f32 %v5570, %v5716
        %v5732 = vmul.f32 %v5575, %v5720
        %v5733 = vmul.f32 %v5580, %v5724
        %v5734 = vlaneseq
        %v5735 = vshrl.u32 %v5734, 7
        %v5736 = vsub.s32 1, %v5735
        %v5737 = vrot.slane %v5588, %v5736
        %v5738 = vmul.f32 %v5726, %v5737
        %v5739 = vmul.f32 %v5727, %v5737
        %v5740 = vmul.f32 %v5728, %v5737
        %v5741 = vmul.f32 %v5729, %v5737
        %v5742 = vmul.f32 %v5730, %v5737
        %v5743 = vmul.f32 %v5731, %v5737
        %v5744 = vmul.f32 %v5732, %v5737
        %v5745 = vmul.f32 %v5733, %v5737
        %v5746 = vadd.f32 %v5686, %v5738
        %v5747 = vadd.f32 %v5687, %v5739
        %v5748 = vadd.f32 %v5688, %v5740
        %v5749 = vadd.f32 %v5689, %v5741
        %v5750 = vadd.f32 %v5690, %v5742
        %v5751 = vadd.f32 %v5691, %v5743
        %v5752 = vadd.f32 %v5692, %v5744
        %v5753 = vadd.f32 %v5693, %v5745
        %v5755 = vrot.slane %v5550, 1
        %v5756 = vrot.slane %v5555, 1
        %v5757 = vsel %vm2188, %v5755, %v5756
        %v5758 = vrot.slane %v5560, 1
        %v5759 = vsel %vm2188, %v5756, %v5758
        %v5760 = vrot.slane %v5565, 1
        %v5761 = vsel %vm2188, %v5758, %v5760
        %v5762 = vrot.slane %v5570, 1
        %v5763 = vsel %vm2188, %v5760, %v5762
        %v5764 = vrot.slane %v5575, 1
        %v5765 = vsel %vm2188, %v5762, %v5764
        %v5766 = vrot.slane %v5580, 1
        %v5767 = vsel %vm2188, %v5764, %v5766
        %v5768 = vrot.slane %v5585, 1
        %v5769 = vsel %vm2188, %v5766, %v5768
        %v5778 = vsel %vm2188, 0.0, %v5755
        %5779 = vset.pattern.permute.xlu0 2
        %5780 = vperm.xlu0 %5779, %v5590
        %v5781 = vpop.permute.xlu0 %5780
        %5783 = vset.pattern.permute.xlu0 2
        %5784 = vperm.xlu0 %5783, %v5591
        %v5785 = vpop.permute.xlu0 %5784
        %5787 = vset.pattern.permute.xlu0 2
        %5788 = vperm.xlu0 %5787, %v5592
        %v5789 = vpop.permute.xlu0 %5788
        %5791 = vset.pattern.permute.xlu0 2
        %5792 = vperm.xlu0 %5791, %v5593
        %v5793 = vpop.permute.xlu0 %5792
        %5795 = vset.pattern.permute.xlu0 2
        %5796 = vperm.xlu0 %5795, %v5594
        %v5797 = vpop.permute.xlu0 %5796
        %5799 = vset.pattern.permute.xlu0 2
        %5800 = vperm.xlu0 %5799, %v5595
        %v5801 = vpop.permute.xlu0 %5800
        %5803 = vset.pattern.permute.xlu0 2
        %5804 = vperm.xlu0 %5803, %v5596
        %v5805 = vpop.permute.xlu0 %5804
        %5807 = vset.pattern.permute.xlu0 2
        %5808 = vperm.xlu0 %5807, %v5597
        %v5809 = vpop.permute.xlu0 %5808
        %v5811 = vmul.f32 %v5778, %v5781
        %v5812 = vmul.f32 %v5757, %v5785
        %v5813 = vmul.f32 %v5759, %v5789
        %v5814 = vmul.f32 %v5761, %v5793
        %v5815 = vmul.f32 %v5763, %v5797
        %v5816 = vmul.f32 %v5765, %v5801
        %v5817 = vmul.f32 %v5767, %v5805
        %v5818 = vmul.f32 %v5769, %v5809
        %v5819 = vlaneseq
        %v5820 = vshrl.u32 %v5819, 7
        %v5821 = vsub.s32 2, %v5820
        %v5822 = vrot.slane %v5588, %v5821
        %v5823 = vmul.f32 %v5811, %v5822
        %v5824 = vmul.f32 %v5812, %v5822
        %v5825 = vmul.f32 %v5813, %v5822
        %v5826 = vmul.f32 %v5814, %v5822
        %v5827 = vmul.f32 %v5815, %v5822
        %v5828 = vmul.f32 %v5816, %v5822
        %v5829 = vmul.f32 %v5817, %v5822
        %v5830 = vmul.f32 %v5818, %v5822
        %v5831 = vadd.f32 %v5746, %v5823
        %v5832 = vadd.f32 %v5747, %v5824
        %v5833 = vadd.f32 %v5748, %v5825
        %v5834 = vadd.f32 %v5749, %v5826
        %v5835 = vadd.f32 %v5750, %v5827
        %v5836 = vadd.f32 %v5751, %v5828
        %v5837 = vadd.f32 %v5752, %v5829
        %v5838 = vadd.f32 %v5753, %v5830
        %v5839 = vrot.slane %v5585, 7
        %v5840 = vsel %vm1608, %v5616, %v5839
        %5842 = vset.pattern.permute.xlu0 3
        %5843 = vperm.xlu0 %5842, %v5590
        %v5844 = vpop.permute.xlu0 %5843
        %5846 = vset.pattern.permute.xlu0 3
        %5847 = vperm.xlu0 %5846, %v5591
        %v5848 = vpop.permute.xlu0 %5847
        %5850 = vset.pattern.permute.xlu0 3
        %5851 = vperm.xlu0 %5850, %v5592
        %v5852 = vpop.permute.xlu0 %5851
        %5854 = vset.pattern.permute.xlu0 3
        %5855 = vperm.xlu0 %5854, %v5593
        %v5856 = vpop.permute.xlu0 %5855
        %5858 = vset.pattern.permute.xlu0 3
        %5859 = vperm.xlu0 %5858, %v5594
        %v5860 = vpop.permute.xlu0 %5859
        %5862 = vset.pattern.permute.xlu0 3
        %5863 = vperm.xlu0 %5862, %v5595
        %v5864 = vpop.permute.xlu0 %5863
        %5866 = vset.pattern.permute.xlu0 3
        %5867 = vperm.xlu0 %5866, %v5596
        %v5868 = vpop.permute.xlu0 %5867
        %5870 = vset.pattern.permute.xlu0 3
        %5871 = vperm.xlu0 %5870, %v5597
        %v5872 = vpop.permute.xlu0 %5871
        %v5874 = vmul.f32 %v5625, %v5844
        %v5875 = vmul.f32 %v5607, %v5848
        %v5876 = vmul.f32 %v5609, %v5852
        %v5877 = vmul.f32 %v5611, %v5856
        %v5878 = vmul.f32 %v5613, %v5860
        %v5879 = vmul.f32 %v5615, %v5864
        %v5880 = vmul.f32 %v5617, %v5868
        %v5881 = vmul.f32 %v5840, %v5872
        %v5882 = vlaneseq
        %v5883 = vshrl.u32 %v5882, 7
        %v5884 = vsub.s32 3, %v5883
        %v5885 = vrot.slane %v5588, %v5884
        %v5886 = vmul.f32 %v5874, %v5885
        %v5887 = vmul.f32 %v5875, %v5885
        %v5888 = vmul.f32 %v5876, %v5885
        %v5889 = vmul.f32 %v5877, %v5885
        %v5890 = vmul.f32 %v5878, %v5885
        %v5891 = vmul.f32 %v5879, %v5885
        %v5892 = vmul.f32 %v5880, %v5885
        %v5893 = vmul.f32 %v5881, %v5885
        %v5894 = vadd.f32 %v5831, %v5886
        %v5895 = vadd.f32 %v5832, %v5887
        %v5896 = vadd.f32 %v5833, %v5888
        %v5897 = vadd.f32 %v5834, %v5889
        %v5898 = vadd.f32 %v5835, %v5890
        %v5899 = vadd.f32 %v5836, %v5891
        %v5900 = vadd.f32 %v5837, %v5892
        %v5901 = vadd.f32 %v5838, %v5893
        %5902 = vset.pattern.permute.xlu0 4
        %5903 = vperm.xlu0 %5902, %v5590
        %v5904 = vpop.permute.xlu0 %5903
        %5906 = vset.pattern.permute.xlu0 4
        %5907 = vperm.xlu0 %5906, %v5591
        %v5908 = vpop.permute.xlu0 %5907
        %5910 = vset.pattern.permute.xlu0 4
        %5911 = vperm.xlu0 %5910, %v5592
        %v5912 = vpop.permute.xlu0 %5911
        %5914 = vset.pattern.permute.xlu0 4
        %5915 = vperm.xlu0 %5914, %v5593
        %v5916 = vpop.permute.xlu0 %5915
        %5918 = vset.pattern.permute.xlu0 4
        %5919 = vperm.xlu0 %5918, %v5594
        %v5920 = vpop.permute.xlu0 %5919
        %5922 = vset.pattern.permute.xlu0 4
        %5923 = vperm.xlu0 %5922, %v5595
        %v5924 = vpop.permute.xlu0 %5923
        %5926 = vset.pattern.permute.xlu0 4
        %5927 = vperm.xlu0 %5926, %v5596
        %v5928 = vpop.permute.xlu0 %5927
        %5930 = vset.pattern.permute.xlu0 4
        %5931 = vperm.xlu0 %5930, %v5597
        %v5932 = vpop.permute.xlu0 %5931
        %v5934 = vmul.f32 %v5550, %v5904
        %v5935 = vmul.f32 %v5555, %v5908
        %v5936 = vmul.f32 %v5560, %v5912
        %v5937 = vmul.f32 %v5565, %v5916
        %v5938 = vmul.f32 %v5570, %v5920
        %v5939 = vmul.f32 %v5575, %v5924
        %v5940 = vmul.f32 %v5580, %v5928
        %v5941 = vmul.f32 %v5585, %v5932
        %v5942 = vlaneseq
        %v5943 = vshrl.u32 %v5942, 7
        %v5944 = vsub.s32 4, %v5943
        %v5945 = vrot.slane %v5588, %v5944
        %v5946 = vmul.f32 %v5934, %v5945
        %v5947 = vmul.f32 %v5935, %v5945
        %v5948 = vmul.f32 %v5936, %v5945
        %v5949 = vmul.f32 %v5937, %v5945
        %v5950 = vmul.f32 %v5938, %v5945
        %v5951 = vmul.f32 %v5939, %v5945
        %v5952 = vmul.f32 %v5940, %v5945
        %v5953 = vmul.f32 %v5941, %v5945
        %v5954 = vadd.f32 %v5894, %v5946
        %v5955 = vadd.f32 %v5895, %v5947
        %v5956 = vadd.f32 %v5896, %v5948
        %v5957 = vadd.f32 %v5897, %v5949
        %v5958 = vadd.f32 %v5898, %v5950
        %v5959 = vadd.f32 %v5899, %v5951
        %v5960 = vadd.f32 %v5900, %v5952
        %v5961 = vadd.f32 %v5901, %v5953
        %v5963 = vsel %vm2188, %v5768, 0.0
        %5964 = vset.pattern.permute.xlu0 5
        %5965 = vperm.xlu0 %5964, %v5590
        %v5966 = vpop.permute.xlu0 %5965
        %5968 = vset.pattern.permute.xlu0 5
        %5969 = vperm.xlu0 %5968, %v5591
        %v5970 = vpop.permute.xlu0 %5969
        %5972 = vset.pattern.permute.xlu0 5
        %5973 = vperm.xlu0 %5972, %v5592
        %v5974 = vpop.permute.xlu0 %5973
        %5976 = vset.pattern.permute.xlu0 5
        %5977 = vperm.xlu0 %5976, %v5593
        %v5978 = vpop.permute.xlu0 %5977
        %5980 = vset.pattern.permute.xlu0 5
        %5981 = vperm.xlu0 %5980, %v5594
        %v5982 = vpop.permute.xlu0 %5981
        %5984 = vset.pattern.permute.xlu0 5
        %5985 = vperm.xlu0 %5984, %v5595
        %v5986 = vpop.permute.xlu0 %5985
        %5988 = vset.pattern.permute.xlu0 5
        %5989 = vperm.xlu0 %5988, %v5596
        %v5990 = vpop.permute.xlu0 %5989
        %5992 = vset.pattern.permute.xlu0 5
        %5993 = vperm.xlu0 %5992, %v5597
        %v5994 = vpop.permute.xlu0 %5993
        %v5996 = vmul.f32 %v5757, %v5966
        %v5997 = vmul.f32 %v5759, %v5970
        %v5998 = vmul.f32 %v5761, %v5974
        %v5999 = vmul.f32 %v5763, %v5978
        %v6000 = vmul.f32 %v5765, %v5982
        %v6001 = vmul.f32 %v5767, %v5986
        %v6002 = vmul.f32 %v5769, %v5990
        %v6003 = vmul.f32 %v5963, %v5994
        %v6004 = vlaneseq
        %v6005 = vshrl.u32 %v6004, 7
        %v6006 = vsub.s32 5, %v6005
        %v6007 = vrot.slane %v5588, %v6006
        %v6008 = vmul.f32 %v5996, %v6007
        %v6009 = vmul.f32 %v5997, %v6007
        %v6010 = vmul.f32 %v5998, %v6007
        %v6011 = vmul.f32 %v5999, %v6007
        %v6012 = vmul.f32 %v6000, %v6007
        %v6013 = vmul.f32 %v6001, %v6007
        %v6014 = vmul.f32 %v6002, %v6007
        %v6015 = vmul.f32 %v6003, %v6007
        %v6016 = vadd.f32 %v5954, %v6008
        %v6017 = vadd.f32 %v5955, %v6009
        %v6018 = vadd.f32 %v5956, %v6010
        %v6019 = vadd.f32 %v5957, %v6011
        %v6020 = vadd.f32 %v5958, %v6012
        %v6021 = vadd.f32 %v5959, %v6013
        %v6022 = vadd.f32 %v5960, %v6014
        %v6023 = vadd.f32 %v5961, %v6015
        %v6025 = vsel %vm1608, %v5839, 0.0
        %6026 = vset.pattern.permute.xlu0 6
        %6027 = vperm.xlu0 %6026, %v5590
        %v6028 = vpop.permute.xlu0 %6027
        %6030 = vset.pattern.permute.xlu0 6
        %6031 = vperm.xlu0 %6030, %v5591
        %v6032 = vpop.permute.xlu0 %6031
        %6034 = vset.pattern.permute.xlu0 6
        %6035 = vperm.xlu0 %6034, %v5592
        %v6036 = vpop.permute.xlu0 %6035
        %6038 = vset.pattern.permute.xlu0 6
        %6039 = vperm.xlu0 %6038, %v5593
        %v6040 = vpop.permute.xlu0 %6039
        %6042 = vset.pattern.permute.xlu0 6
        %6043 = vperm.xlu0 %6042, %v5594
        %v6044 = vpop.permute.xlu0 %6043
        %6046 = vset.pattern.permute.xlu0 6
        %6047 = vperm.xlu0 %6046, %v5595
        %v6048 = vpop.permute.xlu0 %6047
        %6050 = vset.pattern.permute.xlu0 6
        %6051 = vperm.xlu0 %6050, %v5596
        %v6052 = vpop.permute.xlu0 %6051
        %6054 = vset.pattern.permute.xlu0 6
        %6055 = vperm.xlu0 %6054, %v5597
        %v6056 = vpop.permute.xlu0 %6055
        %v6058 = vmul.f32 %v5607, %v6028
        %v6059 = vmul.f32 %v5609, %v6032
        %v6060 = vmul.f32 %v5611, %v6036
        %v6061 = vmul.f32 %v5613, %v6040
        %v6062 = vmul.f32 %v5615, %v6044
        %v6063 = vmul.f32 %v5617, %v6048
        %v6064 = vmul.f32 %v5840, %v6052
        %v6065 = vmul.f32 %v6025, %v6056
        %v6066 = vlaneseq
        %v6067 = vshrl.u32 %v6066, 7
        %v6068 = vsub.s32 6, %v6067
        %v6069 = vrot.slane %v5588, %v6068
        %v6070 = vmul.f32 %v6058, %v6069
        %v6071 = vmul.f32 %v6059, %v6069
        %v6072 = vmul.f32 %v6060, %v6069
        %v6073 = vmul.f32 %v6061, %v6069
        %v6074 = vmul.f32 %v6062, %v6069
        %v6075 = vmul.f32 %v6063, %v6069
        %v6076 = vmul.f32 %v6064, %v6069
        %v6077 = vmul.f32 %v6065, %v6069
        %v6078 = vadd.f32 %v6016, %v6070
        %v6079 = vadd.f32 %v6017, %v6071
        %v6080 = vadd.f32 %v6018, %v6072
        %v6081 = vadd.f32 %v6019, %v6073
        %v6082 = vadd.f32 %v6020, %v6074
        %v6083 = vadd.f32 %v6021, %v6075
        %v6084 = vadd.f32 %v6022, %v6076
        %v6085 = vadd.f32 %v6023, %v6077
        %6086 = vset.pattern.permute.xlu0 7
        %6087 = vperm.xlu0 %6086, %v5590
        %v6088 = vpop.permute.xlu0 %6087
        %6090 = vset.pattern.permute.xlu0 7
        %6091 = vperm.xlu0 %6090, %v5591
        %v6092 = vpop.permute.xlu0 %6091
        %6094 = vset.pattern.permute.xlu0 7
        %6095 = vperm.xlu0 %6094, %v5592
        %v6096 = vpop.permute.xlu0 %6095
        %6098 = vset.pattern.permute.xlu0 7
        %6099 = vperm.xlu0 %6098, %v5593
        %v6100 = vpop.permute.xlu0 %6099
        %6102 = vset.pattern.permute.xlu0 7
        %6103 = vperm.xlu0 %6102, %v5594
        %v6104 = vpop.permute.xlu0 %6103
        %6106 = vset.pattern.permute.xlu0 7
        %6107 = vperm.xlu0 %6106, %v5595
        %v6108 = vpop.permute.xlu0 %6107
        %6110 = vset.pattern.permute.xlu0 7
        %6111 = vperm.xlu0 %6110, %v5596
        %v6112 = vpop.permute.xlu0 %6111
        %6114 = vset.pattern.permute.xlu0 7
        %6115 = vperm.xlu0 %6114, %v5597
        %v6116 = vpop.permute.xlu0 %6115
        %v6118 = vmul.f32 %v5555, %v6088
        %v6119 = vmul.f32 %v5560, %v6092
        %v6120 = vmul.f32 %v5565, %v6096
        %v6121 = vmul.f32 %v5570, %v6100
        %v6122 = vmul.f32 %v5575, %v6104
        %v6123 = vmul.f32 %v5580, %v6108
        %v6124 = vmul.f32 %v5585, %v6112
        %v6125 = vmul.f32 %v6116, 0.0
        %v6126 = vlaneseq
        %v6127 = vshrl.u32 %v6126, 7
        %v6128 = vsub.s32 7, %v6127
        %v6129 = vrot.slane %v5588, %v6128
        %v6130 = vmul.f32 %v6118, %v6129
        %v6131 = vmul.f32 %v6119, %v6129
        %v6132 = vmul.f32 %v6120, %v6129
        %v6133 = vmul.f32 %v6121, %v6129
        %v6134 = vmul.f32 %v6122, %v6129
        %v6135 = vmul.f32 %v6123, %v6129
        %v6136 = vmul.f32 %v6124, %v6129
        %v6137 = vmul.f32 %v6125, %v6129
        %v6138 = vadd.f32 %v6078, %v6130
        %v6139 = vadd.f32 %v6079, %v6131
        %v6140 = vadd.f32 %v6080, %v6132
        %v6141 = vadd.f32 %v6081, %v6133
        %v6142 = vadd.f32 %v6082, %v6134
        %v6143 = vadd.f32 %v6083, %v6135
        %v6144 = vadd.f32 %v6084, %v6136
        %v6145 = vadd.f32 %v6085, %v6137
        %6146 = vset.pattern.permute.xlu0 8
        %6147 = vperm.xlu0 %6146, %v5590
        %v6148 = vpop.permute.xlu0 %6147
        %6150 = vset.pattern.permute.xlu0 8
        %6151 = vperm.xlu0 %6150, %v5591
        %v6152 = vpop.permute.xlu0 %6151
        %6154 = vset.pattern.permute.xlu0 8
        %6155 = vperm.xlu0 %6154, %v5592
        %v6156 = vpop.permute.xlu0 %6155
        %6158 = vset.pattern.permute.xlu0 8
        %6159 = vperm.xlu0 %6158, %v5593
        %v6160 = vpop.permute.xlu0 %6159
        %6162 = vset.pattern.permute.xlu0 8
        %6163 = vperm.xlu0 %6162, %v5594
        %v6164 = vpop.permute.xlu0 %6163
        %6166 = vset.pattern.permute.xlu0 8
        %6167 = vperm.xlu0 %6166, %v5595
        %v6168 = vpop.permute.xlu0 %6167
        %6170 = vset.pattern.permute.xlu0 8
        %6171 = vperm.xlu0 %6170, %v5596
        %v6172 = vpop.permute.xlu0 %6171
        %6174 = vset.pattern.permute.xlu0 8
        %6175 = vperm.xlu0 %6174, %v5597
        %v6176 = vpop.permute.xlu0 %6175
        %v6178 = vmul.f32 %v5759, %v6148
        %v6179 = vmul.f32 %v5761, %v6152
        %v6180 = vmul.f32 %v5763, %v6156
        %v6181 = vmul.f32 %v5765, %v6160
        %v6182 = vmul.f32 %v5767, %v6164
        %v6183 = vmul.f32 %v5769, %v6168
        %v6184 = vmul.f32 %v5963, %v6172
        %v6185 = vmul.f32 %v6176, 0.0
        %v6186 = vlaneseq
        %v6187 = vshrl.u32 %v6186, 7
        %v6188 = vsub.s32 0, %v6187
        %v6189 = vrot.slane %v5589, %v6188
        %v6190 = vmul.f32 %v6178, %v6189
        %v6191 = vmul.f32 %v6179, %v6189
        %v6192 = vmul.f32 %v6180, %v6189
        %v6193 = vmul.f32 %v6181, %v6189
        %v6194 = vmul.f32 %v6182, %v6189
        %v6195 = vmul.f32 %v6183, %v6189
        %v6196 = vmul.f32 %v6184, %v6189
        %v6197 = vmul.f32 %v6185, %v6189
        %v6198 = vadd.f32 %v6138, %v6190
        %v6199 = vadd.f32 %v6139, %v6191
        %v6200 = vadd.f32 %v6140, %v6192
        %v6201 = vadd.f32 %v6141, %v6193
        %v6202 = vadd.f32 %v6142, %v6194
        %v6203 = vadd.f32 %v6143, %v6195
        %v6204 = vadd.f32 %v6144, %v6196
        %v6205 = vadd.f32 %v6145, %v6197
        %v6206 = vld [vmem:[%s35] sm:$0xff]
        %v6207 = vld [vmem:[%s35 + $0x8] sm:$0xff]
        %v6208 = vld [vmem:[%s35 + $0x10] sm:$0xff]
        %v6209 = vld [vmem:[%s35 + $0x18] sm:$0xff]
        %vm6210 = vcmask 261120
        %v6212 = vsel %vm6210, %v6198, 0
        %v6215 = vsel %vm6210, %v6199, 0
        %v6218 = vsel %vm6210, %v6200, 0
        %v6221 = vsel %vm6210, %v6201, 0
        %v6224 = vsel %vm6210, %v6202, 0
        %v6227 = vsel %vm6210, %v6203, 0
        %v6230 = vsel %vm6210, %v6204, 0
        %v6233 = vsel %vm6210, %v6205, 0
        %6235 = vmatprep.subr.mxu0 0.0
        %6236 = vmatpush1.msra.mxu0 0.0
        %6237 = vmatprep.subr.mxu0 0.0
        %6238 = vmatpush1.msra.mxu0 0.0
        %6239 = vmatprep.subr.mxu0 0.0
        %6240 = vmatpush1.msra.mxu0 0.0
        %6241 = vmatprep.subr.mxu0 0.0
        %6242 = vmatpush1.msra.mxu0 0.0
        %6243 = vmatprep.subr.mxu0 0.0
        %6244 = vmatpush1.msra.mxu0 0.0
        %6245 = vmatprep.subr.mxu0 0.0
        %6246 = vmatpush1.msra.mxu0 0.0
        %6247 = vmatprep.subr.mxu0 0.0
        %6248 = vmatpush1.msra.mxu0 0.0
        %6249 = vmatprep.subr.mxu0 0.0
        %6250 = vmatpush1.msra.mxu0 0.0
        %6251 = vmatprep.subr.mxu0 0.0
        %6252 = vmatpush1.msra.mxu0 0.0
        %6253 = vmatprep.subr.mxu0 0.0
        %6254 = vmatpush1.msra.mxu0 0.0
        %6255 = vmatprep.subr.mxu0 0.0
        %6256 = vmatpush1.msra.mxu0 0.0
        %6257 = vmatprep.subr.mxu0 0.0
        %6258 = vmatpush1.msra.mxu0 0.0
        %6259 = vmatprep.subr.mxu0 0.0
        %6260 = vmatpush1.msra.mxu0 %v6209
        %6261 = vmatprep.subr.mxu0 0.0
        %6262 = vmatpush1.msra.mxu0 %v6208
        %6263 = vmatprep.subr.mxu0 0.0
        %6264 = vmatpush1.msra.mxu0 %v6207
        %6265 = vmatprep.subr.mxu0 0.0
        %6266 = vmatpush1.msra.mxu0 %v6206
        %6267 = vmatprep.subr.mxu0 0.0
        %6268 = vmatpush2.msra.mxu0 0.0
        %6269 = vmatprep.subr.mxu0 0.0
        %6270 = vmatpush2.msra.mxu0 0.0
        %6271 = vmatprep.subr.mxu0 0.0
        %6272 = vmatpush2.msra.mxu0 0.0
        %6273 = vmatprep.subr.mxu0 0.0
        %6274 = vmatpush2.msra.mxu0 0.0
        %6275 = vmatprep.subr.mxu0 0.0
        %6276 = vmatpush2.msra.mxu0 0.0
        %6277 = vmatprep.subr.mxu0 0.0
        %6278 = vmatpush2.msra.mxu0 0.0
        %6279 = vmatprep.subr.mxu0 0.0
        %6280 = vmatpush2.msra.mxu0 0.0
        %6281 = vmatprep.subr.mxu0 0.0
        %6282 = vmatpush2.msra.mxu0 0.0
        %6283 = vmatprep.subr.mxu0 0.0
        %6284 = vmatpush2.msra.mxu0 0.0
        %6285 = vmatprep.subr.mxu0 0.0
        %6286 = vmatpush2.msra.mxu0 0.0
        %6287 = vmatprep.subr.mxu0 0.0
        %6288 = vmatpush2.msra.mxu0 0.0
        %6289 = vmatprep.subr.mxu0 0.0
        %6290 = vmatpush2.msra.mxu0 0.0
        %6291 = vmatprep.subr.mxu0 0.0
        %6292 = vmatpush2.msra.mxu0 0.0
        %6293 = vmatprep.subr.mxu0 0.0
        %6294 = vmatpush2.msra.mxu0 0.0
        %6295 = vmatprep.subr.mxu0 0.0
        %6296 = vmatpush2.msra.mxu0 0.0
        %6297 = vmatprep.subr.mxu0 0.0
        %6298 = vmatpush2.msra.mxu0 0.0
        %6299 = vmatprep.mubr.f32.mxu0 0.0
        %6300 = vmatmul.mubr.f32.gmra.mxu0 %v6212
        %v6301 = vpop.f32.mrf.mxu0
        %v6302 = vadd.f32 0.0, %v6301
        %v6303 = vpop.f32.mrf.mxu0
        %6304 = vmatprep.mubr.f32.mxu0 0.0
        %6305 = vmatmul.mubr.f32.gmra.mxu0 %v6215
        %v6306 = vpop.f32.mrf.mxu0
        %v6307 = vadd.f32 0.0, %v6306
        %v6308 = vpop.f32.mrf.mxu0
        %6309 = vmatprep.mubr.f32.mxu0 0.0
        %6310 = vmatmul.mubr.f32.gmra.mxu0 %v6218
        %v6311 = vpop.f32.mrf.mxu0
        %v6312 = vadd.f32 0.0, %v6311
        %v6313 = vpop.f32.mrf.mxu0
        %6314 = vmatprep.mubr.f32.mxu0 0.0
        %6315 = vmatmul.mubr.f32.gmra.mxu0 %v6221
        %v6316 = vpop.f32.mrf.mxu0
        %v6317 = vadd.f32 0.0, %v6316
        %v6318 = vpop.f32.mrf.mxu0
        %6319 = vmatprep.mubr.f32.mxu0 0.0
        %6320 = vmatmul.mubr.f32.gmra.mxu0 %v6224
        %v6321 = vpop.f32.mrf.mxu0
        %v6322 = vadd.f32 0.0, %v6321
        %v6323 = vpop.f32.mrf.mxu0
        %6324 = vmatprep.mubr.f32.mxu0 0.0
        %6325 = vmatmul.mubr.f32.gmra.mxu0 %v6227
        %v6326 = vpop.f32.mrf.mxu0
        %v6327 = vadd.f32 0.0, %v6326
        %v6328 = vpop.f32.mrf.mxu0
        %6329 = vmatprep.mubr.f32.mxu0 0.0
        %6330 = vmatmul.mubr.f32.gmra.mxu0 %v6230
        %v6331 = vpop.f32.mrf.mxu0
        %v6332 = vadd.f32 0.0, %v6331
        %v6333 = vpop.f32.mrf.mxu0
        %6334 = vmatprep.mubr.f32.mxu0 0.0
        %6335 = vmatmul.mubr.f32.gmra.mxu0 %v6233
        %v6336 = vpop.f32.mrf.mxu0
        %v6337 = vadd.f32 0.0, %v6336
        %v6338 = vpop.f32.mrf.mxu0
        %6339 = vdwg.mxu0
        %v6340 = vld [vmem:[%s11] sm:$0xff]
        %v6341 = vld [vmem:[%s11 + $0x8] sm:$0x1]
        %v6349 = vrot.slane %v6302, 7
        %v6350 = vrot.slane %v6307, 7
        %v6351 = vsel %vm1608, %v6349, %v6350
        %v6352 = vrot.slane %v6312, 7
        %v6353 = vsel %vm1608, %v6350, %v6352
        %v6354 = vrot.slane %v6317, 7
        %v6355 = vsel %vm1608, %v6352, %v6354
        %v6356 = vrot.slane %v6322, 7
        %v6357 = vsel %vm1608, %v6354, %v6356
        %v6358 = vrot.slane %v6327, 7
        %v6359 = vsel %vm1608, %v6356, %v6358
        %v6360 = vrot.slane %v6332, 7
        %v6361 = vsel %vm1608, %v6358, %v6360
        %v6369 = vsel %vm1608, 0.0, %v6349
        %v6370 = vmul.f32 %v6369, %v5634
        %v6371 = vmul.f32 %v6351, %v5639
        %v6372 = vmul.f32 %v6353, %v5644
        %v6373 = vmul.f32 %v6355, %v5649
        %v6374 = vmul.f32 %v6357, %v5654
        %v6375 = vmul.f32 %v6359, %v5659
        %v6376 = vmul.f32 %v6361, %v5664
        %v6377 = vlaneseq
        %v6378 = vshrl.u32 %v6377, 7
        %v6379 = vsub.s32 0, %v6378
        %v6380 = vrot.slane %v6340, %v6379
        %v6381 = vmul.f32 %v5666, %v6380
        %v6382 = vmul.f32 %v6370, %v6380
        %v6383 = vmul.f32 %v6371, %v6380
        %v6384 = vmul.f32 %v6372, %v6380
        %v6385 = vmul.f32 %v6373, %v6380
        %v6386 = vmul.f32 %v6374, %v6380
        %v6387 = vmul.f32 %v6375, %v6380
        %v6388 = vmul.f32 %v6376, %v6380
        %v6389 = vadd.f32 %v6381, 0.0
        %v6390 = vadd.f32 %v6382, 0.0
        %v6391 = vadd.f32 %v6383, 0.0
        %v6392 = vadd.f32 %v6384, 0.0
        %v6393 = vadd.f32 %v6385, 0.0
        %v6394 = vadd.f32 %v6386, 0.0
        %v6395 = vadd.f32 %v6387, 0.0
        %v6396 = vadd.f32 %v6388, 0.0
        %v6397 = vmul.f32 %v6302, %v5700
        %v6398 = vmul.f32 %v6307, %v5704
        %v6399 = vmul.f32 %v6312, %v5708
        %v6400 = vmul.f32 %v6317, %v5712
        %v6401 = vmul.f32 %v6322, %v5716
        %v6402 = vmul.f32 %v6327, %v5720
        %v6403 = vmul.f32 %v6332, %v5724
        %v6404 = vlaneseq
        %v6405 = vshrl.u32 %v6404, 7
        %v6406 = vsub.s32 1, %v6405
        %v6407 = vrot.slane %v6340, %v6406
        %v6408 = vmul.f32 %v5726, %v6407
        %v6409 = vmul.f32 %v6397, %v6407
        %v6410 = vmul.f32 %v6398, %v6407
        %v6411 = vmul.f32 %v6399, %v6407
        %v6412 = vmul.f32 %v6400, %v6407
        %v6413 = vmul.f32 %v6401, %v6407
        %v6414 = vmul.f32 %v6402, %v6407
        %v6415 = vmul.f32 %v6403, %v6407
        %v6416 = vadd.f32 %v6389, %v6408
        %v6417 = vadd.f32 %v6390, %v6409
        %v6418 = vadd.f32 %v6391, %v6410
        %v6419 = vadd.f32 %v6392, %v6411
        %v6420 = vadd.f32 %v6393, %v6412
        %v6421 = vadd.f32 %v6394, %v6413
        %v6422 = vadd.f32 %v6395, %v6414
        %v6423 = vadd.f32 %v6396, %v6415
        %v6425 = vrot.slane %v6302, 1
        %v6426 = vrot.slane %v6307, 1
        %v6427 = vsel %vm2188, %v6425, %v6426
        %v6428 = vrot.slane %v6312, 1
        %v6429 = vsel %vm2188, %v6426, %v6428
        %v6430 = vrot.slane %v6317, 1
        %v6431 = vsel %vm2188, %v6428, %v6430
        %v6432 = vrot.slane %v6322, 1
        %v6433 = vsel %vm2188, %v6430, %v6432
        %v6434 = vrot.slane %v6327, 1
        %v6435 = vsel %vm2188, %v6432, %v6434
        %v6436 = vrot.slane %v6332, 1
        %v6437 = vsel %vm2188, %v6434, %v6436
        %v6438 = vrot.slane %v6337, 1
        %v6439 = vsel %vm2188, %v6436, %v6438
        %v6448 = vsel %vm2188, 0.0, %v6425
        %v6449 = vmul.f32 %v6448, %v5781
        %v6450 = vmul.f32 %v6427, %v5785
        %v6451 = vmul.f32 %v6429, %v5789
        %v6452 = vmul.f32 %v6431, %v5793
        %v6453 = vmul.f32 %v6433, %v5797
        %v6454 = vmul.f32 %v6435, %v5801
        %v6455 = vmul.f32 %v6437, %v5805
        %v6456 = vmul.f32 %v6439, %v5809
        %v6457 = vlaneseq
        %v6458 = vshrl.u32 %v6457, 7
        %v6459 = vsub.s32 2, %v6458
        %v6460 = vrot.slane %v6340, %v6459
        %v6461 = vmul.f32 %v6449, %v6460
        %v6462 = vmul.f32 %v6450, %v6460
        %v6463 = vmul.f32 %v6451, %v6460
        %v6464 = vmul.f32 %v6452, %v6460
        %v6465 = vmul.f32 %v6453, %v6460
        %v6466 = vmul.f32 %v6454, %v6460
        %v6467 = vmul.f32 %v6455, %v6460
        %v6468 = vmul.f32 %v6456, %v6460
        %v6469 = vadd.f32 %v6416, %v6461
        %v6470 = vadd.f32 %v6417, %v6462
        %v6471 = vadd.f32 %v6418, %v6463
        %v6472 = vadd.f32 %v6419, %v6464
        %v6473 = vadd.f32 %v6420, %v6465
        %v6474 = vadd.f32 %v6421, %v6466
        %v6475 = vadd.f32 %v6422, %v6467
        %v6476 = vadd.f32 %v6423, %v6468
        %v6477 = vrot.slane %v6337, 7
        %v6478 = vsel %vm1608, %v6360, %v6477
        %v6480 = vmul.f32 %v6369, %v5844
        %v6481 = vmul.f32 %v6351, %v5848
        %v6482 = vmul.f32 %v6353, %v5852
        %v6483 = vmul.f32 %v6355, %v5856
        %v6484 = vmul.f32 %v6357, %v5860
        %v6485 = vmul.f32 %v6359, %v5864
        %v6486 = vmul.f32 %v6361, %v5868
        %v6487 = vmul.f32 %v6478, %v5872
        %v6488 = vlaneseq
        %v6489 = vshrl.u32 %v6488, 7
        %v6490 = vsub.s32 3, %v6489
        %v6491 = vrot.slane %v6340, %v6490
        %v6492 = vmul.f32 %v6480, %v6491
        %v6493 = vmul.f32 %v6481, %v6491
        %v6494 = vmul.f32 %v6482, %v6491
        %v6495 = vmul.f32 %v6483, %v6491
        %v6496 = vmul.f32 %v6484, %v6491
        %v6497 = vmul.f32 %v6485, %v6491
        %v6498 = vmul.f32 %v6486, %v6491
        %v6499 = vmul.f32 %v6487, %v6491
        %v6500 = vadd.f32 %v6469, %v6492
        %v6501 = vadd.f32 %v6470, %v6493
        %v6502 = vadd.f32 %v6471, %v6494
        %v6503 = vadd.f32 %v6472, %v6495
        %v6504 = vadd.f32 %v6473, %v6496
        %v6505 = vadd.f32 %v6474, %v6497
        %v6506 = vadd.f32 %v6475, %v6498
        %v6507 = vadd.f32 %v6476, %v6499
        %v6508 = vmul.f32 %v6302, %v5904
        %v6509 = vmul.f32 %v6307, %v5908
        %v6510 = vmul.f32 %v6312, %v5912
        %v6511 = vmul.f32 %v6317, %v5916
        %v6512 = vmul.f32 %v6322, %v5920
        %v6513 = vmul.f32 %v6327, %v5924
        %v6514 = vmul.f32 %v6332, %v5928
        %v6515 = vmul.f32 %v6337, %v5932
        %v6516 = vlaneseq
        %v6517 = vshrl.u32 %v6516, 7
        %v6518 = vsub.s32 4, %v6517
        %v6519 = vrot.slane %v6340, %v6518
        %v6520 = vmul.f32 %v6508, %v6519
        %v6521 = vmul.f32 %v6509, %v6519
        %v6522 = vmul.f32 %v6510, %v6519
        %v6523 = vmul.f32 %v6511, %v6519
        %v6524 = vmul.f32 %v6512, %v6519
        %v6525 = vmul.f32 %v6513, %v6519
        %v6526 = vmul.f32 %v6514, %v6519
        %v6527 = vmul.f32 %v6515, %v6519
        %v6528 = vadd.f32 %v6500, %v6520
        %v6529 = vadd.f32 %v6501, %v6521
        %v6530 = vadd.f32 %v6502, %v6522
        %v6531 = vadd.f32 %v6503, %v6523
        %v6532 = vadd.f32 %v6504, %v6524
        %v6533 = vadd.f32 %v6505, %v6525
        %v6534 = vadd.f32 %v6506, %v6526
        %v6535 = vadd.f32 %v6507, %v6527
        %v6537 = vsel %vm2188, %v6438, 0.0
        %v6538 = vmul.f32 %v6427, %v5966
        %v6539 = vmul.f32 %v6429, %v5970
        %v6540 = vmul.f32 %v6431, %v5974
        %v6541 = vmul.f32 %v6433, %v5978
        %v6542 = vmul.f32 %v6435, %v5982
        %v6543 = vmul.f32 %v6437, %v5986
        %v6544 = vmul.f32 %v6439, %v5990
        %v6545 = vmul.f32 %v6537, %v5994
        %v6546 = vlaneseq
        %v6547 = vshrl.u32 %v6546, 7
        %v6548 = vsub.s32 5, %v6547
        %v6549 = vrot.slane %v6340, %v6548
        %v6550 = vmul.f32 %v6538, %v6549
        %v6551 = vmul.f32 %v6539, %v6549
        %v6552 = vmul.f32 %v6540, %v6549
        %v6553 = vmul.f32 %v6541, %v6549
        %v6554 = vmul.f32 %v6542, %v6549
        %v6555 = vmul.f32 %v6543, %v6549
        %v6556 = vmul.f32 %v6544, %v6549
        %v6557 = vmul.f32 %v6545, %v6549
        %v6558 = vadd.f32 %v6528, %v6550
        %v6559 = vadd.f32 %v6529, %v6551
        %v6560 = vadd.f32 %v6530, %v6552
        %v6561 = vadd.f32 %v6531, %v6553
        %v6562 = vadd.f32 %v6532, %v6554
        %v6563 = vadd.f32 %v6533, %v6555
        %v6564 = vadd.f32 %v6534, %v6556
        %v6565 = vadd.f32 %v6535, %v6557
        %v6567 = vsel %vm1608, %v6477, 0.0
        %v6568 = vmul.f32 %v6351, %v6028
        %v6569 = vmul.f32 %v6353, %v6032
        %v6570 = vmul.f32 %v6355, %v6036
        %v6571 = vmul.f32 %v6357, %v6040
        %v6572 = vmul.f32 %v6359, %v6044
        %v6573 = vmul.f32 %v6361, %v6048
        %v6574 = vmul.f32 %v6478, %v6052
        %v6575 = vmul.f32 %v6567, %v6056
        %v6576 = vlaneseq
        %v6577 = vshrl.u32 %v6576, 7
        %v6578 = vsub.s32 6, %v6577
        %v6579 = vrot.slane %v6340, %v6578
        %v6580 = vmul.f32 %v6568, %v6579
        %v6581 = vmul.f32 %v6569, %v6579
        %v6582 = vmul.f32 %v6570, %v6579
        %v6583 = vmul.f32 %v6571, %v6579
        %v6584 = vmul.f32 %v6572, %v6579
        %v6585 = vmul.f32 %v6573, %v6579
        %v6586 = vmul.f32 %v6574, %v6579
        %v6587 = vmul.f32 %v6575, %v6579
        %v6588 = vadd.f32 %v6558, %v6580
        %v6589 = vadd.f32 %v6559, %v6581
        %v6590 = vadd.f32 %v6560, %v6582
        %v6591 = vadd.f32 %v6561, %v6583
        %v6592 = vadd.f32 %v6562, %v6584
        %v6593 = vadd.f32 %v6563, %v6585
        %v6594 = vadd.f32 %v6564, %v6586
        %v6595 = vadd.f32 %v6565, %v6587
        %v6596 = vmul.f32 %v6307, %v6088
        %v6597 = vmul.f32 %v6312, %v6092
        %v6598 = vmul.f32 %v6317, %v6096
        %v6599 = vmul.f32 %v6322, %v6100
        %v6600 = vmul.f32 %v6327, %v6104
        %v6601 = vmul.f32 %v6332, %v6108
        %v6602 = vmul.f32 %v6337, %v6112
        %v6603 = vlaneseq
        %v6604 = vshrl.u32 %v6603, 7
        %v6605 = vsub.s32 7, %v6604
        %v6606 = vrot.slane %v6340, %v6605
        %v6607 = vmul.f32 %v6596, %v6606
        %v6608 = vmul.f32 %v6597, %v6606
        %v6609 = vmul.f32 %v6598, %v6606
        %v6610 = vmul.f32 %v6599, %v6606
        %v6611 = vmul.f32 %v6600, %v6606
        %v6612 = vmul.f32 %v6601, %v6606
        %v6613 = vmul.f32 %v6602, %v6606
        %v6614 = vmul.f32 %v6125, %v6606
        %v6615 = vadd.f32 %v6588, %v6607
        %v6616 = vadd.f32 %v6589, %v6608
        %v6617 = vadd.f32 %v6590, %v6609
        %v6618 = vadd.f32 %v6591, %v6610
        %v6619 = vadd.f32 %v6592, %v6611
        %v6620 = vadd.f32 %v6593, %v6612
        %v6621 = vadd.f32 %v6594, %v6613
        %v6622 = vadd.f32 %v6595, %v6614
        %v6623 = vmul.f32 %v6429, %v6148
        %v6624 = vmul.f32 %v6431, %v6152
        %v6625 = vmul.f32 %v6433, %v6156
        %v6626 = vmul.f32 %v6435, %v6160
        %v6627 = vmul.f32 %v6437, %v6164
        %v6628 = vmul.f32 %v6439, %v6168
        %v6629 = vmul.f32 %v6537, %v6172
        %v6630 = vlaneseq
        %v6631 = vshrl.u32 %v6630, 7
        %v6632 = vsub.s32 0, %v6631
        %v6633 = vrot.slane %v6341, %v6632
        %v6634 = vmul.f32 %v6623, %v6633
        %v6635 = vmul.f32 %v6624, %v6633
        %v6636 = vmul.f32 %v6625, %v6633
        %v6637 = vmul.f32 %v6626, %v6633
        %v6638 = vmul.f32 %v6627, %v6633
        %v6639 = vmul.f32 %v6628, %v6633
        %v6640 = vmul.f32 %v6629, %v6633
        %v6641 = vmul.f32 %v6185, %v6633
        %v6642 = vadd.f32 %v6615, %v6634
        %v6643 = vadd.f32 %v6616, %v6635
        %v6644 = vadd.f32 %v6617, %v6636
        %v6645 = vadd.f32 %v6618, %v6637
        %v6646 = vadd.f32 %v6619, %v6638
        %v6647 = vadd.f32 %v6620, %v6639
        %v6648 = vadd.f32 %v6621, %v6640
        %v6649 = vadd.f32 %v6622, %v6641
        %v6650 = vld [vmem:[%s69] sm:$0xff]
        %v6651 = vld [vmem:[%s69 + $0x8] sm:$0xff]
        %vm6652 = vcmask 523264
        %v6654 = vsel %vm6652, %v6650, 0
        %v6657 = vsel %vm6652, %v6651, 0
        %6659 = vmatprep.subr.mxu0 0.0
        %6660 = vmatpush1.msra.mxu0 0.0
        %6661 = vmatprep.subr.mxu0 0.0
        %6662 = vmatpush1.msra.mxu0 0.0
        %6663 = vmatprep.subr.mxu0 0.0
        %6664 = vmatpush1.msra.mxu0 0.0
        %6665 = vmatprep.subr.mxu0 0.0
        %6666 = vmatpush1.msra.mxu0 0.0
        %6667 = vmatprep.subr.mxu0 0.0
        %6668 = vmatpush1.msra.mxu0 0.0
        %6669 = vmatprep.subr.mxu0 0.0
        %6670 = vmatpush1.msra.mxu0 0.0
        %6671 = vmatprep.subr.mxu0 0.0
        %6672 = vmatpush1.msra.mxu0 0.0
        %6673 = vmatprep.subr.mxu0 0.0
        %6674 = vmatpush1.msra.mxu0 0.0
        %6675 = vmatprep.subr.mxu0 0.0
        %6676 = vmatpush1.msra.mxu0 %v6649
        %6677 = vmatprep.subr.mxu0 0.0
        %6678 = vmatpush1.msra.mxu0 %v6648
        %6679 = vmatprep.subr.mxu0 0.0
        %6680 = vmatpush1.msra.mxu0 %v6647
        %6681 = vmatprep.subr.mxu0 0.0
        %6682 = vmatpush1.msra.mxu0 %v6646
        %6683 = vmatprep.subr.mxu0 0.0
        %6684 = vmatpush1.msra.mxu0 %v6645
        %6685 = vmatprep.subr.mxu0 0.0
        %6686 = vmatpush1.msra.mxu0 %v6644
        %6687 = vmatprep.subr.mxu0 0.0
        %6688 = vmatpush1.msra.mxu0 %v6643
        %6689 = vmatprep.subr.mxu0 0.0
        %6690 = vmatpush1.msra.mxu0 %v6642
        %6691 = vmatprep.subr.mxu0 0.0
        %6692 = vmatpush2.msra.mxu0 0.0
        %6693 = vmatprep.subr.mxu0 0.0
        %6694 = vmatpush2.msra.mxu0 0.0
        %6695 = vmatprep.subr.mxu0 0.0
        %6696 = vmatpush2.msra.mxu0 0.0
        %6697 = vmatprep.subr.mxu0 0.0
        %6698 = vmatpush2.msra.mxu0 0.0
        %6699 = vmatprep.subr.mxu0 0.0
        %6700 = vmatpush2.msra.mxu0 0.0
        %6701 = vmatprep.subr.mxu0 0.0
        %6702 = vmatpush2.msra.mxu0 0.0
        %6703 = vmatprep.subr.mxu0 0.0
        %6704 = vmatpush2.msra.mxu0 0.0
        %6705 = vmatprep.subr.mxu0 0.0
        %6706 = vmatpush2.msra.mxu0 0.0
        %6707 = vmatprep.subr.mxu0 0.0
        %6708 = vmatpush2.msra.mxu0 0.0
        %6709 = vmatprep.subr.mxu0 0.0
        %6710 = vmatpush2.msra.mxu0 0.0
        %6711 = vmatprep.subr.mxu0 0.0
        %6712 = vmatpush2.msra.mxu0 0.0
        %6713 = vmatprep.subr.mxu0 0.0
        %6714 = vmatpush2.msra.mxu0 0.0
        %6715 = vmatprep.subr.mxu0 0.0
        %6716 = vmatpush2.msra.mxu0 0.0
        %6717 = vmatprep.subr.mxu0 0.0
        %6718 = vmatpush2.msra.mxu0 0.0
        %6719 = vmatprep.subr.mxu0 0.0
        %6720 = vmatpush2.msra.mxu0 0.0
        %6721 = vmatprep.subr.mxu0 0.0
        %6722 = vmatpush2.msra.mxu0 0.0
        %6723 = vmatprep.mubr.f32.mxu0 0.0
        %6724 = vmatmul.mubr.f32.gmra.mxu0 %v6654
        %v6725 = vpop.f32.mrf.mxu0
        %v6726 = vadd.f32 0.0, %v6725
        %v6727 = vpop.f32.mrf.mxu0
        %6728 = vmatprep.mubr.f32.mxu0 0.0
        %6729 = vmatmul.mubr.f32.gmra.mxu0 %v6657
        %v6730 = vpop.f32.mrf.mxu0
        %v6731 = vadd.f32 0.0, %v6730
        %v6732 = vpop.f32.mrf.mxu0
        %6733 = vdwg.mxu0
        %v6734 = vld [vmem:[%s37] sm:$0xff]
        %v6735 = vld [vmem:[%s37 + $0x8] sm:$0xff]
        %v6736 = vld [vmem:[%s37 + $0x10] sm:$0xff]
        %v6737 = vld [vmem:[%s37 + $0x18] sm:$0xff]
        %v6739 = vsel %vm6210, %v6726, 0
        %v6742 = vsel %vm6210, %v6731, 0
        %6744 = vmatprep.subr.mxu0 0.0
        %6745 = vmatpush1.msra.mxu0 0.0
        %6746 = vmatprep.subr.mxu0 0.0
        %6747 = vmatpush1.msra.mxu0 0.0
        %6748 = vmatprep.subr.mxu0 0.0
        %6749 = vmatpush1.msra.mxu0 0.0
        %6750 = vmatprep.subr.mxu0 0.0
        %6751 = vmatpush1.msra.mxu0 0.0
        %6752 = vmatprep.subr.mxu0 0.0
        %6753 = vmatpush1.msra.mxu0 0.0
        %6754 = vmatprep.subr.mxu0 0.0
        %6755 = vmatpush1.msra.mxu0 0.0
        %6756 = vmatprep.subr.mxu0 0.0
        %6757 = vmatpush1.msra.mxu0 0.0
        %6758 = vmatprep.subr.mxu0 0.0
        %6759 = vmatpush1.msra.mxu0 0.0
        %6760 = vmatprep.subr.mxu0 0.0
        %6761 = vmatpush1.msra.mxu0 0.0
        %6762 = vmatprep.subr.mxu0 0.0
        %6763 = vmatpush1.msra.mxu0 0.0
        %6764 = vmatprep.subr.mxu0 0.0
        %6765 = vmatpush1.msra.mxu0 0.0
        %6766 = vmatprep.subr.mxu0 0.0
        %6767 = vmatpush1.msra.mxu0 0.0
        %6768 = vmatprep.subr.mxu0 0.0
        %6769 = vmatpush1.msra.mxu0 %v6737
        %6770 = vmatprep.subr.mxu0 0.0
        %6771 = vmatpush1.msra.mxu0 %v6736
        %6772 = vmatprep.subr.mxu0 0.0
        %6773 = vmatpush1.msra.mxu0 %v6735
        %6774 = vmatprep.subr.mxu0 0.0
        %6775 = vmatpush1.msra.mxu0 %v6734
        %6776 = vmatprep.subr.mxu0 0.0
        %6777 = vmatpush2.msra.mxu0 0.0
        %6778 = vmatprep.subr.mxu0 0.0
        %6779 = vmatpush2.msra.mxu0 0.0
        %6780 = vmatprep.subr.mxu0 0.0
        %6781 = vmatpush2.msra.mxu0 0.0
        %6782 = vmatprep.subr.mxu0 0.0
        %6783 = vmatpush2.msra.mxu0 0.0
        %6784 = vmatprep.subr.mxu0 0.0
        %6785 = vmatpush2.msra.mxu0 0.0
        %6786 = vmatprep.subr.mxu0 0.0
        %6787 = vmatpush2.msra.mxu0 0.0
        %6788 = vmatprep.subr.mxu0 0.0
        %6789 = vmatpush2.msra.mxu0 0.0
        %6790 = vmatprep.subr.mxu0 0.0
        %6791 = vmatpush2.msra.mxu0 0.0
        %6792 = vmatprep.subr.mxu0 0.0
        %6793 = vmatpush2.msra.mxu0 0.0
        %6794 = vmatprep.subr.mxu0 0.0
        %6795 = vmatpush2.msra.mxu0 0.0
        %6796 = vmatprep.subr.mxu0 0.0
        %6797 = vmatpush2.msra.mxu0 0.0
        %6798 = vmatprep.subr.mxu0 0.0
        %6799 = vmatpush2.msra.mxu0 0.0
        %6800 = vmatprep.subr.mxu0 0.0
        %6801 = vmatpush2.msra.mxu0 0.0
        %6802 = vmatprep.subr.mxu0 0.0
        %6803 = vmatpush2.msra.mxu0 0.0
        %6804 = vmatprep.subr.mxu0 0.0
        %6805 = vmatpush2.msra.mxu0 0.0
        %6806 = vmatprep.subr.mxu0 0.0
        %6807 = vmatpush2.msra.mxu0 0.0
        %6808 = vmatprep.mubr.f32.mxu0 0.0
        %6809 = vmatmul.mubr.f32.gmra.mxu0 %v6739
        %v6810 = vpop.f32.mrf.mxu0
        %v6811 = vadd.f32 0.0, %v6810
        %v6812 = vpop.f32.mrf.mxu0
        %6813 = vmatprep.mubr.f32.mxu0 0.0
        %6814 = vmatmul.mubr.f32.gmra.mxu0 %v6742
        %v6815 = vpop.f32.mrf.mxu0
        %v6816 = vadd.f32 0.0, %v6815
        %v6817 = vpop.f32.mrf.mxu0
        %6818 = vdwg.mxu0
        %v6819 = vld [vmem:[%s13] sm:$0xff]
        %v6820 = vld [vmem:[%s13 + $0x8] sm:$0x1]
        %v6821 = vld [vmem:[%s61] sm:$0xff]
        %v6822 = vld [vmem:[%s61 + $0x8] sm:$0xff]
        %vm6825 = vcmask 1044480
        %v6826 = vrot.slane %v6811, 3
        %v6827 = vrot.slane %v6816, 3
        %v6828 = vsel %vm6825, %v6826, %v6827
        %v6831 = vsel %vm6825, 0.0, %v6826
        %6833 = vset.pattern.permute.xlu0 0
        %6834 = vperm.xlu0 %6833, %v6821
        %v6835 = vpop.permute.xlu0 %6834
        %6838 = vset.pattern.permute.xlu0 0
        %6839 = vperm.xlu0 %6838, %v6822
        %v6840 = vpop.permute.xlu0 %6839
        %v6842 = vmul.f32 %v6831, %v6835
        %v6843 = vmul.f32 %v6828, %v6840
        %v6844 = vlaneseq
        %v6845 = vshrl.u32 %v6844, 7
        %v6846 = vsub.s32 0, %v6845
        %v6847 = vrot.slane %v6819, %v6846
        %v6848 = vmul.f32 %v6842, %v6847
        %v6849 = vmul.f32 %v6843, %v6847
        %v6850 = vadd.f32 %v6848, 0.0
        %v6851 = vadd.f32 %v6849, 0.0
        %vm6852 = vcmask 1043456
        %v6853 = vrot.slane %v6811, 4
        %v6854 = vrot.slane %v6816, 4
        %v6855 = vsel %vm6852, %v6853, %v6854
        %v6858 = vsel %vm6852, 0.0, %v6853
        %6859 = vset.pattern.permute.xlu0 1
        %6860 = vperm.xlu0 %6859, %v6821
        %v6861 = vpop.permute.xlu0 %6860
        %6863 = vset.pattern.permute.xlu0 1
        %6864 = vperm.xlu0 %6863, %v6822
        %v6865 = vpop.permute.xlu0 %6864
        %v6867 = vmul.f32 %v6858, %v6861
        %v6868 = vmul.f32 %v6855, %v6865
        %v6869 = vlaneseq
        %v6870 = vshrl.u32 %v6869, 7
        %v6871 = vsub.s32 1, %v6870
        %v6872 = vrot.slane %v6819, %v6871
        %v6873 = vmul.f32 %v6867, %v6872
        %v6874 = vmul.f32 %v6868, %v6872
        %v6875 = vadd.f32 %v6850, %v6873
        %v6876 = vadd.f32 %v6851, %v6874
        %v6877 = vrot.slane %v6811, 5
        %v6878 = vrot.slane %v6816, 5
        %v6879 = vsel %vm1315, %v6877, %v6878
        %v6882 = vsel %vm1315, 0.0, %v6877
        %6883 = vset.pattern.permute.xlu0 2
        %6884 = vperm.xlu0 %6883, %v6821
        %v6885 = vpop.permute.xlu0 %6884
        %6887 = vset.pattern.permute.xlu0 2
        %6888 = vperm.xlu0 %6887, %v6822
        %v6889 = vpop.permute.xlu0 %6888
        %v6891 = vmul.f32 %v6882, %v6885
        %v6892 = vmul.f32 %v6879, %v6889
        %v6893 = vlaneseq
        %v6894 = vshrl.u32 %v6893, 7
        %v6895 = vsub.s32 2, %v6894
        %v6896 = vrot.slane %v6819, %v6895
        %v6897 = vmul.f32 %v6891, %v6896
        %v6898 = vmul.f32 %v6892, %v6896
        %v6899 = vadd.f32 %v6875, %v6897
        %v6900 = vadd.f32 %v6876, %v6898
        %v6901 = vrot.slane %v6811, 7
        %v6902 = vrot.slane %v6816, 7
        %v6903 = vsel %vm1608, %v6901, %v6902
        %v6906 = vsel %vm1608, 0.0, %v6901
        %6907 = vset.pattern.permute.xlu0 3
        %6908 = vperm.xlu0 %6907, %v6821
        %v6909 = vpop.permute.xlu0 %6908
        %6911 = vset.pattern.permute.xlu0 3
        %6912 = vperm.xlu0 %6911, %v6822
        %v6913 = vpop.permute.xlu0 %6912
        %v6915 = vmul.f32 %v6906, %v6909
        %v6916 = vmul.f32 %v6903, %v6913
        %v6917 = vlaneseq
        %v6918 = vshrl.u32 %v6917, 7
        %v6919 = vsub.s32 3, %v6918
        %v6920 = vrot.slane %v6819, %v6919
        %v6921 = vmul.f32 %v6915, %v6920
        %v6922 = vmul.f32 %v6916, %v6920
        %v6923 = vadd.f32 %v6899, %v6921
        %v6924 = vadd.f32 %v6900, %v6922
        %6925 = vset.pattern.permute.xlu0 4
        %6926 = vperm.xlu0 %6925, %v6821
        %v6927 = vpop.permute.xlu0 %6926
        %6929 = vset.pattern.permute.xlu0 4
        %6930 = vperm.xlu0 %6929, %v6822
        %v6931 = vpop.permute.xlu0 %6930
        %v6933 = vmul.f32 %v6811, %v6927
        %v6934 = vmul.f32 %v6816, %v6931
        %v6935 = vlaneseq
        %v6936 = vshrl.u32 %v6935, 7
        %v6937 = vsub.s32 4, %v6936
        %v6938 = vrot.slane %v6819, %v6937
        %v6939 = vmul.f32 %v6933, %v6938
        %v6940 = vmul.f32 %v6934, %v6938
        %v6941 = vadd.f32 %v6923, %v6939
        %v6942 = vadd.f32 %v6924, %v6940
        %v6943 = vrot.slane %v6811, 1
        %v6944 = vrot.slane %v6816, 1
        %v6945 = vsel %vm2188, %v6943, %v6944
        %v6948 = vsel %vm2188, %v6944, 0.0
        %6949 = vset.pattern.permute.xlu0 5
        %6950 = vperm.xlu0 %6949, %v6821
        %v6951 = vpop.permute.xlu0 %6950
        %6953 = vset.pattern.permute.xlu0 5
        %6954 = vperm.xlu0 %6953, %v6822
        %v6955 = vpop.permute.xlu0 %6954
        %v6957 = vmul.f32 %v6945, %v6951
        %v6958 = vmul.f32 %v6948, %v6955
        %v6959 = vlaneseq
        %v6960 = vshrl.u32 %v6959, 7
        %v6961 = vsub.s32 5, %v6960
        %v6962 = vrot.slane %v6819, %v6961
        %v6963 = vmul.f32 %v6957, %v6962
        %v6964 = vmul.f32 %v6958, %v6962
        %v6965 = vadd.f32 %v6941, %v6963
        %v6966 = vadd.f32 %v6942, %v6964
        %v6968 = vsel %vm6825, %v6827, 0.0
        %6969 = vset.pattern.permute.xlu0 6
        %6970 = vperm.xlu0 %6969, %v6821
        %v6971 = vpop.permute.xlu0 %6970
        %6973 = vset.pattern.permute.xlu0 6
        %6974 = vperm.xlu0 %6973, %v6822
        %v6975 = vpop.permute.xlu0 %6974
        %v6977 = vmul.f32 %v6828, %v6971
        %v6978 = vmul.f32 %v6968, %v6975
        %v6979 = vlaneseq
        %v6980 = vshrl.u32 %v6979, 7
        %v6981 = vsub.s32 6, %v6980
        %v6982 = vrot.slane %v6819, %v6981
        %v6983 = vmul.f32 %v6977, %v6982
        %v6984 = vmul.f32 %v6978, %v6982
        %v6985 = vadd.f32 %v6965, %v6983
        %v6986 = vadd.f32 %v6966, %v6984
        %v6988 = vsel %vm6852, %v6854, 0.0
        %6989 = vset.pattern.permute.xlu0 7
        %6990 = vperm.xlu0 %6989, %v6821
        %v6991 = vpop.permute.xlu0 %6990
        %6993 = vset.pattern.permute.xlu0 7
        %6994 = vperm.xlu0 %6993, %v6822
        %v6995 = vpop.permute.xlu0 %6994
        %v6997 = vmul.f32 %v6855, %v6991
        %v6998 = vmul.f32 %v6988, %v6995
        %v6999 = vlaneseq
        %v7000 = vshrl.u32 %v6999, 7
        %v7001 = vsub.s32 7, %v7000
        %v7002 = vrot.slane %v6819, %v7001
        %v7003 = vmul.f32 %v6997, %v7002
        %v7004 = vmul.f32 %v6998, %v7002
        %v7005 = vadd.f32 %v6985, %v7003
        %v7006 = vadd.f32 %v6986, %v7004
        %v7008 = vsel %vm1315, %v6878, 0.0
        %7009 = vset.pattern.permute.xlu0 8
        %7010 = vperm.xlu0 %7009, %v6821
        %v7011 = vpop.permute.xlu0 %7010
        %7013 = vset.pattern.permute.xlu0 8
        %7014 = vperm.xlu0 %7013, %v6822
        %v7015 = vpop.permute.xlu0 %7014
        %v7017 = vmul.f32 %v6879, %v7011
        %v7018 = vmul.f32 %v7008, %v7015
        %v7019 = vlaneseq
        %v7020 = vshrl.u32 %v7019, 7
        %v7021 = vsub.s32 0, %v7020
        %v7022 = vrot.slane %v6820, %v7021
        %v7023 = vmul.f32 %v7017, %v7022
        %v7024 = vmul.f32 %v7018, %v7022
        %v7025 = vadd.f32 %v7005, %v7023
        %v7026 = vadd.f32 %v7006, %v7024
        %v7027 = vld [vmem:[%s39] sm:$0xff]
        %v7028 = vld [vmem:[%s39 + $0x8] sm:$0xff]
        %v7029 = vld [vmem:[%s39 + $0x10] sm:$0xff]
        %v7030 = vld [vmem:[%s39 + $0x18] sm:$0xff]
        %v7031 = vld [vmem:[%s39 + $0x20] sm:$0xff]
        %v7032 = vld [vmem:[%s39 + $0x28] sm:$0xff]
        %v7033 = vld [vmem:[%s39 + $0x30] sm:$0xff]
        %v7034 = vld [vmem:[%s39 + $0x38] sm:$0xff]
        %v7036 = vsel %vm6652, %v7025, 0
        %v7039 = vsel %vm6652, %v7026, 0
        %7041 = vmatprep.subr.mxu0 0.0
        %7042 = vmatpush1.msra.mxu0 0.0
        %7043 = vmatprep.subr.mxu0 0.0
        %7044 = vmatpush1.msra.mxu0 0.0
        %7045 = vmatprep.subr.mxu0 0.0
        %7046 = vmatpush1.msra.mxu0 0.0
        %7047 = vmatprep.subr.mxu0 0.0
        %7048 = vmatpush1.msra.mxu0 0.0
        %7049 = vmatprep.subr.mxu0 0.0
        %7050 = vmatpush1.msra.mxu0 0.0
        %7051 = vmatprep.subr.mxu0 0.0
        %7052 = vmatpush1.msra.mxu0 0.0
        %7053 = vmatprep.subr.mxu0 0.0
        %7054 = vmatpush1.msra.mxu0 0.0
        %7055 = vmatprep.subr.mxu0 0.0
        %7056 = vmatpush1.msra.mxu0 0.0
        %7057 = vmatprep.subr.mxu0 0.0
        %7058 = vmatpush1.msra.mxu0 %v7034
        %7059 = vmatprep.subr.mxu0 0.0
        %7060 = vmatpush1.msra.mxu0 %v7033
        %7061 = vmatprep.subr.mxu0 0.0
        %7062 = vmatpush1.msra.mxu0 %v7032
        %7063 = vmatprep.subr.mxu0 0.0
        %7064 = vmatpush1.msra.mxu0 %v7031
        %7065 = vmatprep.subr.mxu0 0.0
        %7066 = vmatpush1.msra.mxu0 %v7030
        %7067 = vmatprep.subr.mxu0 0.0
        %7068 = vmatpush1.msra.mxu0 %v7029
        %7069 = vmatprep.subr.mxu0 0.0
        %7070 = vmatpush1.msra.mxu0 %v7028
        %7071 = vmatprep.subr.mxu0 0.0
        %7072 = vmatpush1.msra.mxu0 %v7027
        %7073 = vmatprep.subr.mxu0 0.0
        %7074 = vmatpush2.msra.mxu0 0.0
        %7075 = vmatprep.subr.mxu0 0.0
        %7076 = vmatpush2.msra.mxu0 0.0
        %7077 = vmatprep.subr.mxu0 0.0
        %7078 = vmatpush2.msra.mxu0 0.0
        %7079 = vmatprep.subr.mxu0 0.0
        %7080 = vmatpush2.msra.mxu0 0.0
        %7081 = vmatprep.subr.mxu0 0.0
        %7082 = vmatpush2.msra.mxu0 0.0
        %7083 = vmatprep.subr.mxu0 0.0
        %7084 = vmatpush2.msra.mxu0 0.0
        %7085 = vmatprep.subr.mxu0 0.0
        %7086 = vmatpush2.msra.mxu0 0.0
        %7087 = vmatprep.subr.mxu0 0.0
        %7088 = vmatpush2.msra.mxu0 0.0
        %7089 = vmatprep.subr.mxu0 0.0
        %7090 = vmatpush2.msra.mxu0 0.0
        %7091 = vmatprep.subr.mxu0 0.0
        %7092 = vmatpush2.msra.mxu0 0.0
        %7093 = vmatprep.subr.mxu0 0.0
        %7094 = vmatpush2.msra.mxu0 0.0
        %7095 = vmatprep.subr.mxu0 0.0
        %7096 = vmatpush2.msra.mxu0 0.0
        %7097 = vmatprep.subr.mxu0 0.0
        %7098 = vmatpush2.msra.mxu0 0.0
        %7099 = vmatprep.subr.mxu0 0.0
        %7100 = vmatpush2.msra.mxu0 0.0
        %7101 = vmatprep.subr.mxu0 0.0
        %7102 = vmatpush2.msra.mxu0 0.0
        %7103 = vmatprep.subr.mxu0 0.0
        %7104 = vmatpush2.msra.mxu0 0.0
        %7105 = vmatprep.mubr.f32.mxu0 0.0
        %7106 = vmatmul.mubr.f32.gmra.mxu0 %v7036
        %v7107 = vpop.f32.mrf.mxu0
        %v7108 = vadd.f32 0.0, %v7107
        %v7109 = vpop.f32.mrf.mxu0
        %7110 = vmatprep.mubr.f32.mxu0 0.0
        %7111 = vmatmul.mubr.f32.gmra.mxu0 %v7039
        %v7112 = vpop.f32.mrf.mxu0
        %v7113 = vadd.f32 0.0, %v7112
        %v7114 = vpop.f32.mrf.mxu0
        %7115 = vdwg.mxu0
        %v7116 = vld [vmem:[%s15] sm:$0xff]
        %v7117 = vld [vmem:[%s15 + $0x8] sm:$0x1]
        %v7120 = vrot.slane %v7108, 3
        %v7121 = vrot.slane %v7113, 3
        %v7122 = vsel %vm6825, %v7120, %v7121
        %v7125 = vsel %vm6825, 0.0, %v7120
        %v7126 = vmul.f32 %v7125, %v6835
        %v7127 = vmul.f32 %v7122, %v6840
        %v7128 = vlaneseq
        %v7129 = vshrl.u32 %v7128, 7
        %v7130 = vsub.s32 0, %v7129
        %v7131 = vrot.slane %v7116, %v7130
        %v7132 = vmul.f32 %v7126, %v7131
        %v7133 = vmul.f32 %v7127, %v7131
        %v7134 = vadd.f32 %v7132, 0.0
        %v7135 = vadd.f32 %v7133, 0.0
        %v7136 = vrot.slane %v7108, 4
        %v7137 = vrot.slane %v7113, 4
        %v7138 = vsel %vm6852, %v7136, %v7137
        %v7141 = vsel %vm6852, 0.0, %v7136
        %v7142 = vmul.f32 %v7141, %v6861
        %v7143 = vmul.f32 %v7138, %v6865
        %v7144 = vlaneseq
        %v7145 = vshrl.u32 %v7144, 7
        %v7146 = vsub.s32 1, %v7145
        %v7147 = vrot.slane %v7116, %v7146
        %v7148 = vmul.f32 %v7142, %v7147
        %v7149 = vmul.f32 %v7143, %v7147
        %v7150 = vadd.f32 %v7134, %v7148
        %v7151 = vadd.f32 %v7135, %v7149
        %v7152 = vrot.slane %v7108, 5
        %v7153 = vrot.slane %v7113, 5
        %v7154 = vsel %vm1315, %v7152, %v7153
        %v7157 = vsel %vm1315, 0.0, %v7152
        %v7158 = vmul.f32 %v7157, %v6885
        %v7159 = vmul.f32 %v7154, %v6889
        %v7160 = vlaneseq
        %v7161 = vshrl.u32 %v7160, 7
        %v7162 = vsub.s32 2, %v7161
        %v7163 = vrot.slane %v7116, %v7162
        %v7164 = vmul.f32 %v7158, %v7163
        %v7165 = vmul.f32 %v7159, %v7163
        %v7166 = vadd.f32 %v7150, %v7164
        %v7167 = vadd.f32 %v7151, %v7165
        %v7168 = vrot.slane %v7108, 7
        %v7169 = vrot.slane %v7113, 7
        %v7170 = vsel %vm1608, %v7168, %v7169
        %v7173 = vsel %vm1608, 0.0, %v7168
        %v7174 = vmul.f32 %v7173, %v6909
        %v7175 = vmul.f32 %v7170, %v6913
        %v7176 = vlaneseq
        %v7177 = vshrl.u32 %v7176, 7
        %v7178 = vsub.s32 3, %v7177
        %v7179 = vrot.slane %v7116, %v7178
        %v7180 = vmul.f32 %v7174, %v7179
        %v7181 = vmul.f32 %v7175, %v7179
        %v7182 = vadd.f32 %v7166, %v7180
        %v7183 = vadd.f32 %v7167, %v7181
        %v7184 = vmul.f32 %v7108, %v6927
        %v7185 = vmul.f32 %v7113, %v6931
        %v7186 = vlaneseq
        %v7187 = vshrl.u32 %v7186, 7
        %v7188 = vsub.s32 4, %v7187
        %v7189 = vrot.slane %v7116, %v7188
        %v7190 = vmul.f32 %v7184, %v7189
        %v7191 = vmul.f32 %v7185, %v7189
        %v7192 = vadd.f32 %v7182, %v7190
        %v7193 = vadd.f32 %v7183, %v7191
        %v7194 = vrot.slane %v7108, 1
        %v7195 = vrot.slane %v7113, 1
        %v7196 = vsel %vm2188, %v7194, %v7195
        %v7199 = vsel %vm2188, %v7195, 0.0
        %v7200 = vmul.f32 %v7196, %v6951
        %v7201 = vmul.f32 %v7199, %v6955
        %v7202 = vlaneseq
        %v7203 = vshrl.u32 %v7202, 7
        %v7204 = vsub.s32 5, %v7203
        %v7205 = vrot.slane %v7116, %v7204
        %v7206 = vmul.f32 %v7200, %v7205
        %v7207 = vmul.f32 %v7201, %v7205
        %v7208 = vadd.f32 %v7192, %v7206
        %v7209 = vadd.f32 %v7193, %v7207
        %v7211 = vsel %vm6825, %v7121, 0.0
        %v7212 = vmul.f32 %v7122, %v6971
        %v7213 = vmul.f32 %v7211, %v6975
        %v7214 = vlaneseq
        %v7215 = vshrl.u32 %v7214, 7
        %v7216 = vsub.s32 6, %v7215
        %v7217 = vrot.slane %v7116, %v7216
        %v7218 = vmul.f32 %v7212, %v7217
        %v7219 = vmul.f32 %v7213, %v7217
        %v7220 = vadd.f32 %v7208, %v7218
        %v7221 = vadd.f32 %v7209, %v7219
        %v7223 = vsel %vm6852, %v7137, 0.0
        %v7224 = vmul.f32 %v7138, %v6991
        %v7225 = vmul.f32 %v7223, %v6995
        %v7226 = vlaneseq
        %v7227 = vshrl.u32 %v7226, 7
        %v7228 = vsub.s32 7, %v7227
        %v7229 = vrot.slane %v7116, %v7228
        %v7230 = vmul.f32 %v7224, %v7229
        %v7231 = vmul.f32 %v7225, %v7229
        %v7232 = vadd.f32 %v7220, %v7230
        %v7233 = vadd.f32 %v7221, %v7231
        %v7235 = vsel %vm1315, %v7153, 0.0
        %v7236 = vmul.f32 %v7154, %v7011
        %v7237 = vmul.f32 %v7235, %v7015
        %v7238 = vlaneseq
        %v7239 = vshrl.u32 %v7238, 7
        %v7240 = vsub.s32 0, %v7239
        %v7241 = vrot.slane %v7117, %v7240
        %v7242 = vmul.f32 %v7236, %v7241
        %v7243 = vmul.f32 %v7237, %v7241
        %v7244 = vadd.f32 %v7232, %v7242
        %v7245 = vadd.f32 %v7233, %v7243
        %v7246 = vld [vmem:[%s71] sm:$0xf]
        %v7248 = vsel %vm5458, %v7246, 0
        %7250 = vmatprep.subr.mxu0 0.0
        %7251 = vmatpush1.msra.mxu0 0.0
        %7252 = vmatprep.subr.mxu0 0.0
        %7253 = vmatpush1.msra.mxu0 0.0
        %7254 = vmatprep.subr.mxu0 0.0
        %7255 = vmatpush1.msra.mxu0 0.0
        %7256 = vmatprep.subr.mxu0 0.0
        %7257 = vmatpush1.msra.mxu0 0.0
        %7258 = vmatprep.subr.mxu0 0.0
        %7259 = vmatpush1.msra.mxu0 0.0
        %7260 = vmatprep.subr.mxu0 0.0
        %7261 = vmatpush1.msra.mxu0 0.0
        %7262 = vmatprep.subr.mxu0 0.0
        %7263 = vmatpush1.msra.mxu0 0.0
        %7264 = vmatprep.subr.mxu0 0.0
        %7265 = vmatpush1.msra.mxu0 0.0
        %7266 = vmatprep.subr.mxu0 0.0
        %7267 = vmatpush1.msra.mxu0 0.0
        %7268 = vmatprep.subr.mxu0 0.0
        %7269 = vmatpush1.msra.mxu0 0.0
        %7270 = vmatprep.subr.mxu0 0.0
        %7271 = vmatpush1.msra.mxu0 0.0
        %7272 = vmatprep.subr.mxu0 0.0
        %7273 = vmatpush1.msra.mxu0 0.0
        %7274 = vmatprep.subr.mxu0 0.0
        %7275 = vmatpush1.msra.mxu0 0.0
        %7276 = vmatprep.subr.mxu0 0.0
        %7277 = vmatpush1.msra.mxu0 0.0
        %7278 = vmatprep.subr.mxu0 0.0
        %7279 = vmatpush1.msra.mxu0 %v7245
        %7280 = vmatprep.subr.mxu0 0.0
        %7281 = vmatpush1.msra.mxu0 %v7244
        %7282 = vmatprep.subr.mxu0 0.0
        %7283 = vmatpush2.msra.mxu0 0.0
        %7284 = vmatprep.subr.mxu0 0.0
        %7285 = vmatpush2.msra.mxu0 0.0
        %7286 = vmatprep.subr.mxu0 0.0
        %7287 = vmatpush2.msra.mxu0 0.0
        %7288 = vmatprep.subr.mxu0 0.0
        %7289 = vmatpush2.msra.mxu0 0.0
        %7290 = vmatprep.subr.mxu0 0.0
        %7291 = vmatpush2.msra.mxu0 0.0
        %7292 = vmatprep.subr.mxu0 0.0
        %7293 = vmatpush2.msra.mxu0 0.0
        %7294 = vmatprep.subr.mxu0 0.0
        %7295 = vmatpush2.msra.mxu0 0.0
        %7296 = vmatprep.subr.mxu0 0.0
        %7297 = vmatpush2.msra.mxu0 0.0
        %7298 = vmatprep.subr.mxu0 0.0
        %7299 = vmatpush2.msra.mxu0 0.0
        %7300 = vmatprep.subr.mxu0 0.0
        %7301 = vmatpush2.msra.mxu0 0.0
        %7302 = vmatprep.subr.mxu0 0.0
        %7303 = vmatpush2.msra.mxu0 0.0
        %7304 = vmatprep.subr.mxu0 0.0
        %7305 = vmatpush2.msra.mxu0 0.0
        %7306 = vmatprep.subr.mxu0 0.0
        %7307 = vmatpush2.msra.mxu0 0.0
        %7308 = vmatprep.subr.mxu0 0.0
        %7309 = vmatpush2.msra.mxu0 0.0
        %7310 = vmatprep.subr.mxu0 0.0
        %7311 = vmatpush2.msra.mxu0 0.0
        %7312 = vmatprep.subr.mxu0 0.0
        %7313 = vmatpush2.msra.mxu0 0.0
        %7314 = vmatprep.mubr.f32.mxu0 0.0
        %7315 = vmatmul.mubr.f32.gmra.mxu0 %v7248
        %v7316 = vpop.f32.mrf.mxu0
        %v7317 = vadd.f32 0.0, %v7316
        %v7318 = vpop.f32.mrf.mxu0
        %7319 = vdwg.mxu0
        %v7320 = vld [vmem:[%s41] sm:$0xff]
        %v7321 = vld [vmem:[%s41 + $0x8] sm:$0xff]
        %v7322 = vld [vmem:[%s41 + $0x10] sm:$0xff]
        %v7323 = vld [vmem:[%s41 + $0x18] sm:$0xff]
        %v7324 = vld [vmem:[%s41 + $0x20] sm:$0xff]
        %v7325 = vld [vmem:[%s41 + $0x28] sm:$0xff]
        %v7326 = vld [vmem:[%s41 + $0x30] sm:$0xff]
        %v7327 = vld [vmem:[%s41 + $0x38] sm:$0xff]
        %v7329 = vsel %vm6652, %v7317, 0
        %7331 = vmatprep.subr.mxu0 0.0
        %7332 = vmatpush1.msra.mxu0 0.0
        %7333 = vmatprep.subr.mxu0 0.0
        %7334 = vmatpush1.msra.mxu0 0.0
        %7335 = vmatprep.subr.mxu0 0.0
        %7336 = vmatpush1.msra.mxu0 0.0
        %7337 = vmatprep.subr.mxu0 0.0
        %7338 = vmatpush1.msra.mxu0 0.0
        %7339 = vmatprep.subr.mxu0 0.0
        %7340 = vmatpush1.msra.mxu0 0.0
        %7341 = vmatprep.subr.mxu0 0.0
        %7342 = vmatpush1.msra.mxu0 0.0
        %7343 = vmatprep.subr.mxu0 0.0
        %7344 = vmatpush1.msra.mxu0 0.0
        %7345 = vmatprep.subr.mxu0 0.0
        %7346 = vmatpush1.msra.mxu0 0.0
        %7347 = vmatprep.subr.mxu0 0.0
        %7348 = vmatpush1.msra.mxu0 %v7327
        %7349 = vmatprep.subr.mxu0 0.0
        %7350 = vmatpush1.msra.mxu0 %v7326
        %7351 = vmatprep.subr.mxu0 0.0
        %7352 = vmatpush1.msra.mxu0 %v7325
        %7353 = vmatprep.subr.mxu0 0.0
        %7354 = vmatpush1.msra.mxu0 %v7324
        %7355 = vmatprep.subr.mxu0 0.0
        %7356 = vmatpush1.msra.mxu0 %v7323
        %7357 = vmatprep.subr.mxu0 0.0
        %7358 = vmatpush1.msra.mxu0 %v7322
        %7359 = vmatprep.subr.mxu0 0.0
        %7360 = vmatpush1.msra.mxu0 %v7321
        %7361 = vmatprep.subr.mxu0 0.0
        %7362 = vmatpush1.msra.mxu0 %v7320
        %7363 = vmatprep.subr.mxu0 0.0
        %7364 = vmatpush2.msra.mxu0 0.0
        %7365 = vmatprep.subr.mxu0 0.0
        %7366 = vmatpush2.msra.mxu0 0.0
        %7367 = vmatprep.subr.mxu0 0.0
        %7368 = vmatpush2.msra.mxu0 0.0
        %7369 = vmatprep.subr.mxu0 0.0
        %7370 = vmatpush2.msra.mxu0 0.0
        %7371 = vmatprep.subr.mxu0 0.0
        %7372 = vmatpush2.msra.mxu0 0.0
        %7373 = vmatprep.subr.mxu0 0.0
        %7374 = vmatpush2.msra.mxu0 0.0
        %7375 = vmatprep.subr.mxu0 0.0
        %7376 = vmatpush2.msra.mxu0 0.0
        %7377 = vmatprep.subr.mxu0 0.0
        %7378 = vmatpush2.msra.mxu0 0.0
        %7379 = vmatprep.subr.mxu0 0.0
        %7380 = vmatpush2.msra.mxu0 0.0
        %7381 = vmatprep.subr.mxu0 0.0
        %7382 = vmatpush2.msra.mxu0 0.0
        %7383 = vmatprep.subr.mxu0 0.0
        %7384 = vmatpush2.msra.mxu0 0.0
        %7385 = vmatprep.subr.mxu0 0.0
        %7386 = vmatpush2.msra.mxu0 0.0
        %7387 = vmatprep.subr.mxu0 0.0
        %7388 = vmatpush2.msra.mxu0 0.0
        %7389 = vmatprep.subr.mxu0 0.0
        %7390 = vmatpush2.msra.mxu0 0.0
        %7391 = vmatprep.subr.mxu0 0.0
        %7392 = vmatpush2.msra.mxu0 0.0
        %7393 = vmatprep.subr.mxu0 0.0
        %7394 = vmatpush2.msra.mxu0 0.0
        %7395 = vmatprep.mubr.f32.mxu0 0.0
        %7396 = vmatmul.mubr.f32.gmra.mxu0 %v7329
        %v7397 = vpop.f32.mrf.mxu0
        %v7398 = vadd.f32 0.0, %v7397
        %v7399 = vpop.f32.mrf.mxu0
        %7400 = vdwg.mxu0
        %v7401 = vld [vmem:[%s17] sm:$0xff]
        %v7402 = vld [vmem:[%s17 + $0x8] sm:$0x1]
        %v7403 = vld [vmem:[%s63] sm:$0xf]
        %v7405 = vrot.slane %v7398, 5
        %v7407 = vsel %vm1315, 0.0, %v7405
        %7409 = vset.pattern.permute.xlu0 0
        %7410 = vperm.xlu0 %7409, %v7403
        %v7411 = vpop.permute.xlu0 %7410
        %v7413 = vmul.f32 %v7407, %v7411
        %v7414 = vlaneseq
        %v7415 = vshrl.u32 %v7414, 7
        %v7416 = vsub.s32 0, %v7415
        %v7417 = vrot.slane %v7401, %v7416
        %v7418 = vmul.f32 %v7413, %v7417
        %v7419 = vadd.f32 %v7418, 0.0
        %v7420 = vrot.slane %v7398, 6
        %vm7422 = vcmask 1041408
        %v7423 = vsel %vm7422, 0.0, %v7420
        %7424 = vset.pattern.permute.xlu0 1
        %7425 = vperm.xlu0 %7424, %v7403
        %v7426 = vpop.permute.xlu0 %7425
        %v7428 = vmul.f32 %v7423, %v7426
        %v7429 = vlaneseq
        %v7430 = vshrl.u32 %v7429, 7
        %v7431 = vsub.s32 1, %v7430
        %v7432 = vrot.slane %v7401, %v7431
        %v7433 = vmul.f32 %v7428, %v7432
        %v7434 = vadd.f32 %v7419, %v7433
        %v7435 = vrot.slane %v7398, 7
        %v7437 = vsel %vm1608, 0.0, %v7435
        %7438 = vset.pattern.permute.xlu0 2
        %7439 = vperm.xlu0 %7438, %v7403
        %v7440 = vpop.permute.xlu0 %7439
        %v7442 = vmul.f32 %v7437, %v7440
        %v7443 = vlaneseq
        %v7444 = vshrl.u32 %v7443, 7
        %v7445 = vsub.s32 2, %v7444
        %v7446 = vrot.slane %v7401, %v7445
        %v7447 = vmul.f32 %v7442, %v7446
        %v7448 = vadd.f32 %v7434, %v7447
        %7449 = vset.pattern.permute.xlu0 3
        %7450 = vperm.xlu0 %7449, %v7403
        %v7451 = vpop.permute.xlu0 %7450
        %v7453 = vmul.f32 %v7437, %v7451
        %v7454 = vlaneseq
        %v7455 = vshrl.u32 %v7454, 7
        %v7456 = vsub.s32 3, %v7455
        %v7457 = vrot.slane %v7401, %v7456
        %v7458 = vmul.f32 %v7453, %v7457
        %v7459 = vadd.f32 %v7448, %v7458
        %7460 = vset.pattern.permute.xlu0 4
        %7461 = vperm.xlu0 %7460, %v7403
        %v7462 = vpop.permute.xlu0 %7461
        %v7464 = vmul.f32 %v7398, %v7462
        %v7465 = vlaneseq
        %v7466 = vshrl.u32 %v7465, 7
        %v7467 = vsub.s32 4, %v7466
        %v7468 = vrot.slane %v7401, %v7467
        %v7469 = vmul.f32 %v7464, %v7468
        %v7470 = vadd.f32 %v7459, %v7469
        %v7471 = vrot.slane %v7398, 1
        %v7473 = vsel %vm1315, %v7471, 0.0
        %7474 = vset.pattern.permute.xlu0 5
        %7475 = vperm.xlu0 %7474, %v7403
        %v7476 = vpop.permute.xlu0 %7475
        %v7478 = vmul.f32 %v7473, %v7476
        %v7479 = vlaneseq
        %v7480 = vshrl.u32 %v7479, 7
        %v7481 = vsub.s32 5, %v7480
        %v7482 = vrot.slane %v7401, %v7481
        %v7483 = vmul.f32 %v7478, %v7482
        %v7484 = vadd.f32 %v7470, %v7483
        %7485 = vset.pattern.permute.xlu0 6
        %7486 = vperm.xlu0 %7485, %v7403
        %v7487 = vpop.permute.xlu0 %7486
        %v7489 = vmul.f32 %v7473, %v7487
        %v7490 = vlaneseq
        %v7491 = vshrl.u32 %v7490, 7
        %v7492 = vsub.s32 6, %v7491
        %v7493 = vrot.slane %v7401, %v7492
        %v7494 = vmul.f32 %v7489, %v7493
        %v7495 = vadd.f32 %v7484, %v7494
        %v7496 = vrot.slane %v7398, 2
        %v7498 = vsel %vm7422, %v7496, 0.0
        %7499 = vset.pattern.permute.xlu0 7
        %7500 = vperm.xlu0 %7499, %v7403
        %v7501 = vpop.permute.xlu0 %7500
        %v7503 = vmul.f32 %v7498, %v7501
        %v7504 = vlaneseq
        %v7505 = vshrl.u32 %v7504, 7
        %v7506 = vsub.s32 7, %v7505
        %v7507 = vrot.slane %v7401, %v7506
        %v7508 = vmul.f32 %v7503, %v7507
        %v7509 = vadd.f32 %v7495, %v7508
        %v7510 = vrot.slane %v7398, 3
        %v7512 = vsel %vm1608, %v7510, 0.0
        %7513 = vset.pattern.permute.xlu0 8
        %7514 = vperm.xlu0 %7513, %v7403
        %v7515 = vpop.permute.xlu0 %7514
        %v7517 = vmul.f32 %v7512, %v7515
        %v7518 = vlaneseq
        %v7519 = vshrl.u32 %v7518, 7
        %v7520 = vsub.s32 0, %v7519
        %v7521 = vrot.slane %v7402, %v7520
        %v7522 = vmul.f32 %v7517, %v7521
        %v7523 = vadd.f32 %v7509, %v7522
        %v7524 = vld [vmem:[%s43] sm:$0xff]
        %v7525 = vld [vmem:[%s43 + $0x8] sm:$0xff]
        %v7526 = vld [vmem:[%s43 + $0x10] sm:$0xff]
        %v7527 = vld [vmem:[%s43 + $0x18] sm:$0xff]
        %v7528 = vld [vmem:[%s43 + $0x20] sm:$0xff]
        %v7529 = vld [vmem:[%s43 + $0x28] sm:$0xff]
        %v7530 = vld [vmem:[%s43 + $0x30] sm:$0xff]
        %v7531 = vld [vmem:[%s43 + $0x38] sm:$0xff]
        %v7532 = vld [vmem:[%s43 + $0x40] sm:$0xff]
        %v7533 = vld [vmem:[%s43 + $0x48] sm:$0xff]
        %v7534 = vld [vmem:[%s43 + $0x50] sm:$0xff]
        %v7535 = vld [vmem:[%s43 + $0x58] sm:$0xff]
        %v7536 = vld [vmem:[%s43 + $0x60] sm:$0xff]
        %v7537 = vld [vmem:[%s43 + $0x68] sm:$0xff]
        %v7538 = vld [vmem:[%s43 + $0x70] sm:$0xff]
        %v7539 = vld [vmem:[%s43 + $0x78] sm:$0xff]
        %7540 = vmatprep.subr.mxu0 0.0
        %7541 = vmatpush1.msra.mxu0 %v7539
        %7542 = vmatprep.subr.mxu0 0.0
        %7543 = vmatpush1.msra.mxu0 %v7538
        %7544 = vmatprep.subr.mxu0 0.0
        %7545 = vmatpush1.msra.mxu0 %v7537
        %7546 = vmatprep.subr.mxu0 0.0
        %7547 = vmatpush1.msra.mxu0 %v7536
        %7548 = vmatprep.subr.mxu0 0.0
        %7549 = vmatpush1.msra.mxu0 %v7535
        %7550 = vmatprep.subr.mxu0 0.0
        %7551 = vmatpush1.msra.mxu0 %v7534
        %7552 = vmatprep.subr.mxu0 0.0
        %7553 = vmatpush1.msra.mxu0 %v7533
        %7554 = vmatprep.subr.mxu0 0.0
        %7555 = vmatpush1.msra.mxu0 %v7532
        %7556 = vmatprep.subr.mxu0 0.0
        %7557 = vmatpush1.msra.mxu0 %v7531
        %7558 = vmatprep.subr.mxu0 0.0
        %7559 = vmatpush1.msra.mxu0 %v7530
        %7560 = vmatprep.subr.mxu0 0.0
        %7561 = vmatpush1.msra.mxu0 %v7529
        %7562 = vmatprep.subr.mxu0 0.0
        %7563 = vmatpush1.msra.mxu0 %v7528
        %7564 = vmatprep.subr.mxu0 0.0
        %7565 = vmatpush1.msra.mxu0 %v7527
        %7566 = vmatprep.subr.mxu0 0.0
        %7567 = vmatpush1.msra.mxu0 %v7526
        %7568 = vmatprep.subr.mxu0 0.0
        %7569 = vmatpush1.msra.mxu0 %v7525
        %7570 = vmatprep.subr.mxu0 0.0
        %7571 = vmatpush1.msra.mxu0 %v7524
        %7572 = vmatprep.subr.mxu0 0.0
        %7573 = vmatpush2.msra.mxu0 0.0
        %7574 = vmatprep.subr.mxu0 0.0
        %7575 = vmatpush2.msra.mxu0 0.0
        %7576 = vmatprep.subr.mxu0 0.0
        %7577 = vmatpush2.msra.mxu0 0.0
        %7578 = vmatprep.subr.mxu0 0.0
        %7579 = vmatpush2.msra.mxu0 0.0
        %7580 = vmatprep.subr.mxu0 0.0
        %7581 = vmatpush2.msra.mxu0 0.0
        %7582 = vmatprep.subr.mxu0 0.0
        %7583 = vmatpush2.msra.mxu0 0.0
        %7584 = vmatprep.subr.mxu0 0.0
        %7585 = vmatpush2.msra.mxu0 0.0
        %7586 = vmatprep.subr.mxu0 0.0
        %7587 = vmatpush2.msra.mxu0 0.0
        %7588 = vmatprep.subr.mxu0 0.0
        %7589 = vmatpush2.msra.mxu0 0.0
        %7590 = vmatprep.subr.mxu0 0.0
        %7591 = vmatpush2.msra.mxu0 0.0
        %7592 = vmatprep.subr.mxu0 0.0
        %7593 = vmatpush2.msra.mxu0 0.0
        %7594 = vmatprep.subr.mxu0 0.0
        %7595 = vmatpush2.msra.mxu0 0.0
        %7596 = vmatprep.subr.mxu0 0.0
        %7597 = vmatpush2.msra.mxu0 0.0
        %7598 = vmatprep.subr.mxu0 0.0
        %7599 = vmatpush2.msra.mxu0 0.0
        %7600 = vmatprep.subr.mxu0 0.0
        %7601 = vmatpush2.msra.mxu0 0.0
        %7602 = vmatprep.subr.mxu0 0.0
        %7603 = vmatpush2.msra.mxu0 0.0
        %7604 = vmatprep.mubr.f32.mxu0 0.0
        %7605 = vmatmul.mubr.f32.gmra.mxu0 %v7523
        %v7606 = vpop.f32.mrf.mxu0
        %v7607 = vadd.f32 0.0, %v7606
        %v7608 = vpop.f32.mrf.mxu0
        %7609 = vdwg.mxu0
        %v7610 = vld [vmem:[%s19] sm:$0xff]
        %v7611 = vld [vmem:[%s19 + $0x8] sm:$0x1]
        %v7613 = vrot.slane %v7607, 5
        %v7615 = vsel %vm1315, 0.0, %v7613
        %v7616 = vmul.f32 %v7615, %v7411
        %v7617 = vlaneseq
        %v7618 = vshrl.u32 %v7617, 7
        %v7619 = vsub.s32 0, %v7618
        %v7620 = vrot.slane %v7610, %v7619
        %v7621 = vmul.f32 %v7616, %v7620
        %v7622 = vadd.f32 %v7621, 0.0
        %v7623 = vrot.slane %v7607, 6
        %v7625 = vsel %vm7422, 0.0, %v7623
        %v7626 = vmul.f32 %v7625, %v7426
        %v7627 = vlaneseq
        %v7628 = vshrl.u32 %v7627, 7
        %v7629 = vsub.s32 1, %v7628
        %v7630 = vrot.slane %v7610, %v7629
        %v7631 = vmul.f32 %v7626, %v7630
        %v7632 = vadd.f32 %v7622, %v7631
        %v7633 = vrot.slane %v7607, 7
        %v7635 = vsel %vm1608, 0.0, %v7633
        %v7636 = vmul.f32 %v7635, %v7440
        %v7637 = vlaneseq
        %v7638 = vshrl.u32 %v7637, 7
        %v7639 = vsub.s32 2, %v7638
        %v7640 = vrot.slane %v7610, %v7639
        %v7641 = vmul.f32 %v7636, %v7640
        %v7642 = vadd.f32 %v7632, %v7641
        %v7643 = vmul.f32 %v7635, %v7451
        %v7644 = vlaneseq
        %v7645 = vshrl.u32 %v7644, 7
        %v7646 = vsub.s32 3, %v7645
        %v7647 = vrot.slane %v7610, %v7646
        %v7648 = vmul.f32 %v7643, %v7647
        %v7649 = vadd.f32 %v7642, %v7648
        %v7650 = vmul.f32 %v7607, %v7462
        %v7651 = vlaneseq
        %v7652 = vshrl.u32 %v7651, 7
        %v7653 = vsub.s32 4, %v7652
        %v7654 = vrot.slane %v7610, %v7653
        %v7655 = vmul.f32 %v7650, %v7654
        %v7656 = vadd.f32 %v7649, %v7655
        %v7657 = vrot.slane %v7607, 1
        %v7659 = vsel %vm1315, %v7657, 0.0
        %v7660 = vmul.f32 %v7659, %v7476
        %v7661 = vlaneseq
        %v7662 = vshrl.u32 %v7661, 7
        %v7663 = vsub.s32 5, %v7662
        %v7664 = vrot.slane %v7610, %v7663
        %v7665 = vmul.f32 %v7660, %v7664
        %v7666 = vadd.f32 %v7656, %v7665
        %v7667 = vmul.f32 %v7659, %v7487
        %v7668 = vlaneseq
        %v7669 = vshrl.u32 %v7668, 7
        %v7670 = vsub.s32 6, %v7669
        %v7671 = vrot.slane %v7610, %v7670
        %v7672 = vmul.f32 %v7667, %v7671
        %v7673 = vadd.f32 %v7666, %v7672
        %v7674 = vrot.slane %v7607, 2
        %v7676 = vsel %vm7422, %v7674, 0.0
        %v7677 = vmul.f32 %v7676, %v7501
        %v7678 = vlaneseq
        %v7679 = vshrl.u32 %v7678, 7
        %v7680 = vsub.s32 7, %v7679
        %v7681 = vrot.slane %v7610, %v7680
        %v7682 = vmul.f32 %v7677, %v7681
        %v7683 = vadd.f32 %v7673, %v7682
        %v7684 = vrot.slane %v7607, 3
        %v7686 = vsel %vm1608, %v7684, 0.0
        %v7687 = vmul.f32 %v7686, %v7515
        %v7688 = vlaneseq
        %v7689 = vshrl.u32 %v7688, 7
        %v7690 = vsub.s32 0, %v7689
        %v7691 = vrot.slane %v7611, %v7690
        %v7692 = vmul.f32 %v7687, %v7691
        %v7693 = vadd.f32 %v7683, %v7692
        %v7694 = vld [vmem:[%s45] sm:$0xff]
        %v7695 = vld [vmem:[%s45 + $0x8] sm:$0xff]
        %v7696 = vld [vmem:[%s45 + $0x10] sm:$0xff]
        %v7697 = vld [vmem:[%s45 + $0x18] sm:$0xff]
        %v7698 = vld [vmem:[%s45 + $0x20] sm:$0xff]
        %v7699 = vld [vmem:[%s45 + $0x28] sm:$0xff]
        %v7700 = vld [vmem:[%s45 + $0x30] sm:$0xff]
        %v7701 = vld [vmem:[%s45 + $0x38] sm:$0xff]
        %v7702 = vld [vmem:[%s45 + $0x40] sm:$0xff]
        %v7703 = vld [vmem:[%s45 + $0x48] sm:$0xff]
        %v7704 = vld [vmem:[%s45 + $0x50] sm:$0xff]
        %v7705 = vld [vmem:[%s45 + $0x58] sm:$0xff]
        %v7706 = vld [vmem:[%s45 + $0x60] sm:$0xff]
        %v7707 = vld [vmem:[%s45 + $0x68] sm:$0xff]
        %v7708 = vld [vmem:[%s45 + $0x70] sm:$0xff]
        %v7709 = vld [vmem:[%s45 + $0x78] sm:$0xff]
        %7710 = vmatprep.subr.mxu0 0.0
        %7711 = vmatpush1.msra.mxu0 %v7709
        %7712 = vmatprep.subr.mxu0 0.0
        %7713 = vmatpush1.msra.mxu0 %v7708
        %7714 = vmatprep.subr.mxu0 0.0
        %7715 = vmatpush1.msra.mxu0 %v7707
        %7716 = vmatprep.subr.mxu0 0.0
        %7717 = vmatpush1.msra.mxu0 %v7706
        %7718 = vmatprep.subr.mxu0 0.0
        %7719 = vmatpush1.msra.mxu0 %v7705
        %7720 = vmatprep.subr.mxu0 0.0
        %7721 = vmatpush1.msra.mxu0 %v7704
        %7722 = vmatprep.subr.mxu0 0.0
        %7723 = vmatpush1.msra.mxu0 %v7703
        %7724 = vmatprep.subr.mxu0 0.0
        %7725 = vmatpush1.msra.mxu0 %v7702
        %7726 = vmatprep.subr.mxu0 0.0
        %7727 = vmatpush1.msra.mxu0 %v7701
        %7728 = vmatprep.subr.mxu0 0.0
        %7729 = vmatpush1.msra.mxu0 %v7700
        %7730 = vmatprep.subr.mxu0 0.0
        %7731 = vmatpush1.msra.mxu0 %v7699
        %7732 = vmatprep.subr.mxu0 0.0
        %7733 = vmatpush1.msra.mxu0 %v7698
        %7734 = vmatprep.subr.mxu0 0.0
        %7735 = vmatpush1.msra.mxu0 %v7697
        %7736 = vmatprep.subr.mxu0 0.0
        %7737 = vmatpush1.msra.mxu0 %v7696
        %7738 = vmatprep.subr.mxu0 0.0
        %7739 = vmatpush1.msra.mxu0 %v7695
        %7740 = vmatprep.subr.mxu0 0.0
        %7741 = vmatpush1.msra.mxu0 %v7694
        %7742 = vmatprep.subr.mxu0 0.0
        %7743 = vmatpush2.msra.mxu0 0.0
        %7744 = vmatprep.subr.mxu0 0.0
        %7745 = vmatpush2.msra.mxu0 0.0
        %7746 = vmatprep.subr.mxu0 0.0
        %7747 = vmatpush2.msra.mxu0 0.0
        %7748 = vmatprep.subr.mxu0 0.0
        %7749 = vmatpush2.msra.mxu0 0.0
        %7750 = vmatprep.subr.mxu0 0.0
        %7751 = vmatpush2.msra.mxu0 0.0
        %7752 = vmatprep.subr.mxu0 0.0
        %7753 = vmatpush2.msra.mxu0 0.0
        %7754 = vmatprep.subr.mxu0 0.0
        %7755 = vmatpush2.msra.mxu0 0.0
        %7756 = vmatprep.subr.mxu0 0.0
        %7757 = vmatpush2.msra.mxu0 0.0
        %7758 = vmatprep.subr.mxu0 0.0
        %7759 = vmatpush2.msra.mxu0 0.0
        %7760 = vmatprep.subr.mxu0 0.0
        %7761 = vmatpush2.msra.mxu0 0.0
        %7762 = vmatprep.subr.mxu0 0.0
        %7763 = vmatpush2.msra.mxu0 0.0
        %7764 = vmatprep.subr.mxu0 0.0
        %7765 = vmatpush2.msra.mxu0 0.0
        %7766 = vmatprep.subr.mxu0 0.0
        %7767 = vmatpush2.msra.mxu0 0.0
        %7768 = vmatprep.subr.mxu0 0.0
        %7769 = vmatpush2.msra.mxu0 0.0
        %7770 = vmatprep.subr.mxu0 0.0
        %7771 = vmatpush2.msra.mxu0 0.0
        %7772 = vmatprep.subr.mxu0 0.0
        %7773 = vmatpush2.msra.mxu0 0.0
        %7774 = vmatprep.mubr.f32.mxu0 0.0
        %7775 = vmatmul.mubr.f32.gmra.mxu0 %v7693
        %v7776 = vpop.f32.mrf.mxu0
        %v7777 = vadd.f32 0.0, %v7776
        %v7778 = vpop.f32.mrf.mxu0
        %7779 = vdwg.mxu0
        %v7780 = vld [vmem:[%s21] sm:$0xff]
        %v7781 = vld [vmem:[%s21 + $0x8] sm:$0x1]
        %v7783 = vrot.slane %v7777, 5
        %v7785 = vsel %vm1315, 0.0, %v7783
        %v7786 = vmul.f32 %v7785, %v7411
        %v7787 = vlaneseq
        %v7788 = vshrl.u32 %v7787, 7
        %v7789 = vsub.s32 0, %v7788
        %v7790 = vrot.slane %v7780, %v7789
        %v7791 = vmul.f32 %v7786, %v7790
        %v7792 = vadd.f32 %v7791, 0.0
        %v7793 = vrot.slane %v7777, 6
        %v7795 = vsel %vm7422, 0.0, %v7793
        %v7796 = vmul.f32 %v7795, %v7426
        %v7797 = vlaneseq
        %v7798 = vshrl.u32 %v7797, 7
        %v7799 = vsub.s32 1, %v7798
        %v7800 = vrot.slane %v7780, %v7799
        %v7801 = vmul.f32 %v7796, %v7800
        %v7802 = vadd.f32 %v7792, %v7801
        %v7803 = vrot.slane %v7777, 7
        %v7805 = vsel %vm1608, 0.0, %v7803
        %v7806 = vmul.f32 %v7805, %v7440
        %v7807 = vlaneseq
        %v7808 = vshrl.u32 %v7807, 7
        %v7809 = vsub.s32 2, %v7808
        %v7810 = vrot.slane %v7780, %v7809
        %v7811 = vmul.f32 %v7806, %v7810
        %v7812 = vadd.f32 %v7802, %v7811
        %v7813 = vmul.f32 %v7805, %v7451
        %v7814 = vlaneseq
        %v7815 = vshrl.u32 %v7814, 7
        %v7816 = vsub.s32 3, %v7815
        %v7817 = vrot.slane %v7780, %v7816
        %v7818 = vmul.f32 %v7813, %v7817
        %v7819 = vadd.f32 %v7812, %v7818
        %v7820 = vmul.f32 %v7777, %v7462
        %v7821 = vlaneseq
        %v7822 = vshrl.u32 %v7821, 7
        %v7823 = vsub.s32 4, %v7822
        %v7824 = vrot.slane %v7780, %v7823
        %v7825 = vmul.f32 %v7820, %v7824
        %v7826 = vadd.f32 %v7819, %v7825
        %v7827 = vrot.slane %v7777, 1
        %v7829 = vsel %vm1315, %v7827, 0.0
        %v7830 = vmul.f32 %v7829, %v7476
        %v7831 = vlaneseq
        %v7832 = vshrl.u32 %v7831, 7
        %v7833 = vsub.s32 5, %v7832
        %v7834 = vrot.slane %v7780, %v7833
        %v7835 = vmul.f32 %v7830, %v7834
        %v7836 = vadd.f32 %v7826, %v7835
        %v7837 = vmul.f32 %v7829, %v7487
        %v7838 = vlaneseq
        %v7839 = vshrl.u32 %v7838, 7
        %v7840 = vsub.s32 6, %v7839
        %v7841 = vrot.slane %v7780, %v7840
        %v7842 = vmul.f32 %v7837, %v7841
        %v7843 = vadd.f32 %v7836, %v7842
        %v7844 = vrot.slane %v7777, 2
        %v7846 = vsel %vm7422, %v7844, 0.0
        %v7847 = vmul.f32 %v7846, %v7501
        %v7848 = vlaneseq
        %v7849 = vshrl.u32 %v7848, 7
        %v7850 = vsub.s32 7, %v7849
        %v7851 = vrot.slane %v7780, %v7850
        %v7852 = vmul.f32 %v7847, %v7851
        %v7853 = vadd.f32 %v7843, %v7852
        %v7854 = vrot.slane %v7777, 3
        %v7856 = vsel %vm1608, %v7854, 0.0
        %v7857 = vmul.f32 %v7856, %v7515
        %v7858 = vlaneseq
        %v7859 = vshrl.u32 %v7858, 7
        %v7860 = vsub.s32 0, %v7859
        %v7861 = vrot.slane %v7781, %v7860
        %v7862 = vmul.f32 %v7857, %v7861
        %v7863 = vadd.f32 %v7853, %v7862
        %v7864 = vld [vmem:[%s47] sm:$0xff]
        %v7865 = vld [vmem:[%s47 + $0x8] sm:$0xff]
        %v7866 = vld [vmem:[%s47 + $0x10] sm:$0xff]
        %v7867 = vld [vmem:[%s47 + $0x18] sm:$0xff]
        %v7868 = vld [vmem:[%s47 + $0x20] sm:$0xff]
        %v7869 = vld [vmem:[%s47 + $0x28] sm:$0xff]
        %v7870 = vld [vmem:[%s47 + $0x30] sm:$0xff]
        %v7871 = vld [vmem:[%s47 + $0x38] sm:$0xff]
        %v7872 = vld [vmem:[%s47 + $0x40] sm:$0xff]
        %v7873 = vld [vmem:[%s47 + $0x48] sm:$0xff]
        %v7874 = vld [vmem:[%s47 + $0x50] sm:$0xff]
        %v7875 = vld [vmem:[%s47 + $0x58] sm:$0xff]
        %v7876 = vld [vmem:[%s47 + $0x60] sm:$0xff]
        %v7877 = vld [vmem:[%s47 + $0x68] sm:$0xff]
        %v7878 = vld [vmem:[%s47 + $0x70] sm:$0xff]
        %v7879 = vld [vmem:[%s47 + $0x78] sm:$0xff]
        %7880 = vmatprep.subr.mxu0 0.0
        %7881 = vmatpush1.msra.mxu0 %v7879
        %7882 = vmatprep.subr.mxu0 0.0
        %7883 = vmatpush1.msra.mxu0 %v7878
        %7884 = vmatprep.subr.mxu0 0.0
        %7885 = vmatpush1.msra.mxu0 %v7877
        %7886 = vmatprep.subr.mxu0 0.0
        %7887 = vmatpush1.msra.mxu0 %v7876
        %7888 = vmatprep.subr.mxu0 0.0
        %7889 = vmatpush1.msra.mxu0 %v7875
        %7890 = vmatprep.subr.mxu0 0.0
        %7891 = vmatpush1.msra.mxu0 %v7874
        %7892 = vmatprep.subr.mxu0 0.0
        %7893 = vmatpush1.msra.mxu0 %v7873
        %7894 = vmatprep.subr.mxu0 0.0
        %7895 = vmatpush1.msra.mxu0 %v7872
        %7896 = vmatprep.subr.mxu0 0.0
        %7897 = vmatpush1.msra.mxu0 %v7871
        %7898 = vmatprep.subr.mxu0 0.0
        %7899 = vmatpush1.msra.mxu0 %v7870
        %7900 = vmatprep.subr.mxu0 0.0
        %7901 = vmatpush1.msra.mxu0 %v7869
        %7902 = vmatprep.subr.mxu0 0.0
        %7903 = vmatpush1.msra.mxu0 %v7868
        %7904 = vmatprep.subr.mxu0 0.0
        %7905 = vmatpush1.msra.mxu0 %v7867
        %7906 = vmatprep.subr.mxu0 0.0
        %7907 = vmatpush1.msra.mxu0 %v7866
        %7908 = vmatprep.subr.mxu0 0.0
        %7909 = vmatpush1.msra.mxu0 %v7865
        %7910 = vmatprep.subr.mxu0 0.0
        %7911 = vmatpush1.msra.mxu0 %v7864
        %7912 = vmatprep.subr.mxu0 0.0
        %7913 = vmatpush2.msra.mxu0 0.0
        %7914 = vmatprep.subr.mxu0 0.0
        %7915 = vmatpush2.msra.mxu0 0.0
        %7916 = vmatprep.subr.mxu0 0.0
        %7917 = vmatpush2.msra.mxu0 0.0
        %7918 = vmatprep.subr.mxu0 0.0
        %7919 = vmatpush2.msra.mxu0 0.0
        %7920 = vmatprep.subr.mxu0 0.0
        %7921 = vmatpush2.msra.mxu0 0.0
        %7922 = vmatprep.subr.mxu0 0.0
        %7923 = vmatpush2.msra.mxu0 0.0
        %7924 = vmatprep.subr.mxu0 0.0
        %7925 = vmatpush2.msra.mxu0 0.0
        %7926 = vmatprep.subr.mxu0 0.0
        %7927 = vmatpush2.msra.mxu0 0.0
        %7928 = vmatprep.subr.mxu0 0.0
        %7929 = vmatpush2.msra.mxu0 0.0
        %7930 = vmatprep.subr.mxu0 0.0
        %7931 = vmatpush2.msra.mxu0 0.0
        %7932 = vmatprep.subr.mxu0 0.0
        %7933 = vmatpush2.msra.mxu0 0.0
        %7934 = vmatprep.subr.mxu0 0.0
        %7935 = vmatpush2.msra.mxu0 0.0
        %7936 = vmatprep.subr.mxu0 0.0
        %7937 = vmatpush2.msra.mxu0 0.0
        %7938 = vmatprep.subr.mxu0 0.0
        %7939 = vmatpush2.msra.mxu0 0.0
        %7940 = vmatprep.subr.mxu0 0.0
        %7941 = vmatpush2.msra.mxu0 0.0
        %7942 = vmatprep.subr.mxu0 0.0
        %7943 = vmatpush2.msra.mxu0 0.0
        %7944 = vmatprep.mubr.f32.mxu0 0.0
        %7945 = vmatmul.mubr.f32.gmra.mxu0 %v7863
        %v7946 = vpop.f32.mrf.mxu0
        %v7947 = vadd.f32 0.0, %v7946
        %v7948 = vpop.f32.mrf.mxu0
        %7949 = vdwg.mxu0
        %v7950 = vld [vmem:[%s23] sm:$0xff]
        %v7951 = vld [vmem:[%s23 + $0x8] sm:$0x1]
        %v7953 = vrot.slane %v7947, 5
        %v7955 = vsel %vm1315, 0.0, %v7953
        %v7956 = vmul.f32 %v7955, %v7411
        %v7957 = vlaneseq
        %v7958 = vshrl.u32 %v7957, 7
        %v7959 = vsub.s32 0, %v7958
        %v7960 = vrot.slane %v7950, %v7959
        %v7961 = vmul.f32 %v7956, %v7960
        %v7962 = vadd.f32 %v7961, 0.0
        %v7963 = vrot.slane %v7947, 6
        %v7965 = vsel %vm7422, 0.0, %v7963
        %v7966 = vmul.f32 %v7965, %v7426
        %v7967 = vlaneseq
        %v7968 = vshrl.u32 %v7967, 7
        %v7969 = vsub.s32 1, %v7968
        %v7970 = vrot.slane %v7950, %v7969
        %v7971 = vmul.f32 %v7966, %v7970
        %v7972 = vadd.f32 %v7962, %v7971
        %v7973 = vrot.slane %v7947, 7
        %v7975 = vsel %vm1608, 0.0, %v7973
        %v7976 = vmul.f32 %v7975, %v7440
        %v7977 = vlaneseq
        %v7978 = vshrl.u32 %v7977, 7
        %v7979 = vsub.s32 2, %v7978
        %v7980 = vrot.slane %v7950, %v7979
        %v7981 = vmul.f32 %v7976, %v7980
        %v7982 = vadd.f32 %v7972, %v7981
        %v7983 = vmul.f32 %v7975, %v7451
        %v7984 = vlaneseq
        %v7985 = vshrl.u32 %v7984, 7
        %v7986 = vsub.s32 3, %v7985
        %v7987 = vrot.slane %v7950, %v7986
        %v7988 = vmul.f32 %v7983, %v7987
        %v7989 = vadd.f32 %v7982, %v7988
        %v7990 = vmul.f32 %v7947, %v7462
        %v7991 = vlaneseq
        %v7992 = vshrl.u32 %v7991, 7
        %v7993 = vsub.s32 4, %v7992
        %v7994 = vrot.slane %v7950, %v7993
        %v7995 = vmul.f32 %v7990, %v7994
        %v7996 = vadd.f32 %v7989, %v7995
        %v7997 = vrot.slane %v7947, 1
        %v7999 = vsel %vm1315, %v7997, 0.0
        %v8000 = vmul.f32 %v7999, %v7476
        %v8001 = vlaneseq
        %v8002 = vshrl.u32 %v8001, 7
        %v8003 = vsub.s32 5, %v8002
        %v8004 = vrot.slane %v7950, %v8003
        %v8005 = vmul.f32 %v8000, %v8004
        %v8006 = vadd.f32 %v7996, %v8005
        %v8007 = vmul.f32 %v7999, %v7487
        %v8008 = vlaneseq
        %v8009 = vshrl.u32 %v8008, 7
        %v8010 = vsub.s32 6, %v8009
        %v8011 = vrot.slane %v7950, %v8010
        %v8012 = vmul.f32 %v8007, %v8011
        %v8013 = vadd.f32 %v8006, %v8012
        %v8014 = vrot.slane %v7947, 2
        %v8016 = vsel %vm7422, %v8014, 0.0
        %v8017 = vmul.f32 %v8016, %v7501
        %v8018 = vlaneseq
        %v8019 = vshrl.u32 %v8018, 7
        %v8020 = vsub.s32 7, %v8019
        %v8021 = vrot.slane %v7950, %v8020
        %v8022 = vmul.f32 %v8017, %v8021
        %v8023 = vadd.f32 %v8013, %v8022
        %v8024 = vrot.slane %v7947, 3
        %v8026 = vsel %vm1608, %v8024, 0.0
        %v8027 = vmul.f32 %v8026, %v7515
        %v8028 = vlaneseq
        %v8029 = vshrl.u32 %v8028, 7
        %v8030 = vsub.s32 0, %v8029
        %v8031 = vrot.slane %v7951, %v8030
        %v8032 = vmul.f32 %v8027, %v8031
        %v8033 = vadd.f32 %v8023, %v8032
        %v8034 = vld [vmem:[%s49] sm:$0xff]
        %v8035 = vld [vmem:[%s49 + $0x8] sm:$0xff]
        %v8036 = vld [vmem:[%s49 + $0x10] sm:$0xff]
        %v8037 = vld [vmem:[%s49 + $0x18] sm:$0xff]
        %v8038 = vld [vmem:[%s49 + $0x20] sm:$0xff]
        %v8039 = vld [vmem:[%s49 + $0x28] sm:$0xff]
        %v8040 = vld [vmem:[%s49 + $0x30] sm:$0xff]
        %v8041 = vld [vmem:[%s49 + $0x38] sm:$0xff]
        %v8042 = vld [vmem:[%s49 + $0x40] sm:$0xff]
        %v8043 = vld [vmem:[%s49 + $0x48] sm:$0xff]
        %v8044 = vld [vmem:[%s49 + $0x50] sm:$0xff]
        %v8045 = vld [vmem:[%s49 + $0x58] sm:$0xff]
        %v8046 = vld [vmem:[%s49 + $0x60] sm:$0xff]
        %v8047 = vld [vmem:[%s49 + $0x68] sm:$0xff]
        %v8048 = vld [vmem:[%s49 + $0x70] sm:$0xff]
        %v8049 = vld [vmem:[%s49 + $0x78] sm:$0xff]
        %8050 = vmatprep.subr.mxu0 0.0
        %8051 = vmatpush1.msra.mxu0 %v8049
        %8052 = vmatprep.subr.mxu0 0.0
        %8053 = vmatpush1.msra.mxu0 %v8048
        %8054 = vmatprep.subr.mxu0 0.0
        %8055 = vmatpush1.msra.mxu0 %v8047
        %8056 = vmatprep.subr.mxu0 0.0
        %8057 = vmatpush1.msra.mxu0 %v8046
        %8058 = vmatprep.subr.mxu0 0.0
        %8059 = vmatpush1.msra.mxu0 %v8045
        %8060 = vmatprep.subr.mxu0 0.0
        %8061 = vmatpush1.msra.mxu0 %v8044
        %8062 = vmatprep.subr.mxu0 0.0
        %8063 = vmatpush1.msra.mxu0 %v8043
        %8064 = vmatprep.subr.mxu0 0.0
        %8065 = vmatpush1.msra.mxu0 %v8042
        %8066 = vmatprep.subr.mxu0 0.0
        %8067 = vmatpush1.msra.mxu0 %v8041
        %8068 = vmatprep.subr.mxu0 0.0
        %8069 = vmatpush1.msra.mxu0 %v8040
        %8070 = vmatprep.subr.mxu0 0.0
        %8071 = vmatpush1.msra.mxu0 %v8039
        %8072 = vmatprep.subr.mxu0 0.0
        %8073 = vmatpush1.msra.mxu0 %v8038
        %8074 = vmatprep.subr.mxu0 0.0
        %8075 = vmatpush1.msra.mxu0 %v8037
        %8076 = vmatprep.subr.mxu0 0.0
        %8077 = vmatpush1.msra.mxu0 %v8036
        %8078 = vmatprep.subr.mxu0 0.0
        %8079 = vmatpush1.msra.mxu0 %v8035
        %8080 = vmatprep.subr.mxu0 0.0
        %8081 = vmatpush1.msra.mxu0 %v8034
        %8082 = vmatprep.subr.mxu0 0.0
        %8083 = vmatpush2.msra.mxu0 0.0
        %8084 = vmatprep.subr.mxu0 0.0
        %8085 = vmatpush2.msra.mxu0 0.0
        %8086 = vmatprep.subr.mxu0 0.0
        %8087 = vmatpush2.msra.mxu0 0.0
        %8088 = vmatprep.subr.mxu0 0.0
        %8089 = vmatpush2.msra.mxu0 0.0
        %8090 = vmatprep.subr.mxu0 0.0
        %8091 = vmatpush2.msra.mxu0 0.0
        %8092 = vmatprep.subr.mxu0 0.0
        %8093 = vmatpush2.msra.mxu0 0.0
        %8094 = vmatprep.subr.mxu0 0.0
        %8095 = vmatpush2.msra.mxu0 0.0
        %8096 = vmatprep.subr.mxu0 0.0
        %8097 = vmatpush2.msra.mxu0 0.0
        %8098 = vmatprep.subr.mxu0 0.0
        %8099 = vmatpush2.msra.mxu0 0.0
        %8100 = vmatprep.subr.mxu0 0.0
        %8101 = vmatpush2.msra.mxu0 0.0
        %8102 = vmatprep.subr.mxu0 0.0
        %8103 = vmatpush2.msra.mxu0 0.0
        %8104 = vmatprep.subr.mxu0 0.0
        %8105 = vmatpush2.msra.mxu0 0.0
        %8106 = vmatprep.subr.mxu0 0.0
        %8107 = vmatpush2.msra.mxu0 0.0
        %8108 = vmatprep.subr.mxu0 0.0
        %8109 = vmatpush2.msra.mxu0 0.0
        %8110 = vmatprep.subr.mxu0 0.0
        %8111 = vmatpush2.msra.mxu0 0.0
        %8112 = vmatprep.subr.mxu0 0.0
        %8113 = vmatpush2.msra.mxu0 0.0
        %8114 = vmatprep.mubr.f32.mxu0 0.0
        %8115 = vmatmul.mubr.f32.gmra.mxu0 %v8033
        %v8116 = vpop.f32.mrf.mxu0
        %v8117 = vadd.f32 0.0, %v8116
        %v8118 = vpop.f32.mrf.mxu0
        %8119 = vdwg.mxu0
        %v8120 = vld [vmem:[%s25] sm:$0xff]
        %v8121 = vld [vmem:[%s25 + $0x8] sm:$0x1]
        %v8123 = vrot.slane %v8117, 5
        %v8125 = vsel %vm1315, 0.0, %v8123
        %v8126 = vmul.f32 %v8125, %v7411
        %v8127 = vlaneseq
        %v8128 = vshrl.u32 %v8127, 7
        %v8129 = vsub.s32 0, %v8128
        %v8130 = vrot.slane %v8120, %v8129
        %v8131 = vmul.f32 %v8126, %v8130
        %v8132 = vadd.f32 %v8131, 0.0
        %v8133 = vrot.slane %v8117, 6
        %v8135 = vsel %vm7422, 0.0, %v8133
        %v8136 = vmul.f32 %v8135, %v7426
        %v8137 = vlaneseq
        %v8138 = vshrl.u32 %v8137, 7
        %v8139 = vsub.s32 1, %v8138
        %v8140 = vrot.slane %v8120, %v8139
        %v8141 = vmul.f32 %v8136, %v8140
        %v8142 = vadd.f32 %v8132, %v8141
        %v8143 = vrot.slane %v8117, 7
        %v8145 = vsel %vm1608, 0.0, %v8143
        %v8146 = vmul.f32 %v8145, %v7440
        %v8147 = vlaneseq
        %v8148 = vshrl.u32 %v8147, 7
        %v8149 = vsub.s32 2, %v8148
        %v8150 = vrot.slane %v8120, %v8149
        %v8151 = vmul.f32 %v8146, %v8150
        %v8152 = vadd.f32 %v8142, %v8151
        %v8153 = vmul.f32 %v8145, %v7451
        %v8154 = vlaneseq
        %v8155 = vshrl.u32 %v8154, 7
        %v8156 = vsub.s32 3, %v8155
        %v8157 = vrot.slane %v8120, %v8156
        %v8158 = vmul.f32 %v8153, %v8157
        %v8159 = vadd.f32 %v8152, %v8158
        %v8160 = vmul.f32 %v8117, %v7462
        %v8161 = vlaneseq
        %v8162 = vshrl.u32 %v8161, 7
        %v8163 = vsub.s32 4, %v8162
        %v8164 = vrot.slane %v8120, %v8163
        %v8165 = vmul.f32 %v8160, %v8164
        %v8166 = vadd.f32 %v8159, %v8165
        %v8167 = vrot.slane %v8117, 1
        %v8169 = vsel %vm1315, %v8167, 0.0
        %v8170 = vmul.f32 %v8169, %v7476
        %v8171 = vlaneseq
        %v8172 = vshrl.u32 %v8171, 7
        %v8173 = vsub.s32 5, %v8172
        %v8174 = vrot.slane %v8120, %v8173
        %v8175 = vmul.f32 %v8170, %v8174
        %v8176 = vadd.f32 %v8166, %v8175
        %v8177 = vmul.f32 %v8169, %v7487
        %v8178 = vlaneseq
        %v8179 = vshrl.u32 %v8178, 7
        %v8180 = vsub.s32 6, %v8179
        %v8181 = vrot.slane %v8120, %v8180
        %v8182 = vmul.f32 %v8177, %v8181
        %v8183 = vadd.f32 %v8176, %v8182
        %v8184 = vrot.slane %v8117, 2
        %v8186 = vsel %vm7422, %v8184, 0.0
        %v8187 = vmul.f32 %v8186, %v7501
        %v8188 = vlaneseq
        %v8189 = vshrl.u32 %v8188, 7
        %v8190 = vsub.s32 7, %v8189
        %v8191 = vrot.slane %v8120, %v8190
        %v8192 = vmul.f32 %v8187, %v8191
        %v8193 = vadd.f32 %v8183, %v8192
        %v8194 = vrot.slane %v8117, 3
        %v8196 = vsel %vm1608, %v8194, 0.0
        %v8197 = vmul.f32 %v8196, %v7515
        %v8198 = vlaneseq
        %v8199 = vshrl.u32 %v8198, 7
        %v8200 = vsub.s32 0, %v8199
        %v8201 = vrot.slane %v8121, %v8200
        %v8202 = vmul.f32 %v8197, %v8201
        %v8203 = vadd.f32 %v8193, %v8202
        %v8204 = vld [vmem:[%s51] sm:$0xff]
        %v8205 = vld [vmem:[%s51 + $0x8] sm:$0xff]
        %v8206 = vld [vmem:[%s51 + $0x10] sm:$0xff]
        %v8207 = vld [vmem:[%s51 + $0x18] sm:$0xff]
        %v8208 = vld [vmem:[%s51 + $0x20] sm:$0xff]
        %v8209 = vld [vmem:[%s51 + $0x28] sm:$0xff]
        %v8210 = vld [vmem:[%s51 + $0x30] sm:$0xff]
        %v8211 = vld [vmem:[%s51 + $0x38] sm:$0xff]
        %v8212 = vld [vmem:[%s51 + $0x40] sm:$0xff]
        %v8213 = vld [vmem:[%s51 + $0x48] sm:$0xff]
        %v8214 = vld [vmem:[%s51 + $0x50] sm:$0xff]
        %v8215 = vld [vmem:[%s51 + $0x58] sm:$0xff]
        %v8216 = vld [vmem:[%s51 + $0x60] sm:$0xff]
        %v8217 = vld [vmem:[%s51 + $0x68] sm:$0xff]
        %v8218 = vld [vmem:[%s51 + $0x70] sm:$0xff]
        %v8219 = vld [vmem:[%s51 + $0x78] sm:$0xff]
        %8220 = vmatprep.subr.mxu0 0.0
        %8221 = vmatpush1.msra.mxu0 %v8219
        %8222 = vmatprep.subr.mxu0 0.0
        %8223 = vmatpush1.msra.mxu0 %v8218
        %8224 = vmatprep.subr.mxu0 0.0
        %8225 = vmatpush1.msra.mxu0 %v8217
        %8226 = vmatprep.subr.mxu0 0.0
        %8227 = vmatpush1.msra.mxu0 %v8216
        %8228 = vmatprep.subr.mxu0 0.0
        %8229 = vmatpush1.msra.mxu0 %v8215
        %8230 = vmatprep.subr.mxu0 0.0
        %8231 = vmatpush1.msra.mxu0 %v8214
        %8232 = vmatprep.subr.mxu0 0.0
        %8233 = vmatpush1.msra.mxu0 %v8213
        %8234 = vmatprep.subr.mxu0 0.0
        %8235 = vmatpush1.msra.mxu0 %v8212
        %8236 = vmatprep.subr.mxu0 0.0
        %8237 = vmatpush1.msra.mxu0 %v8211
        %8238 = vmatprep.subr.mxu0 0.0
        %8239 = vmatpush1.msra.mxu0 %v8210
        %8240 = vmatprep.subr.mxu0 0.0
        %8241 = vmatpush1.msra.mxu0 %v8209
        %8242 = vmatprep.subr.mxu0 0.0
        %8243 = vmatpush1.msra.mxu0 %v8208
        %8244 = vmatprep.subr.mxu0 0.0
        %8245 = vmatpush1.msra.mxu0 %v8207
        %8246 = vmatprep.subr.mxu0 0.0
        %8247 = vmatpush1.msra.mxu0 %v8206
        %8248 = vmatprep.subr.mxu0 0.0
        %8249 = vmatpush1.msra.mxu0 %v8205
        %8250 = vmatprep.subr.mxu0 0.0
        %8251 = vmatpush1.msra.mxu0 %v8204
        %8252 = vmatprep.subr.mxu0 0.0
        %8253 = vmatpush2.msra.mxu0 0.0
        %8254 = vmatprep.subr.mxu0 0.0
        %8255 = vmatpush2.msra.mxu0 0.0
        %8256 = vmatprep.subr.mxu0 0.0
        %8257 = vmatpush2.msra.mxu0 0.0
        %8258 = vmatprep.subr.mxu0 0.0
        %8259 = vmatpush2.msra.mxu0 0.0
        %8260 = vmatprep.subr.mxu0 0.0
        %8261 = vmatpush2.msra.mxu0 0.0
        %8262 = vmatprep.subr.mxu0 0.0
        %8263 = vmatpush2.msra.mxu0 0.0
        %8264 = vmatprep.subr.mxu0 0.0
        %8265 = vmatpush2.msra.mxu0 0.0
        %8266 = vmatprep.subr.mxu0 0.0
        %8267 = vmatpush2.msra.mxu0 0.0
        %8268 = vmatprep.subr.mxu0 0.0
        %8269 = vmatpush2.msra.mxu0 0.0
        %8270 = vmatprep.subr.mxu0 0.0
        %8271 = vmatpush2.msra.mxu0 0.0
        %8272 = vmatprep.subr.mxu0 0.0
        %8273 = vmatpush2.msra.mxu0 0.0
        %8274 = vmatprep.subr.mxu0 0.0
        %8275 = vmatpush2.msra.mxu0 0.0
        %8276 = vmatprep.subr.mxu0 0.0
        %8277 = vmatpush2.msra.mxu0 0.0
        %8278 = vmatprep.subr.mxu0 0.0
        %8279 = vmatpush2.msra.mxu0 0.0
        %8280 = vmatprep.subr.mxu0 0.0
        %8281 = vmatpush2.msra.mxu0 0.0
        %8282 = vmatprep.subr.mxu0 0.0
        %8283 = vmatpush2.msra.mxu0 0.0
        %8284 = vmatprep.mubr.f32.mxu0 0.0
        %8285 = vmatmul.mubr.f32.gmra.mxu0 %v8203
        %v8286 = vpop.f32.mrf.mxu0
        %v8287 = vadd.f32 0.0, %v8286
        %v8288 = vpop.f32.mrf.mxu0
        %8289 = vdwg.mxu0
        %v8290 = vld [vmem:[%s27] sm:$0xff]
        %v8291 = vld [vmem:[%s27 + $0x8] sm:$0x1]
        %v8293 = vrot.slane %v8287, 5
        %v8295 = vsel %vm1315, 0.0, %v8293
        %v8296 = vmul.f32 %v8295, %v7411
        %v8297 = vlaneseq
        %v8298 = vshrl.u32 %v8297, 7
        %v8299 = vsub.s32 0, %v8298
        %v8300 = vrot.slane %v8290, %v8299
        %v8301 = vmul.f32 %v8296, %v8300
        %v8302 = vadd.f32 %v8301, 0.0
        %v8303 = vrot.slane %v8287, 6
        %v8305 = vsel %vm7422, 0.0, %v8303
        %v8306 = vmul.f32 %v8305, %v7426
        %v8307 = vlaneseq
        %v8308 = vshrl.u32 %v8307, 7
        %v8309 = vsub.s32 1, %v8308
        %v8310 = vrot.slane %v8290, %v8309
        %v8311 = vmul.f32 %v8306, %v8310
        %v8312 = vadd.f32 %v8302, %v8311
        %v8313 = vrot.slane %v8287, 7
        %v8315 = vsel %vm1608, 0.0, %v8313
        %v8316 = vmul.f32 %v8315, %v7440
        %v8317 = vlaneseq
        %v8318 = vshrl.u32 %v8317, 7
        %v8319 = vsub.s32 2, %v8318
        %v8320 = vrot.slane %v8290, %v8319
        %v8321 = vmul.f32 %v8316, %v8320
        %v8322 = vadd.f32 %v8312, %v8321
        %v8323 = vmul.f32 %v8315, %v7451
        %v8324 = vlaneseq
        %v8325 = vshrl.u32 %v8324, 7
        %v8326 = vsub.s32 3, %v8325
        %v8327 = vrot.slane %v8290, %v8326
        %v8328 = vmul.f32 %v8323, %v8327
        %v8329 = vadd.f32 %v8322, %v8328
        %v8330 = vmul.f32 %v8287, %v7462
        %v8331 = vlaneseq
        %v8332 = vshrl.u32 %v8331, 7
        %v8333 = vsub.s32 4, %v8332
        %v8334 = vrot.slane %v8290, %v8333
        %v8335 = vmul.f32 %v8330, %v8334
        %v8336 = vadd.f32 %v8329, %v8335
        %v8337 = vrot.slane %v8287, 1
        %v8339 = vsel %vm1315, %v8337, 0.0
        %v8340 = vmul.f32 %v8339, %v7476
        %v8341 = vlaneseq
        %v8342 = vshrl.u32 %v8341, 7
        %v8343 = vsub.s32 5, %v8342
        %v8344 = vrot.slane %v8290, %v8343
        %v8345 = vmul.f32 %v8340, %v8344
        %v8346 = vadd.f32 %v8336, %v8345
        %v8347 = vmul.f32 %v8339, %v7487
        %v8348 = vlaneseq
        %v8349 = vshrl.u32 %v8348, 7
        %v8350 = vsub.s32 6, %v8349
        %v8351 = vrot.slane %v8290, %v8350
        %v8352 = vmul.f32 %v8347, %v8351
        %v8353 = vadd.f32 %v8346, %v8352
        %v8354 = vrot.slane %v8287, 2
        %v8356 = vsel %vm7422, %v8354, 0.0
        %v8357 = vmul.f32 %v8356, %v7501
        %v8358 = vlaneseq
        %v8359 = vshrl.u32 %v8358, 7
        %v8360 = vsub.s32 7, %v8359
        %v8361 = vrot.slane %v8290, %v8360
        %v8362 = vmul.f32 %v8357, %v8361
        %v8363 = vadd.f32 %v8353, %v8362
        %v8364 = vrot.slane %v8287, 3
        %v8366 = vsel %vm1608, %v8364, 0.0
        %v8367 = vmul.f32 %v8366, %v7515
        %v8368 = vlaneseq
        %v8369 = vshrl.u32 %v8368, 7
        %v8370 = vsub.s32 0, %v8369
        %v8371 = vrot.slane %v8291, %v8370
        %v8372 = vmul.f32 %v8367, %v8371
        %v8373 = vadd.f32 %v8363, %v8372
        %v8374 = vld [vmem:[%s73] sm:$0x1]
        %vm8375 = vcmask 31744
        %v8377 = vsel %vm8375, %v8374, 0
        %v8380 = vsel %vm6852, %v8373, 0
        %8382 = vmatprep.subr.mxu0 0.0
        %8383 = vmatpush1.msra.mxu0 0.0
        %8384 = vmatprep.subr.mxu0 0.0
        %8385 = vmatpush1.msra.mxu0 0.0
        %8386 = vmatprep.subr.mxu0 0.0
        %8387 = vmatpush1.msra.mxu0 0.0
        %8388 = vmatprep.subr.mxu0 0.0
        %8389 = vmatpush1.msra.mxu0 0.0
        %8390 = vmatprep.subr.mxu0 0.0
        %8391 = vmatpush1.msra.mxu0 0.0
        %8392 = vmatprep.subr.mxu0 0.0
        %8393 = vmatpush1.msra.mxu0 0.0
        %8394 = vmatprep.subr.mxu0 0.0
        %8395 = vmatpush1.msra.mxu0 0.0
        %8396 = vmatprep.subr.mxu0 0.0
        %8397 = vmatpush1.msra.mxu0 0.0
        %8398 = vmatprep.subr.mxu0 0.0
        %8399 = vmatpush1.msra.mxu0 0.0
        %8400 = vmatprep.subr.mxu0 0.0
        %8401 = vmatpush1.msra.mxu0 0.0
        %8402 = vmatprep.subr.mxu0 0.0
        %8403 = vmatpush1.msra.mxu0 0.0
        %8404 = vmatprep.subr.mxu0 0.0
        %8405 = vmatpush1.msra.mxu0 0.0
        %8406 = vmatprep.subr.mxu0 0.0
        %8407 = vmatpush1.msra.mxu0 0.0
        %8408 = vmatprep.subr.mxu0 0.0
        %8409 = vmatpush1.msra.mxu0 0.0
        %8410 = vmatprep.subr.mxu0 0.0
        %8411 = vmatpush1.msra.mxu0 0.0
        %8412 = vmatprep.subr.mxu0 0.0
        %8413 = vmatpush1.msra.mxu0 %v8380
        %8414 = vmatprep.subr.mxu0 0.0
        %8415 = vmatpush2.msra.mxu0 0.0
        %8416 = vmatprep.subr.mxu0 0.0
        %8417 = vmatpush2.msra.mxu0 0.0
        %8418 = vmatprep.subr.mxu0 0.0
        %8419 = vmatpush2.msra.mxu0 0.0
        %8420 = vmatprep.subr.mxu0 0.0
        %8421 = vmatpush2.msra.mxu0 0.0
        %8422 = vmatprep.subr.mxu0 0.0
        %8423 = vmatpush2.msra.mxu0 0.0
        %8424 = vmatprep.subr.mxu0 0.0
        %8425 = vmatpush2.msra.mxu0 0.0
        %8426 = vmatprep.subr.mxu0 0.0
        %8427 = vmatpush2.msra.mxu0 0.0
        %8428 = vmatprep.subr.mxu0 0.0
        %8429 = vmatpush2.msra.mxu0 0.0
        %8430 = vmatprep.subr.mxu0 0.0
        %8431 = vmatpush2.msra.mxu0 0.0
        %8432 = vmatprep.subr.mxu0 0.0
        %8433 = vmatpush2.msra.mxu0 0.0
        %8434 = vmatprep.subr.mxu0 0.0
        %8435 = vmatpush2.msra.mxu0 0.0
        %8436 = vmatprep.subr.mxu0 0.0
        %8437 = vmatpush2.msra.mxu0 0.0
        %8438 = vmatprep.subr.mxu0 0.0
        %8439 = vmatpush2.msra.mxu0 0.0
        %8440 = vmatprep.subr.mxu0 0.0
        %8441 = vmatpush2.msra.mxu0 0.0
        %8442 = vmatprep.subr.mxu0 0.0
        %8443 = vmatpush2.msra.mxu0 0.0
        %8444 = vmatprep.subr.mxu0 0.0
        %8445 = vmatpush2.msra.mxu0 0.0
        %8446 = vmatprep.mubr.f32.mxu0 0.0
        %8447 = vmatmul.mubr.f32.gmra.mxu0 %v8377
        %v8448 = vpop.f32.mrf.mxu0
        %v8449 = vadd.f32 0.0, %v8448
        %v8450 = vpop.f32.mrf.mxu0
        %8451 = vdwg.mxu0
        %v8452 = vld [vmem:[%s53] sm:$0xff]
        %v8453 = vld [vmem:[%s53 + $0x8] sm:$0xff]
        %v8454 = vld [vmem:[%s53 + $0x10] sm:$0xff]
        %v8455 = vld [vmem:[%s53 + $0x18] sm:$0xff]
        %v8456 = vld [vmem:[%s53 + $0x20] sm:$0xff]
        %v8457 = vld [vmem:[%s53 + $0x28] sm:$0xff]
        %v8458 = vld [vmem:[%s53 + $0x30] sm:$0xff]
        %v8459 = vld [vmem:[%s53 + $0x38] sm:$0xff]
        %v8460 = vld [vmem:[%s53 + $0x40] sm:$0xff]
        %v8461 = vld [vmem:[%s53 + $0x48] sm:$0xff]
        %v8462 = vld [vmem:[%s53 + $0x50] sm:$0xff]
        %v8463 = vld [vmem:[%s53 + $0x58] sm:$0xff]
        %v8464 = vld [vmem:[%s53 + $0x60] sm:$0xff]
        %v8465 = vld [vmem:[%s53 + $0x68] sm:$0xff]
        %v8466 = vld [vmem:[%s53 + $0x70] sm:$0xff]
        %v8467 = vld [vmem:[%s53 + $0x78] sm:$0xff]
        %v8468 = vld [vmem:[%s53 + $0x80] sm:$0xff]
        %v8469 = vld [vmem:[%s53 + $0x88] sm:$0xff]
        %v8470 = vld [vmem:[%s53 + $0x90] sm:$0xff]
        %v8471 = vld [vmem:[%s53 + $0x98] sm:$0xff]
        %v8472 = vld [vmem:[%s53 + $0xa0] sm:$0xff]
        %v8473 = vld [vmem:[%s53 + $0xa8] sm:$0xff]
        %v8474 = vld [vmem:[%s53 + $0xb0] sm:$0xff]
        %v8475 = vld [vmem:[%s53 + $0xb8] sm:$0xff]
        %v8476 = vld [vmem:[%s53 + $0xc0] sm:$0xff]
        %v8477 = vld [vmem:[%s53 + $0xc8] sm:$0xff]
        %v8478 = vld [vmem:[%s53 + $0xd0] sm:$0xff]
        %v8479 = vld [vmem:[%s53 + $0xd8] sm:$0xff]
        %v8480 = vld [vmem:[%s53 + $0xe0] sm:$0xff]
        %v8481 = vld [vmem:[%s53 + $0xe8] sm:$0xff]
        %v8482 = vld [vmem:[%s53 + $0xf0] sm:$0xff]
        %v8483 = vld [vmem:[%s53 + $0xf8] sm:$0xff]
        %8484 = vmatprep.subr.mxu0 %v8483
        %8485 = vmatpush1.msra.mxu0 %v8482
        %8486 = vmatprep.subr.mxu0 %v8481
        %8487 = vmatpush1.msra.mxu0 %v8480
        %8488 = vmatprep.subr.mxu0 %v8479
        %8489 = vmatpush1.msra.mxu0 %v8478
        %8490 = vmatprep.subr.mxu0 %v8477
        %8491 = vmatpush1.msra.mxu0 %v8476
        %8492 = vmatprep.subr.mxu0 %v8475
        %8493 = vmatpush1.msra.mxu0 %v8474
        %8494 = vmatprep.subr.mxu0 %v8473
        %8495 = vmatpush1.msra.mxu0 %v8472
        %8496 = vmatprep.subr.mxu0 %v8471
        %8497 = vmatpush1.msra.mxu0 %v8470
        %8498 = vmatprep.subr.mxu0 %v8469
        %8499 = vmatpush1.msra.mxu0 %v8468
        %8500 = vmatprep.subr.mxu0 %v8467
        %8501 = vmatpush1.msra.mxu0 %v8466
        %8502 = vmatprep.subr.mxu0 %v8465
        %8503 = vmatpush1.msra.mxu0 %v8464
        %8504 = vmatprep.subr.mxu0 %v8463
        %8505 = vmatpush1.msra.mxu0 %v8462
        %8506 = vmatprep.subr.mxu0 %v8461
        %8507 = vmatpush1.msra.mxu0 %v8460
        %8508 = vmatprep.subr.mxu0 %v8459
        %8509 = vmatpush1.msra.mxu0 %v8458
        %8510 = vmatprep.subr.mxu0 %v8457
        %8511 = vmatpush1.msra.mxu0 %v8456
        %8512 = vmatprep.subr.mxu0 %v8455
        %8513 = vmatpush1.msra.mxu0 %v8454
        %8514 = vmatprep.subr.mxu0 %v8453
        %8515 = vmatpush1.msra.mxu0 %v8452
        %8516 = vmatprep.subr.mxu0 0.0
        %8517 = vmatpush2.msra.mxu0 0.0
        %8518 = vmatprep.subr.mxu0 0.0
        %8519 = vmatpush2.msra.mxu0 0.0
        %8520 = vmatprep.subr.mxu0 0.0
        %8521 = vmatpush2.msra.mxu0 0.0
        %8522 = vmatprep.subr.mxu0 0.0
        %8523 = vmatpush2.msra.mxu0 0.0
        %8524 = vmatprep.subr.mxu0 0.0
        %8525 = vmatpush2.msra.mxu0 0.0
        %8526 = vmatprep.subr.mxu0 0.0
        %8527 = vmatpush2.msra.mxu0 0.0
        %8528 = vmatprep.subr.mxu0 0.0
        %8529 = vmatpush2.msra.mxu0 0.0
        %8530 = vmatprep.subr.mxu0 0.0
        %8531 = vmatpush2.msra.mxu0 0.0
        %8532 = vmatprep.subr.mxu0 0.0
        %8533 = vmatpush2.msra.mxu0 0.0
        %8534 = vmatprep.subr.mxu0 0.0
        %8535 = vmatpush2.msra.mxu0 0.0
        %8536 = vmatprep.subr.mxu0 0.0
        %8537 = vmatpush2.msra.mxu0 0.0
        %8538 = vmatprep.subr.mxu0 0.0
        %8539 = vmatpush2.msra.mxu0 0.0
        %8540 = vmatprep.subr.mxu0 0.0
        %8541 = vmatpush2.msra.mxu0 0.0
        %8542 = vmatprep.subr.mxu0 0.0
        %8543 = vmatpush2.msra.mxu0 0.0
        %8544 = vmatprep.subr.mxu0 0.0
        %8545 = vmatpush2.msra.mxu0 0.0
        %8546 = vmatprep.subr.mxu0 0.0
        %8547 = vmatpush2.msra.mxu0 0.0
        %8548 = vmatprep.mubr.f32.mxu0 0.0
        %8549 = vmatmul.mubr.f32.gmra.mxu0 %v8449
        %v8550 = vpop.f32.mrf.mxu0
        %v8551 = vadd.f32 0.0, %v8550
        %v8552 = vpop.f32.mrf.mxu0
        %v8553 = vadd.f32 0.0, %v8552
        %8554 = vdwg.mxu0
        %v8555 = vld [vmem:[%s29] sm:$0xff]
        %v8556 = vld [vmem:[%s29 + $0x8] sm:$0xff]
        %v8557 = vld [vmem:[%s29 + $0x10] sm:$0x1]
        %v8558 = vld [vmem:[%s29 + $0x18] sm:$0x1]
        %v8559 = vld [vmem:[%s65] sm:$0x1]
        %8561 = vset.pattern.permute.xlu0 0
        %8562 = vperm.xlu0 %8561, %v8559
        %v8563 = vpop.permute.xlu0 %8562
        %v8565 = vlaneseq
        %v8566 = vshrl.u32 %v8565, 7
        %v8567 = vsub.s32 0, %v8566
        %v8568 = vrot.slane %v8563, %v8567
        %v8569 = vmul.f32 %v8568, 0.0
        %v8570 = vmul.f32 %v8569, %v8555
        %v8571 = vmul.f32 %v8569, %v8556
        %v8572 = vadd.f32 %v8570, 0.0
        %v8573 = vadd.f32 %v8571, 0.0
        %8574 = vset.pattern.permute.xlu0 1
        %8575 = vperm.xlu0 %8574, %v8559
        %v8576 = vpop.permute.xlu0 %8575
        %v8578 = vlaneseq
        %v8579 = vshrl.u32 %v8578, 7
        %v8580 = vsub.s32 0, %v8579
        %v8581 = vrot.slane %v8576, %v8580
        %v8582 = vmul.f32 %v8581, 0.0
        %v8583 = vmul.f32 %v8582, %v8555
        %v8584 = vmul.f32 %v8582, %v8556
        %v8587 = vrot.slane %v8583, 1
        %v8588 = vrot.slane %v8584, 1
        %v8591 = vadd.f32 %v8572, %v8587
        %v8592 = vadd.f32 %v8573, %v8588
        %8593 = vset.pattern.permute.xlu0 2
        %8594 = vperm.xlu0 %8593, %v8559
        %v8595 = vpop.permute.xlu0 %8594
        %v8597 = vlaneseq
        %v8598 = vshrl.u32 %v8597, 7
        %v8599 = vsub.s32 0, %v8598
        %v8600 = vrot.slane %v8595, %v8599
        %v8601 = vmul.f32 %v8551, %v8600
        %v8602 = vmul.f32 %v8553, %v8600
        %v8605 = vrot.slane %v8555, 2
        %v8606 = vrot.slane %v8556, 2
        %v8609 = vmul.f32 %v8601, %v8605
        %v8610 = vmul.f32 %v8602, %v8606
        %v8611 = vadd.f32 %v8591, %v8609
        %v8612 = vadd.f32 %v8592, %v8610
        %8613 = vset.pattern.permute.xlu0 3
        %8614 = vperm.xlu0 %8613, %v8559
        %v8615 = vpop.permute.xlu0 %8614
        %v8617 = vlaneseq
        %v8618 = vshrl.u32 %v8617, 7
        %v8619 = vsub.s32 0, %v8618
        %v8620 = vrot.slane %v8615, %v8619
        %v8621 = vmul.f32 %v8620, 0.0
        %v8622 = vmul.f32 %v8621, %v8555
        %v8623 = vmul.f32 %v8621, %v8556
        %v8626 = vrot.slane %v8622, 3
        %v8627 = vrot.slane %v8623, 3
        %v8630 = vadd.f32 %v8611, %v8626
        %v8631 = vadd.f32 %v8612, %v8627
        %8632 = vset.pattern.permute.xlu0 4
        %8633 = vperm.xlu0 %8632, %v8559
        %v8634 = vpop.permute.xlu0 %8633
        %v8636 = vlaneseq
        %v8637 = vshrl.u32 %v8636, 7
        %v8638 = vsub.s32 0, %v8637
        %v8639 = vrot.slane %v8634, %v8638
        %v8640 = vmul.f32 %v8551, %v8639
        %v8641 = vmul.f32 %v8553, %v8639
        %v8642 = vrot.slane %v8555, 4
        %v8643 = vrot.slane %v8556, 4
        %v8646 = vmul.f32 %v8640, %v8642
        %v8647 = vmul.f32 %v8641, %v8643
        %v8648 = vadd.f32 %v8630, %v8646
        %v8649 = vadd.f32 %v8631, %v8647
        %8650 = vset.pattern.permute.xlu0 5
        %8651 = vperm.xlu0 %8650, %v8559
        %v8652 = vpop.permute.xlu0 %8651
        %v8654 = vlaneseq
        %v8655 = vshrl.u32 %v8654, 7
        %v8656 = vsub.s32 0, %v8655
        %v8657 = vrot.slane %v8652, %v8656
        %v8658 = vmul.f32 %v8657, 0.0
        %v8659 = vmul.f32 %v8658, %v8555
        %v8660 = vmul.f32 %v8658, %v8556
        %v8663 = vrot.slane %v8659, 5
        %v8664 = vrot.slane %v8660, 5
        %v8667 = vadd.f32 %v8648, %v8663
        %v8668 = vadd.f32 %v8649, %v8664
        %8669 = vset.pattern.permute.xlu0 6
        %8670 = vperm.xlu0 %8669, %v8559
        %v8671 = vpop.permute.xlu0 %8670
        %v8673 = vlaneseq
        %v8674 = vshrl.u32 %v8673, 7
        %v8675 = vsub.s32 0, %v8674
        %v8676 = vrot.slane %v8671, %v8675
        %v8677 = vmul.f32 %v8551, %v8676
        %v8678 = vmul.f32 %v8553, %v8676
        %v8679 = vrot.slane %v8555, 6
        %v8680 = vrot.slane %v8556, 6
        %v8683 = vmul.f32 %v8677, %v8679
        %v8684 = vmul.f32 %v8678, %v8680
        %v8685 = vadd.f32 %v8667, %v8683
        %v8686 = vadd.f32 %v8668, %v8684
        %8687 = vset.pattern.permute.xlu0 7
        %8688 = vperm.xlu0 %8687, %v8559
        %v8689 = vpop.permute.xlu0 %8688
        %v8691 = vlaneseq
        %v8692 = vshrl.u32 %v8691, 7
        %v8693 = vsub.s32 0, %v8692
        %v8694 = vrot.slane %v8689, %v8693
        %v8695 = vmul.f32 %v8694, 0.0
        %v8696 = vmul.f32 %v8695, %v8555
        %v8697 = vmul.f32 %v8695, %v8556
        %v8700 = vrot.slane %v8696, 7
        %v8701 = vrot.slane %v8697, 7
        %v8704 = vadd.f32 %v8685, %v8700
        %v8705 = vadd.f32 %v8686, %v8701
        %8706 = vset.pattern.permute.xlu0 8
        %8707 = vperm.xlu0 %8706, %v8559
        %v8708 = vpop.permute.xlu0 %8707
        %v8710 = vlaneseq
        %v8711 = vshrl.u32 %v8710, 7
        %v8712 = vsub.s32 0, %v8711
        %v8713 = vrot.slane %v8708, %v8712
        %v8714 = vmul.f32 %v8713, 0.0
        %v8715 = vmul.f32 %v8714, %v8557
        %v8716 = vmul.f32 %v8714, %v8558
        %v8717 = vadd.f32 %v8704, %v8715
        %v8718 = vadd.f32 %v8705, %v8716
        %v8719 = vld [vmem:[%s55] sm:$0xff]
        %v8720 = vld [vmem:[%s55 + $0x8] sm:$0xff]
        %v8721 = vld [vmem:[%s55 + $0x10] sm:$0xff]
        %v8722 = vld [vmem:[%s55 + $0x18] sm:$0xff]
        %v8723 = vld [vmem:[%s55 + $0x20] sm:$0xff]
        %v8724 = vld [vmem:[%s55 + $0x28] sm:$0xff]
        %v8725 = vld [vmem:[%s55 + $0x30] sm:$0xff]
        %v8726 = vld [vmem:[%s55 + $0x38] sm:$0xff]
        %v8727 = vld [vmem:[%s55 + $0x40] sm:$0xff]
        %v8728 = vld [vmem:[%s55 + $0x48] sm:$0xff]
        %v8729 = vld [vmem:[%s55 + $0x50] sm:$0xff]
        %v8730 = vld [vmem:[%s55 + $0x58] sm:$0xff]
        %v8731 = vld [vmem:[%s55 + $0x60] sm:$0xff]
        %v8732 = vld [vmem:[%s55 + $0x68] sm:$0xff]
        %v8733 = vld [vmem:[%s55 + $0x70] sm:$0xff]
        %v8734 = vld [vmem:[%s55 + $0x78] sm:$0xff]
        %v8735 = vld [vmem:[%s55 + $0x80] sm:$0xff]
        %v8736 = vld [vmem:[%s55 + $0x88] sm:$0xff]
        %v8737 = vld [vmem:[%s55 + $0x90] sm:$0xff]
        %v8738 = vld [vmem:[%s55 + $0x98] sm:$0xff]
        %v8739 = vld [vmem:[%s55 + $0xa0] sm:$0xff]
        %v8740 = vld [vmem:[%s55 + $0xa8] sm:$0xff]
        %v8741 = vld [vmem:[%s55 + $0xb0] sm:$0xff]
        %v8742 = vld [vmem:[%s55 + $0xb8] sm:$0xff]
        %v8743 = vld [vmem:[%s55 + $0xc0] sm:$0xff]
        %v8744 = vld [vmem:[%s55 + $0xc8] sm:$0xff]
        %v8745 = vld [vmem:[%s55 + $0xd0] sm:$0xff]
        %v8746 = vld [vmem:[%s55 + $0xd8] sm:$0xff]
        %v8747 = vld [vmem:[%s55 + $0xe0] sm:$0xff]
        %v8748 = vld [vmem:[%s55 + $0xe8] sm:$0xff]
        %v8749 = vld [vmem:[%s55 + $0xf0] sm:$0xff]
        %v8750 = vld [vmem:[%s55 + $0xf8] sm:$0xff]
        %v8751 = vld [vmem:[%s55 + $0x100] sm:$0xff]
        %v8752 = vld [vmem:[%s55 + $0x108] sm:$0xff]
        %v8753 = vld [vmem:[%s55 + $0x110] sm:$0xff]
        %v8754 = vld [vmem:[%s55 + $0x118] sm:$0xff]
        %v8755 = vld [vmem:[%s55 + $0x120] sm:$0xff]
        %v8756 = vld [vmem:[%s55 + $0x128] sm:$0xff]
        %v8757 = vld [vmem:[%s55 + $0x130] sm:$0xff]
        %v8758 = vld [vmem:[%s55 + $0x138] sm:$0xff]
        %v8759 = vld [vmem:[%s55 + $0x140] sm:$0xff]
        %v8760 = vld [vmem:[%s55 + $0x148] sm:$0xff]
        %v8761 = vld [vmem:[%s55 + $0x150] sm:$0xff]
        %v8762 = vld [vmem:[%s55 + $0x158] sm:$0xff]
        %v8763 = vld [vmem:[%s55 + $0x160] sm:$0xff]
        %v8764 = vld [vmem:[%s55 + $0x168] sm:$0xff]
        %v8765 = vld [vmem:[%s55 + $0x170] sm:$0xff]
        %v8766 = vld [vmem:[%s55 + $0x178] sm:$0xff]
        %v8767 = vld [vmem:[%s55 + $0x180] sm:$0xff]
        %v8768 = vld [vmem:[%s55 + $0x188] sm:$0xff]
        %v8769 = vld [vmem:[%s55 + $0x190] sm:$0xff]
        %v8770 = vld [vmem:[%s55 + $0x198] sm:$0xff]
        %v8771 = vld [vmem:[%s55 + $0x1a0] sm:$0xff]
        %v8772 = vld [vmem:[%s55 + $0x1a8] sm:$0xff]
        %v8773 = vld [vmem:[%s55 + $0x1b0] sm:$0xff]
        %v8774 = vld [vmem:[%s55 + $0x1b8] sm:$0xff]
        %v8775 = vld [vmem:[%s55 + $0x1c0] sm:$0xff]
        %v8776 = vld [vmem:[%s55 + $0x1c8] sm:$0xff]
        %v8777 = vld [vmem:[%s55 + $0x1d0] sm:$0xff]
        %v8778 = vld [vmem:[%s55 + $0x1d8] sm:$0xff]
        %v8779 = vld [vmem:[%s55 + $0x1e0] sm:$0xff]
        %v8780 = vld [vmem:[%s55 + $0x1e8] sm:$0xff]
        %v8781 = vld [vmem:[%s55 + $0x1f0] sm:$0xff]
        %v8782 = vld [vmem:[%s55 + $0x1f8] sm:$0xff]
        %8783 = vmatprep.subr.mxu0 %v8750
        %8784 = vmatpush1.msra.mxu0 %v8749
        %8785 = vmatprep.subr.mxu0 %v8748
        %8786 = vmatpush1.msra.mxu0 %v8747
        %8787 = vmatprep.subr.mxu0 %v8746
        %8788 = vmatpush1.msra.mxu0 %v8745
        %8789 = vmatprep.subr.mxu0 %v8744
        %8790 = vmatpush1.msra.mxu0 %v8743
        %8791 = vmatprep.subr.mxu0 %v8742
        %8792 = vmatpush1.msra.mxu0 %v8741
        %8793 = vmatprep.subr.mxu0 %v8740
        %8794 = vmatpush1.msra.mxu0 %v8739
        %8795 = vmatprep.subr.mxu0 %v8738
        %8796 = vmatpush1.msra.mxu0 %v8737
        %8797 = vmatprep.subr.mxu0 %v8736
        %8798 = vmatpush1.msra.mxu0 %v8735
        %8799 = vmatprep.subr.mxu0 %v8734
        %8800 = vmatpush1.msra.mxu0 %v8733
        %8801 = vmatprep.subr.mxu0 %v8732
        %8802 = vmatpush1.msra.mxu0 %v8731
        %8803 = vmatprep.subr.mxu0 %v8730
        %8804 = vmatpush1.msra.mxu0 %v8729
        %8805 = vmatprep.subr.mxu0 %v8728
        %8806 = vmatpush1.msra.mxu0 %v8727
        %8807 = vmatprep.subr.mxu0 %v8726
        %8808 = vmatpush1.msra.mxu0 %v8725
        %8809 = vmatprep.subr.mxu0 %v8724
        %8810 = vmatpush1.msra.mxu0 %v8723
        %8811 = vmatprep.subr.mxu0 %v8722
        %8812 = vmatpush1.msra.mxu0 %v8721
        %8813 = vmatprep.subr.mxu0 %v8720
        %8814 = vmatpush1.msra.mxu0 %v8719
        %8815 = vmatprep.subr.mxu0 %v8782
        %8816 = vmatpush2.msra.mxu0 %v8781
        %8817 = vmatprep.subr.mxu0 %v8780
        %8818 = vmatpush2.msra.mxu0 %v8779
        %8819 = vmatprep.subr.mxu0 %v8778
        %8820 = vmatpush2.msra.mxu0 %v8777
        %8821 = vmatprep.subr.mxu0 %v8776
        %8822 = vmatpush2.msra.mxu0 %v8775
        %8823 = vmatprep.subr.mxu0 %v8774
        %8824 = vmatpush2.msra.mxu0 %v8773
        %8825 = vmatprep.subr.mxu0 %v8772
        %8826 = vmatpush2.msra.mxu0 %v8771
        %8827 = vmatprep.subr.mxu0 %v8770
        %8828 = vmatpush2.msra.mxu0 %v8769
        %8829 = vmatprep.subr.mxu0 %v8768
        %8830 = vmatpush2.msra.mxu0 %v8767
        %8831 = vmatprep.subr.mxu0 %v8766
        %8832 = vmatpush2.msra.mxu0 %v8765
        %8833 = vmatprep.subr.mxu0 %v8764
        %8834 = vmatpush2.msra.mxu0 %v8763
        %8835 = vmatprep.subr.mxu0 %v8762
        %8836 = vmatpush2.msra.mxu0 %v8761
        %8837 = vmatprep.subr.mxu0 %v8760
        %8838 = vmatpush2.msra.mxu0 %v8759
        %8839 = vmatprep.subr.mxu0 %v8758
        %8840 = vmatpush2.msra.mxu0 %v8757
        %8841 = vmatprep.subr.mxu0 %v8756
        %8842 = vmatpush2.msra.mxu0 %v8755
        %8843 = vmatprep.subr.mxu0 %v8754
        %8844 = vmatpush2.msra.mxu0 %v8753
        %8845 = vmatprep.subr.mxu0 %v8752
        %8846 = vmatpush2.msra.mxu0 %v8751
        %8847 = vmatprep.mubr.f32.mxu0 %v8718
        %8848 = vmatmul.mubr.f32.gmra.mxu0 %v8717
        %v8849 = vpop.f32.mrf.mxu0
        %v8850 = vadd.f32 0.0, %v8849
        %v8851 = vpop.f32.mrf.mxu0
        %v8852 = vadd.f32 0.0, %v8851
        %8853 = vdwg.mxu0
        %v8854 = vadd.f32 %v8850, 0.0
        %v8855 = vadd.f32 %v8852, 0.0
        %v8856 = vld [vmem:[%s75] sm:$0xff]
        %v8857 = vld [vmem:[%s75 + $0x8] sm:$0xff]
        %v8858 = vld [vmem:[%s75 + $0x10] sm:$0xff]
        %v8859 = vld [vmem:[%s75 + $0x18] sm:$0xff]
        %v8860 = vld [vmem:[%s75 + $0x20] sm:$0xff]
        %v8861 = vld [vmem:[%s75 + $0x28] sm:$0xff]
        %v8862 = vld [vmem:[%s75 + $0x30] sm:$0xff]
        %v8863 = vld [vmem:[%s75 + $0x38] sm:$0xff]
        %v8864 = vld [vmem:[%s75 + $0x40] sm:$0xff]
        %v8865 = vld [vmem:[%s75 + $0x48] sm:$0xff]
        %v8866 = vld [vmem:[%s75 + $0x50] sm:$0xff]
        %v8867 = vld [vmem:[%s75 + $0x58] sm:$0xff]
        %v8868 = vld [vmem:[%s75 + $0x60] sm:$0xff]
        %v8869 = vld [vmem:[%s75 + $0x68] sm:$0xff]
        %v8870 = vld [vmem:[%s75 + $0x70] sm:$0xff]
        %v8871 = vld [vmem:[%s75 + $0x78] sm:$0xff]
        %v8872 = vld [vmem:[%s75 + $0x80] sm:$0xff]
        %v8873 = vld [vmem:[%s75 + $0x88] sm:$0xff]
        %v8874 = vld [vmem:[%s75 + $0x90] sm:$0xff]
        %v8875 = vld [vmem:[%s75 + $0x98] sm:$0xff]
        %v8876 = vld [vmem:[%s75 + $0xa0] sm:$0xff]
        %v8877 = vld [vmem:[%s75 + $0xa8] sm:$0xff]
        %v8878 = vld [vmem:[%s75 + $0xb0] sm:$0xff]
        %v8879 = vld [vmem:[%s75 + $0xb8] sm:$0xff]
        %v8880 = vld [vmem:[%s75 + $0xc0] sm:$0xff]
        %v8881 = vld [vmem:[%s75 + $0xc8] sm:$0xff]
        %v8882 = vld [vmem:[%s75 + $0xd0] sm:$0xff]
        %v8883 = vld [vmem:[%s75 + $0xd8] sm:$0xff]
        %v8884 = vld [vmem:[%s75 + $0xe0] sm:$0xff]
        %v8885 = vld [vmem:[%s75 + $0xe8] sm:$0xff]
        %v8886 = vld [vmem:[%s75 + $0xf0] sm:$0xff]
        %v8887 = vld [vmem:[%s75 + $0xf8] sm:$0xff]
        %v8888 = vld [vmem:[%s77] sm:$0x1]
        %8889 = vmatprep.subr.mxu0 0.0
        %8890 = vmatpush1.msra.mxu0 %v8871
        %8891 = vmatprep.subr.mxu0 0.0
        %8892 = vmatpush1.msra.mxu0 %v8870
        %8893 = vmatprep.subr.mxu0 0.0
        %8894 = vmatpush1.msra.mxu0 %v8869
        %8895 = vmatprep.subr.mxu0 0.0
        %8896 = vmatpush1.msra.mxu0 %v8868
        %8897 = vmatprep.subr.mxu0 0.0
        %8898 = vmatpush1.msra.mxu0 %v8867
        %8899 = vmatprep.subr.mxu0 0.0
        %8900 = vmatpush1.msra.mxu0 %v8866
        %8901 = vmatprep.subr.mxu0 0.0
        %8902 = vmatpush1.msra.mxu0 %v8865
        %8903 = vmatprep.subr.mxu0 0.0
        %8904 = vmatpush1.msra.mxu0 %v8864
        %8905 = vmatprep.subr.mxu0 0.0
        %8906 = vmatpush1.msra.mxu0 %v8863
        %8907 = vmatprep.subr.mxu0 0.0
        %8908 = vmatpush1.msra.mxu0 %v8862
        %8909 = vmatprep.subr.mxu0 0.0
        %8910 = vmatpush1.msra.mxu0 %v8861
        %8911 = vmatprep.subr.mxu0 0.0
        %8912 = vmatpush1.msra.mxu0 %v8860
        %8913 = vmatprep.subr.mxu0 0.0
        %8914 = vmatpush1.msra.mxu0 %v8859
        %8915 = vmatprep.subr.mxu0 0.0
        %8916 = vmatpush1.msra.mxu0 %v8858
        %8917 = vmatprep.subr.mxu0 0.0
        %8918 = vmatpush1.msra.mxu0 %v8857
        %8919 = vmatprep.subr.mxu0 0.0
        %8920 = vmatpush1.msra.mxu0 %v8856
        %8921 = vmatprep.subr.mxu0 0.0
        %8922 = vmatpush2.msra.mxu0 %v8887
        %8923 = vmatprep.subr.mxu0 0.0
        %8924 = vmatpush2.msra.mxu0 %v8886
        %8925 = vmatprep.subr.mxu0 0.0
        %8926 = vmatpush2.msra.mxu0 %v8885
        %8927 = vmatprep.subr.mxu0 0.0
        %8928 = vmatpush2.msra.mxu0 %v8884
        %8929 = vmatprep.subr.mxu0 0.0
        %8930 = vmatpush2.msra.mxu0 %v8883
        %8931 = vmatprep.subr.mxu0 0.0
        %8932 = vmatpush2.msra.mxu0 %v8882
        %8933 = vmatprep.subr.mxu0 0.0
        %8934 = vmatpush2.msra.mxu0 %v8881
        %8935 = vmatprep.subr.mxu0 0.0
        %8936 = vmatpush2.msra.mxu0 %v8880
        %8937 = vmatprep.subr.mxu0 0.0
        %8938 = vmatpush2.msra.mxu0 %v8879
        %8939 = vmatprep.subr.mxu0 0.0
        %8940 = vmatpush2.msra.mxu0 %v8878
        %8941 = vmatprep.subr.mxu0 0.0
        %8942 = vmatpush2.msra.mxu0 %v8877
        %8943 = vmatprep.subr.mxu0 0.0
        %8944 = vmatpush2.msra.mxu0 %v8876
        %8945 = vmatprep.subr.mxu0 0.0
        %8946 = vmatpush2.msra.mxu0 %v8875
        %8947 = vmatprep.subr.mxu0 0.0
        %8948 = vmatpush2.msra.mxu0 %v8874
        %8949 = vmatprep.subr.mxu0 0.0
        %8950 = vmatpush2.msra.mxu0 %v8873
        %8951 = vmatprep.subr.mxu0 0.0
        %8952 = vmatpush2.msra.mxu0 %v8872
        %8953 = vmatprep.mubr.f32.mxu0 %v8855
        %8954 = vmatmul.mubr.f32.gmra.mxu0 %v8854
        %v8955 = vpop.f32.mrf.mxu0
        %v8956 = vadd.f32 %v8888, %v8955
        %v8957 = vpop.f32.mrf.mxu0
        %8958 = vdwg.mxu0
        %vm8959 = vcmask 8192
        %8960 = vst.msk [vmem:[%s1175] sm:$0x1] %vm8959, %v8956
        %s8961 = sand.u32 %s925, 1
        %s8962 = scalar_lea.sflag [#allocation3], %s8961
        %s8963 = sand.u32 %s925, 1
        %s8964 = scalar_lea.vmem [#allocation2], %s8963
        // Predicated region
        $region177: #{tinyml_mobilenetv1_forward.1} parent=175 // pred_check
          %p8965 = pneg %p935
        $region178: #{tinyml_mobilenetv1_forward.1} parent=175 // pred_check_branch
          %8967 = sbr.rel (%p8965) target = $region180
        $region179: #{tinyml_mobilenetv1_forward.1} parent=175 // pred_region
          %s8969 = ssub.s32 16, 16
          %8970 = vsyncadd %s8962, %s8969
          %s8971 = smul.addr %s93, 16
          %s8972 = scalar_lea.hbm %s79, %s8971
          %s8974 = sshll.u32 %s8964, 4
          %s8975 = int_to_ptr.vmem [resolvable:$true] %s8974
          %8977 = dma.vmem_to_hbm [thread:$0]  %s8975, 16, %s8972, %s8962
        $region180: #{tinyml_mobilenetv1_forward.1} parent=175 // pred_fallthru
          _
      $region176: #{tinyml_mobilenetv1_forward.1} parent=5 // pred_fallthru
        _
      %p8978 = scmp.le.s32.totalorder 2, %s88
      // Predicated region
      $region181: #{tinyml_mobilenetv1_forward.1} parent=5 // pred_check
        %p8979 = pneg %p8978
      $region182: #{tinyml_mobilenetv1_forward.1} parent=5 // pred_check_branch
        %8981 = sbr.rel (%p8979) target = $region184
      $region183: #{tinyml_mobilenetv1_forward.1} parent=5 // pred_region
        %s8982 = ssub.s32 %s88, 2
        // Predicated region
        $region185: #{tinyml_mobilenetv1_forward.1} parent=183 // pred_check
          %p8983 = pneg %p941
        $region186: #{tinyml_mobilenetv1_forward.1} parent=183 // pred_check_branch
          %8985 = sbr.rel (%p8983) target = $region188
        $region187: #{tinyml_mobilenetv1_forward.1} parent=183 // pred_region
          %s8986 = sand.u32 %s926, 1
          %s8987 = scalar_lea.sflag [#allocation3], %s8986
          %s8988 = sand.u32 %s926, 1
          %s8989 = scalar_lea.vmem [#allocation2], %s8988
          %8990 = dma.done %s8987, 16
        $region188: #{tinyml_mobilenetv1_forward.1} parent=183 // pred_fallthru
          _
      $region184: #{tinyml_mobilenetv1_forward.1} parent=5 // pred_fallthru
        _
    $region6: #{tinyml_mobilenetv1_forward.1} parent=1 // loop_footer
      %s92 = sadd.s32 1, %s88
    $region7: #{tinyml_mobilenetv1_forward.1} parent=1 // loop_footer_branch
      %87 = sbr.rel target = $region3
    $region8: #{tinyml_mobilenetv1_forward.1} parent=1 // loop_exit
      _
    %8991 = vsyncpa [#allocation3], 1
    %s8992 = scalar_lea.sflag [#allocation3], 1
    %8993 = vsyncpa %s8992, 1

</llo_original>
